<compile_context>
chip_gen: v5e
topology: v5e:2x2
jax: 0.10.0
libtpu: 0.0.40
codegen_flags: <defaults>
</compile_context>

<pallas_src>
import functools

import jax
import jax.numpy as jnp
import numpy as np
from jax.experimental import pallas as pl
from jax.experimental.pallas import tpu as pltpu


# ----------------------------------------------------------------------------
# Pallas kernel
# ----------------------------------------------------------------------------
def _grid_kernel(coords_ref, feat_ref, out_ref, *, Z, N, C):
    c = coords_ref[...]                                  # (3, TP) float32
    TP = c.shape[1]

    # Per-point scalars as (1, TP) lane-dense vectors.
    z = jnp.clip(c[0:1, :], 0.0, Z - 1.0)
    x = jnp.clip(c[1:2, :], 0.0, N - 1.0)
    y = jnp.clip(c[2:3, :], 0.0, N - 1.0)

    z0f, x0f, y0f = jnp.floor(z), jnp.floor(x), jnp.floor(y)
    z0 = z0f.astype(jnp.int32)
    x0 = x0f.astype(jnp.int32)
    y0 = y0f.astype(jnp.int32)
    z1 = jnp.minimum(z0 + 1, Z - 1)
    x1 = jnp.minimum(x0 + 1, N - 1)
    y1 = jnp.minimum(y0 + 1, N - 1)

    wz1 = z - z0f
    wx1 = x - x0f
    wy1 = y - y0f
    wz0 = 1.0 - wz1
    wx0 = 1.0 - wx1
    wy0 = 1.0 - wy1

    # ---- Stage 1: weighted one-hot over the zx-plane, (Z*N, TP), 4 corners.
    # Coincident clamped corners carry zero weight, so the sum stays correct.
    iota_zx = jax.lax.broadcasted_iota(jnp.int32, (Z * N, TP), 0)

    def corner(zi, xi, w):
        return jnp.where(iota_zx == zi * N + xi, w, 0.0)

    Wzx = (corner(z0, x0, wz0 * wx0) + corner(z0, x1, wz0 * wx1)
           + corner(z1, x0, wz1 * wx0) + corner(z1, x1, wz1 * wx1))

    # MXU gather: (C*N, Z*N) @ (Z*N, TP) -> (C*N, TP); row = c*N + y.
    # HIGHEST keeps ~f32 accuracy; the matmul is tiny after factorization
    # (K = Z*N = 128), so the extra passes are negligible.
    R = jnp.dot(feat_ref[...], Wzx,
                preferred_element_type=jnp.float32,
                precision=jax.lax.Precision.HIGHEST)

    # ---- Stage 2: resolve y0/y1 with a small (N, TP) select + sublane reduce.
    iota_y = jax.lax.broadcasted_iota(jnp.int32, (N, TP), 0)
    Wy = (jnp.where(iota_y == y0, wy0, 0.0)
          + jnp.where(iota_y == y1, wy1, 0.0))            # (N, TP)

    ch = [jnp.sum(R[i * N:(i + 1) * N, :] * Wy, axis=0, keepdims=True)
          for i in range(C)]                               # each (1, TP)
    a_raw, nz_raw, nx_raw, ny_raw = ch

    # ELU (alpha = 1) on the albedo channel.
    albedo = jnp.where(a_raw > 0.0, a_raw, jnp.exp(a_raw) - 1.0)

    # tanh + base_normal ([-1, 0, 0]) then L2-normalize (F.normalize, eps=1e-12).
    nz = jnp.tanh(nz_raw) - 1.0
    nx = jnp.tanh(nx_raw)
    ny = jnp.tanh(ny_raw)
    inv = jax.lax.rsqrt(jnp.maximum(nz * nz + nx * nx + ny * ny, 1e-24))

    out_ref[0:1, :] = albedo
    out_ref[1:2, :] = nz * inv
    out_ref[2:3, :] = nx * inv
    out_ref[3:4, :] = ny * inv


# ----------------------------------------------------------------------------
# Wrapper
# ----------------------------------------------------------------------------
def reconstruction_grid_forward(coords, albedo_grid, normal_grid, *, tile_p=1024):
    """coords: (P, 3) float; albedo_grid: (Z, N, N); normal_grid: (Z, N, N, 3)."""
    Z, N, _ = albedo_grid.shape
    C = 4
    P = coords.shape[0]
    P_pad = ((P + tile_p - 1) // tile_p) * tile_p

    # Feature table, lane-dense: (C*N, Z*N); row = c*N + y, col = z*N + x.
    grid4 = jnp.concatenate(
        [albedo_grid[..., None].astype(jnp.float32),
         normal_grid.astype(jnp.float32)], axis=-1)       # (Z, N, N, C) = (z,x,y,c)
    feat = jnp.transpose(grid4, (3, 2, 0, 1)).reshape(C * N, Z * N)

    # Coords transposed: (3, P_pad), points on the lane axis.
    coords_t = jnp.zeros((3, P_pad), jnp.float32).at[:, :P].set(
        coords.astype(jnp.float32).T)

    kernel = functools.partial(_grid_kernel, Z=Z, N=N, C=C)
    out = pl.pallas_call(
        kernel,
        out_shape=jax.ShapeDtypeStruct((C, P_pad), jnp.float32),
        grid_spec=pltpu.PrefetchScalarGridSpec(
            num_scalar_prefetch=0,
            grid=(P_pad // tile_p,),
            in_specs=[
                pl.BlockSpec((3, tile_p), lambda i: (0, i)),        # coords tile
                pl.BlockSpec((C * N, Z * N), lambda i: (0, 0)),     # feature table
            ],
            out_specs=pl.BlockSpec((C, tile_p), lambda i: (0, i)),  # fused output
        ),
        compiler_params=pltpu.CompilerParams(
            dimension_semantics=("parallel",)),
    )(coords_t, feat)

    albedo = out[0, :P]
    normal = out[1:4, :P].T
    return albedo, normal


# ----------------------------------------------------------------------------
# Pure-JAX reference (for correctness check)
# ----------------------------------------------------------------------------
def _trilinear_devoxelize_ref(grid, coords):
    # grid: (Z, N, N, C), coords: (P, 3) -> (P, C)
    Z, N, _, _ = grid.shape
    z = jnp.clip(coords[:, 0], 0.0, Z - 1.0)
    x = jnp.clip(coords[:, 1], 0.0, N - 1.0)
    y = jnp.clip(coords[:, 2], 0.0, N - 1.0)
    z0 = jnp.floor(z).astype(jnp.int32)
    x0 = jnp.floor(x).astype(jnp.int32)
    y0 = jnp.floor(y).astype(jnp.int32)
    z1 = jnp.minimum(z0 + 1, Z - 1)
    x1 = jnp.minimum(x0 + 1, N - 1)
    y1 = jnp.minimum(y0 + 1, N - 1)
    wz1 = (z - z0)[:, None]
    wx1 = (x - x0)[:, None]
    wy1 = (y - y0)[:, None]
    wz0, wx0, wy0 = 1 - wz1, 1 - wx1, 1 - wy1
    out = 0.0
    for zi, wz in ((z0, wz0), (z1, wz1)):
        for xi, wx in ((x0, wx0), (x1, wx1)):
            for yi, wy in ((y0, wy0), (y1, wy1)):
                out = out + grid[zi, xi, yi] * (wz * wx * wy)
    return out


def _forward_ref(coords, albedo_grid, normal_grid):
    a = _trilinear_devoxelize_ref(albedo_grid[..., None], coords)[:, 0]
    a = jnp.where(a > 0.0, a, jnp.expm1(a))
    n = _trilinear_devoxelize_ref(normal_grid, coords)
    n = jnp.tanh(n) + jnp.array([-1.0, 0.0, 0.0], jnp.float32)
    n = n / jnp.maximum(jnp.linalg.norm(n, axis=-1, keepdims=True), 1e-12)
    return a, n


# ----------------------------------------------------------------------------
# Main
# ----------------------------------------------------------------------------
if __name__ == "__main__":
    # Module config (small): init_resolution = (Z, N) = (8, 16), init_scale = 1.0
    Z, N = 8, 16
    init_scale = 1.0
    P = 2000   # non-multiple of tile_p -> exercises padding; grid length 2

    key = jax.random.PRNGKey(0)
    k_alb, k_coords, k_nrm = jax.random.split(key, 3)

    # Faithful parameter init (per __init__): albedo ~ U[0,1)*scale, normal = 0.
    albedo_grid = jax.random.uniform(k_alb, (Z, N, N), jnp.float32) * init_scale
    normal_grid = jnp.zeros((Z, N, N, 3), jnp.float32)

    # coords: (P, 3) in voxel-index space (z, x, y).
    coords = jax.random.uniform(k_coords, (P, 3), jnp.float32) * jnp.array(
        [Z - 1.0, N - 1.0, N - 1.0], jnp.float32)

    albedo, normal = reconstruction_grid_forward(coords, albedo_grid, normal_grid)
    jax.block_until_ready((albedo, normal))

    # Correctness check vs pure-JAX reference (faithful init).
    a_ref, n_ref = _forward_ref(coords, albedo_grid, normal_grid)
    np.testing.assert_allclose(np.asarray(albedo), np.asarray(a_ref),
                               rtol=1e-5, atol=1e-5)
    np.testing.assert_allclose(np.asarray(normal), np.asarray(n_ref),
                               rtol=1e-5, atol=1e-5)

    # Extra validation run with a non-trivial normal grid to exercise the
    # tanh + normalize path (init normal is zeros in the module).
    normal_grid2 = 0.5 * jax.random.normal(k_nrm, (Z, N, N, 3), jnp.float32)
    albedo2, normal2 = reconstruction_grid_forward(coords, albedo_grid, normal_grid2)
    jax.block_until_ready((albedo2, normal2))
    a_ref2, n_ref2 = _forward_ref(coords, albedo_grid, normal_grid2)
    np.testing.assert_allclose(np.asarray(albedo2), np.asarray(a_ref2),
                               rtol=1e-5, atol=1e-5)
    np.testing.assert_allclose(np.asarray(normal2), np.asarray(n_ref2),
                               rtol=1e-5, atol=1e-5)

    print("KERNEL_OK")
</pallas_src>

<mosaic_0001>
module attributes {stable_mosaic.version = 11 : i64} {
  func.func @_grid_kernel(%arg0: i32, %arg1: memref<3x1024xf32, #tpu.memory_space<vmem>>, %arg2: memref<64x128xf32, #tpu.memory_space<vmem>>, %arg3: memref<4x1024xf32, #tpu.memory_space<vmem>>) attributes {dimension_semantics = [#tpu.dimension_semantics<parallel>], iteration_bounds = array<i64: 2>, scalar_prefetch = 0 : i64, scratch_operands = 0 : i64, tpu.core_type = #tpu.core_type<tc>, window_params = [{transform_indices = @transform_0, window_bounds = array<i64: 3, 1024>}, {pipeline_mode = #tpu.pipeline_mode<synchronous>, transform_indices = @transform_1, window_bounds = array<i64: 64, 128>}, {transform_indices = @transform_2, window_bounds = array<i64: 4, 1024>}]} {
    %c0 = arith.constant 0 : index
    %c0_0 = arith.constant 0 : index
    %0 = vector.load %arg1[%c0, %c0_0] : memref<3x1024xf32, #tpu.memory_space<vmem>>, vector<3x1024xf32>
    %1 = vector.extract_strided_slice %0 {offsets = [0, 0], sizes = [1, 1024], strides = [1, 1]} : vector<3x1024xf32> to vector<1x1024xf32>
    %cst = arith.constant 0.000000e+00 : f32
    %cst_1 = arith.constant 7.000000e+00 : f32
    %2 = vector.broadcast %cst : f32 to vector<1x1024xf32>
    %3 = arith.maximumf %2, %1 : vector<1x1024xf32>
    %4 = vector.broadcast %cst_1 : f32 to vector<1x1024xf32>
    %5 = arith.minimumf %4, %3 : vector<1x1024xf32>
    %6 = vector.extract_strided_slice %0 {offsets = [1, 0], sizes = [1, 1024], strides = [1, 1]} : vector<3x1024xf32> to vector<1x1024xf32>
    %cst_2 = arith.constant 0.000000e+00 : f32
    %cst_3 = arith.constant 1.500000e+01 : f32
    %7 = vector.broadcast %cst_2 : f32 to vector<1x1024xf32>
    %8 = arith.maximumf %7, %6 : vector<1x1024xf32>
    %9 = vector.broadcast %cst_3 : f32 to vector<1x1024xf32>
    %10 = arith.minimumf %9, %8 : vector<1x1024xf32>
    %11 = vector.extract_strided_slice %0 {offsets = [2, 0], sizes = [1, 1024], strides = [1, 1]} : vector<3x1024xf32> to vector<1x1024xf32>
    %cst_4 = arith.constant 0.000000e+00 : f32
    %cst_5 = arith.constant 1.500000e+01 : f32
    %12 = vector.broadcast %cst_4 : f32 to vector<1x1024xf32>
    %13 = arith.maximumf %12, %11 : vector<1x1024xf32>
    %14 = vector.broadcast %cst_5 : f32 to vector<1x1024xf32>
    %15 = arith.minimumf %14, %13 : vector<1x1024xf32>
    %16 = math.floor %5 : vector<1x1024xf32>
    %17 = math.floor %10 : vector<1x1024xf32>
    %18 = math.floor %15 : vector<1x1024xf32>
    %19 = arith.fptosi %16 : vector<1x1024xf32> to vector<1x1024xi32>
    %20 = arith.fptosi %17 : vector<1x1024xf32> to vector<1x1024xi32>
    %21 = arith.fptosi %18 : vector<1x1024xf32> to vector<1x1024xi32>
    %c1_i32 = arith.constant 1 : i32
    %22 = vector.broadcast %c1_i32 : i32 to vector<1x1024xi32>
    %23 = arith.addi %19, %22 : vector<1x1024xi32>
    %c7_i32 = arith.constant 7 : i32
    %24 = vector.broadcast %c7_i32 : i32 to vector<1x1024xi32>
    %25 = arith.minsi %23, %24 : vector<1x1024xi32>
    %c1_i32_6 = arith.constant 1 : i32
    %26 = vector.broadcast %c1_i32_6 : i32 to vector<1x1024xi32>
    %27 = arith.addi %20, %26 : vector<1x1024xi32>
    %c15_i32 = arith.constant 15 : i32
    %28 = vector.broadcast %c15_i32 : i32 to vector<1x1024xi32>
    %29 = arith.minsi %27, %28 : vector<1x1024xi32>
    %c1_i32_7 = arith.constant 1 : i32
    %30 = vector.broadcast %c1_i32_7 : i32 to vector<1x1024xi32>
    %31 = arith.addi %21, %30 : vector<1x1024xi32>
    %c15_i32_8 = arith.constant 15 : i32
    %32 = vector.broadcast %c15_i32_8 : i32 to vector<1x1024xi32>
    %33 = arith.minsi %31, %32 : vector<1x1024xi32>
    %34 = arith.subf %5, %16 : vector<1x1024xf32>
    %35 = arith.subf %10, %17 : vector<1x1024xf32>
    %36 = arith.subf %15, %18 : vector<1x1024xf32>
    %cst_9 = arith.constant 1.000000e+00 : f32
    %37 = vector.broadcast %cst_9 : f32 to vector<1x1024xf32>
    %38 = arith.subf %37, %34 : vector<1x1024xf32>
    %cst_10 = arith.constant 1.000000e+00 : f32
    %39 = vector.broadcast %cst_10 : f32 to vector<1x1024xf32>
    %40 = arith.subf %39, %35 : vector<1x1024xf32>
    %cst_11 = arith.constant 1.000000e+00 : f32
    %41 = vector.broadcast %cst_11 : f32 to vector<1x1024xf32>
    %42 = arith.subf %41, %36 : vector<1x1024xf32>
    %43 = tpu.iota {dimensions = array<i32: 0>} : vector<128x1024xi32>
    %44 = arith.mulf %38, %40 : vector<1x1024xf32>
    %c16_i32 = arith.constant 16 : i32
    %45 = vector.broadcast %c16_i32 : i32 to vector<1x1024xi32>
    %46 = arith.muli %19, %45 : vector<1x1024xi32>
    %47 = arith.addi %46, %20 : vector<1x1024xi32>
    %48 = vector.broadcast %47 : vector<1x1024xi32> to vector<128x1024xi32>
    %49 = arith.cmpi eq, %43, %48 : vector<128x1024xi32>
    %cst_12 = arith.constant 0.000000e+00 : f32
    %50 = vector.shape_cast %44 : vector<1x1024xf32> to vector<1x1024xf32>
    %51 = vector.broadcast %50 : vector<1x1024xf32> to vector<128x1024xf32>
    %52 = vector.broadcast %cst_12 : f32 to vector<128x1024xf32>
    %53 = arith.select %49, %51, %52 : vector<128x1024xi1>, vector<128x1024xf32>
    %54 = arith.mulf %38, %35 : vector<1x1024xf32>
    %c16_i32_13 = arith.constant 16 : i32
    %55 = vector.broadcast %c16_i32_13 : i32 to vector<1x1024xi32>
    %56 = arith.muli %19, %55 : vector<1x1024xi32>
    %57 = arith.addi %56, %29 : vector<1x1024xi32>
    %58 = vector.broadcast %57 : vector<1x1024xi32> to vector<128x1024xi32>
    %59 = arith.cmpi eq, %43, %58 : vector<128x1024xi32>
    %cst_14 = arith.constant 0.000000e+00 : f32
    %60 = vector.shape_cast %54 : vector<1x1024xf32> to vector<1x1024xf32>
    %61 = vector.broadcast %60 : vector<1x1024xf32> to vector<128x1024xf32>
    %62 = vector.broadcast %cst_14 : f32 to vector<128x1024xf32>
    %63 = arith.select %59, %61, %62 : vector<128x1024xi1>, vector<128x1024xf32>
    %64 = arith.addf %53, %63 : vector<128x1024xf32>
    %65 = arith.mulf %34, %40 : vector<1x1024xf32>
    %c16_i32_15 = arith.constant 16 : i32
    %66 = vector.broadcast %c16_i32_15 : i32 to vector<1x1024xi32>
    %67 = arith.muli %25, %66 : vector<1x1024xi32>
    %68 = arith.addi %67, %20 : vector<1x1024xi32>
    %69 = vector.broadcast %68 : vector<1x1024xi32> to vector<128x1024xi32>
    %70 = arith.cmpi eq, %43, %69 : vector<128x1024xi32>
    %cst_16 = arith.constant 0.000000e+00 : f32
    %71 = vector.shape_cast %65 : vector<1x1024xf32> to vector<1x1024xf32>
    %72 = vector.broadcast %71 : vector<1x1024xf32> to vector<128x1024xf32>
    %73 = vector.broadcast %cst_16 : f32 to vector<128x1024xf32>
    %74 = arith.select %70, %72, %73 : vector<128x1024xi1>, vector<128x1024xf32>
    %75 = arith.addf %64, %74 : vector<128x1024xf32>
    %76 = arith.mulf %34, %35 : vector<1x1024xf32>
    %c16_i32_17 = arith.constant 16 : i32
    %77 = vector.broadcast %c16_i32_17 : i32 to vector<1x1024xi32>
    %78 = arith.muli %25, %77 : vector<1x1024xi32>
    %79 = arith.addi %78, %29 : vector<1x1024xi32>
    %80 = vector.broadcast %79 : vector<1x1024xi32> to vector<128x1024xi32>
    %81 = arith.cmpi eq, %43, %80 : vector<128x1024xi32>
    %cst_18 = arith.constant 0.000000e+00 : f32
    %82 = vector.shape_cast %76 : vector<1x1024xf32> to vector<1x1024xf32>
    %83 = vector.broadcast %82 : vector<1x1024xf32> to vector<128x1024xf32>
    %84 = vector.broadcast %cst_18 : f32 to vector<128x1024xf32>
    %85 = arith.select %81, %83, %84 : vector<128x1024xi1>, vector<128x1024xf32>
    %86 = arith.addf %75, %85 : vector<128x1024xf32>
    %c0_19 = arith.constant 0 : index
    %c0_20 = arith.constant 0 : index
    %87 = vector.load %arg2[%c0_19, %c0_20] : memref<64x128xf32, #tpu.memory_space<vmem>>, vector<64x128xf32>
    %cst_21 = arith.constant dense<0.000000e+00> : vector<64x1024xf32>
    %88 = tpu.matmul %87, %86, %cst_21 {dimension_numbers = #tpu.dot_dimension_numbers<[1], [0], [0], [1], [0, 0, 1, 1], [], []>, precision = #tpu.contract_precision<fp32>} : vector<64x128xf32>, vector<128x1024xf32>, vector<64x1024xf32> -> vector<64x1024xf32>
    %89 = tpu.iota {dimensions = array<i32: 0>} : vector<16x1024xi32>
    %90 = vector.broadcast %21 : vector<1x1024xi32> to vector<16x1024xi32>
    %91 = arith.cmpi eq, %89, %90 : vector<16x1024xi32>
    %cst_22 = arith.constant 0.000000e+00 : f32
    %92 = vector.shape_cast %42 : vector<1x1024xf32> to vector<1x1024xf32>
    %93 = vector.broadcast %92 : vector<1x1024xf32> to vector<16x1024xf32>
    %94 = vector.broadcast %cst_22 : f32 to vector<16x1024xf32>
    %95 = arith.select %91, %93, %94 : vector<16x1024xi1>, vector<16x1024xf32>
    %96 = vector.broadcast %33 : vector<1x1024xi32> to vector<16x1024xi32>
    %97 = arith.cmpi eq, %89, %96 : vector<16x1024xi32>
    %cst_23 = arith.constant 0.000000e+00 : f32
    %98 = vector.shape_cast %36 : vector<1x1024xf32> to vector<1x1024xf32>
    %99 = vector.broadcast %98 : vector<1x1024xf32> to vector<16x1024xf32>
    %100 = vector.broadcast %cst_23 : f32 to vector<16x1024xf32>
    %101 = arith.select %97, %99, %100 : vector<16x1024xi1>, vector<16x1024xf32>
    %102 = arith.addf %95, %101 : vector<16x1024xf32>
    %103 = vector.extract_strided_slice %88 {offsets = [0, 0], sizes = [16, 1024], strides = [1, 1]} : vector<64x1024xf32> to vector<16x1024xf32>
    %104 = arith.mulf %103, %102 : vector<16x1024xf32>
    %cst_24 = arith.constant dense<0.000000e+00> : vector<1024xf32>
    %105 = vector.multi_reduction <add>, %104, %cst_24 [0] : vector<16x1024xf32> to vector<1024xf32>
    %106 = vector.shape_cast %105 : vector<1024xf32> to vector<1x1024xf32>
    %107 = vector.extract_strided_slice %88 {offsets = [16, 0], sizes = [16, 1024], strides = [1, 1]} : vector<64x1024xf32> to vector<16x1024xf32>
    %108 = arith.mulf %107, %102 : vector<16x1024xf32>
    %cst_25 = arith.constant dense<0.000000e+00> : vector<1024xf32>
    %109 = vector.multi_reduction <add>, %108, %cst_25 [0] : vector<16x1024xf32> to vector<1024xf32>
    %110 = vector.shape_cast %109 : vector<1024xf32> to vector<1x1024xf32>
    %111 = vector.extract_strided_slice %88 {offsets = [32, 0], sizes = [16, 1024], strides = [1, 1]} : vector<64x1024xf32> to vector<16x1024xf32>
    %112 = arith.mulf %111, %102 : vector<16x1024xf32>
    %cst_26 = arith.constant dense<0.000000e+00> : vector<1024xf32>
    %113 = vector.multi_reduction <add>, %112, %cst_26 [0] : vector<16x1024xf32> to vector<1024xf32>
    %114 = vector.shape_cast %113 : vector<1024xf32> to vector<1x1024xf32>
    %115 = vector.extract_strided_slice %88 {offsets = [48, 0], sizes = [16, 1024], strides = [1, 1]} : vector<64x1024xf32> to vector<16x1024xf32>
    %116 = arith.mulf %115, %102 : vector<16x1024xf32>
    %cst_27 = arith.constant dense<0.000000e+00> : vector<1024xf32>
    %117 = vector.multi_reduction <add>, %116, %cst_27 [0] : vector<16x1024xf32> to vector<1024xf32>
    %118 = vector.shape_cast %117 : vector<1024xf32> to vector<1x1024xf32>
    %cst_28 = arith.constant 0.000000e+00 : f32
    %119 = vector.broadcast %cst_28 : f32 to vector<1x1024xf32>
    %120 = arith.cmpf ogt, %106, %119 : vector<1x1024xf32>
    %121 = math.exp %106 : vector<1x1024xf32>
    %cst_29 = arith.constant 1.000000e+00 : f32
    %122 = vector.broadcast %cst_29 : f32 to vector<1x1024xf32>
    %123 = arith.subf %121, %122 : vector<1x1024xf32>
    %124 = arith.select %120, %106, %123 : vector<1x1024xi1>, vector<1x1024xf32>
    %125 = math.tanh %110 : vector<1x1024xf32>
    %cst_30 = arith.constant 1.000000e+00 : f32
    %126 = vector.broadcast %cst_30 : f32 to vector<1x1024xf32>
    %127 = arith.subf %125, %126 : vector<1x1024xf32>
    %128 = math.tanh %114 : vector<1x1024xf32>
    %129 = math.tanh %118 : vector<1x1024xf32>
    %130 = arith.mulf %127, %127 : vector<1x1024xf32>
    %131 = arith.mulf %128, %128 : vector<1x1024xf32>
    %132 = arith.addf %130, %131 : vector<1x1024xf32>
    %133 = arith.mulf %129, %129 : vector<1x1024xf32>
    %134 = arith.addf %132, %133 : vector<1x1024xf32>
    %cst_31 = arith.constant 1.000000e-24 : f32
    %135 = vector.broadcast %cst_31 : f32 to vector<1x1024xf32>
    %136 = arith.maximumf %134, %135 : vector<1x1024xf32>
    %137 = math.rsqrt %136 : vector<1x1024xf32>
    %c0_32 = arith.constant 0 : index
    %c0_33 = arith.constant 0 : index
    %138 = vector.load %arg3[%c0_32, %c0_33] : memref<4x1024xf32, #tpu.memory_space<vmem>>, vector<1x1024xf32>
    tpu.vector_store %arg3[%c0_32, %c0_33], %124 {strides = array<i32>} : memref<4x1024xf32, #tpu.memory_space<vmem>>, vector<1x1024xf32>,
    %139 = arith.mulf %127, %137 : vector<1x1024xf32>
    %c1 = arith.constant 1 : index
    %c0_34 = arith.constant 0 : index
    %140 = vector.load %arg3[%c1, %c0_34] : memref<4x1024xf32, #tpu.memory_space<vmem>>, vector<1x1024xf32>
    tpu.vector_store %arg3[%c1, %c0_34], %139 {strides = array<i32>} : memref<4x1024xf32, #tpu.memory_space<vmem>>, vector<1x1024xf32>,
    %141 = arith.mulf %128, %137 : vector<1x1024xf32>
    %c2 = arith.constant 2 : index
    %c0_35 = arith.constant 0 : index
    %142 = vector.load %arg3[%c2, %c0_35] : memref<4x1024xf32, #tpu.memory_space<vmem>>, vector<1x1024xf32>
    tpu.vector_store %arg3[%c2, %c0_35], %141 {strides = array<i32>} : memref<4x1024xf32, #tpu.memory_space<vmem>>, vector<1x1024xf32>,
    %143 = arith.mulf %129, %137 : vector<1x1024xf32>
    %c3 = arith.constant 3 : index
    %c0_36 = arith.constant 0 : index
    %144 = vector.load %arg3[%c3, %c0_36] : memref<4x1024xf32, #tpu.memory_space<vmem>>, vector<1x1024xf32>
    tpu.vector_store %arg3[%c3, %c0_36], %143 {strides = array<i32>} : memref<4x1024xf32, #tpu.memory_space<vmem>>, vector<1x1024xf32>,
    return
  }
  func.func @transform_0(%arg0: i32) -> (i32, i32) {
    %c0_i32 = arith.constant 0 : i32
    %c0_i32_0 = arith.constant 0 : i32
    return %c0_i32, %arg0 : i32, i32
  }
  func.func @transform_1(%arg0: i32) -> (i32, i32) {
    %c0_i32 = arith.constant 0 : i32
    %c0_i32_0 = arith.constant 0 : i32
    %c0_i32_1 = arith.constant 0 : i32
    return %c0_i32, %c0_i32_0 : i32, i32
  }
  func.func @transform_2(%arg0: i32) -> (i32, i32) {
    %c0_i32 = arith.constant 0 : i32
    %c0_i32_0 = arith.constant 0 : i32
    return %c0_i32, %arg0 : i32, i32
  }
}

</mosaic_0001>

<llo_original>
// kernel: tpu_custom_call.1
$region0: #{tpu_custom_call.1}
  #allocation0 [shape = 'u32[]', space=smem, size = 0x4, offset = 0x4, fixed_abs, tag = 'smem constant byte address 0x4 - core index']
  #allocation1 [shape = 'u32[72,128]{1,0:T(1,128)}', space=vmem, size = 0x9000, scoped, tag = 'internal scratch']
  %s0 = inlined_call_operand.hbm [shape: f32[3,2048], index: 0, kind: input, shape index: {}]
  %s1 = inlined_call_operand.hbm [shape: f32[64,128], index: 1, kind: input, shape index: {}]
  %s2 = inlined_call_operand.hbm [shape: f32[4,2048], index: 2, kind: output, shape index: {}]
  %s3 = sld [smem:[#allocation0]]
  $region49: #{tpu_custom_call.1} parent=0
    _
  %s5 = ssub.s32 1, %s3
  %s6 = scalar_select 0, %s5, %s3
  $region1: #{tpu_custom_call.1} parent=0
    #allocation2 [shape = 'u8[32768]{0}', space=vmem, size = 0x8000, scoped, tag = 'input window, operand 0']
    #allocation3 [shape = 's32[2]{0}', space=sflag, size = 0x8, scoped, tag = 'scoped memory for tpu_custom_call.1']
    #allocation4 [shape = 's32[2]{0}', space=sflag, size = 0x8, scoped, tag = 'scoped memory for tpu_custom_call.1']
    #allocation5 [shape = 'u8[32768]{0}', space=vmem, size = 0x8000, scoped, tag = 'input window, operand 1, single buffered']
    #allocation6 [shape = 's32[1]{0}', space=sflag, size = 0x4, scoped, tag = 'scoped memory for tpu_custom_call.1']
    #allocation7 [shape = 'u8[32768]{0}', space=vmem, size = 0x8000, scoped, tag = 'output window, operand 0']
    %7 = vsyncpa [#allocation3], 0
    %s8 = scalar_lea.sflag [#allocation3], 1
    %9 = vsyncpa %s8, 0
    %10 = vsyncpa [#allocation6], 0
    %11 = vsyncpa [#allocation4], 0
    %s12 = scalar_lea.sflag [#allocation4], 1
    %13 = vsyncpa %s12, 0
    loop: start=0, step=1, limit=4
    $region2: #{tpu_custom_call.1} parent=1 // loop_pre_header
      _
    $region3: #{tpu_custom_call.1} parent=1 // loop_header
      %s15 = sphi 0, %s19
      %p16 = scmp.ge.s32.totalorder %s15, 4
      %s25 = sphi 0, %s27
      %s28 = sphi 0, %s25
      %s29 = sphi 0, %s28
      %s45 = sphi 0, %s29
      %s49 = sphi 0, %s49
      %s51 = sphi 0, %s49
      %s52 = sphi 0, %s51
      %s66 = sphi 0, %s52
      %s72 = sphi 0, %s74
      %s75 = sphi 0, %s72
      %s76 = sphi 0, %s75
      %s92 = sphi 0, %s76
    $region4: #{tpu_custom_call.1} parent=1 // loop_header_branch
      %18 = sbr.rel (%p16) target = $region8
    $region5: #{tpu_custom_call.1} parent=1 // loop_body
      %s20 = ssub.s32 %s15, 1
      %s21 = ssub.s32 %s15, 2
      %s22 = sadd.s32 %s15, 1
      %s23 = ssub.s32 %s15, %s22
      %p24 = scmp.eq.s32.totalorder %s23, 0
      %s26 = sadd.s32 %s25, 1
      %s27 = scalar_select %p24, %s25, %s26
      %p30 = pneg %p24
      %p31 = scmp.eq.s32.totalorder %s15, 1
      %p32 = por %p30, %p31
      %p33 = scmp.ne.s32.totalorder %s25, %s28
      %p34 = scmp.eq.s32.totalorder %s15, 0
      %p35 = por %p33, %p34
      %p36 = scmp.ne.s32.totalorder %s25, %s28
      %p37 = scmp.eq.s32.totalorder %s20, 1
      %p38 = por %p36, %p37
      %p39 = scmp.ne.s32.totalorder %s28, %s29
      %p40 = scmp.eq.s32.totalorder %s20, 0
      %p41 = por %p39, %p40
      %p42 = scmp.ne.s32.totalorder %s28, %s29
      %p43 = scmp.eq.s32.totalorder %s21, 1
      %p44 = por %p42, %p43
      %p46 = scmp.ne.s32.totalorder %s29, %s45
      %p47 = scmp.eq.s32.totalorder %s21, 0
      %p48 = por %p46, %p47
      %s50 = sadd.s32 %s49, 1
      %p53 = scmp.eq.s32.totalorder %s15, 1
      %p54 = scmp.ne.s32.totalorder %s49, %s51
      %p55 = scmp.eq.s32.totalorder %s15, 0
      %p56 = por %p54, %p55
      %p57 = scmp.ne.s32.totalorder %s49, %s51
      %p58 = scmp.eq.s32.totalorder %s20, 1
      %p59 = por %p57, %p58
      %p60 = scmp.ne.s32.totalorder %s51, %s52
      %p61 = scmp.eq.s32.totalorder %s20, 0
      %p62 = por %p60, %p61
      %p63 = scmp.ne.s32.totalorder %s51, %s52
      %p64 = scmp.eq.s32.totalorder %s21, 1
      %p65 = por %p63, %p64
      %p67 = scmp.ne.s32.totalorder %s52, %s66
      %p68 = scmp.eq.s32.totalorder %s21, 0
      %p69 = por %p67, %p68
      %s70 = ssub.s32 %s15, %s22
      %p71 = scmp.eq.s32.totalorder %s70, 0
      %s73 = sadd.s32 %s72, 1
      %s74 = scalar_select %p71, %s72, %s73
      %p77 = pneg %p71
      %p78 = scmp.eq.s32.totalorder %s15, 1
      %p79 = por %p77, %p78
      %p80 = scmp.ne.s32.totalorder %s72, %s75
      %p81 = scmp.eq.s32.totalorder %s15, 0
      %p82 = por %p80, %p81
      %p83 = scmp.ne.s32.totalorder %s72, %s75
      %p84 = scmp.eq.s32.totalorder %s20, 1
      %p85 = por %p83, %p84
      %p86 = scmp.ne.s32.totalorder %s75, %s76
      %p87 = scmp.eq.s32.totalorder %s20, 0
      %p88 = por %p86, %p87
      %p89 = scmp.ne.s32.totalorder %s75, %s76
      %p90 = scmp.eq.s32.totalorder %s21, 1
      %p91 = por %p89, %p90
      %p93 = scmp.ne.s32.totalorder %s76, %s92
      %p94 = scmp.eq.s32.totalorder %s21, 0
      %p95 = por %p93, %p94
      %p96 = scmp.le.s32.totalorder 1, %s15
      %p97 = scmp.lt.s32.totalorder %s15, 3
      %p98 = pnand %p96, %p97
      %p99 = pneg %p98
      // Predicated region
      $region9: #{tpu_custom_call.1} parent=5 // pred_check
        _
      $region10: #{tpu_custom_call.1} parent=5 // pred_check_branch
        %101 = sbr.rel (%p98) target = $region12
      $region11: #{tpu_custom_call.1} parent=5 // pred_region
        %s102 = ssub.s32 %s15, 1
        // Predicated region
        $region13: #{tpu_custom_call.1} parent=11 // pred_check
          %p103 = pneg %p62
        $region14: #{tpu_custom_call.1} parent=11 // pred_check_branch
          %105 = sbr.rel (%p103) target = $region16
        $region15: #{tpu_custom_call.1} parent=11 // pred_region
          %107 = vsyncadd [#allocation6], 0
          %s108 = sshll.u32 %s1, 4
          %s109 = int_to_ptr.hbm [resolvable:$true] %s108
          %s110 = sshll.u32 [#allocation5], 4
          %s111 = int_to_ptr.vmem [resolvable:$true] %s110
          %116 = dma.hbm_to_vmem [thread:$0]  %s109, 1024, %s111, [#allocation6], 128, 128, 8
        $region16: #{tpu_custom_call.1} parent=11 // pred_fallthru
          _
      $region12: #{tpu_custom_call.1} parent=5 // pred_fallthru
        _
      %p117 = scmp.lt.s32.totalorder %s15, 2
      // Predicated region
      $region17: #{tpu_custom_call.1} parent=5 // pred_check
        %p118 = pneg %p117
      $region18: #{tpu_custom_call.1} parent=5 // pred_check_branch
        %120 = sbr.rel (%p118) target = $region20
      $region19: #{tpu_custom_call.1} parent=5 // pred_region
        // Predicated region
        $region21: #{tpu_custom_call.1} parent=19 // pred_check
          %p121 = pneg %p35
        $region22: #{tpu_custom_call.1} parent=19 // pred_check_branch
          %123 = sbr.rel (%p121) target = $region24
        $region23: #{tpu_custom_call.1} parent=19 // pred_region
          %s124 = sand.u32 %s25, 1
          %s125 = scalar_lea.sflag [#allocation3], %s124
          %s126 = sand.u32 %s25, 1
          %s127 = smul.addr %s126, 32
          %s128 = scalar_lea.vmem [#allocation2], %s127
          %s129 = smul.u32 8, %s15
          %131 = vsyncadd %s125, 0
          %s132 = smul.addr %s129, 4
          %s133 = scalar_lea.hbm %s0, %s132
          %s135 = sshll.u32 %s133, 4
          %s136 = int_to_ptr.hbm [resolvable:$true] %s135
          %s137 = sshll.u32 %s128, 4
          %s138 = int_to_ptr.vmem [resolvable:$true] %s137
          %140 = dma.hbm_to_vmem [thread:$0]  %s136, 512, %s138, %s125
        $region24: #{tpu_custom_call.1} parent=19 // pred_fallthru
          _
      $region20: #{tpu_custom_call.1} parent=5 // pred_fallthru
        _
      %p141 = scmp.le.s32.totalorder 1, %s15
      %p142 = scmp.lt.s32.totalorder %s15, 3
      %p143 = pnand %p141, %p142
      %p144 = pneg %p143
      // Predicated region
      $region25: #{tpu_custom_call.1} parent=5 // pred_check
        _
      $region26: #{tpu_custom_call.1} parent=5 // pred_check_branch
        %146 = sbr.rel (%p143) target = $region28
      $region27: #{tpu_custom_call.1} parent=5 // pred_region
        %s147 = ssub.s32 %s15, 1
        %s148 = sand.u32 %s28, 1
        %s149 = scalar_lea.sflag [#allocation3], %s148
        %s150 = sand.u32 %s28, 1
        %s151 = smul.addr %s150, 32
        %s152 = scalar_lea.vmem [#allocation2], %s151
        // Predicated region
        $region29: #{tpu_custom_call.1} parent=27 // pred_check
          %p153 = pneg %p41
        $region30: #{tpu_custom_call.1} parent=27 // pred_check_branch
          %155 = sbr.rel (%p153) target = $region32
        $region31: #{tpu_custom_call.1} parent=27 // pred_region
          %157 = dma.done %s149, 512
        $region32: #{tpu_custom_call.1} parent=27 // pred_fallthru
          _
        // Predicated region
        $region33: #{tpu_custom_call.1} parent=27 // pred_check
          %p158 = pneg %p62
        $region34: #{tpu_custom_call.1} parent=27 // pred_check_branch
          %160 = sbr.rel (%p158) target = $region36
        $region35: #{tpu_custom_call.1} parent=27 // pred_region
          %162 = dma.done [#allocation6], 1024
        $region36: #{tpu_custom_call.1} parent=27 // pred_fallthru
          _
        %s163 = sand.u32 %s28, 1
        %s164 = scalar_lea.sflag [#allocation3], %s163
        %s165 = sand.u32 %s28, 1
        %s166 = smul.addr %s165, 32
        %s167 = scalar_lea.vmem [#allocation2], %s166
        %p168 = pneg %p41
        %p169 = pneg %p38
        %p170 = pneg %p62
        %p171 = pneg %p59
        %p172 = pneg %p88
        %p173 = pneg %p85
        %s174 = sand.u32 %s75, 1
        %s175 = scalar_lea.sflag [#allocation4], %s174
        %s176 = sand.u32 %s75, 1
        %s177 = smul.addr %s176, 32
        %s178 = scalar_lea.vmem [#allocation7], %s177
        %s179 = smul.u32 8, %s20
        %s180 = smul.u32 8, %s20
        %v181 = vld [vmem:[%s152] sm:$0x77]
        %v182 = vld [vmem:[%s152 + $0x8] sm:$0x77]
        %v183 = vld [vmem:[%s152 + $0x10] sm:$0x77]
        %v184 = vld [vmem:[%s152 + $0x18] sm:$0x77]
        %v185 = vmax.f32 %v181, 0.0
        %v186 = vmax.f32 %v182, 0.0
        %v187 = vmax.f32 %v183, 0.0
        %v188 = vmax.f32 %v184, 0.0
        %v189 = vmin.f32 %v185, 7.0
        %v190 = vmin.f32 %v186, 7.0
        %v191 = vmin.f32 %v187, 7.0
        %v192 = vmin.f32 %v188, 7.0
        %v193 = vmin.f32 %v185, 15.0
        %v194 = vmin.f32 %v186, 15.0
        %v195 = vmin.f32 %v187, 15.0
        %v196 = vmin.f32 %v188, 15.0
        %v197 = vfloor.f32 %v189
        %v198 = vfloor.f32 %v190
        %v199 = vfloor.f32 %v191
        %v200 = vfloor.f32 %v192
        %v201 = vfloor.f32 %v193
        %v202 = vfloor.f32 %v194
        %v203 = vfloor.f32 %v195
        %v204 = vfloor.f32 %v196
        %v205 = vcvt.f32.s32.to.zero.pseudo %v197
        %v206 = vcvt.f32.s32.to.zero.pseudo %v198
        %v207 = vcvt.f32.s32.to.zero.pseudo %v199
        %v208 = vcvt.f32.s32.to.zero.pseudo %v200
        %v209 = vcvt.f32.s32.to.zero.pseudo %v201
        %v210 = vcvt.f32.s32.to.zero.pseudo %v202
        %v211 = vcvt.f32.s32.to.zero.pseudo %v203
        %v212 = vcvt.f32.s32.to.zero.pseudo %v204
        %v213 = vadd.s32 %v205, 1
        %v214 = vadd.s32 %v206, 1
        %v215 = vadd.s32 %v207, 1
        %v216 = vadd.s32 %v208, 1
        %vm217 = vcmp.lt.s32.totalorder %v213, 7
        %v218 = vsel %vm217, %v213, 7
        %vm219 = vcmp.lt.s32.totalorder %v214, 7
        %v220 = vsel %vm219, %v214, 7
        %vm221 = vcmp.lt.s32.totalorder %v215, 7
        %v222 = vsel %vm221, %v215, 7
        %vm223 = vcmp.lt.s32.totalorder %v216, 7
        %v224 = vsel %vm223, %v216, 7
        %v225 = vadd.s32 %v209, 1
        %v226 = vadd.s32 %v210, 1
        %v227 = vadd.s32 %v211, 1
        %v228 = vadd.s32 %v212, 1
        %vm229 = vcmp.lt.s32.totalorder %v225, 15
        %v230 = vsel %vm229, %v225, 15
        %vm231 = vcmp.lt.s32.totalorder %v226, 15
        %v232 = vsel %vm231, %v226, 15
        %vm233 = vcmp.lt.s32.totalorder %v227, 15
        %v234 = vsel %vm233, %v227, 15
        %vm235 = vcmp.lt.s32.totalorder %v228, 15
        %v236 = vsel %vm235, %v228, 15
        %v237 = vsub.f32 %v189, %v197
        %v238 = vsub.f32 %v190, %v198
        %v239 = vsub.f32 %v191, %v199
        %v240 = vsub.f32 %v192, %v200
        %v241 = vsub.f32 %v193, %v201
        %v242 = vsub.f32 %v194, %v202
        %v243 = vsub.f32 %v195, %v203
        %v244 = vsub.f32 %v196, %v204
        %v245 = vsub.f32 1.0, %v237
        %v246 = vsub.f32 1.0, %v238
        %v247 = vsub.f32 1.0, %v239
        %v248 = vsub.f32 1.0, %v240
        %v249 = vsub.f32 1.0, %v241
        %v250 = vsub.f32 1.0, %v242
        %v251 = vsub.f32 1.0, %v243
        %v252 = vsub.f32 1.0, %v244
        %v253 = vlaneseq
        %v254 = vshrl.u32 %v253, 7
        %v255 = vadd.s32 %v254, 8
        %v256 = vadd.s32 %v254, 16
        %v257 = vadd.s32 %v254, 24
        %v258 = vadd.s32 %v254, 32
        %v259 = vadd.s32 %v254, 40
        %v260 = vadd.s32 %v254, 48
        %v261 = vadd.s32 %v254, 56
        %v262 = vadd.s32 %v254, 64
        %v263 = vadd.s32 %v254, 72
        %v264 = vadd.s32 %v254, 80
        %v265 = vadd.s32 %v254, 88
        %v266 = vadd.s32 %v254, 96
        %v267 = vadd.s32 %v254, 104
        %v268 = vadd.s32 %v254, 112
        %v269 = vadd.s32 %v254, 120
        %v274 = vrot.slane %v249, 5
        %v275 = vrot.slane %v274, 4
        %v276 = vrot.slane %v250, 5
        %v277 = vrot.slane %v276, 4
        %v278 = vrot.slane %v251, 5
        %v279 = vrot.slane %v278, 4
        %v280 = vrot.slane %v252, 5
        %v281 = vrot.slane %v280, 4
        %v286 = vmul.f32 %v245, %v275
        %v287 = vmul.f32 %v246, %v277
        %v288 = vmul.f32 %v247, %v279
        %v289 = vmul.f32 %v248, %v281
        %v290 = vmul.u32 %v205, 16
        %v291 = vmul.u32 %v206, 16
        %v292 = vmul.u32 %v207, 16
        %v293 = vmul.u32 %v208, 16
        %v294 = vrot.slane %v209, 5
        %v295 = vrot.slane %v294, 4
        %v296 = vrot.slane %v210, 5
        %v297 = vrot.slane %v296, 4
        %v298 = vrot.slane %v211, 5
        %v299 = vrot.slane %v298, 4
        %v300 = vrot.slane %v212, 5
        %v301 = vrot.slane %v300, 4
        %v302 = vadd.s32 %v290, %v295
        %v303 = vadd.s32 %v291, %v297
        %v304 = vadd.s32 %v292, %v299
        %v305 = vadd.s32 %v293, %v301
        %v306 = vperm.slane %v302, 0
        %v307 = vperm.slane %v302, 4
        %v308 = vperm.slane %v303, 0
        %v309 = vperm.slane %v303, 4
        %v310 = vperm.slane %v304, 0
        %v311 = vperm.slane %v304, 4
        %v312 = vperm.slane %v305, 0
        %v313 = vperm.slane %v305, 4
        %v314 = vperm.slane %v306, 0
        %v315 = vperm.slane %v307, 0
        %v316 = vperm.slane %v308, 0
        %v317 = vperm.slane %v309, 0
        %v318 = vperm.slane %v310, 0
        %v319 = vperm.slane %v311, 0
        %v320 = vperm.slane %v312, 0
        %v321 = vperm.slane %v313, 0
        %vm322 = vcmp.eq.s32.totalorder %v254, %v314
        %vm323 = vcmp.eq.s32.totalorder %v254, %v315
        %vm324 = vcmp.eq.s32.totalorder %v254, %v316
        %vm325 = vcmp.eq.s32.totalorder %v254, %v317
        %vm326 = vcmp.eq.s32.totalorder %v254, %v318
        %vm327 = vcmp.eq.s32.totalorder %v254, %v319
        %vm328 = vcmp.eq.s32.totalorder %v254, %v320
        %vm329 = vcmp.eq.s32.totalorder %v254, %v321
        %vm330 = vcmp.eq.s32.totalorder %v255, %v314
        %vm331 = vcmp.eq.s32.totalorder %v255, %v315
        %vm332 = vcmp.eq.s32.totalorder %v255, %v316
        %vm333 = vcmp.eq.s32.totalorder %v255, %v317
        %vm334 = vcmp.eq.s32.totalorder %v255, %v318
        %vm335 = vcmp.eq.s32.totalorder %v255, %v319
        %vm336 = vcmp.eq.s32.totalorder %v255, %v320
        %vm337 = vcmp.eq.s32.totalorder %v255, %v321
        %vm338 = vcmp.eq.s32.totalorder %v256, %v314
        %vm339 = vcmp.eq.s32.totalorder %v256, %v315
        %vm340 = vcmp.eq.s32.totalorder %v256, %v316
        %vm341 = vcmp.eq.s32.totalorder %v256, %v317
        %vm342 = vcmp.eq.s32.totalorder %v256, %v318
        %vm343 = vcmp.eq.s32.totalorder %v256, %v319
        %vm344 = vcmp.eq.s32.totalorder %v256, %v320
        %vm345 = vcmp.eq.s32.totalorder %v256, %v321
        %vm346 = vcmp.eq.s32.totalorder %v257, %v314
        %vm347 = vcmp.eq.s32.totalorder %v257, %v315
        %vm348 = vcmp.eq.s32.totalorder %v257, %v316
        %vm349 = vcmp.eq.s32.totalorder %v257, %v317
        %vm350 = vcmp.eq.s32.totalorder %v257, %v318
        %vm351 = vcmp.eq.s32.totalorder %v257, %v319
        %vm352 = vcmp.eq.s32.totalorder %v257, %v320
        %vm353 = vcmp.eq.s32.totalorder %v257, %v321
        %vm354 = vcmp.eq.s32.totalorder %v258, %v314
        %vm355 = vcmp.eq.s32.totalorder %v258, %v315
        %vm356 = vcmp.eq.s32.totalorder %v258, %v316
        %vm357 = vcmp.eq.s32.totalorder %v258, %v317
        %vm358 = vcmp.eq.s32.totalorder %v258, %v318
        %vm359 = vcmp.eq.s32.totalorder %v258, %v319
        %vm360 = vcmp.eq.s32.totalorder %v258, %v320
        %vm361 = vcmp.eq.s32.totalorder %v258, %v321
        %vm362 = vcmp.eq.s32.totalorder %v259, %v314
        %vm363 = vcmp.eq.s32.totalorder %v259, %v315
        %vm364 = vcmp.eq.s32.totalorder %v259, %v316
        %vm365 = vcmp.eq.s32.totalorder %v259, %v317
        %vm366 = vcmp.eq.s32.totalorder %v259, %v318
        %vm367 = vcmp.eq.s32.totalorder %v259, %v319
        %vm368 = vcmp.eq.s32.totalorder %v259, %v320
        %vm369 = vcmp.eq.s32.totalorder %v259, %v321
        %vm370 = vcmp.eq.s32.totalorder %v260, %v314
        %vm371 = vcmp.eq.s32.totalorder %v260, %v315
        %vm372 = vcmp.eq.s32.totalorder %v260, %v316
        %vm373 = vcmp.eq.s32.totalorder %v260, %v317
        %vm374 = vcmp.eq.s32.totalorder %v260, %v318
        %vm375 = vcmp.eq.s32.totalorder %v260, %v319
        %vm376 = vcmp.eq.s32.totalorder %v260, %v320
        %vm377 = vcmp.eq.s32.totalorder %v260, %v321
        %vm378 = vcmp.eq.s32.totalorder %v261, %v314
        %vm379 = vcmp.eq.s32.totalorder %v261, %v315
        %vm380 = vcmp.eq.s32.totalorder %v261, %v316
        %vm381 = vcmp.eq.s32.totalorder %v261, %v317
        %vm382 = vcmp.eq.s32.totalorder %v261, %v318
        %vm383 = vcmp.eq.s32.totalorder %v261, %v319
        %vm384 = vcmp.eq.s32.totalorder %v261, %v320
        %vm385 = vcmp.eq.s32.totalorder %v261, %v321
        %vm386 = vcmp.eq.s32.totalorder %v262, %v314
        %vm387 = vcmp.eq.s32.totalorder %v262, %v315
        %vm388 = vcmp.eq.s32.totalorder %v262, %v316
        %vm389 = vcmp.eq.s32.totalorder %v262, %v317
        %vm390 = vcmp.eq.s32.totalorder %v262, %v318
        %vm391 = vcmp.eq.s32.totalorder %v262, %v319
        %vm392 = vcmp.eq.s32.totalorder %v262, %v320
        %vm393 = vcmp.eq.s32.totalorder %v262, %v321
        %vm394 = vcmp.eq.s32.totalorder %v263, %v314
        %vm395 = vcmp.eq.s32.totalorder %v263, %v315
        %vm396 = vcmp.eq.s32.totalorder %v263, %v316
        %vm397 = vcmp.eq.s32.totalorder %v263, %v317
        %vm398 = vcmp.eq.s32.totalorder %v263, %v318
        %vm399 = vcmp.eq.s32.totalorder %v263, %v319
        %vm400 = vcmp.eq.s32.totalorder %v263, %v320
        %vm401 = vcmp.eq.s32.totalorder %v263, %v321
        %vm402 = vcmp.eq.s32.totalorder %v264, %v314
        %vm403 = vcmp.eq.s32.totalorder %v264, %v315
        %vm404 = vcmp.eq.s32.totalorder %v264, %v316
        %vm405 = vcmp.eq.s32.totalorder %v264, %v317
        %vm406 = vcmp.eq.s32.totalorder %v264, %v318
        %vm407 = vcmp.eq.s32.totalorder %v264, %v319
        %vm408 = vcmp.eq.s32.totalorder %v264, %v320
        %vm409 = vcmp.eq.s32.totalorder %v264, %v321
        %vm410 = vcmp.eq.s32.totalorder %v265, %v314
        %vm411 = vcmp.eq.s32.totalorder %v265, %v315
        %vm412 = vcmp.eq.s32.totalorder %v265, %v316
        %vm413 = vcmp.eq.s32.totalorder %v265, %v317
        %vm414 = vcmp.eq.s32.totalorder %v265, %v318
        %vm415 = vcmp.eq.s32.totalorder %v265, %v319
        %vm416 = vcmp.eq.s32.totalorder %v265, %v320
        %vm417 = vcmp.eq.s32.totalorder %v265, %v321
        %vm418 = vcmp.eq.s32.totalorder %v266, %v314
        %vm419 = vcmp.eq.s32.totalorder %v266, %v315
        %vm420 = vcmp.eq.s32.totalorder %v266, %v316
        %vm421 = vcmp.eq.s32.totalorder %v266, %v317
        %vm422 = vcmp.eq.s32.totalorder %v266, %v318
        %vm423 = vcmp.eq.s32.totalorder %v266, %v319
        %vm424 = vcmp.eq.s32.totalorder %v266, %v320
        %vm425 = vcmp.eq.s32.totalorder %v266, %v321
        %vm426 = vcmp.eq.s32.totalorder %v267, %v314
        %vm427 = vcmp.eq.s32.totalorder %v267, %v315
        %vm428 = vcmp.eq.s32.totalorder %v267, %v316
        %vm429 = vcmp.eq.s32.totalorder %v267, %v317
        %vm430 = vcmp.eq.s32.totalorder %v267, %v318
        %vm431 = vcmp.eq.s32.totalorder %v267, %v319
        %vm432 = vcmp.eq.s32.totalorder %v267, %v320
        %vm433 = vcmp.eq.s32.totalorder %v267, %v321
        %vm434 = vcmp.eq.s32.totalorder %v268, %v314
        %vm435 = vcmp.eq.s32.totalorder %v268, %v315
        %vm436 = vcmp.eq.s32.totalorder %v268, %v316
        %vm437 = vcmp.eq.s32.totalorder %v268, %v317
        %vm438 = vcmp.eq.s32.totalorder %v268, %v318
        %vm439 = vcmp.eq.s32.totalorder %v268, %v319
        %vm440 = vcmp.eq.s32.totalorder %v268, %v320
        %vm441 = vcmp.eq.s32.totalorder %v268, %v321
        %vm442 = vcmp.eq.s32.totalorder %v269, %v314
        %vm443 = vcmp.eq.s32.totalorder %v269, %v315
        %vm444 = vcmp.eq.s32.totalorder %v269, %v316
        %vm445 = vcmp.eq.s32.totalorder %v269, %v317
        %vm446 = vcmp.eq.s32.totalorder %v269, %v318
        %vm447 = vcmp.eq.s32.totalorder %v269, %v319
        %vm448 = vcmp.eq.s32.totalorder %v269, %v320
        %vm449 = vcmp.eq.s32.totalorder %v269, %v321
        %v454 = vperm.slane %v286, 0
        %v455 = vperm.slane %v286, 4
        %v456 = vperm.slane %v287, 0
        %v457 = vperm.slane %v287, 4
        %v458 = vperm.slane %v288, 0
        %v459 = vperm.slane %v288, 4
        %v460 = vperm.slane %v289, 0
        %v461 = vperm.slane %v289, 4
        %v470 = vperm.slane %v454, 0
        %v471 = vperm.slane %v455, 0
        %v472 = vperm.slane %v456, 0
        %v473 = vperm.slane %v457, 0
        %v474 = vperm.slane %v458, 0
        %v475 = vperm.slane %v459, 0
        %v476 = vperm.slane %v460, 0
        %v477 = vperm.slane %v461, 0
        %v478 = vsel %vm322, %v470, 0.0
        %v479 = vsel %vm323, %v471, 0.0
        %v480 = vsel %vm324, %v472, 0.0
        %v481 = vsel %vm325, %v473, 0.0
        %v482 = vsel %vm326, %v474, 0.0
        %v483 = vsel %vm327, %v475, 0.0
        %v484 = vsel %vm328, %v476, 0.0
        %v485 = vsel %vm329, %v477, 0.0
        %v486 = vsel %vm330, %v470, 0.0
        %v487 = vsel %vm331, %v471, 0.0
        %v488 = vsel %vm332, %v472, 0.0
        %v489 = vsel %vm333, %v473, 0.0
        %v490 = vsel %vm334, %v474, 0.0
        %v491 = vsel %vm335, %v475, 0.0
        %v492 = vsel %vm336, %v476, 0.0
        %v493 = vsel %vm337, %v477, 0.0
        %v494 = vsel %vm338, %v470, 0.0
        %v495 = vsel %vm339, %v471, 0.0
        %v496 = vsel %vm340, %v472, 0.0
        %v497 = vsel %vm341, %v473, 0.0
        %v498 = vsel %vm342, %v474, 0.0
        %v499 = vsel %vm343, %v475, 0.0
        %v500 = vsel %vm344, %v476, 0.0
        %v501 = vsel %vm345, %v477, 0.0
        %v502 = vsel %vm346, %v470, 0.0
        %v503 = vsel %vm347, %v471, 0.0
        %v504 = vsel %vm348, %v472, 0.0
        %v505 = vsel %vm349, %v473, 0.0
        %v506 = vsel %vm350, %v474, 0.0
        %v507 = vsel %vm351, %v475, 0.0
        %v508 = vsel %vm352, %v476, 0.0
        %v509 = vsel %vm353, %v477, 0.0
        %v510 = vsel %vm354, %v470, 0.0
        %v511 = vsel %vm355, %v471, 0.0
        %v512 = vsel %vm356, %v472, 0.0
        %v513 = vsel %vm357, %v473, 0.0
        %v514 = vsel %vm358, %v474, 0.0
        %v515 = vsel %vm359, %v475, 0.0
        %v516 = vsel %vm360, %v476, 0.0
        %v517 = vsel %vm361, %v477, 0.0
        %v518 = vsel %vm362, %v470, 0.0
        %v519 = vsel %vm363, %v471, 0.0
        %v520 = vsel %vm364, %v472, 0.0
        %v521 = vsel %vm365, %v473, 0.0
        %v522 = vsel %vm366, %v474, 0.0
        %v523 = vsel %vm367, %v475, 0.0
        %v524 = vsel %vm368, %v476, 0.0
        %v525 = vsel %vm369, %v477, 0.0
        %v526 = vsel %vm370, %v470, 0.0
        %v527 = vsel %vm371, %v471, 0.0
        %v528 = vsel %vm372, %v472, 0.0
        %v529 = vsel %vm373, %v473, 0.0
        %v530 = vsel %vm374, %v474, 0.0
        %v531 = vsel %vm375, %v475, 0.0
        %v532 = vsel %vm376, %v476, 0.0
        %v533 = vsel %vm377, %v477, 0.0
        %v534 = vsel %vm378, %v470, 0.0
        %v535 = vsel %vm379, %v471, 0.0
        %v536 = vsel %vm380, %v472, 0.0
        %v537 = vsel %vm381, %v473, 0.0
        %v538 = vsel %vm382, %v474, 0.0
        %v539 = vsel %vm383, %v475, 0.0
        %v540 = vsel %vm384, %v476, 0.0
        %v541 = vsel %vm385, %v477, 0.0
        %v542 = vsel %vm386, %v470, 0.0
        %v543 = vsel %vm387, %v471, 0.0
        %v544 = vsel %vm388, %v472, 0.0
        %v545 = vsel %vm389, %v473, 0.0
        %v546 = vsel %vm390, %v474, 0.0
        %v547 = vsel %vm391, %v475, 0.0
        %v548 = vsel %vm392, %v476, 0.0
        %v549 = vsel %vm393, %v477, 0.0
        %v550 = vsel %vm394, %v470, 0.0
        %v551 = vsel %vm395, %v471, 0.0
        %v552 = vsel %vm396, %v472, 0.0
        %v553 = vsel %vm397, %v473, 0.0
        %v554 = vsel %vm398, %v474, 0.0
        %v555 = vsel %vm399, %v475, 0.0
        %v556 = vsel %vm400, %v476, 0.0
        %v557 = vsel %vm401, %v477, 0.0
        %v558 = vsel %vm402, %v470, 0.0
        %v559 = vsel %vm403, %v471, 0.0
        %v560 = vsel %vm404, %v472, 0.0
        %v561 = vsel %vm405, %v473, 0.0
        %v562 = vsel %vm406, %v474, 0.0
        %v563 = vsel %vm407, %v475, 0.0
        %v564 = vsel %vm408, %v476, 0.0
        %v565 = vsel %vm409, %v477, 0.0
        %v566 = vsel %vm410, %v470, 0.0
        %v567 = vsel %vm411, %v471, 0.0
        %v568 = vsel %vm412, %v472, 0.0
        %v569 = vsel %vm413, %v473, 0.0
        %v570 = vsel %vm414, %v474, 0.0
        %v571 = vsel %vm415, %v475, 0.0
        %v572 = vsel %vm416, %v476, 0.0
        %v573 = vsel %vm417, %v477, 0.0
        %v574 = vsel %vm418, %v470, 0.0
        %v575 = vsel %vm419, %v471, 0.0
        %v576 = vsel %vm420, %v472, 0.0
        %v577 = vsel %vm421, %v473, 0.0
        %v578 = vsel %vm422, %v474, 0.0
        %v579 = vsel %vm423, %v475, 0.0
        %v580 = vsel %vm424, %v476, 0.0
        %v581 = vsel %vm425, %v477, 0.0
        %v582 = vsel %vm426, %v470, 0.0
        %v583 = vsel %vm427, %v471, 0.0
        %v584 = vsel %vm428, %v472, 0.0
        %v585 = vsel %vm429, %v473, 0.0
        %v586 = vsel %vm430, %v474, 0.0
        %v587 = vsel %vm431, %v475, 0.0
        %v588 = vsel %vm432, %v476, 0.0
        %v589 = vsel %vm433, %v477, 0.0
        %v590 = vsel %vm434, %v470, 0.0
        %v591 = vsel %vm435, %v471, 0.0
        %v592 = vsel %vm436, %v472, 0.0
        %v593 = vsel %vm437, %v473, 0.0
        %v594 = vsel %vm438, %v474, 0.0
        %v595 = vsel %vm439, %v475, 0.0
        %v596 = vsel %vm440, %v476, 0.0
        %v597 = vsel %vm441, %v477, 0.0
        %v598 = vsel %vm442, %v470, 0.0
        %v599 = vsel %vm443, %v471, 0.0
        %v600 = vsel %vm444, %v472, 0.0
        %v601 = vsel %vm445, %v473, 0.0
        %v602 = vsel %vm446, %v474, 0.0
        %v603 = vsel %vm447, %v475, 0.0
        %v604 = vsel %vm448, %v476, 0.0
        %v605 = vsel %vm449, %v477, 0.0
        %v610 = vrot.slane %v241, 5
        %v611 = vrot.slane %v610, 4
        %v612 = vrot.slane %v242, 5
        %v613 = vrot.slane %v612, 4
        %v614 = vrot.slane %v243, 5
        %v615 = vrot.slane %v614, 4
        %v616 = vrot.slane %v244, 5
        %v617 = vrot.slane %v616, 4
        %v622 = vmul.f32 %v245, %v611
        %v623 = vmul.f32 %v246, %v613
        %v624 = vmul.f32 %v247, %v615
        %v625 = vmul.f32 %v248, %v617
        %v626 = vrot.slane %v230, 5
        %v627 = vrot.slane %v626, 4
        %v628 = vrot.slane %v232, 5
        %v629 = vrot.slane %v628, 4
        %v630 = vrot.slane %v234, 5
        %v631 = vrot.slane %v630, 4
        %v632 = vrot.slane %v236, 5
        %v633 = vrot.slane %v632, 4
        %v634 = vadd.s32 %v290, %v627
        %v635 = vadd.s32 %v291, %v629
        %v636 = vadd.s32 %v292, %v631
        %v637 = vadd.s32 %v293, %v633
        %v638 = vperm.slane %v634, 0
        %v639 = vperm.slane %v634, 4
        %v640 = vperm.slane %v635, 0
        %v641 = vperm.slane %v635, 4
        %v642 = vperm.slane %v636, 0
        %v643 = vperm.slane %v636, 4
        %v644 = vperm.slane %v637, 0
        %v645 = vperm.slane %v637, 4
        %v646 = vperm.slane %v638, 0
        %v647 = vperm.slane %v639, 0
        %v648 = vperm.slane %v640, 0
        %v649 = vperm.slane %v641, 0
        %v650 = vperm.slane %v642, 0
        %v651 = vperm.slane %v643, 0
        %v652 = vperm.slane %v644, 0
        %v653 = vperm.slane %v645, 0
        %vm654 = vcmp.eq.s32.totalorder %v254, %v646
        %vm655 = vcmp.eq.s32.totalorder %v254, %v647
        %vm656 = vcmp.eq.s32.totalorder %v254, %v648
        %vm657 = vcmp.eq.s32.totalorder %v254, %v649
        %vm658 = vcmp.eq.s32.totalorder %v254, %v650
        %vm659 = vcmp.eq.s32.totalorder %v254, %v651
        %vm660 = vcmp.eq.s32.totalorder %v254, %v652
        %vm661 = vcmp.eq.s32.totalorder %v254, %v653
        %vm662 = vcmp.eq.s32.totalorder %v255, %v646
        %vm663 = vcmp.eq.s32.totalorder %v255, %v647
        %vm664 = vcmp.eq.s32.totalorder %v255, %v648
        %vm665 = vcmp.eq.s32.totalorder %v255, %v649
        %vm666 = vcmp.eq.s32.totalorder %v255, %v650
        %vm667 = vcmp.eq.s32.totalorder %v255, %v651
        %vm668 = vcmp.eq.s32.totalorder %v255, %v652
        %vm669 = vcmp.eq.s32.totalorder %v255, %v653
        %vm670 = vcmp.eq.s32.totalorder %v256, %v646
        %vm671 = vcmp.eq.s32.totalorder %v256, %v647
        %vm672 = vcmp.eq.s32.totalorder %v256, %v648
        %vm673 = vcmp.eq.s32.totalorder %v256, %v649
        %vm674 = vcmp.eq.s32.totalorder %v256, %v650
        %vm675 = vcmp.eq.s32.totalorder %v256, %v651
        %vm676 = vcmp.eq.s32.totalorder %v256, %v652
        %vm677 = vcmp.eq.s32.totalorder %v256, %v653
        %vm678 = vcmp.eq.s32.totalorder %v257, %v646
        %vm679 = vcmp.eq.s32.totalorder %v257, %v647
        %vm680 = vcmp.eq.s32.totalorder %v257, %v648
        %vm681 = vcmp.eq.s32.totalorder %v257, %v649
        %vm682 = vcmp.eq.s32.totalorder %v257, %v650
        %vm683 = vcmp.eq.s32.totalorder %v257, %v651
        %vm684 = vcmp.eq.s32.totalorder %v257, %v652
        %vm685 = vcmp.eq.s32.totalorder %v257, %v653
        %vm686 = vcmp.eq.s32.totalorder %v258, %v646
        %vm687 = vcmp.eq.s32.totalorder %v258, %v647
        %vm688 = vcmp.eq.s32.totalorder %v258, %v648
        %vm689 = vcmp.eq.s32.totalorder %v258, %v649
        %vm690 = vcmp.eq.s32.totalorder %v258, %v650
        %vm691 = vcmp.eq.s32.totalorder %v258, %v651
        %vm692 = vcmp.eq.s32.totalorder %v258, %v652
        %vm693 = vcmp.eq.s32.totalorder %v258, %v653
        %vm694 = vcmp.eq.s32.totalorder %v259, %v646
        %vm695 = vcmp.eq.s32.totalorder %v259, %v647
        %vm696 = vcmp.eq.s32.totalorder %v259, %v648
        %vm697 = vcmp.eq.s32.totalorder %v259, %v649
        %vm698 = vcmp.eq.s32.totalorder %v259, %v650
        %vm699 = vcmp.eq.s32.totalorder %v259, %v651
        %vm700 = vcmp.eq.s32.totalorder %v259, %v652
        %vm701 = vcmp.eq.s32.totalorder %v259, %v653
        %vm702 = vcmp.eq.s32.totalorder %v260, %v646
        %vm703 = vcmp.eq.s32.totalorder %v260, %v647
        %vm704 = vcmp.eq.s32.totalorder %v260, %v648
        %vm705 = vcmp.eq.s32.totalorder %v260, %v649
        %vm706 = vcmp.eq.s32.totalorder %v260, %v650
        %vm707 = vcmp.eq.s32.totalorder %v260, %v651
        %vm708 = vcmp.eq.s32.totalorder %v260, %v652
        %vm709 = vcmp.eq.s32.totalorder %v260, %v653
        %vm710 = vcmp.eq.s32.totalorder %v261, %v646
        %vm711 = vcmp.eq.s32.totalorder %v261, %v647
        %vm712 = vcmp.eq.s32.totalorder %v261, %v648
        %vm713 = vcmp.eq.s32.totalorder %v261, %v649
        %vm714 = vcmp.eq.s32.totalorder %v261, %v650
        %vm715 = vcmp.eq.s32.totalorder %v261, %v651
        %vm716 = vcmp.eq.s32.totalorder %v261, %v652
        %vm717 = vcmp.eq.s32.totalorder %v261, %v653
        %vm718 = vcmp.eq.s32.totalorder %v262, %v646
        %vm719 = vcmp.eq.s32.totalorder %v262, %v647
        %vm720 = vcmp.eq.s32.totalorder %v262, %v648
        %vm721 = vcmp.eq.s32.totalorder %v262, %v649
        %vm722 = vcmp.eq.s32.totalorder %v262, %v650
        %vm723 = vcmp.eq.s32.totalorder %v262, %v651
        %vm724 = vcmp.eq.s32.totalorder %v262, %v652
        %vm725 = vcmp.eq.s32.totalorder %v262, %v653
        %vm726 = vcmp.eq.s32.totalorder %v263, %v646
        %vm727 = vcmp.eq.s32.totalorder %v263, %v647
        %vm728 = vcmp.eq.s32.totalorder %v263, %v648
        %vm729 = vcmp.eq.s32.totalorder %v263, %v649
        %vm730 = vcmp.eq.s32.totalorder %v263, %v650
        %vm731 = vcmp.eq.s32.totalorder %v263, %v651
        %vm732 = vcmp.eq.s32.totalorder %v263, %v652
        %vm733 = vcmp.eq.s32.totalorder %v263, %v653
        %vm734 = vcmp.eq.s32.totalorder %v264, %v646
        %vm735 = vcmp.eq.s32.totalorder %v264, %v647
        %vm736 = vcmp.eq.s32.totalorder %v264, %v648
        %vm737 = vcmp.eq.s32.totalorder %v264, %v649
        %vm738 = vcmp.eq.s32.totalorder %v264, %v650
        %vm739 = vcmp.eq.s32.totalorder %v264, %v651
        %vm740 = vcmp.eq.s32.totalorder %v264, %v652
        %vm741 = vcmp.eq.s32.totalorder %v264, %v653
        %vm742 = vcmp.eq.s32.totalorder %v265, %v646
        %vm743 = vcmp.eq.s32.totalorder %v265, %v647
        %vm744 = vcmp.eq.s32.totalorder %v265, %v648
        %vm745 = vcmp.eq.s32.totalorder %v265, %v649
        %vm746 = vcmp.eq.s32.totalorder %v265, %v650
        %vm747 = vcmp.eq.s32.totalorder %v265, %v651
        %vm748 = vcmp.eq.s32.totalorder %v265, %v652
        %vm749 = vcmp.eq.s32.totalorder %v265, %v653
        %vm750 = vcmp.eq.s32.totalorder %v266, %v646
        %vm751 = vcmp.eq.s32.totalorder %v266, %v647
        %vm752 = vcmp.eq.s32.totalorder %v266, %v648
        %vm753 = vcmp.eq.s32.totalorder %v266, %v649
        %vm754 = vcmp.eq.s32.totalorder %v266, %v650
        %vm755 = vcmp.eq.s32.totalorder %v266, %v651
        %vm756 = vcmp.eq.s32.totalorder %v266, %v652
        %vm757 = vcmp.eq.s32.totalorder %v266, %v653
        %vm758 = vcmp.eq.s32.totalorder %v267, %v646
        %vm759 = vcmp.eq.s32.totalorder %v267, %v647
        %vm760 = vcmp.eq.s32.totalorder %v267, %v648
        %vm761 = vcmp.eq.s32.totalorder %v267, %v649
        %vm762 = vcmp.eq.s32.totalorder %v267, %v650
        %vm763 = vcmp.eq.s32.totalorder %v267, %v651
        %vm764 = vcmp.eq.s32.totalorder %v267, %v652
        %vm765 = vcmp.eq.s32.totalorder %v267, %v653
        %vm766 = vcmp.eq.s32.totalorder %v268, %v646
        %vm767 = vcmp.eq.s32.totalorder %v268, %v647
        %vm768 = vcmp.eq.s32.totalorder %v268, %v648
        %vm769 = vcmp.eq.s32.totalorder %v268, %v649
        %vm770 = vcmp.eq.s32.totalorder %v268, %v650
        %vm771 = vcmp.eq.s32.totalorder %v268, %v651
        %vm772 = vcmp.eq.s32.totalorder %v268, %v652
        %vm773 = vcmp.eq.s32.totalorder %v268, %v653
        %vm774 = vcmp.eq.s32.totalorder %v269, %v646
        %vm775 = vcmp.eq.s32.totalorder %v269, %v647
        %vm776 = vcmp.eq.s32.totalorder %v269, %v648
        %vm777 = vcmp.eq.s32.totalorder %v269, %v649
        %vm778 = vcmp.eq.s32.totalorder %v269, %v650
        %vm779 = vcmp.eq.s32.totalorder %v269, %v651
        %vm780 = vcmp.eq.s32.totalorder %v269, %v652
        %vm781 = vcmp.eq.s32.totalorder %v269, %v653
        %v786 = vperm.slane %v622, 0
        %v787 = vperm.slane %v622, 4
        %v788 = vperm.slane %v623, 0
        %v789 = vperm.slane %v623, 4
        %v790 = vperm.slane %v624, 0
        %v791 = vperm.slane %v624, 4
        %v792 = vperm.slane %v625, 0
        %v793 = vperm.slane %v625, 4
        %v802 = vperm.slane %v786, 0
        %v803 = vperm.slane %v787, 0
        %v804 = vperm.slane %v788, 0
        %v805 = vperm.slane %v789, 0
        %v806 = vperm.slane %v790, 0
        %v807 = vperm.slane %v791, 0
        %v808 = vperm.slane %v792, 0
        %v809 = vperm.slane %v793, 0
        %v810 = vsel %vm654, %v802, 0.0
        %v811 = vsel %vm655, %v803, 0.0
        %v812 = vsel %vm656, %v804, 0.0
        %v813 = vsel %vm657, %v805, 0.0
        %v814 = vsel %vm658, %v806, 0.0
        %v815 = vsel %vm659, %v807, 0.0
        %v816 = vsel %vm660, %v808, 0.0
        %v817 = vsel %vm661, %v809, 0.0
        %v818 = vsel %vm662, %v802, 0.0
        %v819 = vsel %vm663, %v803, 0.0
        %v820 = vsel %vm664, %v804, 0.0
        %v821 = vsel %vm665, %v805, 0.0
        %v822 = vsel %vm666, %v806, 0.0
        %v823 = vsel %vm667, %v807, 0.0
        %v824 = vsel %vm668, %v808, 0.0
        %v825 = vsel %vm669, %v809, 0.0
        %v826 = vsel %vm670, %v802, 0.0
        %v827 = vsel %vm671, %v803, 0.0
        %v828 = vsel %vm672, %v804, 0.0
        %v829 = vsel %vm673, %v805, 0.0
        %v830 = vsel %vm674, %v806, 0.0
        %v831 = vsel %vm675, %v807, 0.0
        %v832 = vsel %vm676, %v808, 0.0
        %v833 = vsel %vm677, %v809, 0.0
        %v834 = vsel %vm678, %v802, 0.0
        %v835 = vsel %vm679, %v803, 0.0
        %v836 = vsel %vm680, %v804, 0.0
        %v837 = vsel %vm681, %v805, 0.0
        %v838 = vsel %vm682, %v806, 0.0
        %v839 = vsel %vm683, %v807, 0.0
        %v840 = vsel %vm684, %v808, 0.0
        %v841 = vsel %vm685, %v809, 0.0
        %v842 = vsel %vm686, %v802, 0.0
        %v843 = vsel %vm687, %v803, 0.0
        %v844 = vsel %vm688, %v804, 0.0
        %v845 = vsel %vm689, %v805, 0.0
        %v846 = vsel %vm690, %v806, 0.0
        %v847 = vsel %vm691, %v807, 0.0
        %v848 = vsel %vm692, %v808, 0.0
        %v849 = vsel %vm693, %v809, 0.0
        %v850 = vsel %vm694, %v802, 0.0
        %v851 = vsel %vm695, %v803, 0.0
        %v852 = vsel %vm696, %v804, 0.0
        %v853 = vsel %vm697, %v805, 0.0
        %v854 = vsel %vm698, %v806, 0.0
        %v855 = vsel %vm699, %v807, 0.0
        %v856 = vsel %vm700, %v808, 0.0
        %v857 = vsel %vm701, %v809, 0.0
        %v858 = vsel %vm702, %v802, 0.0
        %v859 = vsel %vm703, %v803, 0.0
        %v860 = vsel %vm704, %v804, 0.0
        %v861 = vsel %vm705, %v805, 0.0
        %v862 = vsel %vm706, %v806, 0.0
        %v863 = vsel %vm707, %v807, 0.0
        %v864 = vsel %vm708, %v808, 0.0
        %v865 = vsel %vm709, %v809, 0.0
        %v866 = vsel %vm710, %v802, 0.0
        %v867 = vsel %vm711, %v803, 0.0
        %v868 = vsel %vm712, %v804, 0.0
        %v869 = vsel %vm713, %v805, 0.0
        %v870 = vsel %vm714, %v806, 0.0
        %v871 = vsel %vm715, %v807, 0.0
        %v872 = vsel %vm716, %v808, 0.0
        %v873 = vsel %vm717, %v809, 0.0
        %v874 = vsel %vm718, %v802, 0.0
        %v875 = vsel %vm719, %v803, 0.0
        %v876 = vsel %vm720, %v804, 0.0
        %v877 = vsel %vm721, %v805, 0.0
        %v878 = vsel %vm722, %v806, 0.0
        %v879 = vsel %vm723, %v807, 0.0
        %v880 = vsel %vm724, %v808, 0.0
        %v881 = vsel %vm725, %v809, 0.0
        %v882 = vsel %vm726, %v802, 0.0
        %v883 = vsel %vm727, %v803, 0.0
        %v884 = vsel %vm728, %v804, 0.0
        %v885 = vsel %vm729, %v805, 0.0
        %v886 = vsel %vm730, %v806, 0.0
        %v887 = vsel %vm731, %v807, 0.0
        %v888 = vsel %vm732, %v808, 0.0
        %v889 = vsel %vm733, %v809, 0.0
        %v890 = vsel %vm734, %v802, 0.0
        %v891 = vsel %vm735, %v803, 0.0
        %v892 = vsel %vm736, %v804, 0.0
        %v893 = vsel %vm737, %v805, 0.0
        %v894 = vsel %vm738, %v806, 0.0
        %v895 = vsel %vm739, %v807, 0.0
        %v896 = vsel %vm740, %v808, 0.0
        %v897 = vsel %vm741, %v809, 0.0
        %v898 = vsel %vm742, %v802, 0.0
        %v899 = vsel %vm743, %v803, 0.0
        %v900 = vsel %vm744, %v804, 0.0
        %v901 = vsel %vm745, %v805, 0.0
        %v902 = vsel %vm746, %v806, 0.0
        %v903 = vsel %vm747, %v807, 0.0
        %v904 = vsel %vm748, %v808, 0.0
        %v905 = vsel %vm749, %v809, 0.0
        %v906 = vsel %vm750, %v802, 0.0
        %v907 = vsel %vm751, %v803, 0.0
        %v908 = vsel %vm752, %v804, 0.0
        %v909 = vsel %vm753, %v805, 0.0
        %v910 = vsel %vm754, %v806, 0.0
        %v911 = vsel %vm755, %v807, 0.0
        %v912 = vsel %vm756, %v808, 0.0
        %v913 = vsel %vm757, %v809, 0.0
        %v914 = vsel %vm758, %v802, 0.0
        %v915 = vsel %vm759, %v803, 0.0
        %v916 = vsel %vm760, %v804, 0.0
        %v917 = vsel %vm761, %v805, 0.0
        %v918 = vsel %vm762, %v806, 0.0
        %v919 = vsel %vm763, %v807, 0.0
        %v920 = vsel %vm764, %v808, 0.0
        %v921 = vsel %vm765, %v809, 0.0
        %v922 = vsel %vm766, %v802, 0.0
        %v923 = vsel %vm767, %v803, 0.0
        %v924 = vsel %vm768, %v804, 0.0
        %v925 = vsel %vm769, %v805, 0.0
        %v926 = vsel %vm770, %v806, 0.0
        %v927 = vsel %vm771, %v807, 0.0
        %v928 = vsel %vm772, %v808, 0.0
        %v929 = vsel %vm773, %v809, 0.0
        %v930 = vsel %vm774, %v802, 0.0
        %v931 = vsel %vm775, %v803, 0.0
        %v932 = vsel %vm776, %v804, 0.0
        %v933 = vsel %vm777, %v805, 0.0
        %v934 = vsel %vm778, %v806, 0.0
        %v935 = vsel %vm779, %v807, 0.0
        %v936 = vsel %vm780, %v808, 0.0
        %v937 = vsel %vm781, %v809, 0.0
        %v938 = vadd.f32 %v478, %v810
        %v939 = vadd.f32 %v479, %v811
        %v940 = vadd.f32 %v480, %v812
        %v941 = vadd.f32 %v481, %v813
        %v942 = vadd.f32 %v482, %v814
        %v943 = vadd.f32 %v483, %v815
        %v944 = vadd.f32 %v484, %v816
        %v945 = vadd.f32 %v485, %v817
        %v946 = vadd.f32 %v486, %v818
        %v947 = vadd.f32 %v487, %v819
        %v948 = vadd.f32 %v488, %v820
        %v949 = vadd.f32 %v489, %v821
        %v950 = vadd.f32 %v490, %v822
        %v951 = vadd.f32 %v491, %v823
        %v952 = vadd.f32 %v492, %v824
        %v953 = vadd.f32 %v493, %v825
        %v954 = vadd.f32 %v494, %v826
        %v955 = vadd.f32 %v495, %v827
        %v956 = vadd.f32 %v496, %v828
        %v957 = vadd.f32 %v497, %v829
        %v958 = vadd.f32 %v498, %v830
        %v959 = vadd.f32 %v499, %v831
        %v960 = vadd.f32 %v500, %v832
        %v961 = vadd.f32 %v501, %v833
        %v962 = vadd.f32 %v502, %v834
        %v963 = vadd.f32 %v503, %v835
        %v964 = vadd.f32 %v504, %v836
        %v965 = vadd.f32 %v505, %v837
        %v966 = vadd.f32 %v506, %v838
        %v967 = vadd.f32 %v507, %v839
        %v968 = vadd.f32 %v508, %v840
        %v969 = vadd.f32 %v509, %v841
        %v970 = vadd.f32 %v510, %v842
        %v971 = vadd.f32 %v511, %v843
        %v972 = vadd.f32 %v512, %v844
        %v973 = vadd.f32 %v513, %v845
        %v974 = vadd.f32 %v514, %v846
        %v975 = vadd.f32 %v515, %v847
        %v976 = vadd.f32 %v516, %v848
        %v977 = vadd.f32 %v517, %v849
        %v978 = vadd.f32 %v518, %v850
        %v979 = vadd.f32 %v519, %v851
        %v980 = vadd.f32 %v520, %v852
        %v981 = vadd.f32 %v521, %v853
        %v982 = vadd.f32 %v522, %v854
        %v983 = vadd.f32 %v523, %v855
        %v984 = vadd.f32 %v524, %v856
        %v985 = vadd.f32 %v525, %v857
        %v986 = vadd.f32 %v526, %v858
        %v987 = vadd.f32 %v527, %v859
        %v988 = vadd.f32 %v528, %v860
        %v989 = vadd.f32 %v529, %v861
        %v990 = vadd.f32 %v530, %v862
        %v991 = vadd.f32 %v531, %v863
        %v992 = vadd.f32 %v532, %v864
        %v993 = vadd.f32 %v533, %v865
        %v994 = vadd.f32 %v534, %v866
        %v995 = vadd.f32 %v535, %v867
        %v996 = vadd.f32 %v536, %v868
        %v997 = vadd.f32 %v537, %v869
        %v998 = vadd.f32 %v538, %v870
        %v999 = vadd.f32 %v539, %v871
        %v1000 = vadd.f32 %v540, %v872
        %v1001 = vadd.f32 %v541, %v873
        %v1002 = vadd.f32 %v542, %v874
        %v1003 = vadd.f32 %v543, %v875
        %v1004 = vadd.f32 %v544, %v876
        %v1005 = vadd.f32 %v545, %v877
        %v1006 = vadd.f32 %v546, %v878
        %v1007 = vadd.f32 %v547, %v879
        %v1008 = vadd.f32 %v548, %v880
        %v1009 = vadd.f32 %v549, %v881
        %v1010 = vadd.f32 %v550, %v882
        %v1011 = vadd.f32 %v551, %v883
        %v1012 = vadd.f32 %v552, %v884
        %v1013 = vadd.f32 %v553, %v885
        %v1014 = vadd.f32 %v554, %v886
        %v1015 = vadd.f32 %v555, %v887
        %v1016 = vadd.f32 %v556, %v888
        %v1017 = vadd.f32 %v557, %v889
        %v1018 = vadd.f32 %v558, %v890
        %v1019 = vadd.f32 %v559, %v891
        %v1020 = vadd.f32 %v560, %v892
        %v1021 = vadd.f32 %v561, %v893
        %v1022 = vadd.f32 %v562, %v894
        %v1023 = vadd.f32 %v563, %v895
        %v1024 = vadd.f32 %v564, %v896
        %v1025 = vadd.f32 %v565, %v897
        %v1026 = vadd.f32 %v566, %v898
        %v1027 = vadd.f32 %v567, %v899
        %v1028 = vadd.f32 %v568, %v900
        %v1029 = vadd.f32 %v569, %v901
        %v1030 = vadd.f32 %v570, %v902
        %v1031 = vadd.f32 %v571, %v903
        %v1032 = vadd.f32 %v572, %v904
        %v1033 = vadd.f32 %v573, %v905
        %v1034 = vadd.f32 %v574, %v906
        %v1035 = vadd.f32 %v575, %v907
        %v1036 = vadd.f32 %v576, %v908
        %v1037 = vadd.f32 %v577, %v909
        %v1038 = vadd.f32 %v578, %v910
        %v1039 = vadd.f32 %v579, %v911
        %v1040 = vadd.f32 %v580, %v912
        %v1041 = vadd.f32 %v581, %v913
        %v1042 = vadd.f32 %v582, %v914
        %v1043 = vadd.f32 %v583, %v915
        %v1044 = vadd.f32 %v584, %v916
        %v1045 = vadd.f32 %v585, %v917
        %v1046 = vadd.f32 %v586, %v918
        %v1047 = vadd.f32 %v587, %v919
        %v1048 = vadd.f32 %v588, %v920
        %v1049 = vadd.f32 %v589, %v921
        %v1050 = vadd.f32 %v590, %v922
        %v1051 = vadd.f32 %v591, %v923
        %v1052 = vadd.f32 %v592, %v924
        %v1053 = vadd.f32 %v593, %v925
        %v1054 = vadd.f32 %v594, %v926
        %v1055 = vadd.f32 %v595, %v927
        %v1056 = vadd.f32 %v596, %v928
        %v1057 = vadd.f32 %v597, %v929
        %v1058 = vadd.f32 %v598, %v930
        %v1059 = vadd.f32 %v599, %v931
        %v1060 = vadd.f32 %v600, %v932
        %v1061 = vadd.f32 %v601, %v933
        %v1062 = vadd.f32 %v602, %v934
        %v1063 = vadd.f32 %v603, %v935
        %v1064 = vadd.f32 %v604, %v936
        %v1065 = vadd.f32 %v605, %v937
        %v1066 = vmul.f32 %v237, %v275
        %v1067 = vmul.f32 %v238, %v277
        %v1068 = vmul.f32 %v239, %v279
        %v1069 = vmul.f32 %v240, %v281
        %v1070 = vmul.u32 %v218, 16
        %v1071 = vmul.u32 %v220, 16
        %v1072 = vmul.u32 %v222, 16
        %v1073 = vmul.u32 %v224, 16
        %v1074 = vadd.s32 %v1070, %v295
        %v1075 = vadd.s32 %v1071, %v297
        %v1076 = vadd.s32 %v1072, %v299
        %v1077 = vadd.s32 %v1073, %v301
        %v1078 = vperm.slane %v1074, 0
        %v1079 = vperm.slane %v1074, 4
        %v1080 = vperm.slane %v1075, 0
        %v1081 = vperm.slane %v1075, 4
        %v1082 = vperm.slane %v1076, 0
        %v1083 = vperm.slane %v1076, 4
        %v1084 = vperm.slane %v1077, 0
        %v1085 = vperm.slane %v1077, 4
        %v1086 = vperm.slane %v1078, 0
        %v1087 = vperm.slane %v1079, 0
        %v1088 = vperm.slane %v1080, 0
        %v1089 = vperm.slane %v1081, 0
        %v1090 = vperm.slane %v1082, 0
        %v1091 = vperm.slane %v1083, 0
        %v1092 = vperm.slane %v1084, 0
        %v1093 = vperm.slane %v1085, 0
        %vm1094 = vcmp.eq.s32.totalorder %v254, %v1086
        %vm1095 = vcmp.eq.s32.totalorder %v254, %v1087
        %vm1096 = vcmp.eq.s32.totalorder %v254, %v1088
        %vm1097 = vcmp.eq.s32.totalorder %v254, %v1089
        %vm1098 = vcmp.eq.s32.totalorder %v254, %v1090
        %vm1099 = vcmp.eq.s32.totalorder %v254, %v1091
        %vm1100 = vcmp.eq.s32.totalorder %v254, %v1092
        %vm1101 = vcmp.eq.s32.totalorder %v254, %v1093
        %vm1102 = vcmp.eq.s32.totalorder %v255, %v1086
        %vm1103 = vcmp.eq.s32.totalorder %v255, %v1087
        %vm1104 = vcmp.eq.s32.totalorder %v255, %v1088
        %vm1105 = vcmp.eq.s32.totalorder %v255, %v1089
        %vm1106 = vcmp.eq.s32.totalorder %v255, %v1090
        %vm1107 = vcmp.eq.s32.totalorder %v255, %v1091
        %vm1108 = vcmp.eq.s32.totalorder %v255, %v1092
        %vm1109 = vcmp.eq.s32.totalorder %v255, %v1093
        %vm1110 = vcmp.eq.s32.totalorder %v256, %v1086
        %vm1111 = vcmp.eq.s32.totalorder %v256, %v1087
        %vm1112 = vcmp.eq.s32.totalorder %v256, %v1088
        %vm1113 = vcmp.eq.s32.totalorder %v256, %v1089
        %vm1114 = vcmp.eq.s32.totalorder %v256, %v1090
        %vm1115 = vcmp.eq.s32.totalorder %v256, %v1091
        %vm1116 = vcmp.eq.s32.totalorder %v256, %v1092
        %vm1117 = vcmp.eq.s32.totalorder %v256, %v1093
        %vm1118 = vcmp.eq.s32.totalorder %v257, %v1086
        %vm1119 = vcmp.eq.s32.totalorder %v257, %v1087
        %vm1120 = vcmp.eq.s32.totalorder %v257, %v1088
        %vm1121 = vcmp.eq.s32.totalorder %v257, %v1089
        %vm1122 = vcmp.eq.s32.totalorder %v257, %v1090
        %vm1123 = vcmp.eq.s32.totalorder %v257, %v1091
        %vm1124 = vcmp.eq.s32.totalorder %v257, %v1092
        %vm1125 = vcmp.eq.s32.totalorder %v257, %v1093
        %vm1126 = vcmp.eq.s32.totalorder %v258, %v1086
        %vm1127 = vcmp.eq.s32.totalorder %v258, %v1087
        %vm1128 = vcmp.eq.s32.totalorder %v258, %v1088
        %vm1129 = vcmp.eq.s32.totalorder %v258, %v1089
        %vm1130 = vcmp.eq.s32.totalorder %v258, %v1090
        %vm1131 = vcmp.eq.s32.totalorder %v258, %v1091
        %vm1132 = vcmp.eq.s32.totalorder %v258, %v1092
        %vm1133 = vcmp.eq.s32.totalorder %v258, %v1093
        %vm1134 = vcmp.eq.s32.totalorder %v259, %v1086
        %vm1135 = vcmp.eq.s32.totalorder %v259, %v1087
        %vm1136 = vcmp.eq.s32.totalorder %v259, %v1088
        %vm1137 = vcmp.eq.s32.totalorder %v259, %v1089
        %vm1138 = vcmp.eq.s32.totalorder %v259, %v1090
        %vm1139 = vcmp.eq.s32.totalorder %v259, %v1091
        %vm1140 = vcmp.eq.s32.totalorder %v259, %v1092
        %vm1141 = vcmp.eq.s32.totalorder %v259, %v1093
        %vm1142 = vcmp.eq.s32.totalorder %v260, %v1086
        %vm1143 = vcmp.eq.s32.totalorder %v260, %v1087
        %vm1144 = vcmp.eq.s32.totalorder %v260, %v1088
        %vm1145 = vcmp.eq.s32.totalorder %v260, %v1089
        %vm1146 = vcmp.eq.s32.totalorder %v260, %v1090
        %vm1147 = vcmp.eq.s32.totalorder %v260, %v1091
        %vm1148 = vcmp.eq.s32.totalorder %v260, %v1092
        %vm1149 = vcmp.eq.s32.totalorder %v260, %v1093
        %vm1150 = vcmp.eq.s32.totalorder %v261, %v1086
        %vm1151 = vcmp.eq.s32.totalorder %v261, %v1087
        %vm1152 = vcmp.eq.s32.totalorder %v261, %v1088
        %vm1153 = vcmp.eq.s32.totalorder %v261, %v1089
        %vm1154 = vcmp.eq.s32.totalorder %v261, %v1090
        %vm1155 = vcmp.eq.s32.totalorder %v261, %v1091
        %vm1156 = vcmp.eq.s32.totalorder %v261, %v1092
        %vm1157 = vcmp.eq.s32.totalorder %v261, %v1093
        %vm1158 = vcmp.eq.s32.totalorder %v262, %v1086
        %vm1159 = vcmp.eq.s32.totalorder %v262, %v1087
        %vm1160 = vcmp.eq.s32.totalorder %v262, %v1088
        %vm1161 = vcmp.eq.s32.totalorder %v262, %v1089
        %vm1162 = vcmp.eq.s32.totalorder %v262, %v1090
        %vm1163 = vcmp.eq.s32.totalorder %v262, %v1091
        %vm1164 = vcmp.eq.s32.totalorder %v262, %v1092
        %vm1165 = vcmp.eq.s32.totalorder %v262, %v1093
        %vm1166 = vcmp.eq.s32.totalorder %v263, %v1086
        %vm1167 = vcmp.eq.s32.totalorder %v263, %v1087
        %vm1168 = vcmp.eq.s32.totalorder %v263, %v1088
        %vm1169 = vcmp.eq.s32.totalorder %v263, %v1089
        %vm1170 = vcmp.eq.s32.totalorder %v263, %v1090
        %vm1171 = vcmp.eq.s32.totalorder %v263, %v1091
        %vm1172 = vcmp.eq.s32.totalorder %v263, %v1092
        %vm1173 = vcmp.eq.s32.totalorder %v263, %v1093
        %vm1174 = vcmp.eq.s32.totalorder %v264, %v1086
        %vm1175 = vcmp.eq.s32.totalorder %v264, %v1087
        %vm1176 = vcmp.eq.s32.totalorder %v264, %v1088
        %vm1177 = vcmp.eq.s32.totalorder %v264, %v1089
        %vm1178 = vcmp.eq.s32.totalorder %v264, %v1090
        %vm1179 = vcmp.eq.s32.totalorder %v264, %v1091
        %vm1180 = vcmp.eq.s32.totalorder %v264, %v1092
        %vm1181 = vcmp.eq.s32.totalorder %v264, %v1093
        %vm1182 = vcmp.eq.s32.totalorder %v265, %v1086
        %vm1183 = vcmp.eq.s32.totalorder %v265, %v1087
        %vm1184 = vcmp.eq.s32.totalorder %v265, %v1088
        %vm1185 = vcmp.eq.s32.totalorder %v265, %v1089
        %vm1186 = vcmp.eq.s32.totalorder %v265, %v1090
        %vm1187 = vcmp.eq.s32.totalorder %v265, %v1091
        %vm1188 = vcmp.eq.s32.totalorder %v265, %v1092
        %vm1189 = vcmp.eq.s32.totalorder %v265, %v1093
        %vm1190 = vcmp.eq.s32.totalorder %v266, %v1086
        %vm1191 = vcmp.eq.s32.totalorder %v266, %v1087
        %vm1192 = vcmp.eq.s32.totalorder %v266, %v1088
        %vm1193 = vcmp.eq.s32.totalorder %v266, %v1089
        %vm1194 = vcmp.eq.s32.totalorder %v266, %v1090
        %vm1195 = vcmp.eq.s32.totalorder %v266, %v1091
        %vm1196 = vcmp.eq.s32.totalorder %v266, %v1092
        %vm1197 = vcmp.eq.s32.totalorder %v266, %v1093
        %vm1198 = vcmp.eq.s32.totalorder %v267, %v1086
        %vm1199 = vcmp.eq.s32.totalorder %v267, %v1087
        %vm1200 = vcmp.eq.s32.totalorder %v267, %v1088
        %vm1201 = vcmp.eq.s32.totalorder %v267, %v1089
        %vm1202 = vcmp.eq.s32.totalorder %v267, %v1090
        %vm1203 = vcmp.eq.s32.totalorder %v267, %v1091
        %vm1204 = vcmp.eq.s32.totalorder %v267, %v1092
        %vm1205 = vcmp.eq.s32.totalorder %v267, %v1093
        %vm1206 = vcmp.eq.s32.totalorder %v268, %v1086
        %vm1207 = vcmp.eq.s32.totalorder %v268, %v1087
        %vm1208 = vcmp.eq.s32.totalorder %v268, %v1088
        %vm1209 = vcmp.eq.s32.totalorder %v268, %v1089
        %vm1210 = vcmp.eq.s32.totalorder %v268, %v1090
        %vm1211 = vcmp.eq.s32.totalorder %v268, %v1091
        %vm1212 = vcmp.eq.s32.totalorder %v268, %v1092
        %vm1213 = vcmp.eq.s32.totalorder %v268, %v1093
        %vm1214 = vcmp.eq.s32.totalorder %v269, %v1086
        %vm1215 = vcmp.eq.s32.totalorder %v269, %v1087
        %vm1216 = vcmp.eq.s32.totalorder %v269, %v1088
        %vm1217 = vcmp.eq.s32.totalorder %v269, %v1089
        %vm1218 = vcmp.eq.s32.totalorder %v269, %v1090
        %vm1219 = vcmp.eq.s32.totalorder %v269, %v1091
        %vm1220 = vcmp.eq.s32.totalorder %v269, %v1092
        %vm1221 = vcmp.eq.s32.totalorder %v269, %v1093
        %v1226 = vperm.slane %v1066, 0
        %v1227 = vperm.slane %v1066, 4
        %v1228 = vperm.slane %v1067, 0
        %v1229 = vperm.slane %v1067, 4
        %v1230 = vperm.slane %v1068, 0
        %v1231 = vperm.slane %v1068, 4
        %v1232 = vperm.slane %v1069, 0
        %v1233 = vperm.slane %v1069, 4
        %v1242 = vperm.slane %v1226, 0
        %v1243 = vperm.slane %v1227, 0
        %v1244 = vperm.slane %v1228, 0
        %v1245 = vperm.slane %v1229, 0
        %v1246 = vperm.slane %v1230, 0
        %v1247 = vperm.slane %v1231, 0
        %v1248 = vperm.slane %v1232, 0
        %v1249 = vperm.slane %v1233, 0
        %v1250 = vsel %vm1094, %v1242, 0.0
        %v1251 = vsel %vm1095, %v1243, 0.0
        %v1252 = vsel %vm1096, %v1244, 0.0
        %v1253 = vsel %vm1097, %v1245, 0.0
        %v1254 = vsel %vm1098, %v1246, 0.0
        %v1255 = vsel %vm1099, %v1247, 0.0
        %v1256 = vsel %vm1100, %v1248, 0.0
        %v1257 = vsel %vm1101, %v1249, 0.0
        %v1258 = vsel %vm1102, %v1242, 0.0
        %v1259 = vsel %vm1103, %v1243, 0.0
        %v1260 = vsel %vm1104, %v1244, 0.0
        %v1261 = vsel %vm1105, %v1245, 0.0
        %v1262 = vsel %vm1106, %v1246, 0.0
        %v1263 = vsel %vm1107, %v1247, 0.0
        %v1264 = vsel %vm1108, %v1248, 0.0
        %v1265 = vsel %vm1109, %v1249, 0.0
        %v1266 = vsel %vm1110, %v1242, 0.0
        %v1267 = vsel %vm1111, %v1243, 0.0
        %v1268 = vsel %vm1112, %v1244, 0.0
        %v1269 = vsel %vm1113, %v1245, 0.0
        %v1270 = vsel %vm1114, %v1246, 0.0
        %v1271 = vsel %vm1115, %v1247, 0.0
        %v1272 = vsel %vm1116, %v1248, 0.0
        %v1273 = vsel %vm1117, %v1249, 0.0
        %v1274 = vsel %vm1118, %v1242, 0.0
        %v1275 = vsel %vm1119, %v1243, 0.0
        %v1276 = vsel %vm1120, %v1244, 0.0
        %v1277 = vsel %vm1121, %v1245, 0.0
        %v1278 = vsel %vm1122, %v1246, 0.0
        %v1279 = vsel %vm1123, %v1247, 0.0
        %v1280 = vsel %vm1124, %v1248, 0.0
        %v1281 = vsel %vm1125, %v1249, 0.0
        %v1282 = vsel %vm1126, %v1242, 0.0
        %v1283 = vsel %vm1127, %v1243, 0.0
        %v1284 = vsel %vm1128, %v1244, 0.0
        %v1285 = vsel %vm1129, %v1245, 0.0
        %v1286 = vsel %vm1130, %v1246, 0.0
        %v1287 = vsel %vm1131, %v1247, 0.0
        %v1288 = vsel %vm1132, %v1248, 0.0
        %v1289 = vsel %vm1133, %v1249, 0.0
        %v1290 = vsel %vm1134, %v1242, 0.0
        %v1291 = vsel %vm1135, %v1243, 0.0
        %v1292 = vsel %vm1136, %v1244, 0.0
        %v1293 = vsel %vm1137, %v1245, 0.0
        %v1294 = vsel %vm1138, %v1246, 0.0
        %v1295 = vsel %vm1139, %v1247, 0.0
        %v1296 = vsel %vm1140, %v1248, 0.0
        %v1297 = vsel %vm1141, %v1249, 0.0
        %v1298 = vsel %vm1142, %v1242, 0.0
        %v1299 = vsel %vm1143, %v1243, 0.0
        %v1300 = vsel %vm1144, %v1244, 0.0
        %v1301 = vsel %vm1145, %v1245, 0.0
        %v1302 = vsel %vm1146, %v1246, 0.0
        %v1303 = vsel %vm1147, %v1247, 0.0
        %v1304 = vsel %vm1148, %v1248, 0.0
        %v1305 = vsel %vm1149, %v1249, 0.0
        %v1306 = vsel %vm1150, %v1242, 0.0
        %v1307 = vsel %vm1151, %v1243, 0.0
        %v1308 = vsel %vm1152, %v1244, 0.0
        %v1309 = vsel %vm1153, %v1245, 0.0
        %v1310 = vsel %vm1154, %v1246, 0.0
        %v1311 = vsel %vm1155, %v1247, 0.0
        %v1312 = vsel %vm1156, %v1248, 0.0
        %v1313 = vsel %vm1157, %v1249, 0.0
        %v1314 = vsel %vm1158, %v1242, 0.0
        %v1315 = vsel %vm1159, %v1243, 0.0
        %v1316 = vsel %vm1160, %v1244, 0.0
        %v1317 = vsel %vm1161, %v1245, 0.0
        %v1318 = vsel %vm1162, %v1246, 0.0
        %v1319 = vsel %vm1163, %v1247, 0.0
        %v1320 = vsel %vm1164, %v1248, 0.0
        %v1321 = vsel %vm1165, %v1249, 0.0
        %v1322 = vsel %vm1166, %v1242, 0.0
        %v1323 = vsel %vm1167, %v1243, 0.0
        %v1324 = vsel %vm1168, %v1244, 0.0
        %v1325 = vsel %vm1169, %v1245, 0.0
        %v1326 = vsel %vm1170, %v1246, 0.0
        %v1327 = vsel %vm1171, %v1247, 0.0
        %v1328 = vsel %vm1172, %v1248, 0.0
        %v1329 = vsel %vm1173, %v1249, 0.0
        %v1330 = vsel %vm1174, %v1242, 0.0
        %v1331 = vsel %vm1175, %v1243, 0.0
        %v1332 = vsel %vm1176, %v1244, 0.0
        %v1333 = vsel %vm1177, %v1245, 0.0
        %v1334 = vsel %vm1178, %v1246, 0.0
        %v1335 = vsel %vm1179, %v1247, 0.0
        %v1336 = vsel %vm1180, %v1248, 0.0
        %v1337 = vsel %vm1181, %v1249, 0.0
        %v1338 = vsel %vm1182, %v1242, 0.0
        %v1339 = vsel %vm1183, %v1243, 0.0
        %v1340 = vsel %vm1184, %v1244, 0.0
        %v1341 = vsel %vm1185, %v1245, 0.0
        %v1342 = vsel %vm1186, %v1246, 0.0
        %v1343 = vsel %vm1187, %v1247, 0.0
        %v1344 = vsel %vm1188, %v1248, 0.0
        %v1345 = vsel %vm1189, %v1249, 0.0
        %v1346 = vsel %vm1190, %v1242, 0.0
        %v1347 = vsel %vm1191, %v1243, 0.0
        %v1348 = vsel %vm1192, %v1244, 0.0
        %v1349 = vsel %vm1193, %v1245, 0.0
        %v1350 = vsel %vm1194, %v1246, 0.0
        %v1351 = vsel %vm1195, %v1247, 0.0
        %v1352 = vsel %vm1196, %v1248, 0.0
        %v1353 = vsel %vm1197, %v1249, 0.0
        %v1354 = vsel %vm1198, %v1242, 0.0
        %v1355 = vsel %vm1199, %v1243, 0.0
        %v1356 = vsel %vm1200, %v1244, 0.0
        %v1357 = vsel %vm1201, %v1245, 0.0
        %v1358 = vsel %vm1202, %v1246, 0.0
        %v1359 = vsel %vm1203, %v1247, 0.0
        %v1360 = vsel %vm1204, %v1248, 0.0
        %v1361 = vsel %vm1205, %v1249, 0.0
        %v1362 = vsel %vm1206, %v1242, 0.0
        %v1363 = vsel %vm1207, %v1243, 0.0
        %v1364 = vsel %vm1208, %v1244, 0.0
        %v1365 = vsel %vm1209, %v1245, 0.0
        %v1366 = vsel %vm1210, %v1246, 0.0
        %v1367 = vsel %vm1211, %v1247, 0.0
        %v1368 = vsel %vm1212, %v1248, 0.0
        %v1369 = vsel %vm1213, %v1249, 0.0
        %v1370 = vsel %vm1214, %v1242, 0.0
        %v1371 = vsel %vm1215, %v1243, 0.0
        %v1372 = vsel %vm1216, %v1244, 0.0
        %v1373 = vsel %vm1217, %v1245, 0.0
        %v1374 = vsel %vm1218, %v1246, 0.0
        %v1375 = vsel %vm1219, %v1247, 0.0
        %v1376 = vsel %vm1220, %v1248, 0.0
        %v1377 = vsel %vm1221, %v1249, 0.0
        %v1378 = vadd.f32 %v938, %v1250
        %v1379 = vadd.f32 %v939, %v1251
        %v1380 = vadd.f32 %v940, %v1252
        %v1381 = vadd.f32 %v941, %v1253
        %v1382 = vadd.f32 %v942, %v1254
        %v1383 = vadd.f32 %v943, %v1255
        %v1384 = vadd.f32 %v944, %v1256
        %v1385 = vadd.f32 %v945, %v1257
        %v1386 = vadd.f32 %v946, %v1258
        %v1387 = vadd.f32 %v947, %v1259
        %v1388 = vadd.f32 %v948, %v1260
        %v1389 = vadd.f32 %v949, %v1261
        %v1390 = vadd.f32 %v950, %v1262
        %v1391 = vadd.f32 %v951, %v1263
        %v1392 = vadd.f32 %v952, %v1264
        %v1393 = vadd.f32 %v953, %v1265
        %v1394 = vadd.f32 %v954, %v1266
        %v1395 = vadd.f32 %v955, %v1267
        %v1396 = vadd.f32 %v956, %v1268
        %v1397 = vadd.f32 %v957, %v1269
        %v1398 = vadd.f32 %v958, %v1270
        %v1399 = vadd.f32 %v959, %v1271
        %v1400 = vadd.f32 %v960, %v1272
        %v1401 = vadd.f32 %v961, %v1273
        %v1402 = vadd.f32 %v962, %v1274
        %v1403 = vadd.f32 %v963, %v1275
        %v1404 = vadd.f32 %v964, %v1276
        %v1405 = vadd.f32 %v965, %v1277
        %v1406 = vadd.f32 %v966, %v1278
        %v1407 = vadd.f32 %v967, %v1279
        %v1408 = vadd.f32 %v968, %v1280
        %v1409 = vadd.f32 %v969, %v1281
        %v1410 = vadd.f32 %v970, %v1282
        %v1411 = vadd.f32 %v971, %v1283
        %v1412 = vadd.f32 %v972, %v1284
        %v1413 = vadd.f32 %v973, %v1285
        %v1414 = vadd.f32 %v974, %v1286
        %v1415 = vadd.f32 %v975, %v1287
        %v1416 = vadd.f32 %v976, %v1288
        %v1417 = vadd.f32 %v977, %v1289
        %v1418 = vadd.f32 %v978, %v1290
        %v1419 = vadd.f32 %v979, %v1291
        %v1420 = vadd.f32 %v980, %v1292
        %v1421 = vadd.f32 %v981, %v1293
        %v1422 = vadd.f32 %v982, %v1294
        %v1423 = vadd.f32 %v983, %v1295
        %v1424 = vadd.f32 %v984, %v1296
        %v1425 = vadd.f32 %v985, %v1297
        %v1426 = vadd.f32 %v986, %v1298
        %v1427 = vadd.f32 %v987, %v1299
        %v1428 = vadd.f32 %v988, %v1300
        %v1429 = vadd.f32 %v989, %v1301
        %v1430 = vadd.f32 %v990, %v1302
        %v1431 = vadd.f32 %v991, %v1303
        %v1432 = vadd.f32 %v992, %v1304
        %v1433 = vadd.f32 %v993, %v1305
        %v1434 = vadd.f32 %v994, %v1306
        %v1435 = vadd.f32 %v995, %v1307
        %v1436 = vadd.f32 %v996, %v1308
        %v1437 = vadd.f32 %v997, %v1309
        %v1438 = vadd.f32 %v998, %v1310
        %v1439 = vadd.f32 %v999, %v1311
        %v1440 = vadd.f32 %v1000, %v1312
        %v1441 = vadd.f32 %v1001, %v1313
        %v1442 = vadd.f32 %v1002, %v1314
        %v1443 = vadd.f32 %v1003, %v1315
        %v1444 = vadd.f32 %v1004, %v1316
        %v1445 = vadd.f32 %v1005, %v1317
        %v1446 = vadd.f32 %v1006, %v1318
        %v1447 = vadd.f32 %v1007, %v1319
        %v1448 = vadd.f32 %v1008, %v1320
        %v1449 = vadd.f32 %v1009, %v1321
        %v1450 = vadd.f32 %v1010, %v1322
        %v1451 = vadd.f32 %v1011, %v1323
        %v1452 = vadd.f32 %v1012, %v1324
        %v1453 = vadd.f32 %v1013, %v1325
        %v1454 = vadd.f32 %v1014, %v1326
        %v1455 = vadd.f32 %v1015, %v1327
        %v1456 = vadd.f32 %v1016, %v1328
        %v1457 = vadd.f32 %v1017, %v1329
        %v1458 = vadd.f32 %v1018, %v1330
        %v1459 = vadd.f32 %v1019, %v1331
        %v1460 = vadd.f32 %v1020, %v1332
        %v1461 = vadd.f32 %v1021, %v1333
        %v1462 = vadd.f32 %v1022, %v1334
        %v1463 = vadd.f32 %v1023, %v1335
        %v1464 = vadd.f32 %v1024, %v1336
        %v1465 = vadd.f32 %v1025, %v1337
        %v1466 = vadd.f32 %v1026, %v1338
        %v1467 = vadd.f32 %v1027, %v1339
        %v1468 = vadd.f32 %v1028, %v1340
        %v1469 = vadd.f32 %v1029, %v1341
        %v1470 = vadd.f32 %v1030, %v1342
        %v1471 = vadd.f32 %v1031, %v1343
        %v1472 = vadd.f32 %v1032, %v1344
        %v1473 = vadd.f32 %v1033, %v1345
        %v1474 = vadd.f32 %v1034, %v1346
        %v1475 = vadd.f32 %v1035, %v1347
        %v1476 = vadd.f32 %v1036, %v1348
        %v1477 = vadd.f32 %v1037, %v1349
        %v1478 = vadd.f32 %v1038, %v1350
        %v1479 = vadd.f32 %v1039, %v1351
        %v1480 = vadd.f32 %v1040, %v1352
        %v1481 = vadd.f32 %v1041, %v1353
        %v1482 = vadd.f32 %v1042, %v1354
        %v1483 = vadd.f32 %v1043, %v1355
        %v1484 = vadd.f32 %v1044, %v1356
        %v1485 = vadd.f32 %v1045, %v1357
        %v1486 = vadd.f32 %v1046, %v1358
        %v1487 = vadd.f32 %v1047, %v1359
        %v1488 = vadd.f32 %v1048, %v1360
        %v1489 = vadd.f32 %v1049, %v1361
        %v1490 = vadd.f32 %v1050, %v1362
        %v1491 = vadd.f32 %v1051, %v1363
        %v1492 = vadd.f32 %v1052, %v1364
        %v1493 = vadd.f32 %v1053, %v1365
        %v1494 = vadd.f32 %v1054, %v1366
        %v1495 = vadd.f32 %v1055, %v1367
        %v1496 = vadd.f32 %v1056, %v1368
        %v1497 = vadd.f32 %v1057, %v1369
        %v1498 = vadd.f32 %v1058, %v1370
        %v1499 = vadd.f32 %v1059, %v1371
        %v1500 = vadd.f32 %v1060, %v1372
        %v1501 = vadd.f32 %v1061, %v1373
        %v1502 = vadd.f32 %v1062, %v1374
        %v1503 = vadd.f32 %v1063, %v1375
        %v1504 = vadd.f32 %v1064, %v1376
        %v1505 = vadd.f32 %v1065, %v1377
        %v1506 = vmul.f32 %v237, %v611
        %v1507 = vmul.f32 %v238, %v613
        %v1508 = vmul.f32 %v239, %v615
        %v1509 = vmul.f32 %v240, %v617
        %v1510 = vadd.s32 %v1070, %v627
        %v1511 = vadd.s32 %v1071, %v629
        %v1512 = vadd.s32 %v1072, %v631
        %v1513 = vadd.s32 %v1073, %v633
        %v1514 = vperm.slane %v1510, 0
        %v1515 = vperm.slane %v1510, 4
        %v1516 = vperm.slane %v1511, 0
        %v1517 = vperm.slane %v1511, 4
        %v1518 = vperm.slane %v1512, 0
        %v1519 = vperm.slane %v1512, 4
        %v1520 = vperm.slane %v1513, 0
        %v1521 = vperm.slane %v1513, 4
        %v1522 = vperm.slane %v1514, 0
        %v1523 = vperm.slane %v1515, 0
        %v1524 = vperm.slane %v1516, 0
        %v1525 = vperm.slane %v1517, 0
        %v1526 = vperm.slane %v1518, 0
        %v1527 = vperm.slane %v1519, 0
        %v1528 = vperm.slane %v1520, 0
        %v1529 = vperm.slane %v1521, 0
        %vm1530 = vcmp.eq.s32.totalorder %v254, %v1522
        %vm1531 = vcmp.eq.s32.totalorder %v254, %v1523
        %vm1532 = vcmp.eq.s32.totalorder %v254, %v1524
        %vm1533 = vcmp.eq.s32.totalorder %v254, %v1525
        %vm1534 = vcmp.eq.s32.totalorder %v254, %v1526
        %vm1535 = vcmp.eq.s32.totalorder %v254, %v1527
        %vm1536 = vcmp.eq.s32.totalorder %v254, %v1528
        %vm1537 = vcmp.eq.s32.totalorder %v254, %v1529
        %vm1538 = vcmp.eq.s32.totalorder %v255, %v1522
        %vm1539 = vcmp.eq.s32.totalorder %v255, %v1523
        %vm1540 = vcmp.eq.s32.totalorder %v255, %v1524
        %vm1541 = vcmp.eq.s32.totalorder %v255, %v1525
        %vm1542 = vcmp.eq.s32.totalorder %v255, %v1526
        %vm1543 = vcmp.eq.s32.totalorder %v255, %v1527
        %vm1544 = vcmp.eq.s32.totalorder %v255, %v1528
        %vm1545 = vcmp.eq.s32.totalorder %v255, %v1529
        %vm1546 = vcmp.eq.s32.totalorder %v256, %v1522
        %vm1547 = vcmp.eq.s32.totalorder %v256, %v1523
        %vm1548 = vcmp.eq.s32.totalorder %v256, %v1524
        %vm1549 = vcmp.eq.s32.totalorder %v256, %v1525
        %vm1550 = vcmp.eq.s32.totalorder %v256, %v1526
        %vm1551 = vcmp.eq.s32.totalorder %v256, %v1527
        %vm1552 = vcmp.eq.s32.totalorder %v256, %v1528
        %vm1553 = vcmp.eq.s32.totalorder %v256, %v1529
        %vm1554 = vcmp.eq.s32.totalorder %v257, %v1522
        %vm1555 = vcmp.eq.s32.totalorder %v257, %v1523
        %vm1556 = vcmp.eq.s32.totalorder %v257, %v1524
        %vm1557 = vcmp.eq.s32.totalorder %v257, %v1525
        %vm1558 = vcmp.eq.s32.totalorder %v257, %v1526
        %vm1559 = vcmp.eq.s32.totalorder %v257, %v1527
        %vm1560 = vcmp.eq.s32.totalorder %v257, %v1528
        %vm1561 = vcmp.eq.s32.totalorder %v257, %v1529
        %vm1562 = vcmp.eq.s32.totalorder %v258, %v1522
        %vm1563 = vcmp.eq.s32.totalorder %v258, %v1523
        %vm1564 = vcmp.eq.s32.totalorder %v258, %v1524
        %vm1565 = vcmp.eq.s32.totalorder %v258, %v1525
        %vm1566 = vcmp.eq.s32.totalorder %v258, %v1526
        %vm1567 = vcmp.eq.s32.totalorder %v258, %v1527
        %vm1568 = vcmp.eq.s32.totalorder %v258, %v1528
        %vm1569 = vcmp.eq.s32.totalorder %v258, %v1529
        %vm1570 = vcmp.eq.s32.totalorder %v259, %v1522
        %vm1571 = vcmp.eq.s32.totalorder %v259, %v1523
        %vm1572 = vcmp.eq.s32.totalorder %v259, %v1524
        %vm1573 = vcmp.eq.s32.totalorder %v259, %v1525
        %vm1574 = vcmp.eq.s32.totalorder %v259, %v1526
        %vm1575 = vcmp.eq.s32.totalorder %v259, %v1527
        %vm1576 = vcmp.eq.s32.totalorder %v259, %v1528
        %vm1577 = vcmp.eq.s32.totalorder %v259, %v1529
        %vm1578 = vcmp.eq.s32.totalorder %v260, %v1522
        %vm1579 = vcmp.eq.s32.totalorder %v260, %v1523
        %vm1580 = vcmp.eq.s32.totalorder %v260, %v1524
        %vm1581 = vcmp.eq.s32.totalorder %v260, %v1525
        %vm1582 = vcmp.eq.s32.totalorder %v260, %v1526
        %vm1583 = vcmp.eq.s32.totalorder %v260, %v1527
        %vm1584 = vcmp.eq.s32.totalorder %v260, %v1528
        %vm1585 = vcmp.eq.s32.totalorder %v260, %v1529
        %vm1586 = vcmp.eq.s32.totalorder %v261, %v1522
        %vm1587 = vcmp.eq.s32.totalorder %v261, %v1523
        %vm1588 = vcmp.eq.s32.totalorder %v261, %v1524
        %vm1589 = vcmp.eq.s32.totalorder %v261, %v1525
        %vm1590 = vcmp.eq.s32.totalorder %v261, %v1526
        %vm1591 = vcmp.eq.s32.totalorder %v261, %v1527
        %vm1592 = vcmp.eq.s32.totalorder %v261, %v1528
        %vm1593 = vcmp.eq.s32.totalorder %v261, %v1529
        %vm1594 = vcmp.eq.s32.totalorder %v262, %v1522
        %vm1595 = vcmp.eq.s32.totalorder %v262, %v1523
        %vm1596 = vcmp.eq.s32.totalorder %v262, %v1524
        %vm1597 = vcmp.eq.s32.totalorder %v262, %v1525
        %vm1598 = vcmp.eq.s32.totalorder %v262, %v1526
        %vm1599 = vcmp.eq.s32.totalorder %v262, %v1527
        %vm1600 = vcmp.eq.s32.totalorder %v262, %v1528
        %vm1601 = vcmp.eq.s32.totalorder %v262, %v1529
        %vm1602 = vcmp.eq.s32.totalorder %v263, %v1522
        %vm1603 = vcmp.eq.s32.totalorder %v263, %v1523
        %vm1604 = vcmp.eq.s32.totalorder %v263, %v1524
        %vm1605 = vcmp.eq.s32.totalorder %v263, %v1525
        %vm1606 = vcmp.eq.s32.totalorder %v263, %v1526
        %vm1607 = vcmp.eq.s32.totalorder %v263, %v1527
        %vm1608 = vcmp.eq.s32.totalorder %v263, %v1528
        %vm1609 = vcmp.eq.s32.totalorder %v263, %v1529
        %vm1610 = vcmp.eq.s32.totalorder %v264, %v1522
        %vm1611 = vcmp.eq.s32.totalorder %v264, %v1523
        %vm1612 = vcmp.eq.s32.totalorder %v264, %v1524
        %vm1613 = vcmp.eq.s32.totalorder %v264, %v1525
        %vm1614 = vcmp.eq.s32.totalorder %v264, %v1526
        %vm1615 = vcmp.eq.s32.totalorder %v264, %v1527
        %vm1616 = vcmp.eq.s32.totalorder %v264, %v1528
        %vm1617 = vcmp.eq.s32.totalorder %v264, %v1529
        %vm1618 = vcmp.eq.s32.totalorder %v265, %v1522
        %vm1619 = vcmp.eq.s32.totalorder %v265, %v1523
        %vm1620 = vcmp.eq.s32.totalorder %v265, %v1524
        %vm1621 = vcmp.eq.s32.totalorder %v265, %v1525
        %vm1622 = vcmp.eq.s32.totalorder %v265, %v1526
        %vm1623 = vcmp.eq.s32.totalorder %v265, %v1527
        %vm1624 = vcmp.eq.s32.totalorder %v265, %v1528
        %vm1625 = vcmp.eq.s32.totalorder %v265, %v1529
        %vm1626 = vcmp.eq.s32.totalorder %v266, %v1522
        %vm1627 = vcmp.eq.s32.totalorder %v266, %v1523
        %vm1628 = vcmp.eq.s32.totalorder %v266, %v1524
        %vm1629 = vcmp.eq.s32.totalorder %v266, %v1525
        %vm1630 = vcmp.eq.s32.totalorder %v266, %v1526
        %vm1631 = vcmp.eq.s32.totalorder %v266, %v1527
        %vm1632 = vcmp.eq.s32.totalorder %v266, %v1528
        %vm1633 = vcmp.eq.s32.totalorder %v266, %v1529
        %vm1634 = vcmp.eq.s32.totalorder %v267, %v1522
        %vm1635 = vcmp.eq.s32.totalorder %v267, %v1523
        %vm1636 = vcmp.eq.s32.totalorder %v267, %v1524
        %vm1637 = vcmp.eq.s32.totalorder %v267, %v1525
        %vm1638 = vcmp.eq.s32.totalorder %v267, %v1526
        %vm1639 = vcmp.eq.s32.totalorder %v267, %v1527
        %vm1640 = vcmp.eq.s32.totalorder %v267, %v1528
        %vm1641 = vcmp.eq.s32.totalorder %v267, %v1529
        %vm1642 = vcmp.eq.s32.totalorder %v268, %v1522
        %vm1643 = vcmp.eq.s32.totalorder %v268, %v1523
        %vm1644 = vcmp.eq.s32.totalorder %v268, %v1524
        %vm1645 = vcmp.eq.s32.totalorder %v268, %v1525
        %vm1646 = vcmp.eq.s32.totalorder %v268, %v1526
        %vm1647 = vcmp.eq.s32.totalorder %v268, %v1527
        %vm1648 = vcmp.eq.s32.totalorder %v268, %v1528
        %vm1649 = vcmp.eq.s32.totalorder %v268, %v1529
        %vm1650 = vcmp.eq.s32.totalorder %v269, %v1522
        %vm1651 = vcmp.eq.s32.totalorder %v269, %v1523
        %vm1652 = vcmp.eq.s32.totalorder %v269, %v1524
        %vm1653 = vcmp.eq.s32.totalorder %v269, %v1525
        %vm1654 = vcmp.eq.s32.totalorder %v269, %v1526
        %vm1655 = vcmp.eq.s32.totalorder %v269, %v1527
        %vm1656 = vcmp.eq.s32.totalorder %v269, %v1528
        %vm1657 = vcmp.eq.s32.totalorder %v269, %v1529
        %v1662 = vperm.slane %v1506, 0
        %v1663 = vperm.slane %v1506, 4
        %v1664 = vperm.slane %v1507, 0
        %v1665 = vperm.slane %v1507, 4
        %v1666 = vperm.slane %v1508, 0
        %v1667 = vperm.slane %v1508, 4
        %v1668 = vperm.slane %v1509, 0
        %v1669 = vperm.slane %v1509, 4
        %v1678 = vperm.slane %v1662, 0
        %v1679 = vperm.slane %v1663, 0
        %v1680 = vperm.slane %v1664, 0
        %v1681 = vperm.slane %v1665, 0
        %v1682 = vperm.slane %v1666, 0
        %v1683 = vperm.slane %v1667, 0
        %v1684 = vperm.slane %v1668, 0
        %v1685 = vperm.slane %v1669, 0
        %v1686 = vsel %vm1530, %v1678, 0.0
        %v1687 = vsel %vm1531, %v1679, 0.0
        %v1688 = vsel %vm1532, %v1680, 0.0
        %v1689 = vsel %vm1533, %v1681, 0.0
        %v1690 = vsel %vm1534, %v1682, 0.0
        %v1691 = vsel %vm1535, %v1683, 0.0
        %v1692 = vsel %vm1536, %v1684, 0.0
        %v1693 = vsel %vm1537, %v1685, 0.0
        %v1694 = vsel %vm1538, %v1678, 0.0
        %v1695 = vsel %vm1539, %v1679, 0.0
        %v1696 = vsel %vm1540, %v1680, 0.0
        %v1697 = vsel %vm1541, %v1681, 0.0
        %v1698 = vsel %vm1542, %v1682, 0.0
        %v1699 = vsel %vm1543, %v1683, 0.0
        %v1700 = vsel %vm1544, %v1684, 0.0
        %v1701 = vsel %vm1545, %v1685, 0.0
        %v1702 = vsel %vm1546, %v1678, 0.0
        %v1703 = vsel %vm1547, %v1679, 0.0
        %v1704 = vsel %vm1548, %v1680, 0.0
        %v1705 = vsel %vm1549, %v1681, 0.0
        %v1706 = vsel %vm1550, %v1682, 0.0
        %v1707 = vsel %vm1551, %v1683, 0.0
        %v1708 = vsel %vm1552, %v1684, 0.0
        %v1709 = vsel %vm1553, %v1685, 0.0
        %v1710 = vsel %vm1554, %v1678, 0.0
        %v1711 = vsel %vm1555, %v1679, 0.0
        %v1712 = vsel %vm1556, %v1680, 0.0
        %v1713 = vsel %vm1557, %v1681, 0.0
        %v1714 = vsel %vm1558, %v1682, 0.0
        %v1715 = vsel %vm1559, %v1683, 0.0
        %v1716 = vsel %vm1560, %v1684, 0.0
        %v1717 = vsel %vm1561, %v1685, 0.0
        %v1718 = vsel %vm1562, %v1678, 0.0
        %v1719 = vsel %vm1563, %v1679, 0.0
        %v1720 = vsel %vm1564, %v1680, 0.0
        %v1721 = vsel %vm1565, %v1681, 0.0
        %v1722 = vsel %vm1566, %v1682, 0.0
        %v1723 = vsel %vm1567, %v1683, 0.0
        %v1724 = vsel %vm1568, %v1684, 0.0
        %v1725 = vsel %vm1569, %v1685, 0.0
        %v1726 = vsel %vm1570, %v1678, 0.0
        %v1727 = vsel %vm1571, %v1679, 0.0
        %v1728 = vsel %vm1572, %v1680, 0.0
        %v1729 = vsel %vm1573, %v1681, 0.0
        %v1730 = vsel %vm1574, %v1682, 0.0
        %v1731 = vsel %vm1575, %v1683, 0.0
        %v1732 = vsel %vm1576, %v1684, 0.0
        %v1733 = vsel %vm1577, %v1685, 0.0
        %v1734 = vsel %vm1578, %v1678, 0.0
        %v1735 = vsel %vm1579, %v1679, 0.0
        %v1736 = vsel %vm1580, %v1680, 0.0
        %v1737 = vsel %vm1581, %v1681, 0.0
        %v1738 = vsel %vm1582, %v1682, 0.0
        %v1739 = vsel %vm1583, %v1683, 0.0
        %v1740 = vsel %vm1584, %v1684, 0.0
        %v1741 = vsel %vm1585, %v1685, 0.0
        %v1742 = vsel %vm1586, %v1678, 0.0
        %v1743 = vsel %vm1587, %v1679, 0.0
        %v1744 = vsel %vm1588, %v1680, 0.0
        %v1745 = vsel %vm1589, %v1681, 0.0
        %v1746 = vsel %vm1590, %v1682, 0.0
        %v1747 = vsel %vm1591, %v1683, 0.0
        %v1748 = vsel %vm1592, %v1684, 0.0
        %v1749 = vsel %vm1593, %v1685, 0.0
        %v1750 = vsel %vm1594, %v1678, 0.0
        %v1751 = vsel %vm1595, %v1679, 0.0
        %v1752 = vsel %vm1596, %v1680, 0.0
        %v1753 = vsel %vm1597, %v1681, 0.0
        %v1754 = vsel %vm1598, %v1682, 0.0
        %v1755 = vsel %vm1599, %v1683, 0.0
        %v1756 = vsel %vm1600, %v1684, 0.0
        %v1757 = vsel %vm1601, %v1685, 0.0
        %v1758 = vsel %vm1602, %v1678, 0.0
        %v1759 = vsel %vm1603, %v1679, 0.0
        %v1760 = vsel %vm1604, %v1680, 0.0
        %v1761 = vsel %vm1605, %v1681, 0.0
        %v1762 = vsel %vm1606, %v1682, 0.0
        %v1763 = vsel %vm1607, %v1683, 0.0
        %v1764 = vsel %vm1608, %v1684, 0.0
        %v1765 = vsel %vm1609, %v1685, 0.0
        %v1766 = vsel %vm1610, %v1678, 0.0
        %v1767 = vsel %vm1611, %v1679, 0.0
        %v1768 = vsel %vm1612, %v1680, 0.0
        %v1769 = vsel %vm1613, %v1681, 0.0
        %v1770 = vsel %vm1614, %v1682, 0.0
        %v1771 = vsel %vm1615, %v1683, 0.0
        %v1772 = vsel %vm1616, %v1684, 0.0
        %v1773 = vsel %vm1617, %v1685, 0.0
        %v1774 = vsel %vm1618, %v1678, 0.0
        %v1775 = vsel %vm1619, %v1679, 0.0
        %v1776 = vsel %vm1620, %v1680, 0.0
        %v1777 = vsel %vm1621, %v1681, 0.0
        %v1778 = vsel %vm1622, %v1682, 0.0
        %v1779 = vsel %vm1623, %v1683, 0.0
        %v1780 = vsel %vm1624, %v1684, 0.0
        %v1781 = vsel %vm1625, %v1685, 0.0
        %v1782 = vsel %vm1626, %v1678, 0.0
        %v1783 = vsel %vm1627, %v1679, 0.0
        %v1784 = vsel %vm1628, %v1680, 0.0
        %v1785 = vsel %vm1629, %v1681, 0.0
        %v1786 = vsel %vm1630, %v1682, 0.0
        %v1787 = vsel %vm1631, %v1683, 0.0
        %v1788 = vsel %vm1632, %v1684, 0.0
        %v1789 = vsel %vm1633, %v1685, 0.0
        %v1790 = vsel %vm1634, %v1678, 0.0
        %v1791 = vsel %vm1635, %v1679, 0.0
        %v1792 = vsel %vm1636, %v1680, 0.0
        %v1793 = vsel %vm1637, %v1681, 0.0
        %v1794 = vsel %vm1638, %v1682, 0.0
        %v1795 = vsel %vm1639, %v1683, 0.0
        %v1796 = vsel %vm1640, %v1684, 0.0
        %v1797 = vsel %vm1641, %v1685, 0.0
        %v1798 = vsel %vm1642, %v1678, 0.0
        %v1799 = vsel %vm1643, %v1679, 0.0
        %v1800 = vsel %vm1644, %v1680, 0.0
        %v1801 = vsel %vm1645, %v1681, 0.0
        %v1802 = vsel %vm1646, %v1682, 0.0
        %v1803 = vsel %vm1647, %v1683, 0.0
        %v1804 = vsel %vm1648, %v1684, 0.0
        %v1805 = vsel %vm1649, %v1685, 0.0
        %v1806 = vsel %vm1650, %v1678, 0.0
        %v1807 = vsel %vm1651, %v1679, 0.0
        %v1808 = vsel %vm1652, %v1680, 0.0
        %v1809 = vsel %vm1653, %v1681, 0.0
        %v1810 = vsel %vm1654, %v1682, 0.0
        %v1811 = vsel %vm1655, %v1683, 0.0
        %v1812 = vsel %vm1656, %v1684, 0.0
        %v1813 = vsel %vm1657, %v1685, 0.0
        %v1814 = vadd.f32 %v1378, %v1686
        %v1815 = vadd.f32 %v1379, %v1687
        %v1816 = vadd.f32 %v1380, %v1688
        %v1817 = vadd.f32 %v1381, %v1689
        %v1818 = vadd.f32 %v1382, %v1690
        %v1819 = vadd.f32 %v1383, %v1691
        %v1820 = vadd.f32 %v1384, %v1692
        %v1821 = vadd.f32 %v1385, %v1693
        %v1822 = vadd.f32 %v1386, %v1694
        %v1823 = vadd.f32 %v1387, %v1695
        %v1824 = vadd.f32 %v1388, %v1696
        %v1825 = vadd.f32 %v1389, %v1697
        %v1826 = vadd.f32 %v1390, %v1698
        %v1827 = vadd.f32 %v1391, %v1699
        %v1828 = vadd.f32 %v1392, %v1700
        %v1829 = vadd.f32 %v1393, %v1701
        %v1830 = vadd.f32 %v1394, %v1702
        %v1831 = vadd.f32 %v1395, %v1703
        %v1832 = vadd.f32 %v1396, %v1704
        %v1833 = vadd.f32 %v1397, %v1705
        %v1834 = vadd.f32 %v1398, %v1706
        %v1835 = vadd.f32 %v1399, %v1707
        %v1836 = vadd.f32 %v1400, %v1708
        %v1837 = vadd.f32 %v1401, %v1709
        %v1838 = vadd.f32 %v1402, %v1710
        %v1839 = vadd.f32 %v1403, %v1711
        %v1840 = vadd.f32 %v1404, %v1712
        %v1841 = vadd.f32 %v1405, %v1713
        %v1842 = vadd.f32 %v1406, %v1714
        %v1843 = vadd.f32 %v1407, %v1715
        %v1844 = vadd.f32 %v1408, %v1716
        %v1845 = vadd.f32 %v1409, %v1717
        %v1846 = vadd.f32 %v1410, %v1718
        %v1847 = vadd.f32 %v1411, %v1719
        %v1848 = vadd.f32 %v1412, %v1720
        %v1849 = vadd.f32 %v1413, %v1721
        %v1850 = vadd.f32 %v1414, %v1722
        %v1851 = vadd.f32 %v1415, %v1723
        %v1852 = vadd.f32 %v1416, %v1724
        %v1853 = vadd.f32 %v1417, %v1725
        %v1854 = vadd.f32 %v1418, %v1726
        %v1855 = vadd.f32 %v1419, %v1727
        %v1856 = vadd.f32 %v1420, %v1728
        %v1857 = vadd.f32 %v1421, %v1729
        %v1858 = vadd.f32 %v1422, %v1730
        %v1859 = vadd.f32 %v1423, %v1731
        %v1860 = vadd.f32 %v1424, %v1732
        %v1861 = vadd.f32 %v1425, %v1733
        %v1862 = vadd.f32 %v1426, %v1734
        %v1863 = vadd.f32 %v1427, %v1735
        %v1864 = vadd.f32 %v1428, %v1736
        %v1865 = vadd.f32 %v1429, %v1737
        %v1866 = vadd.f32 %v1430, %v1738
        %v1867 = vadd.f32 %v1431, %v1739
        %v1868 = vadd.f32 %v1432, %v1740
        %v1869 = vadd.f32 %v1433, %v1741
        %v1870 = vadd.f32 %v1434, %v1742
        %v1871 = vadd.f32 %v1435, %v1743
        %v1872 = vadd.f32 %v1436, %v1744
        %v1873 = vadd.f32 %v1437, %v1745
        %v1874 = vadd.f32 %v1438, %v1746
        %v1875 = vadd.f32 %v1439, %v1747
        %v1876 = vadd.f32 %v1440, %v1748
        %v1877 = vadd.f32 %v1441, %v1749
        %v1878 = vadd.f32 %v1442, %v1750
        %v1879 = vadd.f32 %v1443, %v1751
        %v1880 = vadd.f32 %v1444, %v1752
        %v1881 = vadd.f32 %v1445, %v1753
        %v1882 = vadd.f32 %v1446, %v1754
        %v1883 = vadd.f32 %v1447, %v1755
        %v1884 = vadd.f32 %v1448, %v1756
        %v1885 = vadd.f32 %v1449, %v1757
        %v1886 = vadd.f32 %v1450, %v1758
        %v1887 = vadd.f32 %v1451, %v1759
        %v1888 = vadd.f32 %v1452, %v1760
        %v1889 = vadd.f32 %v1453, %v1761
        %v1890 = vadd.f32 %v1454, %v1762
        %v1891 = vadd.f32 %v1455, %v1763
        %v1892 = vadd.f32 %v1456, %v1764
        %v1893 = vadd.f32 %v1457, %v1765
        %v1894 = vadd.f32 %v1458, %v1766
        %v1895 = vadd.f32 %v1459, %v1767
        %v1896 = vadd.f32 %v1460, %v1768
        %v1897 = vadd.f32 %v1461, %v1769
        %v1898 = vadd.f32 %v1462, %v1770
        %v1899 = vadd.f32 %v1463, %v1771
        %v1900 = vadd.f32 %v1464, %v1772
        %v1901 = vadd.f32 %v1465, %v1773
        %v1902 = vadd.f32 %v1466, %v1774
        %v1903 = vadd.f32 %v1467, %v1775
        %v1904 = vadd.f32 %v1468, %v1776
        %v1905 = vadd.f32 %v1469, %v1777
        %v1906 = vadd.f32 %v1470, %v1778
        %v1907 = vadd.f32 %v1471, %v1779
        %v1908 = vadd.f32 %v1472, %v1780
        %v1909 = vadd.f32 %v1473, %v1781
        %v1910 = vadd.f32 %v1474, %v1782
        %v1911 = vadd.f32 %v1475, %v1783
        %v1912 = vadd.f32 %v1476, %v1784
        %v1913 = vadd.f32 %v1477, %v1785
        %v1914 = vadd.f32 %v1478, %v1786
        %v1915 = vadd.f32 %v1479, %v1787
        %v1916 = vadd.f32 %v1480, %v1788
        %v1917 = vadd.f32 %v1481, %v1789
        %v1918 = vadd.f32 %v1482, %v1790
        %v1919 = vadd.f32 %v1483, %v1791
        %v1920 = vadd.f32 %v1484, %v1792
        %v1921 = vadd.f32 %v1485, %v1793
        %v1922 = vadd.f32 %v1486, %v1794
        %v1923 = vadd.f32 %v1487, %v1795
        %v1924 = vadd.f32 %v1488, %v1796
        %v1925 = vadd.f32 %v1489, %v1797
        %v1926 = vadd.f32 %v1490, %v1798
        %v1927 = vadd.f32 %v1491, %v1799
        %v1928 = vadd.f32 %v1492, %v1800
        %v1929 = vadd.f32 %v1493, %v1801
        %v1930 = vadd.f32 %v1494, %v1802
        %v1931 = vadd.f32 %v1495, %v1803
        %v1932 = vadd.f32 %v1496, %v1804
        %v1933 = vadd.f32 %v1497, %v1805
        %v1934 = vadd.f32 %v1498, %v1806
        %v1935 = vadd.f32 %v1499, %v1807
        %v1936 = vadd.f32 %v1500, %v1808
        %v1937 = vadd.f32 %v1501, %v1809
        %v1938 = vadd.f32 %v1502, %v1810
        %v1939 = vadd.f32 %v1503, %v1811
        %v1940 = vadd.f32 %v1504, %v1812
        %v1941 = vadd.f32 %v1505, %v1813
        %v1942 = vld [vmem:[#allocation5] sm:$0xff]
        %v1943 = vld [vmem:[#allocation5 + $0x8] sm:$0xff]
        %v1944 = vld [vmem:[#allocation5 + $0x10] sm:$0xff]
        %v1945 = vld [vmem:[#allocation5 + $0x18] sm:$0xff]
        %v1946 = vld [vmem:[#allocation5 + $0x20] sm:$0xff]
        %v1947 = vld [vmem:[#allocation5 + $0x28] sm:$0xff]
        %v1948 = vld [vmem:[#allocation5 + $0x30] sm:$0xff]
        %v1949 = vld [vmem:[#allocation5 + $0x38] sm:$0xff]
        %v1950 = vand.u32 %v1934, 4294901760
        %1951 = vmatpush.msra.mxu0 %v1950
        %v1952 = vand.u32 %v1926, 4294901760
        %1953 = vmatpush.msra.mxu0 %v1952
        %v1954 = vand.u32 %v1918, 4294901760
        %1955 = vmatpush.msra.mxu0 %v1954
        %v1956 = vand.u32 %v1910, 4294901760
        %1957 = vmatpush.msra.mxu0 %v1956
        %v1958 = vand.u32 %v1902, 4294901760
        %1959 = vmatpush.msra.mxu0 %v1958
        %v1960 = vand.u32 %v1894, 4294901760
        %1961 = vmatpush.msra.mxu0 %v1960
        %v1962 = vand.u32 %v1886, 4294901760
        %1963 = vmatpush.msra.mxu0 %v1962
        %v1964 = vand.u32 %v1878, 4294901760
        %1965 = vmatpush.msra.mxu0 %v1964
        %v1966 = vand.u32 %v1870, 4294901760
        %1967 = vmatpush.msra.mxu0 %v1966
        %v1968 = vand.u32 %v1862, 4294901760
        %1969 = vmatpush.msra.mxu0 %v1968
        %v1970 = vand.u32 %v1854, 4294901760
        %1971 = vmatpush.msra.mxu0 %v1970
        %v1972 = vand.u32 %v1846, 4294901760
        %1973 = vmatpush.msra.mxu0 %v1972
        %v1974 = vand.u32 %v1838, 4294901760
        %1975 = vmatpush.msra.mxu0 %v1974
        %v1976 = vand.u32 %v1830, 4294901760
        %1977 = vmatpush.msra.mxu0 %v1976
        %v1978 = vand.u32 %v1822, 4294901760
        %1979 = vmatpush.msra.mxu0 %v1978
        %v1980 = vand.u32 %v1814, 4294901760
        %1981 = vmatpush.msra.mxu0 %v1980
        %v1982 = vand.u32 %v1942, 4294901760
        %v1983 = vsub.f32 %v1942, %v1982
        %v1984 = vand.u32 %v1983, 4294901760
        %v1985 = vsub.f32 %v1983, %v1984
        %v1986 = vand.u32 %v1985, 4294901760
        %1987 = vmatmul.f32.gmra.mxu0 %v1986
        %v1988 = vpop.f32.mrf.mxu0
        %v1989 = vadd.f32 0.0, %v1988
        %v1990 = vand.u32 %v1943, 4294901760
        %v1991 = vsub.f32 %v1943, %v1990
        %v1992 = vand.u32 %v1991, 4294901760
        %v1993 = vsub.f32 %v1991, %v1992
        %v1994 = vand.u32 %v1993, 4294901760
        %1995 = vmatmul.f32.gmra.mxu0 %v1994
        %v1996 = vpop.f32.mrf.mxu0
        %v1997 = vadd.f32 0.0, %v1996
        %v1998 = vand.u32 %v1944, 4294901760
        %v1999 = vsub.f32 %v1944, %v1998
        %v2000 = vand.u32 %v1999, 4294901760
        %v2001 = vsub.f32 %v1999, %v2000
        %v2002 = vand.u32 %v2001, 4294901760
        %2003 = vmatmul.f32.gmra.mxu0 %v2002
        %v2004 = vpop.f32.mrf.mxu0
        %v2005 = vadd.f32 0.0, %v2004
        %v2006 = vand.u32 %v1945, 4294901760
        %v2007 = vsub.f32 %v1945, %v2006
        %v2008 = vand.u32 %v2007, 4294901760
        %v2009 = vsub.f32 %v2007, %v2008
        %v2010 = vand.u32 %v2009, 4294901760
        %2011 = vmatmul.f32.gmra.mxu0 %v2010
        %v2012 = vpop.f32.mrf.mxu0
        %v2013 = vadd.f32 0.0, %v2012
        %v2014 = vand.u32 %v1946, 4294901760
        %v2015 = vsub.f32 %v1946, %v2014
        %v2016 = vand.u32 %v2015, 4294901760
        %v2017 = vsub.f32 %v2015, %v2016
        %v2018 = vand.u32 %v2017, 4294901760
        %2019 = vmatmul.f32.gmra.mxu0 %v2018
        %v2020 = vpop.f32.mrf.mxu0
        %v2021 = vadd.f32 0.0, %v2020
        %v2022 = vand.u32 %v1947, 4294901760
        %v2023 = vsub.f32 %v1947, %v2022
        %v2024 = vand.u32 %v2023, 4294901760
        %v2025 = vsub.f32 %v2023, %v2024
        %v2026 = vand.u32 %v2025, 4294901760
        %2027 = vmatmul.f32.gmra.mxu0 %v2026
        %v2028 = vpop.f32.mrf.mxu0
        %v2029 = vadd.f32 0.0, %v2028
        %v2030 = vand.u32 %v1948, 4294901760
        %v2031 = vsub.f32 %v1948, %v2030
        %v2032 = vand.u32 %v2031, 4294901760
        %v2033 = vsub.f32 %v2031, %v2032
        %v2034 = vand.u32 %v2033, 4294901760
        %2035 = vmatmul.f32.gmra.mxu0 %v2034
        %v2036 = vpop.f32.mrf.mxu0
        %v2037 = vadd.f32 0.0, %v2036
        %v2038 = vand.u32 %v1949, 4294901760
        %v2039 = vsub.f32 %v1949, %v2038
        %v2040 = vand.u32 %v2039, 4294901760
        %v2041 = vsub.f32 %v2039, %v2040
        %v2042 = vand.u32 %v2041, 4294901760
        %2043 = vmatmul.f32.gmra.mxu0 %v2042
        %v2044 = vpop.f32.mrf.mxu0
        %v2045 = vadd.f32 0.0, %v2044
        %2046 = vdwg.mxu0
        %v2047 = vand.u32 %v1934, 4294901760
        %v2048 = vsub.f32 %v1934, %v2047
        %v2049 = vand.u32 %v2048, 4294901760
        %v2050 = vsub.f32 %v2048, %v2049
        %v2051 = vand.u32 %v2050, 4294901760
        %2052 = vmatpush.msra.mxu0 %v2051
        %v2053 = vand.u32 %v1926, 4294901760
        %v2054 = vsub.f32 %v1926, %v2053
        %v2055 = vand.u32 %v2054, 4294901760
        %v2056 = vsub.f32 %v2054, %v2055
        %v2057 = vand.u32 %v2056, 4294901760
        %2058 = vmatpush.msra.mxu0 %v2057
        %v2059 = vand.u32 %v1918, 4294901760
        %v2060 = vsub.f32 %v1918, %v2059
        %v2061 = vand.u32 %v2060, 4294901760
        %v2062 = vsub.f32 %v2060, %v2061
        %v2063 = vand.u32 %v2062, 4294901760
        %2064 = vmatpush.msra.mxu0 %v2063
        %v2065 = vand.u32 %v1910, 4294901760
        %v2066 = vsub.f32 %v1910, %v2065
        %v2067 = vand.u32 %v2066, 4294901760
        %v2068 = vsub.f32 %v2066, %v2067
        %v2069 = vand.u32 %v2068, 4294901760
        %2070 = vmatpush.msra.mxu0 %v2069
        %v2071 = vand.u32 %v1902, 4294901760
        %v2072 = vsub.f32 %v1902, %v2071
        %v2073 = vand.u32 %v2072, 4294901760
        %v2074 = vsub.f32 %v2072, %v2073
        %v2075 = vand.u32 %v2074, 4294901760
        %2076 = vmatpush.msra.mxu0 %v2075
        %v2077 = vand.u32 %v1894, 4294901760
        %v2078 = vsub.f32 %v1894, %v2077
        %v2079 = vand.u32 %v2078, 4294901760
        %v2080 = vsub.f32 %v2078, %v2079
        %v2081 = vand.u32 %v2080, 4294901760
        %2082 = vmatpush.msra.mxu0 %v2081
        %v2083 = vand.u32 %v1886, 4294901760
        %v2084 = vsub.f32 %v1886, %v2083
        %v2085 = vand.u32 %v2084, 4294901760
        %v2086 = vsub.f32 %v2084, %v2085
        %v2087 = vand.u32 %v2086, 4294901760
        %2088 = vmatpush.msra.mxu0 %v2087
        %v2089 = vand.u32 %v1878, 4294901760
        %v2090 = vsub.f32 %v1878, %v2089
        %v2091 = vand.u32 %v2090, 4294901760
        %v2092 = vsub.f32 %v2090, %v2091
        %v2093 = vand.u32 %v2092, 4294901760
        %2094 = vmatpush.msra.mxu0 %v2093
        %v2095 = vand.u32 %v1870, 4294901760
        %v2096 = vsub.f32 %v1870, %v2095
        %v2097 = vand.u32 %v2096, 4294901760
        %v2098 = vsub.f32 %v2096, %v2097
        %v2099 = vand.u32 %v2098, 4294901760
        %2100 = vmatpush.msra.mxu0 %v2099
        %v2101 = vand.u32 %v1862, 4294901760
        %v2102 = vsub.f32 %v1862, %v2101
        %v2103 = vand.u32 %v2102, 4294901760
        %v2104 = vsub.f32 %v2102, %v2103
        %v2105 = vand.u32 %v2104, 4294901760
        %2106 = vmatpush.msra.mxu0 %v2105
        %v2107 = vand.u32 %v1854, 4294901760
        %v2108 = vsub.f32 %v1854, %v2107
        %v2109 = vand.u32 %v2108, 4294901760
        %v2110 = vsub.f32 %v2108, %v2109
        %v2111 = vand.u32 %v2110, 4294901760
        %2112 = vmatpush.msra.mxu0 %v2111
        %v2113 = vand.u32 %v1846, 4294901760
        %v2114 = vsub.f32 %v1846, %v2113
        %v2115 = vand.u32 %v2114, 4294901760
        %v2116 = vsub.f32 %v2114, %v2115
        %v2117 = vand.u32 %v2116, 4294901760
        %2118 = vmatpush.msra.mxu0 %v2117
        %v2119 = vand.u32 %v1838, 4294901760
        %v2120 = vsub.f32 %v1838, %v2119
        %v2121 = vand.u32 %v2120, 4294901760
        %v2122 = vsub.f32 %v2120, %v2121
        %v2123 = vand.u32 %v2122, 4294901760
        %2124 = vmatpush.msra.mxu0 %v2123
        %v2125 = vand.u32 %v1830, 4294901760
        %v2126 = vsub.f32 %v1830, %v2125
        %v2127 = vand.u32 %v2126, 4294901760
        %v2128 = vsub.f32 %v2126, %v2127
        %v2129 = vand.u32 %v2128, 4294901760
        %2130 = vmatpush.msra.mxu0 %v2129
        %v2131 = vand.u32 %v1822, 4294901760
        %v2132 = vsub.f32 %v1822, %v2131
        %v2133 = vand.u32 %v2132, 4294901760
        %v2134 = vsub.f32 %v2132, %v2133
        %v2135 = vand.u32 %v2134, 4294901760
        %2136 = vmatpush.msra.mxu0 %v2135
        %v2137 = vand.u32 %v1814, 4294901760
        %v2138 = vsub.f32 %v1814, %v2137
        %v2139 = vand.u32 %v2138, 4294901760
        %v2140 = vsub.f32 %v2138, %v2139
        %v2141 = vand.u32 %v2140, 4294901760
        %2142 = vmatpush.msra.mxu0 %v2141
        %v2143 = vand.u32 %v1942, 4294901760
        %2144 = vmatmul.f32.gmra.mxu0 %v2143
        %v2145 = vpop.f32.mrf.mxu0
        %v2146 = vadd.f32 %v1989, %v2145
        %v2147 = vand.u32 %v1943, 4294901760
        %2148 = vmatmul.f32.gmra.mxu0 %v2147
        %v2149 = vpop.f32.mrf.mxu0
        %v2150 = vadd.f32 %v1997, %v2149
        %v2151 = vand.u32 %v1944, 4294901760
        %2152 = vmatmul.f32.gmra.mxu0 %v2151
        %v2153 = vpop.f32.mrf.mxu0
        %v2154 = vadd.f32 %v2005, %v2153
        %v2155 = vand.u32 %v1945, 4294901760
        %2156 = vmatmul.f32.gmra.mxu0 %v2155
        %v2157 = vpop.f32.mrf.mxu0
        %v2158 = vadd.f32 %v2013, %v2157
        %v2159 = vand.u32 %v1946, 4294901760
        %2160 = vmatmul.f32.gmra.mxu0 %v2159
        %v2161 = vpop.f32.mrf.mxu0
        %v2162 = vadd.f32 %v2021, %v2161
        %v2163 = vand.u32 %v1947, 4294901760
        %2164 = vmatmul.f32.gmra.mxu0 %v2163
        %v2165 = vpop.f32.mrf.mxu0
        %v2166 = vadd.f32 %v2029, %v2165
        %v2167 = vand.u32 %v1948, 4294901760
        %2168 = vmatmul.f32.gmra.mxu0 %v2167
        %v2169 = vpop.f32.mrf.mxu0
        %v2170 = vadd.f32 %v2037, %v2169
        %v2171 = vand.u32 %v1949, 4294901760
        %2172 = vmatmul.f32.gmra.mxu0 %v2171
        %v2173 = vpop.f32.mrf.mxu0
        %v2174 = vadd.f32 %v2045, %v2173
        %2175 = vdwg.mxu0
        %v2176 = vand.u32 %v1934, 4294901760
        %v2177 = vsub.f32 %v1934, %v2176
        %2178 = vmatpush.msra.mxu0 %v2177
        %v2179 = vand.u32 %v1926, 4294901760
        %v2180 = vsub.f32 %v1926, %v2179
        %2181 = vmatpush.msra.mxu0 %v2180
        %v2182 = vand.u32 %v1918, 4294901760
        %v2183 = vsub.f32 %v1918, %v2182
        %2184 = vmatpush.msra.mxu0 %v2183
        %v2185 = vand.u32 %v1910, 4294901760
        %v2186 = vsub.f32 %v1910, %v2185
        %2187 = vmatpush.msra.mxu0 %v2186
        %v2188 = vand.u32 %v1902, 4294901760
        %v2189 = vsub.f32 %v1902, %v2188
        %2190 = vmatpush.msra.mxu0 %v2189
        %v2191 = vand.u32 %v1894, 4294901760
        %v2192 = vsub.f32 %v1894, %v2191
        %2193 = vmatpush.msra.mxu0 %v2192
        %v2194 = vand.u32 %v1886, 4294901760
        %v2195 = vsub.f32 %v1886, %v2194
        %2196 = vmatpush.msra.mxu0 %v2195
        %v2197 = vand.u32 %v1878, 4294901760
        %v2198 = vsub.f32 %v1878, %v2197
        %2199 = vmatpush.msra.mxu0 %v2198
        %v2200 = vand.u32 %v1870, 4294901760
        %v2201 = vsub.f32 %v1870, %v2200
        %2202 = vmatpush.msra.mxu0 %v2201
        %v2203 = vand.u32 %v1862, 4294901760
        %v2204 = vsub.f32 %v1862, %v2203
        %2205 = vmatpush.msra.mxu0 %v2204
        %v2206 = vand.u32 %v1854, 4294901760
        %v2207 = vsub.f32 %v1854, %v2206
        %2208 = vmatpush.msra.mxu0 %v2207
        %v2209 = vand.u32 %v1846, 4294901760
        %v2210 = vsub.f32 %v1846, %v2209
        %2211 = vmatpush.msra.mxu0 %v2210
        %v2212 = vand.u32 %v1838, 4294901760
        %v2213 = vsub.f32 %v1838, %v2212
        %2214 = vmatpush.msra.mxu0 %v2213
        %v2215 = vand.u32 %v1830, 4294901760
        %v2216 = vsub.f32 %v1830, %v2215
        %2217 = vmatpush.msra.mxu0 %v2216
        %v2218 = vand.u32 %v1822, 4294901760
        %v2219 = vsub.f32 %v1822, %v2218
        %2220 = vmatpush.msra.mxu0 %v2219
        %v2221 = vand.u32 %v1814, 4294901760
        %v2222 = vsub.f32 %v1814, %v2221
        %2223 = vmatpush.msra.mxu0 %v2222
        %v2224 = vand.u32 %v1942, 4294901760
        %v2225 = vsub.f32 %v1942, %v2224
        %2226 = vmatmul.f32.gmra.mxu0 %v2225
        %v2227 = vpop.f32.mrf.mxu0
        %v2228 = vadd.f32 %v2146, %v2227
        %v2229 = vand.u32 %v1943, 4294901760
        %v2230 = vsub.f32 %v1943, %v2229
        %2231 = vmatmul.f32.gmra.mxu0 %v2230
        %v2232 = vpop.f32.mrf.mxu0
        %v2233 = vadd.f32 %v2150, %v2232
        %v2234 = vand.u32 %v1944, 4294901760
        %v2235 = vsub.f32 %v1944, %v2234
        %2236 = vmatmul.f32.gmra.mxu0 %v2235
        %v2237 = vpop.f32.mrf.mxu0
        %v2238 = vadd.f32 %v2154, %v2237
        %v2239 = vand.u32 %v1945, 4294901760
        %v2240 = vsub.f32 %v1945, %v2239
        %2241 = vmatmul.f32.gmra.mxu0 %v2240
        %v2242 = vpop.f32.mrf.mxu0
        %v2243 = vadd.f32 %v2158, %v2242
        %v2244 = vand.u32 %v1946, 4294901760
        %v2245 = vsub.f32 %v1946, %v2244
        %2246 = vmatmul.f32.gmra.mxu0 %v2245
        %v2247 = vpop.f32.mrf.mxu0
        %v2248 = vadd.f32 %v2162, %v2247
        %v2249 = vand.u32 %v1947, 4294901760
        %v2250 = vsub.f32 %v1947, %v2249
        %2251 = vmatmul.f32.gmra.mxu0 %v2250
        %v2252 = vpop.f32.mrf.mxu0
        %v2253 = vadd.f32 %v2166, %v2252
        %v2254 = vand.u32 %v1948, 4294901760
        %v2255 = vsub.f32 %v1948, %v2254
        %2256 = vmatmul.f32.gmra.mxu0 %v2255
        %v2257 = vpop.f32.mrf.mxu0
        %v2258 = vadd.f32 %v2170, %v2257
        %v2259 = vand.u32 %v1949, 4294901760
        %v2260 = vsub.f32 %v1949, %v2259
        %2261 = vmatmul.f32.gmra.mxu0 %v2260
        %v2262 = vpop.f32.mrf.mxu0
        %v2263 = vadd.f32 %v2174, %v2262
        %2264 = vdwg.mxu0
        %v2265 = vand.u32 %v1934, 4294901760
        %2266 = vmatpush.msra.mxu0 %v2265
        %v2267 = vand.u32 %v1926, 4294901760
        %2268 = vmatpush.msra.mxu0 %v2267
        %v2269 = vand.u32 %v1918, 4294901760
        %2270 = vmatpush.msra.mxu0 %v2269
        %v2271 = vand.u32 %v1910, 4294901760
        %2272 = vmatpush.msra.mxu0 %v2271
        %v2273 = vand.u32 %v1902, 4294901760
        %2274 = vmatpush.msra.mxu0 %v2273
        %v2275 = vand.u32 %v1894, 4294901760
        %2276 = vmatpush.msra.mxu0 %v2275
        %v2277 = vand.u32 %v1886, 4294901760
        %2278 = vmatpush.msra.mxu0 %v2277
        %v2279 = vand.u32 %v1878, 4294901760
        %2280 = vmatpush.msra.mxu0 %v2279
        %v2281 = vand.u32 %v1870, 4294901760
        %2282 = vmatpush.msra.mxu0 %v2281
        %v2283 = vand.u32 %v1862, 4294901760
        %2284 = vmatpush.msra.mxu0 %v2283
        %v2285 = vand.u32 %v1854, 4294901760
        %2286 = vmatpush.msra.mxu0 %v2285
        %v2287 = vand.u32 %v1846, 4294901760
        %2288 = vmatpush.msra.mxu0 %v2287
        %v2289 = vand.u32 %v1838, 4294901760
        %2290 = vmatpush.msra.mxu0 %v2289
        %v2291 = vand.u32 %v1830, 4294901760
        %2292 = vmatpush.msra.mxu0 %v2291
        %v2293 = vand.u32 %v1822, 4294901760
        %2294 = vmatpush.msra.mxu0 %v2293
        %v2295 = vand.u32 %v1814, 4294901760
        %2296 = vmatpush.msra.mxu0 %v2295
        %v2297 = vand.u32 %v1942, 4294901760
        %v2298 = vsub.f32 %v1942, %v2297
        %v2299 = vand.u32 %v2298, 4294901760
        %2300 = vmatmul.f32.gmra.mxu0 %v2299
        %v2301 = vpop.f32.mrf.mxu0
        %v2302 = vadd.f32 %v2228, %v2301
        %v2303 = vand.u32 %v1943, 4294901760
        %v2304 = vsub.f32 %v1943, %v2303
        %v2305 = vand.u32 %v2304, 4294901760
        %2306 = vmatmul.f32.gmra.mxu0 %v2305
        %v2307 = vpop.f32.mrf.mxu0
        %v2308 = vadd.f32 %v2233, %v2307
        %v2309 = vand.u32 %v1944, 4294901760
        %v2310 = vsub.f32 %v1944, %v2309
        %v2311 = vand.u32 %v2310, 4294901760
        %2312 = vmatmul.f32.gmra.mxu0 %v2311
        %v2313 = vpop.f32.mrf.mxu0
        %v2314 = vadd.f32 %v2238, %v2313
        %v2315 = vand.u32 %v1945, 4294901760
        %v2316 = vsub.f32 %v1945, %v2315
        %v2317 = vand.u32 %v2316, 4294901760
        %2318 = vmatmul.f32.gmra.mxu0 %v2317
        %v2319 = vpop.f32.mrf.mxu0
        %v2320 = vadd.f32 %v2243, %v2319
        %v2321 = vand.u32 %v1946, 4294901760
        %v2322 = vsub.f32 %v1946, %v2321
        %v2323 = vand.u32 %v2322, 4294901760
        %2324 = vmatmul.f32.gmra.mxu0 %v2323
        %v2325 = vpop.f32.mrf.mxu0
        %v2326 = vadd.f32 %v2248, %v2325
        %v2327 = vand.u32 %v1947, 4294901760
        %v2328 = vsub.f32 %v1947, %v2327
        %v2329 = vand.u32 %v2328, 4294901760
        %2330 = vmatmul.f32.gmra.mxu0 %v2329
        %v2331 = vpop.f32.mrf.mxu0
        %v2332 = vadd.f32 %v2253, %v2331
        %v2333 = vand.u32 %v1948, 4294901760
        %v2334 = vsub.f32 %v1948, %v2333
        %v2335 = vand.u32 %v2334, 4294901760
        %2336 = vmatmul.f32.gmra.mxu0 %v2335
        %v2337 = vpop.f32.mrf.mxu0
        %v2338 = vadd.f32 %v2258, %v2337
        %v2339 = vand.u32 %v1949, 4294901760
        %v2340 = vsub.f32 %v1949, %v2339
        %v2341 = vand.u32 %v2340, 4294901760
        %2342 = vmatmul.f32.gmra.mxu0 %v2341
        %v2343 = vpop.f32.mrf.mxu0
        %v2344 = vadd.f32 %v2263, %v2343
        %2345 = vdwg.mxu0
        %v2346 = vand.u32 %v1934, 4294901760
        %v2347 = vsub.f32 %v1934, %v2346
        %v2348 = vand.u32 %v2347, 4294901760
        %2349 = vmatpush.msra.mxu0 %v2348
        %v2350 = vand.u32 %v1926, 4294901760
        %v2351 = vsub.f32 %v1926, %v2350
        %v2352 = vand.u32 %v2351, 4294901760
        %2353 = vmatpush.msra.mxu0 %v2352
        %v2354 = vand.u32 %v1918, 4294901760
        %v2355 = vsub.f32 %v1918, %v2354
        %v2356 = vand.u32 %v2355, 4294901760
        %2357 = vmatpush.msra.mxu0 %v2356
        %v2358 = vand.u32 %v1910, 4294901760
        %v2359 = vsub.f32 %v1910, %v2358
        %v2360 = vand.u32 %v2359, 4294901760
        %2361 = vmatpush.msra.mxu0 %v2360
        %v2362 = vand.u32 %v1902, 4294901760
        %v2363 = vsub.f32 %v1902, %v2362
        %v2364 = vand.u32 %v2363, 4294901760
        %2365 = vmatpush.msra.mxu0 %v2364
        %v2366 = vand.u32 %v1894, 4294901760
        %v2367 = vsub.f32 %v1894, %v2366
        %v2368 = vand.u32 %v2367, 4294901760
        %2369 = vmatpush.msra.mxu0 %v2368
        %v2370 = vand.u32 %v1886, 4294901760
        %v2371 = vsub.f32 %v1886, %v2370
        %v2372 = vand.u32 %v2371, 4294901760
        %2373 = vmatpush.msra.mxu0 %v2372
        %v2374 = vand.u32 %v1878, 4294901760
        %v2375 = vsub.f32 %v1878, %v2374
        %v2376 = vand.u32 %v2375, 4294901760
        %2377 = vmatpush.msra.mxu0 %v2376
        %v2378 = vand.u32 %v1870, 4294901760
        %v2379 = vsub.f32 %v1870, %v2378
        %v2380 = vand.u32 %v2379, 4294901760
        %2381 = vmatpush.msra.mxu0 %v2380
        %v2382 = vand.u32 %v1862, 4294901760
        %v2383 = vsub.f32 %v1862, %v2382
        %v2384 = vand.u32 %v2383, 4294901760
        %2385 = vmatpush.msra.mxu0 %v2384
        %v2386 = vand.u32 %v1854, 4294901760
        %v2387 = vsub.f32 %v1854, %v2386
        %v2388 = vand.u32 %v2387, 4294901760
        %2389 = vmatpush.msra.mxu0 %v2388
        %v2390 = vand.u32 %v1846, 4294901760
        %v2391 = vsub.f32 %v1846, %v2390
        %v2392 = vand.u32 %v2391, 4294901760
        %2393 = vmatpush.msra.mxu0 %v2392
        %v2394 = vand.u32 %v1838, 4294901760
        %v2395 = vsub.f32 %v1838, %v2394
        %v2396 = vand.u32 %v2395, 4294901760
        %2397 = vmatpush.msra.mxu0 %v2396
        %v2398 = vand.u32 %v1830, 4294901760
        %v2399 = vsub.f32 %v1830, %v2398
        %v2400 = vand.u32 %v2399, 4294901760
        %2401 = vmatpush.msra.mxu0 %v2400
        %v2402 = vand.u32 %v1822, 4294901760
        %v2403 = vsub.f32 %v1822, %v2402
        %v2404 = vand.u32 %v2403, 4294901760
        %2405 = vmatpush.msra.mxu0 %v2404
        %v2406 = vand.u32 %v1814, 4294901760
        %v2407 = vsub.f32 %v1814, %v2406
        %v2408 = vand.u32 %v2407, 4294901760
        %2409 = vmatpush.msra.mxu0 %v2408
        %v2410 = vand.u32 %v1942, 4294901760
        %2411 = vmatmul.f32.gmra.mxu0 %v2410
        %v2412 = vpop.f32.mrf.mxu0
        %v2413 = vadd.f32 %v2302, %v2412
        %v2414 = vand.u32 %v1943, 4294901760
        %2415 = vmatmul.f32.gmra.mxu0 %v2414
        %v2416 = vpop.f32.mrf.mxu0
        %v2417 = vadd.f32 %v2308, %v2416
        %v2418 = vand.u32 %v1944, 4294901760
        %2419 = vmatmul.f32.gmra.mxu0 %v2418
        %v2420 = vpop.f32.mrf.mxu0
        %v2421 = vadd.f32 %v2314, %v2420
        %v2422 = vand.u32 %v1945, 4294901760
        %2423 = vmatmul.f32.gmra.mxu0 %v2422
        %v2424 = vpop.f32.mrf.mxu0
        %v2425 = vadd.f32 %v2320, %v2424
        %v2426 = vand.u32 %v1946, 4294901760
        %2427 = vmatmul.f32.gmra.mxu0 %v2426
        %v2428 = vpop.f32.mrf.mxu0
        %v2429 = vadd.f32 %v2326, %v2428
        %v2430 = vand.u32 %v1947, 4294901760
        %2431 = vmatmul.f32.gmra.mxu0 %v2430
        %v2432 = vpop.f32.mrf.mxu0
        %v2433 = vadd.f32 %v2332, %v2432
        %v2434 = vand.u32 %v1948, 4294901760
        %2435 = vmatmul.f32.gmra.mxu0 %v2434
        %v2436 = vpop.f32.mrf.mxu0
        %v2437 = vadd.f32 %v2338, %v2436
        %v2438 = vand.u32 %v1949, 4294901760
        %2439 = vmatmul.f32.gmra.mxu0 %v2438
        %v2440 = vpop.f32.mrf.mxu0
        %v2441 = vadd.f32 %v2344, %v2440
        %2442 = vdwg.mxu0
        %v2443 = vand.u32 %v1934, 4294901760
        %2444 = vmatpush.msra.mxu0 %v2443
        %v2445 = vand.u32 %v1926, 4294901760
        %2446 = vmatpush.msra.mxu0 %v2445
        %v2447 = vand.u32 %v1918, 4294901760
        %2448 = vmatpush.msra.mxu0 %v2447
        %v2449 = vand.u32 %v1910, 4294901760
        %2450 = vmatpush.msra.mxu0 %v2449
        %v2451 = vand.u32 %v1902, 4294901760
        %2452 = vmatpush.msra.mxu0 %v2451
        %v2453 = vand.u32 %v1894, 4294901760
        %2454 = vmatpush.msra.mxu0 %v2453
        %v2455 = vand.u32 %v1886, 4294901760
        %2456 = vmatpush.msra.mxu0 %v2455
        %v2457 = vand.u32 %v1878, 4294901760
        %2458 = vmatpush.msra.mxu0 %v2457
        %v2459 = vand.u32 %v1870, 4294901760
        %2460 = vmatpush.msra.mxu0 %v2459
        %v2461 = vand.u32 %v1862, 4294901760
        %2462 = vmatpush.msra.mxu0 %v2461
        %v2463 = vand.u32 %v1854, 4294901760
        %2464 = vmatpush.msra.mxu0 %v2463
        %v2465 = vand.u32 %v1846, 4294901760
        %2466 = vmatpush.msra.mxu0 %v2465
        %v2467 = vand.u32 %v1838, 4294901760
        %2468 = vmatpush.msra.mxu0 %v2467
        %v2469 = vand.u32 %v1830, 4294901760
        %2470 = vmatpush.msra.mxu0 %v2469
        %v2471 = vand.u32 %v1822, 4294901760
        %2472 = vmatpush.msra.mxu0 %v2471
        %v2473 = vand.u32 %v1814, 4294901760
        %2474 = vmatpush.msra.mxu0 %v2473
        %v2475 = vand.u32 %v1942, 4294901760
        %2476 = vmatmul.f32.gmra.mxu0 %v2475
        %v2477 = vpop.f32.mrf.mxu0
        %v2478 = vadd.f32 %v2413, %v2477
        %v2479 = vand.u32 %v1943, 4294901760
        %2480 = vmatmul.f32.gmra.mxu0 %v2479
        %v2481 = vpop.f32.mrf.mxu0
        %v2482 = vadd.f32 %v2417, %v2481
        %v2483 = vand.u32 %v1944, 4294901760
        %2484 = vmatmul.f32.gmra.mxu0 %v2483
        %v2485 = vpop.f32.mrf.mxu0
        %v2486 = vadd.f32 %v2421, %v2485
        %v2487 = vand.u32 %v1945, 4294901760
        %2488 = vmatmul.f32.gmra.mxu0 %v2487
        %v2489 = vpop.f32.mrf.mxu0
        %v2490 = vadd.f32 %v2425, %v2489
        %v2491 = vand.u32 %v1946, 4294901760
        %2492 = vmatmul.f32.gmra.mxu0 %v2491
        %v2493 = vpop.f32.mrf.mxu0
        %v2494 = vadd.f32 %v2429, %v2493
        %v2495 = vand.u32 %v1947, 4294901760
        %2496 = vmatmul.f32.gmra.mxu0 %v2495
        %v2497 = vpop.f32.mrf.mxu0
        %v2498 = vadd.f32 %v2433, %v2497
        %v2499 = vand.u32 %v1948, 4294901760
        %2500 = vmatmul.f32.gmra.mxu0 %v2499
        %v2501 = vpop.f32.mrf.mxu0
        %v2502 = vadd.f32 %v2437, %v2501
        %v2503 = vand.u32 %v1949, 4294901760
        %2504 = vmatmul.f32.gmra.mxu0 %v2503
        %v2505 = vpop.f32.mrf.mxu0
        %v2506 = vadd.f32 %v2441, %v2505
        %2507 = vdwg.mxu0
        %v2508 = vand.u32 %v1935, 4294901760
        %2509 = vmatpush.msra.mxu0 %v2508
        %v2510 = vand.u32 %v1927, 4294901760
        %2511 = vmatpush.msra.mxu0 %v2510
        %v2512 = vand.u32 %v1919, 4294901760
        %2513 = vmatpush.msra.mxu0 %v2512
        %v2514 = vand.u32 %v1911, 4294901760
        %2515 = vmatpush.msra.mxu0 %v2514
        %v2516 = vand.u32 %v1903, 4294901760
        %2517 = vmatpush.msra.mxu0 %v2516
        %v2518 = vand.u32 %v1895, 4294901760
        %2519 = vmatpush.msra.mxu0 %v2518
        %v2520 = vand.u32 %v1887, 4294901760
        %2521 = vmatpush.msra.mxu0 %v2520
        %v2522 = vand.u32 %v1879, 4294901760
        %2523 = vmatpush.msra.mxu0 %v2522
        %v2524 = vand.u32 %v1871, 4294901760
        %2525 = vmatpush.msra.mxu0 %v2524
        %v2526 = vand.u32 %v1863, 4294901760
        %2527 = vmatpush.msra.mxu0 %v2526
        %v2528 = vand.u32 %v1855, 4294901760
        %2529 = vmatpush.msra.mxu0 %v2528
        %v2530 = vand.u32 %v1847, 4294901760
        %2531 = vmatpush.msra.mxu0 %v2530
        %v2532 = vand.u32 %v1839, 4294901760
        %2533 = vmatpush.msra.mxu0 %v2532
        %v2534 = vand.u32 %v1831, 4294901760
        %2535 = vmatpush.msra.mxu0 %v2534
        %v2536 = vand.u32 %v1823, 4294901760
        %2537 = vmatpush.msra.mxu0 %v2536
        %v2538 = vand.u32 %v1815, 4294901760
        %2539 = vmatpush.msra.mxu0 %v2538
        %v2540 = vand.u32 %v1942, 4294901760
        %v2541 = vsub.f32 %v1942, %v2540
        %v2542 = vand.u32 %v2541, 4294901760
        %v2543 = vsub.f32 %v2541, %v2542
        %v2544 = vand.u32 %v2543, 4294901760
        %2545 = vmatmul.f32.gmra.mxu0 %v2544
        %v2546 = vpop.f32.mrf.mxu0
        %v2547 = vadd.f32 0.0, %v2546
        %v2548 = vand.u32 %v1943, 4294901760
        %v2549 = vsub.f32 %v1943, %v2548
        %v2550 = vand.u32 %v2549, 4294901760
        %v2551 = vsub.f32 %v2549, %v2550
        %v2552 = vand.u32 %v2551, 4294901760
        %2553 = vmatmul.f32.gmra.mxu0 %v2552
        %v2554 = vpop.f32.mrf.mxu0
        %v2555 = vadd.f32 0.0, %v2554
        %v2556 = vand.u32 %v1944, 4294901760
        %v2557 = vsub.f32 %v1944, %v2556
        %v2558 = vand.u32 %v2557, 4294901760
        %v2559 = vsub.f32 %v2557, %v2558
        %v2560 = vand.u32 %v2559, 4294901760
        %2561 = vmatmul.f32.gmra.mxu0 %v2560
        %v2562 = vpop.f32.mrf.mxu0
        %v2563 = vadd.f32 0.0, %v2562
        %v2564 = vand.u32 %v1945, 4294901760
        %v2565 = vsub.f32 %v1945, %v2564
        %v2566 = vand.u32 %v2565, 4294901760
        %v2567 = vsub.f32 %v2565, %v2566
        %v2568 = vand.u32 %v2567, 4294901760
        %2569 = vmatmul.f32.gmra.mxu0 %v2568
        %v2570 = vpop.f32.mrf.mxu0
        %v2571 = vadd.f32 0.0, %v2570
        %v2572 = vand.u32 %v1946, 4294901760
        %v2573 = vsub.f32 %v1946, %v2572
        %v2574 = vand.u32 %v2573, 4294901760
        %v2575 = vsub.f32 %v2573, %v2574
        %v2576 = vand.u32 %v2575, 4294901760
        %2577 = vmatmul.f32.gmra.mxu0 %v2576
        %v2578 = vpop.f32.mrf.mxu0
        %v2579 = vadd.f32 0.0, %v2578
        %v2580 = vand.u32 %v1947, 4294901760
        %v2581 = vsub.f32 %v1947, %v2580
        %v2582 = vand.u32 %v2581, 4294901760
        %v2583 = vsub.f32 %v2581, %v2582
        %v2584 = vand.u32 %v2583, 4294901760
        %2585 = vmatmul.f32.gmra.mxu0 %v2584
        %v2586 = vpop.f32.mrf.mxu0
        %v2587 = vadd.f32 0.0, %v2586
        %v2588 = vand.u32 %v1948, 4294901760
        %v2589 = vsub.f32 %v1948, %v2588
        %v2590 = vand.u32 %v2589, 4294901760
        %v2591 = vsub.f32 %v2589, %v2590
        %v2592 = vand.u32 %v2591, 4294901760
        %2593 = vmatmul.f32.gmra.mxu0 %v2592
        %v2594 = vpop.f32.mrf.mxu0
        %v2595 = vadd.f32 0.0, %v2594
        %v2596 = vand.u32 %v1949, 4294901760
        %v2597 = vsub.f32 %v1949, %v2596
        %v2598 = vand.u32 %v2597, 4294901760
        %v2599 = vsub.f32 %v2597, %v2598
        %v2600 = vand.u32 %v2599, 4294901760
        %2601 = vmatmul.f32.gmra.mxu0 %v2600
        %v2602 = vpop.f32.mrf.mxu0
        %v2603 = vadd.f32 0.0, %v2602
        %2604 = vdwg.mxu0
        %v2605 = vand.u32 %v1935, 4294901760
        %v2606 = vsub.f32 %v1935, %v2605
        %v2607 = vand.u32 %v2606, 4294901760
        %v2608 = vsub.f32 %v2606, %v2607
        %v2609 = vand.u32 %v2608, 4294901760
        %2610 = vmatpush.msra.mxu0 %v2609
        %v2611 = vand.u32 %v1927, 4294901760
        %v2612 = vsub.f32 %v1927, %v2611
        %v2613 = vand.u32 %v2612, 4294901760
        %v2614 = vsub.f32 %v2612, %v2613
        %v2615 = vand.u32 %v2614, 4294901760
        %2616 = vmatpush.msra.mxu0 %v2615
        %v2617 = vand.u32 %v1919, 4294901760
        %v2618 = vsub.f32 %v1919, %v2617
        %v2619 = vand.u32 %v2618, 4294901760
        %v2620 = vsub.f32 %v2618, %v2619
        %v2621 = vand.u32 %v2620, 4294901760
        %2622 = vmatpush.msra.mxu0 %v2621
        %v2623 = vand.u32 %v1911, 4294901760
        %v2624 = vsub.f32 %v1911, %v2623
        %v2625 = vand.u32 %v2624, 4294901760
        %v2626 = vsub.f32 %v2624, %v2625
        %v2627 = vand.u32 %v2626, 4294901760
        %2628 = vmatpush.msra.mxu0 %v2627
        %v2629 = vand.u32 %v1903, 4294901760
        %v2630 = vsub.f32 %v1903, %v2629
        %v2631 = vand.u32 %v2630, 4294901760
        %v2632 = vsub.f32 %v2630, %v2631
        %v2633 = vand.u32 %v2632, 4294901760
        %2634 = vmatpush.msra.mxu0 %v2633
        %v2635 = vand.u32 %v1895, 4294901760
        %v2636 = vsub.f32 %v1895, %v2635
        %v2637 = vand.u32 %v2636, 4294901760
        %v2638 = vsub.f32 %v2636, %v2637
        %v2639 = vand.u32 %v2638, 4294901760
        %2640 = vmatpush.msra.mxu0 %v2639
        %v2641 = vand.u32 %v1887, 4294901760
        %v2642 = vsub.f32 %v1887, %v2641
        %v2643 = vand.u32 %v2642, 4294901760
        %v2644 = vsub.f32 %v2642, %v2643
        %v2645 = vand.u32 %v2644, 4294901760
        %2646 = vmatpush.msra.mxu0 %v2645
        %v2647 = vand.u32 %v1879, 4294901760
        %v2648 = vsub.f32 %v1879, %v2647
        %v2649 = vand.u32 %v2648, 4294901760
        %v2650 = vsub.f32 %v2648, %v2649
        %v2651 = vand.u32 %v2650, 4294901760
        %2652 = vmatpush.msra.mxu0 %v2651
        %v2653 = vand.u32 %v1871, 4294901760
        %v2654 = vsub.f32 %v1871, %v2653
        %v2655 = vand.u32 %v2654, 4294901760
        %v2656 = vsub.f32 %v2654, %v2655
        %v2657 = vand.u32 %v2656, 4294901760
        %2658 = vmatpush.msra.mxu0 %v2657
        %v2659 = vand.u32 %v1863, 4294901760
        %v2660 = vsub.f32 %v1863, %v2659
        %v2661 = vand.u32 %v2660, 4294901760
        %v2662 = vsub.f32 %v2660, %v2661
        %v2663 = vand.u32 %v2662, 4294901760
        %2664 = vmatpush.msra.mxu0 %v2663
        %v2665 = vand.u32 %v1855, 4294901760
        %v2666 = vsub.f32 %v1855, %v2665
        %v2667 = vand.u32 %v2666, 4294901760
        %v2668 = vsub.f32 %v2666, %v2667
        %v2669 = vand.u32 %v2668, 4294901760
        %2670 = vmatpush.msra.mxu0 %v2669
        %v2671 = vand.u32 %v1847, 4294901760
        %v2672 = vsub.f32 %v1847, %v2671
        %v2673 = vand.u32 %v2672, 4294901760
        %v2674 = vsub.f32 %v2672, %v2673
        %v2675 = vand.u32 %v2674, 4294901760
        %2676 = vmatpush.msra.mxu0 %v2675
        %v2677 = vand.u32 %v1839, 4294901760
        %v2678 = vsub.f32 %v1839, %v2677
        %v2679 = vand.u32 %v2678, 4294901760
        %v2680 = vsub.f32 %v2678, %v2679
        %v2681 = vand.u32 %v2680, 4294901760
        %2682 = vmatpush.msra.mxu0 %v2681
        %v2683 = vand.u32 %v1831, 4294901760
        %v2684 = vsub.f32 %v1831, %v2683
        %v2685 = vand.u32 %v2684, 4294901760
        %v2686 = vsub.f32 %v2684, %v2685
        %v2687 = vand.u32 %v2686, 4294901760
        %2688 = vmatpush.msra.mxu0 %v2687
        %v2689 = vand.u32 %v1823, 4294901760
        %v2690 = vsub.f32 %v1823, %v2689
        %v2691 = vand.u32 %v2690, 4294901760
        %v2692 = vsub.f32 %v2690, %v2691
        %v2693 = vand.u32 %v2692, 4294901760
        %2694 = vmatpush.msra.mxu0 %v2693
        %v2695 = vand.u32 %v1815, 4294901760
        %v2696 = vsub.f32 %v1815, %v2695
        %v2697 = vand.u32 %v2696, 4294901760
        %v2698 = vsub.f32 %v2696, %v2697
        %v2699 = vand.u32 %v2698, 4294901760
        %2700 = vmatpush.msra.mxu0 %v2699
        %v2701 = vand.u32 %v1942, 4294901760
        %2702 = vmatmul.f32.gmra.mxu0 %v2701
        %v2703 = vpop.f32.mrf.mxu0
        %v2704 = vadd.f32 %v2547, %v2703
        %v2705 = vand.u32 %v1943, 4294901760
        %2706 = vmatmul.f32.gmra.mxu0 %v2705
        %v2707 = vpop.f32.mrf.mxu0
        %v2708 = vadd.f32 %v2555, %v2707
        %v2709 = vand.u32 %v1944, 4294901760
        %2710 = vmatmul.f32.gmra.mxu0 %v2709
        %v2711 = vpop.f32.mrf.mxu0
        %v2712 = vadd.f32 %v2563, %v2711
        %v2713 = vand.u32 %v1945, 4294901760
        %2714 = vmatmul.f32.gmra.mxu0 %v2713
        %v2715 = vpop.f32.mrf.mxu0
        %v2716 = vadd.f32 %v2571, %v2715
        %v2717 = vand.u32 %v1946, 4294901760
        %2718 = vmatmul.f32.gmra.mxu0 %v2717
        %v2719 = vpop.f32.mrf.mxu0
        %v2720 = vadd.f32 %v2579, %v2719
        %v2721 = vand.u32 %v1947, 4294901760
        %2722 = vmatmul.f32.gmra.mxu0 %v2721
        %v2723 = vpop.f32.mrf.mxu0
        %v2724 = vadd.f32 %v2587, %v2723
        %v2725 = vand.u32 %v1948, 4294901760
        %2726 = vmatmul.f32.gmra.mxu0 %v2725
        %v2727 = vpop.f32.mrf.mxu0
        %v2728 = vadd.f32 %v2595, %v2727
        %v2729 = vand.u32 %v1949, 4294901760
        %2730 = vmatmul.f32.gmra.mxu0 %v2729
        %v2731 = vpop.f32.mrf.mxu0
        %v2732 = vadd.f32 %v2603, %v2731
        %2733 = vdwg.mxu0
        %v2734 = vand.u32 %v1935, 4294901760
        %v2735 = vsub.f32 %v1935, %v2734
        %2736 = vmatpush.msra.mxu0 %v2735
        %v2737 = vand.u32 %v1927, 4294901760
        %v2738 = vsub.f32 %v1927, %v2737
        %2739 = vmatpush.msra.mxu0 %v2738
        %v2740 = vand.u32 %v1919, 4294901760
        %v2741 = vsub.f32 %v1919, %v2740
        %2742 = vmatpush.msra.mxu0 %v2741
        %v2743 = vand.u32 %v1911, 4294901760
        %v2744 = vsub.f32 %v1911, %v2743
        %2745 = vmatpush.msra.mxu0 %v2744
        %v2746 = vand.u32 %v1903, 4294901760
        %v2747 = vsub.f32 %v1903, %v2746
        %2748 = vmatpush.msra.mxu0 %v2747
        %v2749 = vand.u32 %v1895, 4294901760
        %v2750 = vsub.f32 %v1895, %v2749
        %2751 = vmatpush.msra.mxu0 %v2750
        %v2752 = vand.u32 %v1887, 4294901760
        %v2753 = vsub.f32 %v1887, %v2752
        %2754 = vmatpush.msra.mxu0 %v2753
        %v2755 = vand.u32 %v1879, 4294901760
        %v2756 = vsub.f32 %v1879, %v2755
        %2757 = vmatpush.msra.mxu0 %v2756
        %v2758 = vand.u32 %v1871, 4294901760
        %v2759 = vsub.f32 %v1871, %v2758
        %2760 = vmatpush.msra.mxu0 %v2759
        %v2761 = vand.u32 %v1863, 4294901760
        %v2762 = vsub.f32 %v1863, %v2761
        %2763 = vmatpush.msra.mxu0 %v2762
        %v2764 = vand.u32 %v1855, 4294901760
        %v2765 = vsub.f32 %v1855, %v2764
        %2766 = vmatpush.msra.mxu0 %v2765
        %v2767 = vand.u32 %v1847, 4294901760
        %v2768 = vsub.f32 %v1847, %v2767
        %2769 = vmatpush.msra.mxu0 %v2768
        %v2770 = vand.u32 %v1839, 4294901760
        %v2771 = vsub.f32 %v1839, %v2770
        %2772 = vmatpush.msra.mxu0 %v2771
        %v2773 = vand.u32 %v1831, 4294901760
        %v2774 = vsub.f32 %v1831, %v2773
        %2775 = vmatpush.msra.mxu0 %v2774
        %v2776 = vand.u32 %v1823, 4294901760
        %v2777 = vsub.f32 %v1823, %v2776
        %2778 = vmatpush.msra.mxu0 %v2777
        %v2779 = vand.u32 %v1815, 4294901760
        %v2780 = vsub.f32 %v1815, %v2779
        %2781 = vmatpush.msra.mxu0 %v2780
        %v2782 = vand.u32 %v1942, 4294901760
        %v2783 = vsub.f32 %v1942, %v2782
        %2784 = vmatmul.f32.gmra.mxu0 %v2783
        %v2785 = vpop.f32.mrf.mxu0
        %v2786 = vadd.f32 %v2704, %v2785
        %v2787 = vand.u32 %v1943, 4294901760
        %v2788 = vsub.f32 %v1943, %v2787
        %2789 = vmatmul.f32.gmra.mxu0 %v2788
        %v2790 = vpop.f32.mrf.mxu0
        %v2791 = vadd.f32 %v2708, %v2790
        %v2792 = vand.u32 %v1944, 4294901760
        %v2793 = vsub.f32 %v1944, %v2792
        %2794 = vmatmul.f32.gmra.mxu0 %v2793
        %v2795 = vpop.f32.mrf.mxu0
        %v2796 = vadd.f32 %v2712, %v2795
        %v2797 = vand.u32 %v1945, 4294901760
        %v2798 = vsub.f32 %v1945, %v2797
        %2799 = vmatmul.f32.gmra.mxu0 %v2798
        %v2800 = vpop.f32.mrf.mxu0
        %v2801 = vadd.f32 %v2716, %v2800
        %v2802 = vand.u32 %v1946, 4294901760
        %v2803 = vsub.f32 %v1946, %v2802
        %2804 = vmatmul.f32.gmra.mxu0 %v2803
        %v2805 = vpop.f32.mrf.mxu0
        %v2806 = vadd.f32 %v2720, %v2805
        %v2807 = vand.u32 %v1947, 4294901760
        %v2808 = vsub.f32 %v1947, %v2807
        %2809 = vmatmul.f32.gmra.mxu0 %v2808
        %v2810 = vpop.f32.mrf.mxu0
        %v2811 = vadd.f32 %v2724, %v2810
        %v2812 = vand.u32 %v1948, 4294901760
        %v2813 = vsub.f32 %v1948, %v2812
        %2814 = vmatmul.f32.gmra.mxu0 %v2813
        %v2815 = vpop.f32.mrf.mxu0
        %v2816 = vadd.f32 %v2728, %v2815
        %v2817 = vand.u32 %v1949, 4294901760
        %v2818 = vsub.f32 %v1949, %v2817
        %2819 = vmatmul.f32.gmra.mxu0 %v2818
        %v2820 = vpop.f32.mrf.mxu0
        %v2821 = vadd.f32 %v2732, %v2820
        %2822 = vdwg.mxu0
        %v2823 = vand.u32 %v1935, 4294901760
        %2824 = vmatpush.msra.mxu0 %v2823
        %v2825 = vand.u32 %v1927, 4294901760
        %2826 = vmatpush.msra.mxu0 %v2825
        %v2827 = vand.u32 %v1919, 4294901760
        %2828 = vmatpush.msra.mxu0 %v2827
        %v2829 = vand.u32 %v1911, 4294901760
        %2830 = vmatpush.msra.mxu0 %v2829
        %v2831 = vand.u32 %v1903, 4294901760
        %2832 = vmatpush.msra.mxu0 %v2831
        %v2833 = vand.u32 %v1895, 4294901760
        %2834 = vmatpush.msra.mxu0 %v2833
        %v2835 = vand.u32 %v1887, 4294901760
        %2836 = vmatpush.msra.mxu0 %v2835
        %v2837 = vand.u32 %v1879, 4294901760
        %2838 = vmatpush.msra.mxu0 %v2837
        %v2839 = vand.u32 %v1871, 4294901760
        %2840 = vmatpush.msra.mxu0 %v2839
        %v2841 = vand.u32 %v1863, 4294901760
        %2842 = vmatpush.msra.mxu0 %v2841
        %v2843 = vand.u32 %v1855, 4294901760
        %2844 = vmatpush.msra.mxu0 %v2843
        %v2845 = vand.u32 %v1847, 4294901760
        %2846 = vmatpush.msra.mxu0 %v2845
        %v2847 = vand.u32 %v1839, 4294901760
        %2848 = vmatpush.msra.mxu0 %v2847
        %v2849 = vand.u32 %v1831, 4294901760
        %2850 = vmatpush.msra.mxu0 %v2849
        %v2851 = vand.u32 %v1823, 4294901760
        %2852 = vmatpush.msra.mxu0 %v2851
        %v2853 = vand.u32 %v1815, 4294901760
        %2854 = vmatpush.msra.mxu0 %v2853
        %v2855 = vand.u32 %v1942, 4294901760
        %v2856 = vsub.f32 %v1942, %v2855
        %v2857 = vand.u32 %v2856, 4294901760
        %2858 = vmatmul.f32.gmra.mxu0 %v2857
        %v2859 = vpop.f32.mrf.mxu0
        %v2860 = vadd.f32 %v2786, %v2859
        %v2861 = vand.u32 %v1943, 4294901760
        %v2862 = vsub.f32 %v1943, %v2861
        %v2863 = vand.u32 %v2862, 4294901760
        %2864 = vmatmul.f32.gmra.mxu0 %v2863
        %v2865 = vpop.f32.mrf.mxu0
        %v2866 = vadd.f32 %v2791, %v2865
        %v2867 = vand.u32 %v1944, 4294901760
        %v2868 = vsub.f32 %v1944, %v2867
        %v2869 = vand.u32 %v2868, 4294901760
        %2870 = vmatmul.f32.gmra.mxu0 %v2869
        %v2871 = vpop.f32.mrf.mxu0
        %v2872 = vadd.f32 %v2796, %v2871
        %v2873 = vand.u32 %v1945, 4294901760
        %v2874 = vsub.f32 %v1945, %v2873
        %v2875 = vand.u32 %v2874, 4294901760
        %2876 = vmatmul.f32.gmra.mxu0 %v2875
        %v2877 = vpop.f32.mrf.mxu0
        %v2878 = vadd.f32 %v2801, %v2877
        %v2879 = vand.u32 %v1946, 4294901760
        %v2880 = vsub.f32 %v1946, %v2879
        %v2881 = vand.u32 %v2880, 4294901760
        %2882 = vmatmul.f32.gmra.mxu0 %v2881
        %v2883 = vpop.f32.mrf.mxu0
        %v2884 = vadd.f32 %v2806, %v2883
        %v2885 = vand.u32 %v1947, 4294901760
        %v2886 = vsub.f32 %v1947, %v2885
        %v2887 = vand.u32 %v2886, 4294901760
        %2888 = vmatmul.f32.gmra.mxu0 %v2887
        %v2889 = vpop.f32.mrf.mxu0
        %v2890 = vadd.f32 %v2811, %v2889
        %v2891 = vand.u32 %v1948, 4294901760
        %v2892 = vsub.f32 %v1948, %v2891
        %v2893 = vand.u32 %v2892, 4294901760
        %2894 = vmatmul.f32.gmra.mxu0 %v2893
        %v2895 = vpop.f32.mrf.mxu0
        %v2896 = vadd.f32 %v2816, %v2895
        %v2897 = vand.u32 %v1949, 4294901760
        %v2898 = vsub.f32 %v1949, %v2897
        %v2899 = vand.u32 %v2898, 4294901760
        %2900 = vmatmul.f32.gmra.mxu0 %v2899
        %v2901 = vpop.f32.mrf.mxu0
        %v2902 = vadd.f32 %v2821, %v2901
        %2903 = vdwg.mxu0
        %v2904 = vand.u32 %v1935, 4294901760
        %v2905 = vsub.f32 %v1935, %v2904
        %v2906 = vand.u32 %v2905, 4294901760
        %2907 = vmatpush.msra.mxu0 %v2906
        %v2908 = vand.u32 %v1927, 4294901760
        %v2909 = vsub.f32 %v1927, %v2908
        %v2910 = vand.u32 %v2909, 4294901760
        %2911 = vmatpush.msra.mxu0 %v2910
        %v2912 = vand.u32 %v1919, 4294901760
        %v2913 = vsub.f32 %v1919, %v2912
        %v2914 = vand.u32 %v2913, 4294901760
        %2915 = vmatpush.msra.mxu0 %v2914
        %v2916 = vand.u32 %v1911, 4294901760
        %v2917 = vsub.f32 %v1911, %v2916
        %v2918 = vand.u32 %v2917, 4294901760
        %2919 = vmatpush.msra.mxu0 %v2918
        %v2920 = vand.u32 %v1903, 4294901760
        %v2921 = vsub.f32 %v1903, %v2920
        %v2922 = vand.u32 %v2921, 4294901760
        %2923 = vmatpush.msra.mxu0 %v2922
        %v2924 = vand.u32 %v1895, 4294901760
        %v2925 = vsub.f32 %v1895, %v2924
        %v2926 = vand.u32 %v2925, 4294901760
        %2927 = vmatpush.msra.mxu0 %v2926
        %v2928 = vand.u32 %v1887, 4294901760
        %v2929 = vsub.f32 %v1887, %v2928
        %v2930 = vand.u32 %v2929, 4294901760
        %2931 = vmatpush.msra.mxu0 %v2930
        %v2932 = vand.u32 %v1879, 4294901760
        %v2933 = vsub.f32 %v1879, %v2932
        %v2934 = vand.u32 %v2933, 4294901760
        %2935 = vmatpush.msra.mxu0 %v2934
        %v2936 = vand.u32 %v1871, 4294901760
        %v2937 = vsub.f32 %v1871, %v2936
        %v2938 = vand.u32 %v2937, 4294901760
        %2939 = vmatpush.msra.mxu0 %v2938
        %v2940 = vand.u32 %v1863, 4294901760
        %v2941 = vsub.f32 %v1863, %v2940
        %v2942 = vand.u32 %v2941, 4294901760
        %2943 = vmatpush.msra.mxu0 %v2942
        %v2944 = vand.u32 %v1855, 4294901760
        %v2945 = vsub.f32 %v1855, %v2944
        %v2946 = vand.u32 %v2945, 4294901760
        %2947 = vmatpush.msra.mxu0 %v2946
        %v2948 = vand.u32 %v1847, 4294901760
        %v2949 = vsub.f32 %v1847, %v2948
        %v2950 = vand.u32 %v2949, 4294901760
        %2951 = vmatpush.msra.mxu0 %v2950
        %v2952 = vand.u32 %v1839, 4294901760
        %v2953 = vsub.f32 %v1839, %v2952
        %v2954 = vand.u32 %v2953, 4294901760
        %2955 = vmatpush.msra.mxu0 %v2954
        %v2956 = vand.u32 %v1831, 4294901760
        %v2957 = vsub.f32 %v1831, %v2956
        %v2958 = vand.u32 %v2957, 4294901760
        %2959 = vmatpush.msra.mxu0 %v2958
        %v2960 = vand.u32 %v1823, 4294901760
        %v2961 = vsub.f32 %v1823, %v2960
        %v2962 = vand.u32 %v2961, 4294901760
        %2963 = vmatpush.msra.mxu0 %v2962
        %v2964 = vand.u32 %v1815, 4294901760
        %v2965 = vsub.f32 %v1815, %v2964
        %v2966 = vand.u32 %v2965, 4294901760
        %2967 = vmatpush.msra.mxu0 %v2966
        %v2968 = vand.u32 %v1942, 4294901760
        %2969 = vmatmul.f32.gmra.mxu0 %v2968
        %v2970 = vpop.f32.mrf.mxu0
        %v2971 = vadd.f32 %v2860, %v2970
        %v2972 = vand.u32 %v1943, 4294901760
        %2973 = vmatmul.f32.gmra.mxu0 %v2972
        %v2974 = vpop.f32.mrf.mxu0
        %v2975 = vadd.f32 %v2866, %v2974
        %v2976 = vand.u32 %v1944, 4294901760
        %2977 = vmatmul.f32.gmra.mxu0 %v2976
        %v2978 = vpop.f32.mrf.mxu0
        %v2979 = vadd.f32 %v2872, %v2978
        %v2980 = vand.u32 %v1945, 4294901760
        %2981 = vmatmul.f32.gmra.mxu0 %v2980
        %v2982 = vpop.f32.mrf.mxu0
        %v2983 = vadd.f32 %v2878, %v2982
        %v2984 = vand.u32 %v1946, 4294901760
        %2985 = vmatmul.f32.gmra.mxu0 %v2984
        %v2986 = vpop.f32.mrf.mxu0
        %v2987 = vadd.f32 %v2884, %v2986
        %v2988 = vand.u32 %v1947, 4294901760
        %2989 = vmatmul.f32.gmra.mxu0 %v2988
        %v2990 = vpop.f32.mrf.mxu0
        %v2991 = vadd.f32 %v2890, %v2990
        %v2992 = vand.u32 %v1948, 4294901760
        %2993 = vmatmul.f32.gmra.mxu0 %v2992
        %v2994 = vpop.f32.mrf.mxu0
        %v2995 = vadd.f32 %v2896, %v2994
        %v2996 = vand.u32 %v1949, 4294901760
        %2997 = vmatmul.f32.gmra.mxu0 %v2996
        %v2998 = vpop.f32.mrf.mxu0
        %v2999 = vadd.f32 %v2902, %v2998
        %3000 = vdwg.mxu0
        %v3001 = vand.u32 %v1935, 4294901760
        %3002 = vmatpush.msra.mxu0 %v3001
        %v3003 = vand.u32 %v1927, 4294901760
        %3004 = vmatpush.msra.mxu0 %v3003
        %v3005 = vand.u32 %v1919, 4294901760
        %3006 = vmatpush.msra.mxu0 %v3005
        %v3007 = vand.u32 %v1911, 4294901760
        %3008 = vmatpush.msra.mxu0 %v3007
        %v3009 = vand.u32 %v1903, 4294901760
        %3010 = vmatpush.msra.mxu0 %v3009
        %v3011 = vand.u32 %v1895, 4294901760
        %3012 = vmatpush.msra.mxu0 %v3011
        %v3013 = vand.u32 %v1887, 4294901760
        %3014 = vmatpush.msra.mxu0 %v3013
        %v3015 = vand.u32 %v1879, 4294901760
        %3016 = vmatpush.msra.mxu0 %v3015
        %v3017 = vand.u32 %v1871, 4294901760
        %3018 = vmatpush.msra.mxu0 %v3017
        %v3019 = vand.u32 %v1863, 4294901760
        %3020 = vmatpush.msra.mxu0 %v3019
        %v3021 = vand.u32 %v1855, 4294901760
        %3022 = vmatpush.msra.mxu0 %v3021
        %v3023 = vand.u32 %v1847, 4294901760
        %3024 = vmatpush.msra.mxu0 %v3023
        %v3025 = vand.u32 %v1839, 4294901760
        %3026 = vmatpush.msra.mxu0 %v3025
        %v3027 = vand.u32 %v1831, 4294901760
        %3028 = vmatpush.msra.mxu0 %v3027
        %v3029 = vand.u32 %v1823, 4294901760
        %3030 = vmatpush.msra.mxu0 %v3029
        %v3031 = vand.u32 %v1815, 4294901760
        %3032 = vmatpush.msra.mxu0 %v3031
        %v3033 = vand.u32 %v1942, 4294901760
        %3034 = vmatmul.f32.gmra.mxu0 %v3033
        %v3035 = vpop.f32.mrf.mxu0
        %v3036 = vadd.f32 %v2971, %v3035
        %v3037 = vand.u32 %v1943, 4294901760
        %3038 = vmatmul.f32.gmra.mxu0 %v3037
        %v3039 = vpop.f32.mrf.mxu0
        %v3040 = vadd.f32 %v2975, %v3039
        %v3041 = vand.u32 %v1944, 4294901760
        %3042 = vmatmul.f32.gmra.mxu0 %v3041
        %v3043 = vpop.f32.mrf.mxu0
        %v3044 = vadd.f32 %v2979, %v3043
        %v3045 = vand.u32 %v1945, 4294901760
        %3046 = vmatmul.f32.gmra.mxu0 %v3045
        %v3047 = vpop.f32.mrf.mxu0
        %v3048 = vadd.f32 %v2983, %v3047
        %v3049 = vand.u32 %v1946, 4294901760
        %3050 = vmatmul.f32.gmra.mxu0 %v3049
        %v3051 = vpop.f32.mrf.mxu0
        %v3052 = vadd.f32 %v2987, %v3051
        %v3053 = vand.u32 %v1947, 4294901760
        %3054 = vmatmul.f32.gmra.mxu0 %v3053
        %v3055 = vpop.f32.mrf.mxu0
        %v3056 = vadd.f32 %v2991, %v3055
        %v3057 = vand.u32 %v1948, 4294901760
        %3058 = vmatmul.f32.gmra.mxu0 %v3057
        %v3059 = vpop.f32.mrf.mxu0
        %v3060 = vadd.f32 %v2995, %v3059
        %v3061 = vand.u32 %v1949, 4294901760
        %3062 = vmatmul.f32.gmra.mxu0 %v3061
        %v3063 = vpop.f32.mrf.mxu0
        %v3064 = vadd.f32 %v2999, %v3063
        %3065 = vdwg.mxu0
        %v3066 = vand.u32 %v1936, 4294901760
        %3067 = vmatpush.msra.mxu0 %v3066
        %v3068 = vand.u32 %v1928, 4294901760
        %3069 = vmatpush.msra.mxu0 %v3068
        %v3070 = vand.u32 %v1920, 4294901760
        %3071 = vmatpush.msra.mxu0 %v3070
        %v3072 = vand.u32 %v1912, 4294901760
        %3073 = vmatpush.msra.mxu0 %v3072
        %v3074 = vand.u32 %v1904, 4294901760
        %3075 = vmatpush.msra.mxu0 %v3074
        %v3076 = vand.u32 %v1896, 4294901760
        %3077 = vmatpush.msra.mxu0 %v3076
        %v3078 = vand.u32 %v1888, 4294901760
        %3079 = vmatpush.msra.mxu0 %v3078
        %v3080 = vand.u32 %v1880, 4294901760
        %3081 = vmatpush.msra.mxu0 %v3080
        %v3082 = vand.u32 %v1872, 4294901760
        %3083 = vmatpush.msra.mxu0 %v3082
        %v3084 = vand.u32 %v1864, 4294901760
        %3085 = vmatpush.msra.mxu0 %v3084
        %v3086 = vand.u32 %v1856, 4294901760
        %3087 = vmatpush.msra.mxu0 %v3086
        %v3088 = vand.u32 %v1848, 4294901760
        %3089 = vmatpush.msra.mxu0 %v3088
        %v3090 = vand.u32 %v1840, 4294901760
        %3091 = vmatpush.msra.mxu0 %v3090
        %v3092 = vand.u32 %v1832, 4294901760
        %3093 = vmatpush.msra.mxu0 %v3092
        %v3094 = vand.u32 %v1824, 4294901760
        %3095 = vmatpush.msra.mxu0 %v3094
        %v3096 = vand.u32 %v1816, 4294901760
        %3097 = vmatpush.msra.mxu0 %v3096
        %v3098 = vand.u32 %v1942, 4294901760
        %v3099 = vsub.f32 %v1942, %v3098
        %v3100 = vand.u32 %v3099, 4294901760
        %v3101 = vsub.f32 %v3099, %v3100
        %v3102 = vand.u32 %v3101, 4294901760
        %3103 = vmatmul.f32.gmra.mxu0 %v3102
        %v3104 = vpop.f32.mrf.mxu0
        %v3105 = vadd.f32 0.0, %v3104
        %v3106 = vand.u32 %v1943, 4294901760
        %v3107 = vsub.f32 %v1943, %v3106
        %v3108 = vand.u32 %v3107, 4294901760
        %v3109 = vsub.f32 %v3107, %v3108
        %v3110 = vand.u32 %v3109, 4294901760
        %3111 = vmatmul.f32.gmra.mxu0 %v3110
        %v3112 = vpop.f32.mrf.mxu0
        %v3113 = vadd.f32 0.0, %v3112
        %v3114 = vand.u32 %v1944, 4294901760
        %v3115 = vsub.f32 %v1944, %v3114
        %v3116 = vand.u32 %v3115, 4294901760
        %v3117 = vsub.f32 %v3115, %v3116
        %v3118 = vand.u32 %v3117, 4294901760
        %3119 = vmatmul.f32.gmra.mxu0 %v3118
        %v3120 = vpop.f32.mrf.mxu0
        %v3121 = vadd.f32 0.0, %v3120
        %v3122 = vand.u32 %v1945, 4294901760
        %v3123 = vsub.f32 %v1945, %v3122
        %v3124 = vand.u32 %v3123, 4294901760
        %v3125 = vsub.f32 %v3123, %v3124
        %v3126 = vand.u32 %v3125, 4294901760
        %3127 = vmatmul.f32.gmra.mxu0 %v3126
        %v3128 = vpop.f32.mrf.mxu0
        %v3129 = vadd.f32 0.0, %v3128
        %v3130 = vand.u32 %v1946, 4294901760
        %v3131 = vsub.f32 %v1946, %v3130
        %v3132 = vand.u32 %v3131, 4294901760
        %v3133 = vsub.f32 %v3131, %v3132
        %v3134 = vand.u32 %v3133, 4294901760
        %3135 = vmatmul.f32.gmra.mxu0 %v3134
        %v3136 = vpop.f32.mrf.mxu0
        %v3137 = vadd.f32 0.0, %v3136
        %v3138 = vand.u32 %v1947, 4294901760
        %v3139 = vsub.f32 %v1947, %v3138
        %v3140 = vand.u32 %v3139, 4294901760
        %v3141 = vsub.f32 %v3139, %v3140
        %v3142 = vand.u32 %v3141, 4294901760
        %3143 = vmatmul.f32.gmra.mxu0 %v3142
        %v3144 = vpop.f32.mrf.mxu0
        %v3145 = vadd.f32 0.0, %v3144
        %v3146 = vand.u32 %v1948, 4294901760
        %v3147 = vsub.f32 %v1948, %v3146
        %v3148 = vand.u32 %v3147, 4294901760
        %v3149 = vsub.f32 %v3147, %v3148
        %v3150 = vand.u32 %v3149, 4294901760
        %3151 = vmatmul.f32.gmra.mxu0 %v3150
        %v3152 = vpop.f32.mrf.mxu0
        %v3153 = vadd.f32 0.0, %v3152
        %v3154 = vand.u32 %v1949, 4294901760
        %v3155 = vsub.f32 %v1949, %v3154
        %v3156 = vand.u32 %v3155, 4294901760
        %v3157 = vsub.f32 %v3155, %v3156
        %v3158 = vand.u32 %v3157, 4294901760
        %3159 = vmatmul.f32.gmra.mxu0 %v3158
        %v3160 = vpop.f32.mrf.mxu0
        %v3161 = vadd.f32 0.0, %v3160
        %3162 = vdwg.mxu0
        %v3163 = vand.u32 %v1936, 4294901760
        %v3164 = vsub.f32 %v1936, %v3163
        %v3165 = vand.u32 %v3164, 4294901760
        %v3166 = vsub.f32 %v3164, %v3165
        %v3167 = vand.u32 %v3166, 4294901760
        %3168 = vmatpush.msra.mxu0 %v3167
        %v3169 = vand.u32 %v1928, 4294901760
        %v3170 = vsub.f32 %v1928, %v3169
        %v3171 = vand.u32 %v3170, 4294901760
        %v3172 = vsub.f32 %v3170, %v3171
        %v3173 = vand.u32 %v3172, 4294901760
        %3174 = vmatpush.msra.mxu0 %v3173
        %v3175 = vand.u32 %v1920, 4294901760
        %v3176 = vsub.f32 %v1920, %v3175
        %v3177 = vand.u32 %v3176, 4294901760
        %v3178 = vsub.f32 %v3176, %v3177
        %v3179 = vand.u32 %v3178, 4294901760
        %3180 = vmatpush.msra.mxu0 %v3179
        %v3181 = vand.u32 %v1912, 4294901760
        %v3182 = vsub.f32 %v1912, %v3181
        %v3183 = vand.u32 %v3182, 4294901760
        %v3184 = vsub.f32 %v3182, %v3183
        %v3185 = vand.u32 %v3184, 4294901760
        %3186 = vmatpush.msra.mxu0 %v3185
        %v3187 = vand.u32 %v1904, 4294901760
        %v3188 = vsub.f32 %v1904, %v3187
        %v3189 = vand.u32 %v3188, 4294901760
        %v3190 = vsub.f32 %v3188, %v3189
        %v3191 = vand.u32 %v3190, 4294901760
        %3192 = vmatpush.msra.mxu0 %v3191
        %v3193 = vand.u32 %v1896, 4294901760
        %v3194 = vsub.f32 %v1896, %v3193
        %v3195 = vand.u32 %v3194, 4294901760
        %v3196 = vsub.f32 %v3194, %v3195
        %v3197 = vand.u32 %v3196, 4294901760
        %3198 = vmatpush.msra.mxu0 %v3197
        %v3199 = vand.u32 %v1888, 4294901760
        %v3200 = vsub.f32 %v1888, %v3199
        %v3201 = vand.u32 %v3200, 4294901760
        %v3202 = vsub.f32 %v3200, %v3201
        %v3203 = vand.u32 %v3202, 4294901760
        %3204 = vmatpush.msra.mxu0 %v3203
        %v3205 = vand.u32 %v1880, 4294901760
        %v3206 = vsub.f32 %v1880, %v3205
        %v3207 = vand.u32 %v3206, 4294901760
        %v3208 = vsub.f32 %v3206, %v3207
        %v3209 = vand.u32 %v3208, 4294901760
        %3210 = vmatpush.msra.mxu0 %v3209
        %v3211 = vand.u32 %v1872, 4294901760
        %v3212 = vsub.f32 %v1872, %v3211
        %v3213 = vand.u32 %v3212, 4294901760
        %v3214 = vsub.f32 %v3212, %v3213
        %v3215 = vand.u32 %v3214, 4294901760
        %3216 = vmatpush.msra.mxu0 %v3215
        %v3217 = vand.u32 %v1864, 4294901760
        %v3218 = vsub.f32 %v1864, %v3217
        %v3219 = vand.u32 %v3218, 4294901760
        %v3220 = vsub.f32 %v3218, %v3219
        %v3221 = vand.u32 %v3220, 4294901760
        %3222 = vmatpush.msra.mxu0 %v3221
        %v3223 = vand.u32 %v1856, 4294901760
        %v3224 = vsub.f32 %v1856, %v3223
        %v3225 = vand.u32 %v3224, 4294901760
        %v3226 = vsub.f32 %v3224, %v3225
        %v3227 = vand.u32 %v3226, 4294901760
        %3228 = vmatpush.msra.mxu0 %v3227
        %v3229 = vand.u32 %v1848, 4294901760
        %v3230 = vsub.f32 %v1848, %v3229
        %v3231 = vand.u32 %v3230, 4294901760
        %v3232 = vsub.f32 %v3230, %v3231
        %v3233 = vand.u32 %v3232, 4294901760
        %3234 = vmatpush.msra.mxu0 %v3233
        %v3235 = vand.u32 %v1840, 4294901760
        %v3236 = vsub.f32 %v1840, %v3235
        %v3237 = vand.u32 %v3236, 4294901760
        %v3238 = vsub.f32 %v3236, %v3237
        %v3239 = vand.u32 %v3238, 4294901760
        %3240 = vmatpush.msra.mxu0 %v3239
        %v3241 = vand.u32 %v1832, 4294901760
        %v3242 = vsub.f32 %v1832, %v3241
        %v3243 = vand.u32 %v3242, 4294901760
        %v3244 = vsub.f32 %v3242, %v3243
        %v3245 = vand.u32 %v3244, 4294901760
        %3246 = vmatpush.msra.mxu0 %v3245
        %v3247 = vand.u32 %v1824, 4294901760
        %v3248 = vsub.f32 %v1824, %v3247
        %v3249 = vand.u32 %v3248, 4294901760
        %v3250 = vsub.f32 %v3248, %v3249
        %v3251 = vand.u32 %v3250, 4294901760
        %3252 = vmatpush.msra.mxu0 %v3251
        %v3253 = vand.u32 %v1816, 4294901760
        %v3254 = vsub.f32 %v1816, %v3253
        %v3255 = vand.u32 %v3254, 4294901760
        %v3256 = vsub.f32 %v3254, %v3255
        %v3257 = vand.u32 %v3256, 4294901760
        %3258 = vmatpush.msra.mxu0 %v3257
        %v3259 = vand.u32 %v1942, 4294901760
        %3260 = vmatmul.f32.gmra.mxu0 %v3259
        %v3261 = vpop.f32.mrf.mxu0
        %v3262 = vadd.f32 %v3105, %v3261
        %v3263 = vand.u32 %v1943, 4294901760
        %3264 = vmatmul.f32.gmra.mxu0 %v3263
        %v3265 = vpop.f32.mrf.mxu0
        %v3266 = vadd.f32 %v3113, %v3265
        %v3267 = vand.u32 %v1944, 4294901760
        %3268 = vmatmul.f32.gmra.mxu0 %v3267
        %v3269 = vpop.f32.mrf.mxu0
        %v3270 = vadd.f32 %v3121, %v3269
        %v3271 = vand.u32 %v1945, 4294901760
        %3272 = vmatmul.f32.gmra.mxu0 %v3271
        %v3273 = vpop.f32.mrf.mxu0
        %v3274 = vadd.f32 %v3129, %v3273
        %v3275 = vand.u32 %v1946, 4294901760
        %3276 = vmatmul.f32.gmra.mxu0 %v3275
        %v3277 = vpop.f32.mrf.mxu0
        %v3278 = vadd.f32 %v3137, %v3277
        %v3279 = vand.u32 %v1947, 4294901760
        %3280 = vmatmul.f32.gmra.mxu0 %v3279
        %v3281 = vpop.f32.mrf.mxu0
        %v3282 = vadd.f32 %v3145, %v3281
        %v3283 = vand.u32 %v1948, 4294901760
        %3284 = vmatmul.f32.gmra.mxu0 %v3283
        %v3285 = vpop.f32.mrf.mxu0
        %v3286 = vadd.f32 %v3153, %v3285
        %v3287 = vand.u32 %v1949, 4294901760
        %3288 = vmatmul.f32.gmra.mxu0 %v3287
        %v3289 = vpop.f32.mrf.mxu0
        %v3290 = vadd.f32 %v3161, %v3289
        %3291 = vdwg.mxu0
        %v3292 = vand.u32 %v1936, 4294901760
        %v3293 = vsub.f32 %v1936, %v3292
        %3294 = vmatpush.msra.mxu0 %v3293
        %v3295 = vand.u32 %v1928, 4294901760
        %v3296 = vsub.f32 %v1928, %v3295
        %3297 = vmatpush.msra.mxu0 %v3296
        %v3298 = vand.u32 %v1920, 4294901760
        %v3299 = vsub.f32 %v1920, %v3298
        %3300 = vmatpush.msra.mxu0 %v3299
        %v3301 = vand.u32 %v1912, 4294901760
        %v3302 = vsub.f32 %v1912, %v3301
        %3303 = vmatpush.msra.mxu0 %v3302
        %v3304 = vand.u32 %v1904, 4294901760
        %v3305 = vsub.f32 %v1904, %v3304
        %3306 = vmatpush.msra.mxu0 %v3305
        %v3307 = vand.u32 %v1896, 4294901760
        %v3308 = vsub.f32 %v1896, %v3307
        %3309 = vmatpush.msra.mxu0 %v3308
        %v3310 = vand.u32 %v1888, 4294901760
        %v3311 = vsub.f32 %v1888, %v3310
        %3312 = vmatpush.msra.mxu0 %v3311
        %v3313 = vand.u32 %v1880, 4294901760
        %v3314 = vsub.f32 %v1880, %v3313
        %3315 = vmatpush.msra.mxu0 %v3314
        %v3316 = vand.u32 %v1872, 4294901760
        %v3317 = vsub.f32 %v1872, %v3316
        %3318 = vmatpush.msra.mxu0 %v3317
        %v3319 = vand.u32 %v1864, 4294901760
        %v3320 = vsub.f32 %v1864, %v3319
        %3321 = vmatpush.msra.mxu0 %v3320
        %v3322 = vand.u32 %v1856, 4294901760
        %v3323 = vsub.f32 %v1856, %v3322
        %3324 = vmatpush.msra.mxu0 %v3323
        %v3325 = vand.u32 %v1848, 4294901760
        %v3326 = vsub.f32 %v1848, %v3325
        %3327 = vmatpush.msra.mxu0 %v3326
        %v3328 = vand.u32 %v1840, 4294901760
        %v3329 = vsub.f32 %v1840, %v3328
        %3330 = vmatpush.msra.mxu0 %v3329
        %v3331 = vand.u32 %v1832, 4294901760
        %v3332 = vsub.f32 %v1832, %v3331
        %3333 = vmatpush.msra.mxu0 %v3332
        %v3334 = vand.u32 %v1824, 4294901760
        %v3335 = vsub.f32 %v1824, %v3334
        %3336 = vmatpush.msra.mxu0 %v3335
        %v3337 = vand.u32 %v1816, 4294901760
        %v3338 = vsub.f32 %v1816, %v3337
        %3339 = vmatpush.msra.mxu0 %v3338
        %v3340 = vand.u32 %v1942, 4294901760
        %v3341 = vsub.f32 %v1942, %v3340
        %3342 = vmatmul.f32.gmra.mxu0 %v3341
        %v3343 = vpop.f32.mrf.mxu0
        %v3344 = vadd.f32 %v3262, %v3343
        %v3345 = vand.u32 %v1943, 4294901760
        %v3346 = vsub.f32 %v1943, %v3345
        %3347 = vmatmul.f32.gmra.mxu0 %v3346
        %v3348 = vpop.f32.mrf.mxu0
        %v3349 = vadd.f32 %v3266, %v3348
        %v3350 = vand.u32 %v1944, 4294901760
        %v3351 = vsub.f32 %v1944, %v3350
        %3352 = vmatmul.f32.gmra.mxu0 %v3351
        %v3353 = vpop.f32.mrf.mxu0
        %v3354 = vadd.f32 %v3270, %v3353
        %v3355 = vand.u32 %v1945, 4294901760
        %v3356 = vsub.f32 %v1945, %v3355
        %3357 = vmatmul.f32.gmra.mxu0 %v3356
        %v3358 = vpop.f32.mrf.mxu0
        %v3359 = vadd.f32 %v3274, %v3358
        %v3360 = vand.u32 %v1946, 4294901760
        %v3361 = vsub.f32 %v1946, %v3360
        %3362 = vmatmul.f32.gmra.mxu0 %v3361
        %v3363 = vpop.f32.mrf.mxu0
        %v3364 = vadd.f32 %v3278, %v3363
        %v3365 = vand.u32 %v1947, 4294901760
        %v3366 = vsub.f32 %v1947, %v3365
        %3367 = vmatmul.f32.gmra.mxu0 %v3366
        %v3368 = vpop.f32.mrf.mxu0
        %v3369 = vadd.f32 %v3282, %v3368
        %v3370 = vand.u32 %v1948, 4294901760
        %v3371 = vsub.f32 %v1948, %v3370
        %3372 = vmatmul.f32.gmra.mxu0 %v3371
        %v3373 = vpop.f32.mrf.mxu0
        %v3374 = vadd.f32 %v3286, %v3373
        %v3375 = vand.u32 %v1949, 4294901760
        %v3376 = vsub.f32 %v1949, %v3375
        %3377 = vmatmul.f32.gmra.mxu0 %v3376
        %v3378 = vpop.f32.mrf.mxu0
        %v3379 = vadd.f32 %v3290, %v3378
        %3380 = vdwg.mxu0
        %v3381 = vand.u32 %v1936, 4294901760
        %3382 = vmatpush.msra.mxu0 %v3381
        %v3383 = vand.u32 %v1928, 4294901760
        %3384 = vmatpush.msra.mxu0 %v3383
        %v3385 = vand.u32 %v1920, 4294901760
        %3386 = vmatpush.msra.mxu0 %v3385
        %v3387 = vand.u32 %v1912, 4294901760
        %3388 = vmatpush.msra.mxu0 %v3387
        %v3389 = vand.u32 %v1904, 4294901760
        %3390 = vmatpush.msra.mxu0 %v3389
        %v3391 = vand.u32 %v1896, 4294901760
        %3392 = vmatpush.msra.mxu0 %v3391
        %v3393 = vand.u32 %v1888, 4294901760
        %3394 = vmatpush.msra.mxu0 %v3393
        %v3395 = vand.u32 %v1880, 4294901760
        %3396 = vmatpush.msra.mxu0 %v3395
        %v3397 = vand.u32 %v1872, 4294901760
        %3398 = vmatpush.msra.mxu0 %v3397
        %v3399 = vand.u32 %v1864, 4294901760
        %3400 = vmatpush.msra.mxu0 %v3399
        %v3401 = vand.u32 %v1856, 4294901760
        %3402 = vmatpush.msra.mxu0 %v3401
        %v3403 = vand.u32 %v1848, 4294901760
        %3404 = vmatpush.msra.mxu0 %v3403
        %v3405 = vand.u32 %v1840, 4294901760
        %3406 = vmatpush.msra.mxu0 %v3405
        %v3407 = vand.u32 %v1832, 4294901760
        %3408 = vmatpush.msra.mxu0 %v3407
        %v3409 = vand.u32 %v1824, 4294901760
        %3410 = vmatpush.msra.mxu0 %v3409
        %v3411 = vand.u32 %v1816, 4294901760
        %3412 = vmatpush.msra.mxu0 %v3411
        %v3413 = vand.u32 %v1942, 4294901760
        %v3414 = vsub.f32 %v1942, %v3413
        %v3415 = vand.u32 %v3414, 4294901760
        %3416 = vmatmul.f32.gmra.mxu0 %v3415
        %v3417 = vpop.f32.mrf.mxu0
        %v3418 = vadd.f32 %v3344, %v3417
        %v3419 = vand.u32 %v1943, 4294901760
        %v3420 = vsub.f32 %v1943, %v3419
        %v3421 = vand.u32 %v3420, 4294901760
        %3422 = vmatmul.f32.gmra.mxu0 %v3421
        %v3423 = vpop.f32.mrf.mxu0
        %v3424 = vadd.f32 %v3349, %v3423
        %v3425 = vand.u32 %v1944, 4294901760
        %v3426 = vsub.f32 %v1944, %v3425
        %v3427 = vand.u32 %v3426, 4294901760
        %3428 = vmatmul.f32.gmra.mxu0 %v3427
        %v3429 = vpop.f32.mrf.mxu0
        %v3430 = vadd.f32 %v3354, %v3429
        %v3431 = vand.u32 %v1945, 4294901760
        %v3432 = vsub.f32 %v1945, %v3431
        %v3433 = vand.u32 %v3432, 4294901760
        %3434 = vmatmul.f32.gmra.mxu0 %v3433
        %v3435 = vpop.f32.mrf.mxu0
        %v3436 = vadd.f32 %v3359, %v3435
        %v3437 = vand.u32 %v1946, 4294901760
        %v3438 = vsub.f32 %v1946, %v3437
        %v3439 = vand.u32 %v3438, 4294901760
        %3440 = vmatmul.f32.gmra.mxu0 %v3439
        %v3441 = vpop.f32.mrf.mxu0
        %v3442 = vadd.f32 %v3364, %v3441
        %v3443 = vand.u32 %v1947, 4294901760
        %v3444 = vsub.f32 %v1947, %v3443
        %v3445 = vand.u32 %v3444, 4294901760
        %3446 = vmatmul.f32.gmra.mxu0 %v3445
        %v3447 = vpop.f32.mrf.mxu0
        %v3448 = vadd.f32 %v3369, %v3447
        %v3449 = vand.u32 %v1948, 4294901760
        %v3450 = vsub.f32 %v1948, %v3449
        %v3451 = vand.u32 %v3450, 4294901760
        %3452 = vmatmul.f32.gmra.mxu0 %v3451
        %v3453 = vpop.f32.mrf.mxu0
        %v3454 = vadd.f32 %v3374, %v3453
        %v3455 = vand.u32 %v1949, 4294901760
        %v3456 = vsub.f32 %v1949, %v3455
        %v3457 = vand.u32 %v3456, 4294901760
        %3458 = vmatmul.f32.gmra.mxu0 %v3457
        %v3459 = vpop.f32.mrf.mxu0
        %v3460 = vadd.f32 %v3379, %v3459
        %3461 = vdwg.mxu0
        %v3462 = vand.u32 %v1936, 4294901760
        %v3463 = vsub.f32 %v1936, %v3462
        %v3464 = vand.u32 %v3463, 4294901760
        %3465 = vmatpush.msra.mxu0 %v3464
        %v3466 = vand.u32 %v1928, 4294901760
        %v3467 = vsub.f32 %v1928, %v3466
        %v3468 = vand.u32 %v3467, 4294901760
        %3469 = vmatpush.msra.mxu0 %v3468
        %v3470 = vand.u32 %v1920, 4294901760
        %v3471 = vsub.f32 %v1920, %v3470
        %v3472 = vand.u32 %v3471, 4294901760
        %3473 = vmatpush.msra.mxu0 %v3472
        %v3474 = vand.u32 %v1912, 4294901760
        %v3475 = vsub.f32 %v1912, %v3474
        %v3476 = vand.u32 %v3475, 4294901760
        %3477 = vmatpush.msra.mxu0 %v3476
        %v3478 = vand.u32 %v1904, 4294901760
        %v3479 = vsub.f32 %v1904, %v3478
        %v3480 = vand.u32 %v3479, 4294901760
        %3481 = vmatpush.msra.mxu0 %v3480
        %v3482 = vand.u32 %v1896, 4294901760
        %v3483 = vsub.f32 %v1896, %v3482
        %v3484 = vand.u32 %v3483, 4294901760
        %3485 = vmatpush.msra.mxu0 %v3484
        %v3486 = vand.u32 %v1888, 4294901760
        %v3487 = vsub.f32 %v1888, %v3486
        %v3488 = vand.u32 %v3487, 4294901760
        %3489 = vmatpush.msra.mxu0 %v3488
        %v3490 = vand.u32 %v1880, 4294901760
        %v3491 = vsub.f32 %v1880, %v3490
        %v3492 = vand.u32 %v3491, 4294901760
        %3493 = vmatpush.msra.mxu0 %v3492
        %v3494 = vand.u32 %v1872, 4294901760
        %v3495 = vsub.f32 %v1872, %v3494
        %v3496 = vand.u32 %v3495, 4294901760
        %3497 = vmatpush.msra.mxu0 %v3496
        %v3498 = vand.u32 %v1864, 4294901760
        %v3499 = vsub.f32 %v1864, %v3498
        %v3500 = vand.u32 %v3499, 4294901760
        %3501 = vmatpush.msra.mxu0 %v3500
        %v3502 = vand.u32 %v1856, 4294901760
        %v3503 = vsub.f32 %v1856, %v3502
        %v3504 = vand.u32 %v3503, 4294901760
        %3505 = vmatpush.msra.mxu0 %v3504
        %v3506 = vand.u32 %v1848, 4294901760
        %v3507 = vsub.f32 %v1848, %v3506
        %v3508 = vand.u32 %v3507, 4294901760
        %3509 = vmatpush.msra.mxu0 %v3508
        %v3510 = vand.u32 %v1840, 4294901760
        %v3511 = vsub.f32 %v1840, %v3510
        %v3512 = vand.u32 %v3511, 4294901760
        %3513 = vmatpush.msra.mxu0 %v3512
        %v3514 = vand.u32 %v1832, 4294901760
        %v3515 = vsub.f32 %v1832, %v3514
        %v3516 = vand.u32 %v3515, 4294901760
        %3517 = vmatpush.msra.mxu0 %v3516
        %v3518 = vand.u32 %v1824, 4294901760
        %v3519 = vsub.f32 %v1824, %v3518
        %v3520 = vand.u32 %v3519, 4294901760
        %3521 = vmatpush.msra.mxu0 %v3520
        %v3522 = vand.u32 %v1816, 4294901760
        %v3523 = vsub.f32 %v1816, %v3522
        %v3524 = vand.u32 %v3523, 4294901760
        %3525 = vmatpush.msra.mxu0 %v3524
        %v3526 = vand.u32 %v1942, 4294901760
        %3527 = vmatmul.f32.gmra.mxu0 %v3526
        %v3528 = vpop.f32.mrf.mxu0
        %v3529 = vadd.f32 %v3418, %v3528
        %v3530 = vand.u32 %v1943, 4294901760
        %3531 = vmatmul.f32.gmra.mxu0 %v3530
        %v3532 = vpop.f32.mrf.mxu0
        %v3533 = vadd.f32 %v3424, %v3532
        %v3534 = vand.u32 %v1944, 4294901760
        %3535 = vmatmul.f32.gmra.mxu0 %v3534
        %v3536 = vpop.f32.mrf.mxu0
        %v3537 = vadd.f32 %v3430, %v3536
        %v3538 = vand.u32 %v1945, 4294901760
        %3539 = vmatmul.f32.gmra.mxu0 %v3538
        %v3540 = vpop.f32.mrf.mxu0
        %v3541 = vadd.f32 %v3436, %v3540
        %v3542 = vand.u32 %v1946, 4294901760
        %3543 = vmatmul.f32.gmra.mxu0 %v3542
        %v3544 = vpop.f32.mrf.mxu0
        %v3545 = vadd.f32 %v3442, %v3544
        %v3546 = vand.u32 %v1947, 4294901760
        %3547 = vmatmul.f32.gmra.mxu0 %v3546
        %v3548 = vpop.f32.mrf.mxu0
        %v3549 = vadd.f32 %v3448, %v3548
        %v3550 = vand.u32 %v1948, 4294901760
        %3551 = vmatmul.f32.gmra.mxu0 %v3550
        %v3552 = vpop.f32.mrf.mxu0
        %v3553 = vadd.f32 %v3454, %v3552
        %v3554 = vand.u32 %v1949, 4294901760
        %3555 = vmatmul.f32.gmra.mxu0 %v3554
        %v3556 = vpop.f32.mrf.mxu0
        %v3557 = vadd.f32 %v3460, %v3556
        %3558 = vdwg.mxu0
        %v3559 = vand.u32 %v1936, 4294901760
        %3560 = vmatpush.msra.mxu0 %v3559
        %v3561 = vand.u32 %v1928, 4294901760
        %3562 = vmatpush.msra.mxu0 %v3561
        %v3563 = vand.u32 %v1920, 4294901760
        %3564 = vmatpush.msra.mxu0 %v3563
        %v3565 = vand.u32 %v1912, 4294901760
        %3566 = vmatpush.msra.mxu0 %v3565
        %v3567 = vand.u32 %v1904, 4294901760
        %3568 = vmatpush.msra.mxu0 %v3567
        %v3569 = vand.u32 %v1896, 4294901760
        %3570 = vmatpush.msra.mxu0 %v3569
        %v3571 = vand.u32 %v1888, 4294901760
        %3572 = vmatpush.msra.mxu0 %v3571
        %v3573 = vand.u32 %v1880, 4294901760
        %3574 = vmatpush.msra.mxu0 %v3573
        %v3575 = vand.u32 %v1872, 4294901760
        %3576 = vmatpush.msra.mxu0 %v3575
        %v3577 = vand.u32 %v1864, 4294901760
        %3578 = vmatpush.msra.mxu0 %v3577
        %v3579 = vand.u32 %v1856, 4294901760
        %3580 = vmatpush.msra.mxu0 %v3579
        %v3581 = vand.u32 %v1848, 4294901760
        %3582 = vmatpush.msra.mxu0 %v3581
        %v3583 = vand.u32 %v1840, 4294901760
        %3584 = vmatpush.msra.mxu0 %v3583
        %v3585 = vand.u32 %v1832, 4294901760
        %3586 = vmatpush.msra.mxu0 %v3585
        %v3587 = vand.u32 %v1824, 4294901760
        %3588 = vmatpush.msra.mxu0 %v3587
        %v3589 = vand.u32 %v1816, 4294901760
        %3590 = vmatpush.msra.mxu0 %v3589
        %v3591 = vand.u32 %v1942, 4294901760
        %3592 = vmatmul.f32.gmra.mxu0 %v3591
        %v3593 = vpop.f32.mrf.mxu0
        %v3594 = vadd.f32 %v3529, %v3593
        %v3595 = vand.u32 %v1943, 4294901760
        %3596 = vmatmul.f32.gmra.mxu0 %v3595
        %v3597 = vpop.f32.mrf.mxu0
        %v3598 = vadd.f32 %v3533, %v3597
        %v3599 = vand.u32 %v1944, 4294901760
        %3600 = vmatmul.f32.gmra.mxu0 %v3599
        %v3601 = vpop.f32.mrf.mxu0
        %v3602 = vadd.f32 %v3537, %v3601
        %v3603 = vand.u32 %v1945, 4294901760
        %3604 = vmatmul.f32.gmra.mxu0 %v3603
        %v3605 = vpop.f32.mrf.mxu0
        %v3606 = vadd.f32 %v3541, %v3605
        %v3607 = vand.u32 %v1946, 4294901760
        %3608 = vmatmul.f32.gmra.mxu0 %v3607
        %v3609 = vpop.f32.mrf.mxu0
        %v3610 = vadd.f32 %v3545, %v3609
        %v3611 = vand.u32 %v1947, 4294901760
        %3612 = vmatmul.f32.gmra.mxu0 %v3611
        %v3613 = vpop.f32.mrf.mxu0
        %v3614 = vadd.f32 %v3549, %v3613
        %v3615 = vand.u32 %v1948, 4294901760
        %3616 = vmatmul.f32.gmra.mxu0 %v3615
        %v3617 = vpop.f32.mrf.mxu0
        %v3618 = vadd.f32 %v3553, %v3617
        %v3619 = vand.u32 %v1949, 4294901760
        %3620 = vmatmul.f32.gmra.mxu0 %v3619
        %v3621 = vpop.f32.mrf.mxu0
        %v3622 = vadd.f32 %v3557, %v3621
        %3623 = vdwg.mxu0
        %v3624 = vand.u32 %v1937, 4294901760
        %3625 = vmatpush.msra.mxu0 %v3624
        %v3626 = vand.u32 %v1929, 4294901760
        %3627 = vmatpush.msra.mxu0 %v3626
        %v3628 = vand.u32 %v1921, 4294901760
        %3629 = vmatpush.msra.mxu0 %v3628
        %v3630 = vand.u32 %v1913, 4294901760
        %3631 = vmatpush.msra.mxu0 %v3630
        %v3632 = vand.u32 %v1905, 4294901760
        %3633 = vmatpush.msra.mxu0 %v3632
        %v3634 = vand.u32 %v1897, 4294901760
        %3635 = vmatpush.msra.mxu0 %v3634
        %v3636 = vand.u32 %v1889, 4294901760
        %3637 = vmatpush.msra.mxu0 %v3636
        %v3638 = vand.u32 %v1881, 4294901760
        %3639 = vmatpush.msra.mxu0 %v3638
        %v3640 = vand.u32 %v1873, 4294901760
        %3641 = vmatpush.msra.mxu0 %v3640
        %v3642 = vand.u32 %v1865, 4294901760
        %3643 = vmatpush.msra.mxu0 %v3642
        %v3644 = vand.u32 %v1857, 4294901760
        %3645 = vmatpush.msra.mxu0 %v3644
        %v3646 = vand.u32 %v1849, 4294901760
        %3647 = vmatpush.msra.mxu0 %v3646
        %v3648 = vand.u32 %v1841, 4294901760
        %3649 = vmatpush.msra.mxu0 %v3648
        %v3650 = vand.u32 %v1833, 4294901760
        %3651 = vmatpush.msra.mxu0 %v3650
        %v3652 = vand.u32 %v1825, 4294901760
        %3653 = vmatpush.msra.mxu0 %v3652
        %v3654 = vand.u32 %v1817, 4294901760
        %3655 = vmatpush.msra.mxu0 %v3654
        %v3656 = vand.u32 %v1942, 4294901760
        %v3657 = vsub.f32 %v1942, %v3656
        %v3658 = vand.u32 %v3657, 4294901760
        %v3659 = vsub.f32 %v3657, %v3658
        %v3660 = vand.u32 %v3659, 4294901760
        %3661 = vmatmul.f32.gmra.mxu0 %v3660
        %v3662 = vpop.f32.mrf.mxu0
        %v3663 = vadd.f32 0.0, %v3662
        %v3664 = vand.u32 %v1943, 4294901760
        %v3665 = vsub.f32 %v1943, %v3664
        %v3666 = vand.u32 %v3665, 4294901760
        %v3667 = vsub.f32 %v3665, %v3666
        %v3668 = vand.u32 %v3667, 4294901760
        %3669 = vmatmul.f32.gmra.mxu0 %v3668
        %v3670 = vpop.f32.mrf.mxu0
        %v3671 = vadd.f32 0.0, %v3670
        %v3672 = vand.u32 %v1944, 4294901760
        %v3673 = vsub.f32 %v1944, %v3672
        %v3674 = vand.u32 %v3673, 4294901760
        %v3675 = vsub.f32 %v3673, %v3674
        %v3676 = vand.u32 %v3675, 4294901760
        %3677 = vmatmul.f32.gmra.mxu0 %v3676
        %v3678 = vpop.f32.mrf.mxu0
        %v3679 = vadd.f32 0.0, %v3678
        %v3680 = vand.u32 %v1945, 4294901760
        %v3681 = vsub.f32 %v1945, %v3680
        %v3682 = vand.u32 %v3681, 4294901760
        %v3683 = vsub.f32 %v3681, %v3682
        %v3684 = vand.u32 %v3683, 4294901760
        %3685 = vmatmul.f32.gmra.mxu0 %v3684
        %v3686 = vpop.f32.mrf.mxu0
        %v3687 = vadd.f32 0.0, %v3686
        %v3688 = vand.u32 %v1946, 4294901760
        %v3689 = vsub.f32 %v1946, %v3688
        %v3690 = vand.u32 %v3689, 4294901760
        %v3691 = vsub.f32 %v3689, %v3690
        %v3692 = vand.u32 %v3691, 4294901760
        %3693 = vmatmul.f32.gmra.mxu0 %v3692
        %v3694 = vpop.f32.mrf.mxu0
        %v3695 = vadd.f32 0.0, %v3694
        %v3696 = vand.u32 %v1947, 4294901760
        %v3697 = vsub.f32 %v1947, %v3696
        %v3698 = vand.u32 %v3697, 4294901760
        %v3699 = vsub.f32 %v3697, %v3698
        %v3700 = vand.u32 %v3699, 4294901760
        %3701 = vmatmul.f32.gmra.mxu0 %v3700
        %v3702 = vpop.f32.mrf.mxu0
        %v3703 = vadd.f32 0.0, %v3702
        %v3704 = vand.u32 %v1948, 4294901760
        %v3705 = vsub.f32 %v1948, %v3704
        %v3706 = vand.u32 %v3705, 4294901760
        %v3707 = vsub.f32 %v3705, %v3706
        %v3708 = vand.u32 %v3707, 4294901760
        %3709 = vmatmul.f32.gmra.mxu0 %v3708
        %v3710 = vpop.f32.mrf.mxu0
        %v3711 = vadd.f32 0.0, %v3710
        %v3712 = vand.u32 %v1949, 4294901760
        %v3713 = vsub.f32 %v1949, %v3712
        %v3714 = vand.u32 %v3713, 4294901760
        %v3715 = vsub.f32 %v3713, %v3714
        %v3716 = vand.u32 %v3715, 4294901760
        %3717 = vmatmul.f32.gmra.mxu0 %v3716
        %v3718 = vpop.f32.mrf.mxu0
        %v3719 = vadd.f32 0.0, %v3718
        %3720 = vdwg.mxu0
        %v3721 = vand.u32 %v1937, 4294901760
        %v3722 = vsub.f32 %v1937, %v3721
        %v3723 = vand.u32 %v3722, 4294901760
        %v3724 = vsub.f32 %v3722, %v3723
        %v3725 = vand.u32 %v3724, 4294901760
        %3726 = vmatpush.msra.mxu0 %v3725
        %v3727 = vand.u32 %v1929, 4294901760
        %v3728 = vsub.f32 %v1929, %v3727
        %v3729 = vand.u32 %v3728, 4294901760
        %v3730 = vsub.f32 %v3728, %v3729
        %v3731 = vand.u32 %v3730, 4294901760
        %3732 = vmatpush.msra.mxu0 %v3731
        %v3733 = vand.u32 %v1921, 4294901760
        %v3734 = vsub.f32 %v1921, %v3733
        %v3735 = vand.u32 %v3734, 4294901760
        %v3736 = vsub.f32 %v3734, %v3735
        %v3737 = vand.u32 %v3736, 4294901760
        %3738 = vmatpush.msra.mxu0 %v3737
        %v3739 = vand.u32 %v1913, 4294901760
        %v3740 = vsub.f32 %v1913, %v3739
        %v3741 = vand.u32 %v3740, 4294901760
        %v3742 = vsub.f32 %v3740, %v3741
        %v3743 = vand.u32 %v3742, 4294901760
        %3744 = vmatpush.msra.mxu0 %v3743
        %v3745 = vand.u32 %v1905, 4294901760
        %v3746 = vsub.f32 %v1905, %v3745
        %v3747 = vand.u32 %v3746, 4294901760
        %v3748 = vsub.f32 %v3746, %v3747
        %v3749 = vand.u32 %v3748, 4294901760
        %3750 = vmatpush.msra.mxu0 %v3749
        %v3751 = vand.u32 %v1897, 4294901760
        %v3752 = vsub.f32 %v1897, %v3751
        %v3753 = vand.u32 %v3752, 4294901760
        %v3754 = vsub.f32 %v3752, %v3753
        %v3755 = vand.u32 %v3754, 4294901760
        %3756 = vmatpush.msra.mxu0 %v3755
        %v3757 = vand.u32 %v1889, 4294901760
        %v3758 = vsub.f32 %v1889, %v3757
        %v3759 = vand.u32 %v3758, 4294901760
        %v3760 = vsub.f32 %v3758, %v3759
        %v3761 = vand.u32 %v3760, 4294901760
        %3762 = vmatpush.msra.mxu0 %v3761
        %v3763 = vand.u32 %v1881, 4294901760
        %v3764 = vsub.f32 %v1881, %v3763
        %v3765 = vand.u32 %v3764, 4294901760
        %v3766 = vsub.f32 %v3764, %v3765
        %v3767 = vand.u32 %v3766, 4294901760
        %3768 = vmatpush.msra.mxu0 %v3767
        %v3769 = vand.u32 %v1873, 4294901760
        %v3770 = vsub.f32 %v1873, %v3769
        %v3771 = vand.u32 %v3770, 4294901760
        %v3772 = vsub.f32 %v3770, %v3771
        %v3773 = vand.u32 %v3772, 4294901760
        %3774 = vmatpush.msra.mxu0 %v3773
        %v3775 = vand.u32 %v1865, 4294901760
        %v3776 = vsub.f32 %v1865, %v3775
        %v3777 = vand.u32 %v3776, 4294901760
        %v3778 = vsub.f32 %v3776, %v3777
        %v3779 = vand.u32 %v3778, 4294901760
        %3780 = vmatpush.msra.mxu0 %v3779
        %v3781 = vand.u32 %v1857, 4294901760
        %v3782 = vsub.f32 %v1857, %v3781
        %v3783 = vand.u32 %v3782, 4294901760
        %v3784 = vsub.f32 %v3782, %v3783
        %v3785 = vand.u32 %v3784, 4294901760
        %3786 = vmatpush.msra.mxu0 %v3785
        %v3787 = vand.u32 %v1849, 4294901760
        %v3788 = vsub.f32 %v1849, %v3787
        %v3789 = vand.u32 %v3788, 4294901760
        %v3790 = vsub.f32 %v3788, %v3789
        %v3791 = vand.u32 %v3790, 4294901760
        %3792 = vmatpush.msra.mxu0 %v3791
        %v3793 = vand.u32 %v1841, 4294901760
        %v3794 = vsub.f32 %v1841, %v3793
        %v3795 = vand.u32 %v3794, 4294901760
        %v3796 = vsub.f32 %v3794, %v3795
        %v3797 = vand.u32 %v3796, 4294901760
        %3798 = vmatpush.msra.mxu0 %v3797
        %v3799 = vand.u32 %v1833, 4294901760
        %v3800 = vsub.f32 %v1833, %v3799
        %v3801 = vand.u32 %v3800, 4294901760
        %v3802 = vsub.f32 %v3800, %v3801
        %v3803 = vand.u32 %v3802, 4294901760
        %3804 = vmatpush.msra.mxu0 %v3803
        %v3805 = vand.u32 %v1825, 4294901760
        %v3806 = vsub.f32 %v1825, %v3805
        %v3807 = vand.u32 %v3806, 4294901760
        %v3808 = vsub.f32 %v3806, %v3807
        %v3809 = vand.u32 %v3808, 4294901760
        %3810 = vmatpush.msra.mxu0 %v3809
        %v3811 = vand.u32 %v1817, 4294901760
        %v3812 = vsub.f32 %v1817, %v3811
        %v3813 = vand.u32 %v3812, 4294901760
        %v3814 = vsub.f32 %v3812, %v3813
        %v3815 = vand.u32 %v3814, 4294901760
        %3816 = vmatpush.msra.mxu0 %v3815
        %v3817 = vand.u32 %v1942, 4294901760
        %3818 = vmatmul.f32.gmra.mxu0 %v3817
        %v3819 = vpop.f32.mrf.mxu0
        %v3820 = vadd.f32 %v3663, %v3819
        %v3821 = vand.u32 %v1943, 4294901760
        %3822 = vmatmul.f32.gmra.mxu0 %v3821
        %v3823 = vpop.f32.mrf.mxu0
        %v3824 = vadd.f32 %v3671, %v3823
        %v3825 = vand.u32 %v1944, 4294901760
        %3826 = vmatmul.f32.gmra.mxu0 %v3825
        %v3827 = vpop.f32.mrf.mxu0
        %v3828 = vadd.f32 %v3679, %v3827
        %v3829 = vand.u32 %v1945, 4294901760
        %3830 = vmatmul.f32.gmra.mxu0 %v3829
        %v3831 = vpop.f32.mrf.mxu0
        %v3832 = vadd.f32 %v3687, %v3831
        %v3833 = vand.u32 %v1946, 4294901760
        %3834 = vmatmul.f32.gmra.mxu0 %v3833
        %v3835 = vpop.f32.mrf.mxu0
        %v3836 = vadd.f32 %v3695, %v3835
        %v3837 = vand.u32 %v1947, 4294901760
        %3838 = vmatmul.f32.gmra.mxu0 %v3837
        %v3839 = vpop.f32.mrf.mxu0
        %v3840 = vadd.f32 %v3703, %v3839
        %v3841 = vand.u32 %v1948, 4294901760
        %3842 = vmatmul.f32.gmra.mxu0 %v3841
        %v3843 = vpop.f32.mrf.mxu0
        %v3844 = vadd.f32 %v3711, %v3843
        %v3845 = vand.u32 %v1949, 4294901760
        %3846 = vmatmul.f32.gmra.mxu0 %v3845
        %v3847 = vpop.f32.mrf.mxu0
        %v3848 = vadd.f32 %v3719, %v3847
        %3849 = vdwg.mxu0
        %v3850 = vand.u32 %v1937, 4294901760
        %v3851 = vsub.f32 %v1937, %v3850
        %3852 = vmatpush.msra.mxu0 %v3851
        %v3853 = vand.u32 %v1929, 4294901760
        %v3854 = vsub.f32 %v1929, %v3853
        %3855 = vmatpush.msra.mxu0 %v3854
        %v3856 = vand.u32 %v1921, 4294901760
        %v3857 = vsub.f32 %v1921, %v3856
        %3858 = vmatpush.msra.mxu0 %v3857
        %v3859 = vand.u32 %v1913, 4294901760
        %v3860 = vsub.f32 %v1913, %v3859
        %3861 = vmatpush.msra.mxu0 %v3860
        %v3862 = vand.u32 %v1905, 4294901760
        %v3863 = vsub.f32 %v1905, %v3862
        %3864 = vmatpush.msra.mxu0 %v3863
        %v3865 = vand.u32 %v1897, 4294901760
        %v3866 = vsub.f32 %v1897, %v3865
        %3867 = vmatpush.msra.mxu0 %v3866
        %v3868 = vand.u32 %v1889, 4294901760
        %v3869 = vsub.f32 %v1889, %v3868
        %3870 = vmatpush.msra.mxu0 %v3869
        %v3871 = vand.u32 %v1881, 4294901760
        %v3872 = vsub.f32 %v1881, %v3871
        %3873 = vmatpush.msra.mxu0 %v3872
        %v3874 = vand.u32 %v1873, 4294901760
        %v3875 = vsub.f32 %v1873, %v3874
        %3876 = vmatpush.msra.mxu0 %v3875
        %v3877 = vand.u32 %v1865, 4294901760
        %v3878 = vsub.f32 %v1865, %v3877
        %3879 = vmatpush.msra.mxu0 %v3878
        %v3880 = vand.u32 %v1857, 4294901760
        %v3881 = vsub.f32 %v1857, %v3880
        %3882 = vmatpush.msra.mxu0 %v3881
        %v3883 = vand.u32 %v1849, 4294901760
        %v3884 = vsub.f32 %v1849, %v3883
        %3885 = vmatpush.msra.mxu0 %v3884
        %v3886 = vand.u32 %v1841, 4294901760
        %v3887 = vsub.f32 %v1841, %v3886
        %3888 = vmatpush.msra.mxu0 %v3887
        %v3889 = vand.u32 %v1833, 4294901760
        %v3890 = vsub.f32 %v1833, %v3889
        %3891 = vmatpush.msra.mxu0 %v3890
        %v3892 = vand.u32 %v1825, 4294901760
        %v3893 = vsub.f32 %v1825, %v3892
        %3894 = vmatpush.msra.mxu0 %v3893
        %v3895 = vand.u32 %v1817, 4294901760
        %v3896 = vsub.f32 %v1817, %v3895
        %3897 = vmatpush.msra.mxu0 %v3896
        %v3898 = vand.u32 %v1942, 4294901760
        %v3899 = vsub.f32 %v1942, %v3898
        %3900 = vmatmul.f32.gmra.mxu0 %v3899
        %v3901 = vpop.f32.mrf.mxu0
        %v3902 = vadd.f32 %v3820, %v3901
        %v3903 = vand.u32 %v1943, 4294901760
        %v3904 = vsub.f32 %v1943, %v3903
        %3905 = vmatmul.f32.gmra.mxu0 %v3904
        %v3906 = vpop.f32.mrf.mxu0
        %v3907 = vadd.f32 %v3824, %v3906
        %v3908 = vand.u32 %v1944, 4294901760
        %v3909 = vsub.f32 %v1944, %v3908
        %3910 = vmatmul.f32.gmra.mxu0 %v3909
        %v3911 = vpop.f32.mrf.mxu0
        %v3912 = vadd.f32 %v3828, %v3911
        %v3913 = vand.u32 %v1945, 4294901760
        %v3914 = vsub.f32 %v1945, %v3913
        %3915 = vmatmul.f32.gmra.mxu0 %v3914
        %v3916 = vpop.f32.mrf.mxu0
        %v3917 = vadd.f32 %v3832, %v3916
        %v3918 = vand.u32 %v1946, 4294901760
        %v3919 = vsub.f32 %v1946, %v3918
        %3920 = vmatmul.f32.gmra.mxu0 %v3919
        %v3921 = vpop.f32.mrf.mxu0
        %v3922 = vadd.f32 %v3836, %v3921
        %v3923 = vand.u32 %v1947, 4294901760
        %v3924 = vsub.f32 %v1947, %v3923
        %3925 = vmatmul.f32.gmra.mxu0 %v3924
        %v3926 = vpop.f32.mrf.mxu0
        %v3927 = vadd.f32 %v3840, %v3926
        %v3928 = vand.u32 %v1948, 4294901760
        %v3929 = vsub.f32 %v1948, %v3928
        %3930 = vmatmul.f32.gmra.mxu0 %v3929
        %v3931 = vpop.f32.mrf.mxu0
        %v3932 = vadd.f32 %v3844, %v3931
        %v3933 = vand.u32 %v1949, 4294901760
        %v3934 = vsub.f32 %v1949, %v3933
        %3935 = vmatmul.f32.gmra.mxu0 %v3934
        %v3936 = vpop.f32.mrf.mxu0
        %v3937 = vadd.f32 %v3848, %v3936
        %3938 = vdwg.mxu0
        %v3939 = vand.u32 %v1937, 4294901760
        %3940 = vmatpush.msra.mxu0 %v3939
        %v3941 = vand.u32 %v1929, 4294901760
        %3942 = vmatpush.msra.mxu0 %v3941
        %v3943 = vand.u32 %v1921, 4294901760
        %3944 = vmatpush.msra.mxu0 %v3943
        %v3945 = vand.u32 %v1913, 4294901760
        %3946 = vmatpush.msra.mxu0 %v3945
        %v3947 = vand.u32 %v1905, 4294901760
        %3948 = vmatpush.msra.mxu0 %v3947
        %v3949 = vand.u32 %v1897, 4294901760
        %3950 = vmatpush.msra.mxu0 %v3949
        %v3951 = vand.u32 %v1889, 4294901760
        %3952 = vmatpush.msra.mxu0 %v3951
        %v3953 = vand.u32 %v1881, 4294901760
        %3954 = vmatpush.msra.mxu0 %v3953
        %v3955 = vand.u32 %v1873, 4294901760
        %3956 = vmatpush.msra.mxu0 %v3955
        %v3957 = vand.u32 %v1865, 4294901760
        %3958 = vmatpush.msra.mxu0 %v3957
        %v3959 = vand.u32 %v1857, 4294901760
        %3960 = vmatpush.msra.mxu0 %v3959
        %v3961 = vand.u32 %v1849, 4294901760
        %3962 = vmatpush.msra.mxu0 %v3961
        %v3963 = vand.u32 %v1841, 4294901760
        %3964 = vmatpush.msra.mxu0 %v3963
        %v3965 = vand.u32 %v1833, 4294901760
        %3966 = vmatpush.msra.mxu0 %v3965
        %v3967 = vand.u32 %v1825, 4294901760
        %3968 = vmatpush.msra.mxu0 %v3967
        %v3969 = vand.u32 %v1817, 4294901760
        %3970 = vmatpush.msra.mxu0 %v3969
        %v3971 = vand.u32 %v1942, 4294901760
        %v3972 = vsub.f32 %v1942, %v3971
        %v3973 = vand.u32 %v3972, 4294901760
        %3974 = vmatmul.f32.gmra.mxu0 %v3973
        %v3975 = vpop.f32.mrf.mxu0
        %v3976 = vadd.f32 %v3902, %v3975
        %v3977 = vand.u32 %v1943, 4294901760
        %v3978 = vsub.f32 %v1943, %v3977
        %v3979 = vand.u32 %v3978, 4294901760
        %3980 = vmatmul.f32.gmra.mxu0 %v3979
        %v3981 = vpop.f32.mrf.mxu0
        %v3982 = vadd.f32 %v3907, %v3981
        %v3983 = vand.u32 %v1944, 4294901760
        %v3984 = vsub.f32 %v1944, %v3983
        %v3985 = vand.u32 %v3984, 4294901760
        %3986 = vmatmul.f32.gmra.mxu0 %v3985
        %v3987 = vpop.f32.mrf.mxu0
        %v3988 = vadd.f32 %v3912, %v3987
        %v3989 = vand.u32 %v1945, 4294901760
        %v3990 = vsub.f32 %v1945, %v3989
        %v3991 = vand.u32 %v3990, 4294901760
        %3992 = vmatmul.f32.gmra.mxu0 %v3991
        %v3993 = vpop.f32.mrf.mxu0
        %v3994 = vadd.f32 %v3917, %v3993
        %v3995 = vand.u32 %v1946, 4294901760
        %v3996 = vsub.f32 %v1946, %v3995
        %v3997 = vand.u32 %v3996, 4294901760
        %3998 = vmatmul.f32.gmra.mxu0 %v3997
        %v3999 = vpop.f32.mrf.mxu0
        %v4000 = vadd.f32 %v3922, %v3999
        %v4001 = vand.u32 %v1947, 4294901760
        %v4002 = vsub.f32 %v1947, %v4001
        %v4003 = vand.u32 %v4002, 4294901760
        %4004 = vmatmul.f32.gmra.mxu0 %v4003
        %v4005 = vpop.f32.mrf.mxu0
        %v4006 = vadd.f32 %v3927, %v4005
        %v4007 = vand.u32 %v1948, 4294901760
        %v4008 = vsub.f32 %v1948, %v4007
        %v4009 = vand.u32 %v4008, 4294901760
        %4010 = vmatmul.f32.gmra.mxu0 %v4009
        %v4011 = vpop.f32.mrf.mxu0
        %v4012 = vadd.f32 %v3932, %v4011
        %v4013 = vand.u32 %v1949, 4294901760
        %v4014 = vsub.f32 %v1949, %v4013
        %v4015 = vand.u32 %v4014, 4294901760
        %4016 = vmatmul.f32.gmra.mxu0 %v4015
        %v4017 = vpop.f32.mrf.mxu0
        %v4018 = vadd.f32 %v3937, %v4017
        %4019 = vdwg.mxu0
        %v4020 = vand.u32 %v1937, 4294901760
        %v4021 = vsub.f32 %v1937, %v4020
        %v4022 = vand.u32 %v4021, 4294901760
        %4023 = vmatpush.msra.mxu0 %v4022
        %v4024 = vand.u32 %v1929, 4294901760
        %v4025 = vsub.f32 %v1929, %v4024
        %v4026 = vand.u32 %v4025, 4294901760
        %4027 = vmatpush.msra.mxu0 %v4026
        %v4028 = vand.u32 %v1921, 4294901760
        %v4029 = vsub.f32 %v1921, %v4028
        %v4030 = vand.u32 %v4029, 4294901760
        %4031 = vmatpush.msra.mxu0 %v4030
        %v4032 = vand.u32 %v1913, 4294901760
        %v4033 = vsub.f32 %v1913, %v4032
        %v4034 = vand.u32 %v4033, 4294901760
        %4035 = vmatpush.msra.mxu0 %v4034
        %v4036 = vand.u32 %v1905, 4294901760
        %v4037 = vsub.f32 %v1905, %v4036
        %v4038 = vand.u32 %v4037, 4294901760
        %4039 = vmatpush.msra.mxu0 %v4038
        %v4040 = vand.u32 %v1897, 4294901760
        %v4041 = vsub.f32 %v1897, %v4040
        %v4042 = vand.u32 %v4041, 4294901760
        %4043 = vmatpush.msra.mxu0 %v4042
        %v4044 = vand.u32 %v1889, 4294901760
        %v4045 = vsub.f32 %v1889, %v4044
        %v4046 = vand.u32 %v4045, 4294901760
        %4047 = vmatpush.msra.mxu0 %v4046
        %v4048 = vand.u32 %v1881, 4294901760
        %v4049 = vsub.f32 %v1881, %v4048
        %v4050 = vand.u32 %v4049, 4294901760
        %4051 = vmatpush.msra.mxu0 %v4050
        %v4052 = vand.u32 %v1873, 4294901760
        %v4053 = vsub.f32 %v1873, %v4052
        %v4054 = vand.u32 %v4053, 4294901760
        %4055 = vmatpush.msra.mxu0 %v4054
        %v4056 = vand.u32 %v1865, 4294901760
        %v4057 = vsub.f32 %v1865, %v4056
        %v4058 = vand.u32 %v4057, 4294901760
        %4059 = vmatpush.msra.mxu0 %v4058
        %v4060 = vand.u32 %v1857, 4294901760
        %v4061 = vsub.f32 %v1857, %v4060
        %v4062 = vand.u32 %v4061, 4294901760
        %4063 = vmatpush.msra.mxu0 %v4062
        %v4064 = vand.u32 %v1849, 4294901760
        %v4065 = vsub.f32 %v1849, %v4064
        %v4066 = vand.u32 %v4065, 4294901760
        %4067 = vmatpush.msra.mxu0 %v4066
        %v4068 = vand.u32 %v1841, 4294901760
        %v4069 = vsub.f32 %v1841, %v4068
        %v4070 = vand.u32 %v4069, 4294901760
        %4071 = vmatpush.msra.mxu0 %v4070
        %v4072 = vand.u32 %v1833, 4294901760
        %v4073 = vsub.f32 %v1833, %v4072
        %v4074 = vand.u32 %v4073, 4294901760
        %4075 = vmatpush.msra.mxu0 %v4074
        %v4076 = vand.u32 %v1825, 4294901760
        %v4077 = vsub.f32 %v1825, %v4076
        %v4078 = vand.u32 %v4077, 4294901760
        %4079 = vmatpush.msra.mxu0 %v4078
        %v4080 = vand.u32 %v1817, 4294901760
        %v4081 = vsub.f32 %v1817, %v4080
        %v4082 = vand.u32 %v4081, 4294901760
        %4083 = vmatpush.msra.mxu0 %v4082
        %v4084 = vand.u32 %v1942, 4294901760
        %4085 = vmatmul.f32.gmra.mxu0 %v4084
        %v4086 = vpop.f32.mrf.mxu0
        %v4087 = vadd.f32 %v3976, %v4086
        %v4088 = vand.u32 %v1943, 4294901760
        %4089 = vmatmul.f32.gmra.mxu0 %v4088
        %v4090 = vpop.f32.mrf.mxu0
        %v4091 = vadd.f32 %v3982, %v4090
        %v4092 = vand.u32 %v1944, 4294901760
        %4093 = vmatmul.f32.gmra.mxu0 %v4092
        %v4094 = vpop.f32.mrf.mxu0
        %v4095 = vadd.f32 %v3988, %v4094
        %v4096 = vand.u32 %v1945, 4294901760
        %4097 = vmatmul.f32.gmra.mxu0 %v4096
        %v4098 = vpop.f32.mrf.mxu0
        %v4099 = vadd.f32 %v3994, %v4098
        %v4100 = vand.u32 %v1946, 4294901760
        %4101 = vmatmul.f32.gmra.mxu0 %v4100
        %v4102 = vpop.f32.mrf.mxu0
        %v4103 = vadd.f32 %v4000, %v4102
        %v4104 = vand.u32 %v1947, 4294901760
        %4105 = vmatmul.f32.gmra.mxu0 %v4104
        %v4106 = vpop.f32.mrf.mxu0
        %v4107 = vadd.f32 %v4006, %v4106
        %v4108 = vand.u32 %v1948, 4294901760
        %4109 = vmatmul.f32.gmra.mxu0 %v4108
        %v4110 = vpop.f32.mrf.mxu0
        %v4111 = vadd.f32 %v4012, %v4110
        %v4112 = vand.u32 %v1949, 4294901760
        %4113 = vmatmul.f32.gmra.mxu0 %v4112
        %v4114 = vpop.f32.mrf.mxu0
        %v4115 = vadd.f32 %v4018, %v4114
        %4116 = vdwg.mxu0
        %v4117 = vand.u32 %v1937, 4294901760
        %4118 = vmatpush.msra.mxu0 %v4117
        %v4119 = vand.u32 %v1929, 4294901760
        %4120 = vmatpush.msra.mxu0 %v4119
        %v4121 = vand.u32 %v1921, 4294901760
        %4122 = vmatpush.msra.mxu0 %v4121
        %v4123 = vand.u32 %v1913, 4294901760
        %4124 = vmatpush.msra.mxu0 %v4123
        %v4125 = vand.u32 %v1905, 4294901760
        %4126 = vmatpush.msra.mxu0 %v4125
        %v4127 = vand.u32 %v1897, 4294901760
        %4128 = vmatpush.msra.mxu0 %v4127
        %v4129 = vand.u32 %v1889, 4294901760
        %4130 = vmatpush.msra.mxu0 %v4129
        %v4131 = vand.u32 %v1881, 4294901760
        %4132 = vmatpush.msra.mxu0 %v4131
        %v4133 = vand.u32 %v1873, 4294901760
        %4134 = vmatpush.msra.mxu0 %v4133
        %v4135 = vand.u32 %v1865, 4294901760
        %4136 = vmatpush.msra.mxu0 %v4135
        %v4137 = vand.u32 %v1857, 4294901760
        %4138 = vmatpush.msra.mxu0 %v4137
        %v4139 = vand.u32 %v1849, 4294901760
        %4140 = vmatpush.msra.mxu0 %v4139
        %v4141 = vand.u32 %v1841, 4294901760
        %4142 = vmatpush.msra.mxu0 %v4141
        %v4143 = vand.u32 %v1833, 4294901760
        %4144 = vmatpush.msra.mxu0 %v4143
        %v4145 = vand.u32 %v1825, 4294901760
        %4146 = vmatpush.msra.mxu0 %v4145
        %v4147 = vand.u32 %v1817, 4294901760
        %4148 = vmatpush.msra.mxu0 %v4147
        %v4149 = vand.u32 %v1942, 4294901760
        %4150 = vmatmul.f32.gmra.mxu0 %v4149
        %v4151 = vpop.f32.mrf.mxu0
        %v4152 = vadd.f32 %v4087, %v4151
        %v4153 = vand.u32 %v1943, 4294901760
        %4154 = vmatmul.f32.gmra.mxu0 %v4153
        %v4155 = vpop.f32.mrf.mxu0
        %v4156 = vadd.f32 %v4091, %v4155
        %v4157 = vand.u32 %v1944, 4294901760
        %4158 = vmatmul.f32.gmra.mxu0 %v4157
        %v4159 = vpop.f32.mrf.mxu0
        %v4160 = vadd.f32 %v4095, %v4159
        %v4161 = vand.u32 %v1945, 4294901760
        %4162 = vmatmul.f32.gmra.mxu0 %v4161
        %v4163 = vpop.f32.mrf.mxu0
        %v4164 = vadd.f32 %v4099, %v4163
        %v4165 = vand.u32 %v1946, 4294901760
        %4166 = vmatmul.f32.gmra.mxu0 %v4165
        %v4167 = vpop.f32.mrf.mxu0
        %v4168 = vadd.f32 %v4103, %v4167
        %v4169 = vand.u32 %v1947, 4294901760
        %4170 = vmatmul.f32.gmra.mxu0 %v4169
        %v4171 = vpop.f32.mrf.mxu0
        %v4172 = vadd.f32 %v4107, %v4171
        %v4173 = vand.u32 %v1948, 4294901760
        %4174 = vmatmul.f32.gmra.mxu0 %v4173
        %v4175 = vpop.f32.mrf.mxu0
        %v4176 = vadd.f32 %v4111, %v4175
        %v4177 = vand.u32 %v1949, 4294901760
        %4178 = vmatmul.f32.gmra.mxu0 %v4177
        %v4179 = vpop.f32.mrf.mxu0
        %v4180 = vadd.f32 %v4115, %v4179
        %4181 = vdwg.mxu0
        %v4182 = vand.u32 %v1938, 4294901760
        %4183 = vmatpush.msra.mxu0 %v4182
        %v4184 = vand.u32 %v1930, 4294901760
        %4185 = vmatpush.msra.mxu0 %v4184
        %v4186 = vand.u32 %v1922, 4294901760
        %4187 = vmatpush.msra.mxu0 %v4186
        %v4188 = vand.u32 %v1914, 4294901760
        %4189 = vmatpush.msra.mxu0 %v4188
        %v4190 = vand.u32 %v1906, 4294901760
        %4191 = vmatpush.msra.mxu0 %v4190
        %v4192 = vand.u32 %v1898, 4294901760
        %4193 = vmatpush.msra.mxu0 %v4192
        %v4194 = vand.u32 %v1890, 4294901760
        %4195 = vmatpush.msra.mxu0 %v4194
        %v4196 = vand.u32 %v1882, 4294901760
        %4197 = vmatpush.msra.mxu0 %v4196
        %v4198 = vand.u32 %v1874, 4294901760
        %4199 = vmatpush.msra.mxu0 %v4198
        %v4200 = vand.u32 %v1866, 4294901760
        %4201 = vmatpush.msra.mxu0 %v4200
        %v4202 = vand.u32 %v1858, 4294901760
        %4203 = vmatpush.msra.mxu0 %v4202
        %v4204 = vand.u32 %v1850, 4294901760
        %4205 = vmatpush.msra.mxu0 %v4204
        %v4206 = vand.u32 %v1842, 4294901760
        %4207 = vmatpush.msra.mxu0 %v4206
        %v4208 = vand.u32 %v1834, 4294901760
        %4209 = vmatpush.msra.mxu0 %v4208
        %v4210 = vand.u32 %v1826, 4294901760
        %4211 = vmatpush.msra.mxu0 %v4210
        %v4212 = vand.u32 %v1818, 4294901760
        %4213 = vmatpush.msra.mxu0 %v4212
        %v4214 = vand.u32 %v1942, 4294901760
        %v4215 = vsub.f32 %v1942, %v4214
        %v4216 = vand.u32 %v4215, 4294901760
        %v4217 = vsub.f32 %v4215, %v4216
        %v4218 = vand.u32 %v4217, 4294901760
        %4219 = vmatmul.f32.gmra.mxu0 %v4218
        %v4220 = vpop.f32.mrf.mxu0
        %v4221 = vadd.f32 0.0, %v4220
        %v4222 = vand.u32 %v1943, 4294901760
        %v4223 = vsub.f32 %v1943, %v4222
        %v4224 = vand.u32 %v4223, 4294901760
        %v4225 = vsub.f32 %v4223, %v4224
        %v4226 = vand.u32 %v4225, 4294901760
        %4227 = vmatmul.f32.gmra.mxu0 %v4226
        %v4228 = vpop.f32.mrf.mxu0
        %v4229 = vadd.f32 0.0, %v4228
        %v4230 = vand.u32 %v1944, 4294901760
        %v4231 = vsub.f32 %v1944, %v4230
        %v4232 = vand.u32 %v4231, 4294901760
        %v4233 = vsub.f32 %v4231, %v4232
        %v4234 = vand.u32 %v4233, 4294901760
        %4235 = vmatmul.f32.gmra.mxu0 %v4234
        %v4236 = vpop.f32.mrf.mxu0
        %v4237 = vadd.f32 0.0, %v4236
        %v4238 = vand.u32 %v1945, 4294901760
        %v4239 = vsub.f32 %v1945, %v4238
        %v4240 = vand.u32 %v4239, 4294901760
        %v4241 = vsub.f32 %v4239, %v4240
        %v4242 = vand.u32 %v4241, 4294901760
        %4243 = vmatmul.f32.gmra.mxu0 %v4242
        %v4244 = vpop.f32.mrf.mxu0
        %v4245 = vadd.f32 0.0, %v4244
        %v4246 = vand.u32 %v1946, 4294901760
        %v4247 = vsub.f32 %v1946, %v4246
        %v4248 = vand.u32 %v4247, 4294901760
        %v4249 = vsub.f32 %v4247, %v4248
        %v4250 = vand.u32 %v4249, 4294901760
        %4251 = vmatmul.f32.gmra.mxu0 %v4250
        %v4252 = vpop.f32.mrf.mxu0
        %v4253 = vadd.f32 0.0, %v4252
        %v4254 = vand.u32 %v1947, 4294901760
        %v4255 = vsub.f32 %v1947, %v4254
        %v4256 = vand.u32 %v4255, 4294901760
        %v4257 = vsub.f32 %v4255, %v4256
        %v4258 = vand.u32 %v4257, 4294901760
        %4259 = vmatmul.f32.gmra.mxu0 %v4258
        %v4260 = vpop.f32.mrf.mxu0
        %v4261 = vadd.f32 0.0, %v4260
        %v4262 = vand.u32 %v1948, 4294901760
        %v4263 = vsub.f32 %v1948, %v4262
        %v4264 = vand.u32 %v4263, 4294901760
        %v4265 = vsub.f32 %v4263, %v4264
        %v4266 = vand.u32 %v4265, 4294901760
        %4267 = vmatmul.f32.gmra.mxu0 %v4266
        %v4268 = vpop.f32.mrf.mxu0
        %v4269 = vadd.f32 0.0, %v4268
        %v4270 = vand.u32 %v1949, 4294901760
        %v4271 = vsub.f32 %v1949, %v4270
        %v4272 = vand.u32 %v4271, 4294901760
        %v4273 = vsub.f32 %v4271, %v4272
        %v4274 = vand.u32 %v4273, 4294901760
        %4275 = vmatmul.f32.gmra.mxu0 %v4274
        %v4276 = vpop.f32.mrf.mxu0
        %v4277 = vadd.f32 0.0, %v4276
        %4278 = vdwg.mxu0
        %v4279 = vand.u32 %v1938, 4294901760
        %v4280 = vsub.f32 %v1938, %v4279
        %v4281 = vand.u32 %v4280, 4294901760
        %v4282 = vsub.f32 %v4280, %v4281
        %v4283 = vand.u32 %v4282, 4294901760
        %4284 = vmatpush.msra.mxu0 %v4283
        %v4285 = vand.u32 %v1930, 4294901760
        %v4286 = vsub.f32 %v1930, %v4285
        %v4287 = vand.u32 %v4286, 4294901760
        %v4288 = vsub.f32 %v4286, %v4287
        %v4289 = vand.u32 %v4288, 4294901760
        %4290 = vmatpush.msra.mxu0 %v4289
        %v4291 = vand.u32 %v1922, 4294901760
        %v4292 = vsub.f32 %v1922, %v4291
        %v4293 = vand.u32 %v4292, 4294901760
        %v4294 = vsub.f32 %v4292, %v4293
        %v4295 = vand.u32 %v4294, 4294901760
        %4296 = vmatpush.msra.mxu0 %v4295
        %v4297 = vand.u32 %v1914, 4294901760
        %v4298 = vsub.f32 %v1914, %v4297
        %v4299 = vand.u32 %v4298, 4294901760
        %v4300 = vsub.f32 %v4298, %v4299
        %v4301 = vand.u32 %v4300, 4294901760
        %4302 = vmatpush.msra.mxu0 %v4301
        %v4303 = vand.u32 %v1906, 4294901760
        %v4304 = vsub.f32 %v1906, %v4303
        %v4305 = vand.u32 %v4304, 4294901760
        %v4306 = vsub.f32 %v4304, %v4305
        %v4307 = vand.u32 %v4306, 4294901760
        %4308 = vmatpush.msra.mxu0 %v4307
        %v4309 = vand.u32 %v1898, 4294901760
        %v4310 = vsub.f32 %v1898, %v4309
        %v4311 = vand.u32 %v4310, 4294901760
        %v4312 = vsub.f32 %v4310, %v4311
        %v4313 = vand.u32 %v4312, 4294901760
        %4314 = vmatpush.msra.mxu0 %v4313
        %v4315 = vand.u32 %v1890, 4294901760
        %v4316 = vsub.f32 %v1890, %v4315
        %v4317 = vand.u32 %v4316, 4294901760
        %v4318 = vsub.f32 %v4316, %v4317
        %v4319 = vand.u32 %v4318, 4294901760
        %4320 = vmatpush.msra.mxu0 %v4319
        %v4321 = vand.u32 %v1882, 4294901760
        %v4322 = vsub.f32 %v1882, %v4321
        %v4323 = vand.u32 %v4322, 4294901760
        %v4324 = vsub.f32 %v4322, %v4323
        %v4325 = vand.u32 %v4324, 4294901760
        %4326 = vmatpush.msra.mxu0 %v4325
        %v4327 = vand.u32 %v1874, 4294901760
        %v4328 = vsub.f32 %v1874, %v4327
        %v4329 = vand.u32 %v4328, 4294901760
        %v4330 = vsub.f32 %v4328, %v4329
        %v4331 = vand.u32 %v4330, 4294901760
        %4332 = vmatpush.msra.mxu0 %v4331
        %v4333 = vand.u32 %v1866, 4294901760
        %v4334 = vsub.f32 %v1866, %v4333
        %v4335 = vand.u32 %v4334, 4294901760
        %v4336 = vsub.f32 %v4334, %v4335
        %v4337 = vand.u32 %v4336, 4294901760
        %4338 = vmatpush.msra.mxu0 %v4337
        %v4339 = vand.u32 %v1858, 4294901760
        %v4340 = vsub.f32 %v1858, %v4339
        %v4341 = vand.u32 %v4340, 4294901760
        %v4342 = vsub.f32 %v4340, %v4341
        %v4343 = vand.u32 %v4342, 4294901760
        %4344 = vmatpush.msra.mxu0 %v4343
        %v4345 = vand.u32 %v1850, 4294901760
        %v4346 = vsub.f32 %v1850, %v4345
        %v4347 = vand.u32 %v4346, 4294901760
        %v4348 = vsub.f32 %v4346, %v4347
        %v4349 = vand.u32 %v4348, 4294901760
        %4350 = vmatpush.msra.mxu0 %v4349
        %v4351 = vand.u32 %v1842, 4294901760
        %v4352 = vsub.f32 %v1842, %v4351
        %v4353 = vand.u32 %v4352, 4294901760
        %v4354 = vsub.f32 %v4352, %v4353
        %v4355 = vand.u32 %v4354, 4294901760
        %4356 = vmatpush.msra.mxu0 %v4355
        %v4357 = vand.u32 %v1834, 4294901760
        %v4358 = vsub.f32 %v1834, %v4357
        %v4359 = vand.u32 %v4358, 4294901760
        %v4360 = vsub.f32 %v4358, %v4359
        %v4361 = vand.u32 %v4360, 4294901760
        %4362 = vmatpush.msra.mxu0 %v4361
        %v4363 = vand.u32 %v1826, 4294901760
        %v4364 = vsub.f32 %v1826, %v4363
        %v4365 = vand.u32 %v4364, 4294901760
        %v4366 = vsub.f32 %v4364, %v4365
        %v4367 = vand.u32 %v4366, 4294901760
        %4368 = vmatpush.msra.mxu0 %v4367
        %v4369 = vand.u32 %v1818, 4294901760
        %v4370 = vsub.f32 %v1818, %v4369
        %v4371 = vand.u32 %v4370, 4294901760
        %v4372 = vsub.f32 %v4370, %v4371
        %v4373 = vand.u32 %v4372, 4294901760
        %4374 = vmatpush.msra.mxu0 %v4373
        %v4375 = vand.u32 %v1942, 4294901760
        %4376 = vmatmul.f32.gmra.mxu0 %v4375
        %v4377 = vpop.f32.mrf.mxu0
        %v4378 = vadd.f32 %v4221, %v4377
        %v4379 = vand.u32 %v1943, 4294901760
        %4380 = vmatmul.f32.gmra.mxu0 %v4379
        %v4381 = vpop.f32.mrf.mxu0
        %v4382 = vadd.f32 %v4229, %v4381
        %v4383 = vand.u32 %v1944, 4294901760
        %4384 = vmatmul.f32.gmra.mxu0 %v4383
        %v4385 = vpop.f32.mrf.mxu0
        %v4386 = vadd.f32 %v4237, %v4385
        %v4387 = vand.u32 %v1945, 4294901760
        %4388 = vmatmul.f32.gmra.mxu0 %v4387
        %v4389 = vpop.f32.mrf.mxu0
        %v4390 = vadd.f32 %v4245, %v4389
        %v4391 = vand.u32 %v1946, 4294901760
        %4392 = vmatmul.f32.gmra.mxu0 %v4391
        %v4393 = vpop.f32.mrf.mxu0
        %v4394 = vadd.f32 %v4253, %v4393
        %v4395 = vand.u32 %v1947, 4294901760
        %4396 = vmatmul.f32.gmra.mxu0 %v4395
        %v4397 = vpop.f32.mrf.mxu0
        %v4398 = vadd.f32 %v4261, %v4397
        %v4399 = vand.u32 %v1948, 4294901760
        %4400 = vmatmul.f32.gmra.mxu0 %v4399
        %v4401 = vpop.f32.mrf.mxu0
        %v4402 = vadd.f32 %v4269, %v4401
        %v4403 = vand.u32 %v1949, 4294901760
        %4404 = vmatmul.f32.gmra.mxu0 %v4403
        %v4405 = vpop.f32.mrf.mxu0
        %v4406 = vadd.f32 %v4277, %v4405
        %4407 = vdwg.mxu0
        %v4408 = vand.u32 %v1938, 4294901760
        %v4409 = vsub.f32 %v1938, %v4408
        %4410 = vmatpush.msra.mxu0 %v4409
        %v4411 = vand.u32 %v1930, 4294901760
        %v4412 = vsub.f32 %v1930, %v4411
        %4413 = vmatpush.msra.mxu0 %v4412
        %v4414 = vand.u32 %v1922, 4294901760
        %v4415 = vsub.f32 %v1922, %v4414
        %4416 = vmatpush.msra.mxu0 %v4415
        %v4417 = vand.u32 %v1914, 4294901760
        %v4418 = vsub.f32 %v1914, %v4417
        %4419 = vmatpush.msra.mxu0 %v4418
        %v4420 = vand.u32 %v1906, 4294901760
        %v4421 = vsub.f32 %v1906, %v4420
        %4422 = vmatpush.msra.mxu0 %v4421
        %v4423 = vand.u32 %v1898, 4294901760
        %v4424 = vsub.f32 %v1898, %v4423
        %4425 = vmatpush.msra.mxu0 %v4424
        %v4426 = vand.u32 %v1890, 4294901760
        %v4427 = vsub.f32 %v1890, %v4426
        %4428 = vmatpush.msra.mxu0 %v4427
        %v4429 = vand.u32 %v1882, 4294901760
        %v4430 = vsub.f32 %v1882, %v4429
        %4431 = vmatpush.msra.mxu0 %v4430
        %v4432 = vand.u32 %v1874, 4294901760
        %v4433 = vsub.f32 %v1874, %v4432
        %4434 = vmatpush.msra.mxu0 %v4433
        %v4435 = vand.u32 %v1866, 4294901760
        %v4436 = vsub.f32 %v1866, %v4435
        %4437 = vmatpush.msra.mxu0 %v4436
        %v4438 = vand.u32 %v1858, 4294901760
        %v4439 = vsub.f32 %v1858, %v4438
        %4440 = vmatpush.msra.mxu0 %v4439
        %v4441 = vand.u32 %v1850, 4294901760
        %v4442 = vsub.f32 %v1850, %v4441
        %4443 = vmatpush.msra.mxu0 %v4442
        %v4444 = vand.u32 %v1842, 4294901760
        %v4445 = vsub.f32 %v1842, %v4444
        %4446 = vmatpush.msra.mxu0 %v4445
        %v4447 = vand.u32 %v1834, 4294901760
        %v4448 = vsub.f32 %v1834, %v4447
        %4449 = vmatpush.msra.mxu0 %v4448
        %v4450 = vand.u32 %v1826, 4294901760
        %v4451 = vsub.f32 %v1826, %v4450
        %4452 = vmatpush.msra.mxu0 %v4451
        %v4453 = vand.u32 %v1818, 4294901760
        %v4454 = vsub.f32 %v1818, %v4453
        %4455 = vmatpush.msra.mxu0 %v4454
        %v4456 = vand.u32 %v1942, 4294901760
        %v4457 = vsub.f32 %v1942, %v4456
        %4458 = vmatmul.f32.gmra.mxu0 %v4457
        %v4459 = vpop.f32.mrf.mxu0
        %v4460 = vadd.f32 %v4378, %v4459
        %v4461 = vand.u32 %v1943, 4294901760
        %v4462 = vsub.f32 %v1943, %v4461
        %4463 = vmatmul.f32.gmra.mxu0 %v4462
        %v4464 = vpop.f32.mrf.mxu0
        %v4465 = vadd.f32 %v4382, %v4464
        %v4466 = vand.u32 %v1944, 4294901760
        %v4467 = vsub.f32 %v1944, %v4466
        %4468 = vmatmul.f32.gmra.mxu0 %v4467
        %v4469 = vpop.f32.mrf.mxu0
        %v4470 = vadd.f32 %v4386, %v4469
        %v4471 = vand.u32 %v1945, 4294901760
        %v4472 = vsub.f32 %v1945, %v4471
        %4473 = vmatmul.f32.gmra.mxu0 %v4472
        %v4474 = vpop.f32.mrf.mxu0
        %v4475 = vadd.f32 %v4390, %v4474
        %v4476 = vand.u32 %v1946, 4294901760
        %v4477 = vsub.f32 %v1946, %v4476
        %4478 = vmatmul.f32.gmra.mxu0 %v4477
        %v4479 = vpop.f32.mrf.mxu0
        %v4480 = vadd.f32 %v4394, %v4479
        %v4481 = vand.u32 %v1947, 4294901760
        %v4482 = vsub.f32 %v1947, %v4481
        %4483 = vmatmul.f32.gmra.mxu0 %v4482
        %v4484 = vpop.f32.mrf.mxu0
        %v4485 = vadd.f32 %v4398, %v4484
        %v4486 = vand.u32 %v1948, 4294901760
        %v4487 = vsub.f32 %v1948, %v4486
        %4488 = vmatmul.f32.gmra.mxu0 %v4487
        %v4489 = vpop.f32.mrf.mxu0
        %v4490 = vadd.f32 %v4402, %v4489
        %v4491 = vand.u32 %v1949, 4294901760
        %v4492 = vsub.f32 %v1949, %v4491
        %4493 = vmatmul.f32.gmra.mxu0 %v4492
        %v4494 = vpop.f32.mrf.mxu0
        %v4495 = vadd.f32 %v4406, %v4494
        %4496 = vdwg.mxu0
        %v4497 = vand.u32 %v1938, 4294901760
        %4498 = vmatpush.msra.mxu0 %v4497
        %v4499 = vand.u32 %v1930, 4294901760
        %4500 = vmatpush.msra.mxu0 %v4499
        %v4501 = vand.u32 %v1922, 4294901760
        %4502 = vmatpush.msra.mxu0 %v4501
        %v4503 = vand.u32 %v1914, 4294901760
        %4504 = vmatpush.msra.mxu0 %v4503
        %v4505 = vand.u32 %v1906, 4294901760
        %4506 = vmatpush.msra.mxu0 %v4505
        %v4507 = vand.u32 %v1898, 4294901760
        %4508 = vmatpush.msra.mxu0 %v4507
        %v4509 = vand.u32 %v1890, 4294901760
        %4510 = vmatpush.msra.mxu0 %v4509
        %v4511 = vand.u32 %v1882, 4294901760
        %4512 = vmatpush.msra.mxu0 %v4511
        %v4513 = vand.u32 %v1874, 4294901760
        %4514 = vmatpush.msra.mxu0 %v4513
        %v4515 = vand.u32 %v1866, 4294901760
        %4516 = vmatpush.msra.mxu0 %v4515
        %v4517 = vand.u32 %v1858, 4294901760
        %4518 = vmatpush.msra.mxu0 %v4517
        %v4519 = vand.u32 %v1850, 4294901760
        %4520 = vmatpush.msra.mxu0 %v4519
        %v4521 = vand.u32 %v1842, 4294901760
        %4522 = vmatpush.msra.mxu0 %v4521
        %v4523 = vand.u32 %v1834, 4294901760
        %4524 = vmatpush.msra.mxu0 %v4523
        %v4525 = vand.u32 %v1826, 4294901760
        %4526 = vmatpush.msra.mxu0 %v4525
        %v4527 = vand.u32 %v1818, 4294901760
        %4528 = vmatpush.msra.mxu0 %v4527
        %v4529 = vand.u32 %v1942, 4294901760
        %v4530 = vsub.f32 %v1942, %v4529
        %v4531 = vand.u32 %v4530, 4294901760
        %4532 = vmatmul.f32.gmra.mxu0 %v4531
        %v4533 = vpop.f32.mrf.mxu0
        %v4534 = vadd.f32 %v4460, %v4533
        %v4535 = vand.u32 %v1943, 4294901760
        %v4536 = vsub.f32 %v1943, %v4535
        %v4537 = vand.u32 %v4536, 4294901760
        %4538 = vmatmul.f32.gmra.mxu0 %v4537
        %v4539 = vpop.f32.mrf.mxu0
        %v4540 = vadd.f32 %v4465, %v4539
        %v4541 = vand.u32 %v1944, 4294901760
        %v4542 = vsub.f32 %v1944, %v4541
        %v4543 = vand.u32 %v4542, 4294901760
        %4544 = vmatmul.f32.gmra.mxu0 %v4543
        %v4545 = vpop.f32.mrf.mxu0
        %v4546 = vadd.f32 %v4470, %v4545
        %v4547 = vand.u32 %v1945, 4294901760
        %v4548 = vsub.f32 %v1945, %v4547
        %v4549 = vand.u32 %v4548, 4294901760
        %4550 = vmatmul.f32.gmra.mxu0 %v4549
        %v4551 = vpop.f32.mrf.mxu0
        %v4552 = vadd.f32 %v4475, %v4551
        %v4553 = vand.u32 %v1946, 4294901760
        %v4554 = vsub.f32 %v1946, %v4553
        %v4555 = vand.u32 %v4554, 4294901760
        %4556 = vmatmul.f32.gmra.mxu0 %v4555
        %v4557 = vpop.f32.mrf.mxu0
        %v4558 = vadd.f32 %v4480, %v4557
        %v4559 = vand.u32 %v1947, 4294901760
        %v4560 = vsub.f32 %v1947, %v4559
        %v4561 = vand.u32 %v4560, 4294901760
        %4562 = vmatmul.f32.gmra.mxu0 %v4561
        %v4563 = vpop.f32.mrf.mxu0
        %v4564 = vadd.f32 %v4485, %v4563
        %v4565 = vand.u32 %v1948, 4294901760
        %v4566 = vsub.f32 %v1948, %v4565
        %v4567 = vand.u32 %v4566, 4294901760
        %4568 = vmatmul.f32.gmra.mxu0 %v4567
        %v4569 = vpop.f32.mrf.mxu0
        %v4570 = vadd.f32 %v4490, %v4569
        %v4571 = vand.u32 %v1949, 4294901760
        %v4572 = vsub.f32 %v1949, %v4571
        %v4573 = vand.u32 %v4572, 4294901760
        %4574 = vmatmul.f32.gmra.mxu0 %v4573
        %v4575 = vpop.f32.mrf.mxu0
        %v4576 = vadd.f32 %v4495, %v4575
        %4577 = vdwg.mxu0
        %v4578 = vand.u32 %v1938, 4294901760
        %v4579 = vsub.f32 %v1938, %v4578
        %v4580 = vand.u32 %v4579, 4294901760
        %4581 = vmatpush.msra.mxu0 %v4580
        %v4582 = vand.u32 %v1930, 4294901760
        %v4583 = vsub.f32 %v1930, %v4582
        %v4584 = vand.u32 %v4583, 4294901760
        %4585 = vmatpush.msra.mxu0 %v4584
        %v4586 = vand.u32 %v1922, 4294901760
        %v4587 = vsub.f32 %v1922, %v4586
        %v4588 = vand.u32 %v4587, 4294901760
        %4589 = vmatpush.msra.mxu0 %v4588
        %v4590 = vand.u32 %v1914, 4294901760
        %v4591 = vsub.f32 %v1914, %v4590
        %v4592 = vand.u32 %v4591, 4294901760
        %4593 = vmatpush.msra.mxu0 %v4592
        %v4594 = vand.u32 %v1906, 4294901760
        %v4595 = vsub.f32 %v1906, %v4594
        %v4596 = vand.u32 %v4595, 4294901760
        %4597 = vmatpush.msra.mxu0 %v4596
        %v4598 = vand.u32 %v1898, 4294901760
        %v4599 = vsub.f32 %v1898, %v4598
        %v4600 = vand.u32 %v4599, 4294901760
        %4601 = vmatpush.msra.mxu0 %v4600
        %v4602 = vand.u32 %v1890, 4294901760
        %v4603 = vsub.f32 %v1890, %v4602
        %v4604 = vand.u32 %v4603, 4294901760
        %4605 = vmatpush.msra.mxu0 %v4604
        %v4606 = vand.u32 %v1882, 4294901760
        %v4607 = vsub.f32 %v1882, %v4606
        %v4608 = vand.u32 %v4607, 4294901760
        %4609 = vmatpush.msra.mxu0 %v4608
        %v4610 = vand.u32 %v1874, 4294901760
        %v4611 = vsub.f32 %v1874, %v4610
        %v4612 = vand.u32 %v4611, 4294901760
        %4613 = vmatpush.msra.mxu0 %v4612
        %v4614 = vand.u32 %v1866, 4294901760
        %v4615 = vsub.f32 %v1866, %v4614
        %v4616 = vand.u32 %v4615, 4294901760
        %4617 = vmatpush.msra.mxu0 %v4616
        %v4618 = vand.u32 %v1858, 4294901760
        %v4619 = vsub.f32 %v1858, %v4618
        %v4620 = vand.u32 %v4619, 4294901760
        %4621 = vmatpush.msra.mxu0 %v4620
        %v4622 = vand.u32 %v1850, 4294901760
        %v4623 = vsub.f32 %v1850, %v4622
        %v4624 = vand.u32 %v4623, 4294901760
        %4625 = vmatpush.msra.mxu0 %v4624
        %v4626 = vand.u32 %v1842, 4294901760
        %v4627 = vsub.f32 %v1842, %v4626
        %v4628 = vand.u32 %v4627, 4294901760
        %4629 = vmatpush.msra.mxu0 %v4628
        %v4630 = vand.u32 %v1834, 4294901760
        %v4631 = vsub.f32 %v1834, %v4630
        %v4632 = vand.u32 %v4631, 4294901760
        %4633 = vmatpush.msra.mxu0 %v4632
        %v4634 = vand.u32 %v1826, 4294901760
        %v4635 = vsub.f32 %v1826, %v4634
        %v4636 = vand.u32 %v4635, 4294901760
        %4637 = vmatpush.msra.mxu0 %v4636
        %v4638 = vand.u32 %v1818, 4294901760
        %v4639 = vsub.f32 %v1818, %v4638
        %v4640 = vand.u32 %v4639, 4294901760
        %4641 = vmatpush.msra.mxu0 %v4640
        %v4642 = vand.u32 %v1942, 4294901760
        %4643 = vmatmul.f32.gmra.mxu0 %v4642
        %v4644 = vpop.f32.mrf.mxu0
        %v4645 = vadd.f32 %v4534, %v4644
        %v4646 = vand.u32 %v1943, 4294901760
        %4647 = vmatmul.f32.gmra.mxu0 %v4646
        %v4648 = vpop.f32.mrf.mxu0
        %v4649 = vadd.f32 %v4540, %v4648
        %v4650 = vand.u32 %v1944, 4294901760
        %4651 = vmatmul.f32.gmra.mxu0 %v4650
        %v4652 = vpop.f32.mrf.mxu0
        %v4653 = vadd.f32 %v4546, %v4652
        %v4654 = vand.u32 %v1945, 4294901760
        %4655 = vmatmul.f32.gmra.mxu0 %v4654
        %v4656 = vpop.f32.mrf.mxu0
        %v4657 = vadd.f32 %v4552, %v4656
        %v4658 = vand.u32 %v1946, 4294901760
        %4659 = vmatmul.f32.gmra.mxu0 %v4658
        %v4660 = vpop.f32.mrf.mxu0
        %v4661 = vadd.f32 %v4558, %v4660
        %v4662 = vand.u32 %v1947, 4294901760
        %4663 = vmatmul.f32.gmra.mxu0 %v4662
        %v4664 = vpop.f32.mrf.mxu0
        %v4665 = vadd.f32 %v4564, %v4664
        %v4666 = vand.u32 %v1948, 4294901760
        %4667 = vmatmul.f32.gmra.mxu0 %v4666
        %v4668 = vpop.f32.mrf.mxu0
        %v4669 = vadd.f32 %v4570, %v4668
        %v4670 = vand.u32 %v1949, 4294901760
        %4671 = vmatmul.f32.gmra.mxu0 %v4670
        %v4672 = vpop.f32.mrf.mxu0
        %v4673 = vadd.f32 %v4576, %v4672
        %4674 = vdwg.mxu0
        %v4675 = vand.u32 %v1938, 4294901760
        %4676 = vmatpush.msra.mxu0 %v4675
        %v4677 = vand.u32 %v1930, 4294901760
        %4678 = vmatpush.msra.mxu0 %v4677
        %v4679 = vand.u32 %v1922, 4294901760
        %4680 = vmatpush.msra.mxu0 %v4679
        %v4681 = vand.u32 %v1914, 4294901760
        %4682 = vmatpush.msra.mxu0 %v4681
        %v4683 = vand.u32 %v1906, 4294901760
        %4684 = vmatpush.msra.mxu0 %v4683
        %v4685 = vand.u32 %v1898, 4294901760
        %4686 = vmatpush.msra.mxu0 %v4685
        %v4687 = vand.u32 %v1890, 4294901760
        %4688 = vmatpush.msra.mxu0 %v4687
        %v4689 = vand.u32 %v1882, 4294901760
        %4690 = vmatpush.msra.mxu0 %v4689
        %v4691 = vand.u32 %v1874, 4294901760
        %4692 = vmatpush.msra.mxu0 %v4691
        %v4693 = vand.u32 %v1866, 4294901760
        %4694 = vmatpush.msra.mxu0 %v4693
        %v4695 = vand.u32 %v1858, 4294901760
        %4696 = vmatpush.msra.mxu0 %v4695
        %v4697 = vand.u32 %v1850, 4294901760
        %4698 = vmatpush.msra.mxu0 %v4697
        %v4699 = vand.u32 %v1842, 4294901760
        %4700 = vmatpush.msra.mxu0 %v4699
        %v4701 = vand.u32 %v1834, 4294901760
        %4702 = vmatpush.msra.mxu0 %v4701
        %v4703 = vand.u32 %v1826, 4294901760
        %4704 = vmatpush.msra.mxu0 %v4703
        %v4705 = vand.u32 %v1818, 4294901760
        %4706 = vmatpush.msra.mxu0 %v4705
        %v4707 = vand.u32 %v1942, 4294901760
        %4708 = vmatmul.f32.gmra.mxu0 %v4707
        %v4709 = vpop.f32.mrf.mxu0
        %v4710 = vadd.f32 %v4645, %v4709
        %v4711 = vand.u32 %v1943, 4294901760
        %4712 = vmatmul.f32.gmra.mxu0 %v4711
        %v4713 = vpop.f32.mrf.mxu0
        %v4714 = vadd.f32 %v4649, %v4713
        %v4715 = vand.u32 %v1944, 4294901760
        %4716 = vmatmul.f32.gmra.mxu0 %v4715
        %v4717 = vpop.f32.mrf.mxu0
        %v4718 = vadd.f32 %v4653, %v4717
        %v4719 = vand.u32 %v1945, 4294901760
        %4720 = vmatmul.f32.gmra.mxu0 %v4719
        %v4721 = vpop.f32.mrf.mxu0
        %v4722 = vadd.f32 %v4657, %v4721
        %v4723 = vand.u32 %v1946, 4294901760
        %4724 = vmatmul.f32.gmra.mxu0 %v4723
        %v4725 = vpop.f32.mrf.mxu0
        %v4726 = vadd.f32 %v4661, %v4725
        %v4727 = vand.u32 %v1947, 4294901760
        %4728 = vmatmul.f32.gmra.mxu0 %v4727
        %v4729 = vpop.f32.mrf.mxu0
        %v4730 = vadd.f32 %v4665, %v4729
        %v4731 = vand.u32 %v1948, 4294901760
        %4732 = vmatmul.f32.gmra.mxu0 %v4731
        %v4733 = vpop.f32.mrf.mxu0
        %v4734 = vadd.f32 %v4669, %v4733
        %v4735 = vand.u32 %v1949, 4294901760
        %4736 = vmatmul.f32.gmra.mxu0 %v4735
        %v4737 = vpop.f32.mrf.mxu0
        %v4738 = vadd.f32 %v4673, %v4737
        %4739 = vdwg.mxu0
        %v4740 = vand.u32 %v1939, 4294901760
        %4741 = vmatpush.msra.mxu0 %v4740
        %v4742 = vand.u32 %v1931, 4294901760
        %4743 = vmatpush.msra.mxu0 %v4742
        %v4744 = vand.u32 %v1923, 4294901760
        %4745 = vmatpush.msra.mxu0 %v4744
        %v4746 = vand.u32 %v1915, 4294901760
        %4747 = vmatpush.msra.mxu0 %v4746
        %v4748 = vand.u32 %v1907, 4294901760
        %4749 = vmatpush.msra.mxu0 %v4748
        %v4750 = vand.u32 %v1899, 4294901760
        %4751 = vmatpush.msra.mxu0 %v4750
        %v4752 = vand.u32 %v1891, 4294901760
        %4753 = vmatpush.msra.mxu0 %v4752
        %v4754 = vand.u32 %v1883, 4294901760
        %4755 = vmatpush.msra.mxu0 %v4754
        %v4756 = vand.u32 %v1875, 4294901760
        %4757 = vmatpush.msra.mxu0 %v4756
        %v4758 = vand.u32 %v1867, 4294901760
        %4759 = vmatpush.msra.mxu0 %v4758
        %v4760 = vand.u32 %v1859, 4294901760
        %4761 = vmatpush.msra.mxu0 %v4760
        %v4762 = vand.u32 %v1851, 4294901760
        %4763 = vmatpush.msra.mxu0 %v4762
        %v4764 = vand.u32 %v1843, 4294901760
        %4765 = vmatpush.msra.mxu0 %v4764
        %v4766 = vand.u32 %v1835, 4294901760
        %4767 = vmatpush.msra.mxu0 %v4766
        %v4768 = vand.u32 %v1827, 4294901760
        %4769 = vmatpush.msra.mxu0 %v4768
        %v4770 = vand.u32 %v1819, 4294901760
        %4771 = vmatpush.msra.mxu0 %v4770
        %v4772 = vand.u32 %v1942, 4294901760
        %v4773 = vsub.f32 %v1942, %v4772
        %v4774 = vand.u32 %v4773, 4294901760
        %v4775 = vsub.f32 %v4773, %v4774
        %v4776 = vand.u32 %v4775, 4294901760
        %4777 = vmatmul.f32.gmra.mxu0 %v4776
        %v4778 = vpop.f32.mrf.mxu0
        %v4779 = vadd.f32 0.0, %v4778
        %v4780 = vand.u32 %v1943, 4294901760
        %v4781 = vsub.f32 %v1943, %v4780
        %v4782 = vand.u32 %v4781, 4294901760
        %v4783 = vsub.f32 %v4781, %v4782
        %v4784 = vand.u32 %v4783, 4294901760
        %4785 = vmatmul.f32.gmra.mxu0 %v4784
        %v4786 = vpop.f32.mrf.mxu0
        %v4787 = vadd.f32 0.0, %v4786
        %v4788 = vand.u32 %v1944, 4294901760
        %v4789 = vsub.f32 %v1944, %v4788
        %v4790 = vand.u32 %v4789, 4294901760
        %v4791 = vsub.f32 %v4789, %v4790
        %v4792 = vand.u32 %v4791, 4294901760
        %4793 = vmatmul.f32.gmra.mxu0 %v4792
        %v4794 = vpop.f32.mrf.mxu0
        %v4795 = vadd.f32 0.0, %v4794
        %v4796 = vand.u32 %v1945, 4294901760
        %v4797 = vsub.f32 %v1945, %v4796
        %v4798 = vand.u32 %v4797, 4294901760
        %v4799 = vsub.f32 %v4797, %v4798
        %v4800 = vand.u32 %v4799, 4294901760
        %4801 = vmatmul.f32.gmra.mxu0 %v4800
        %v4802 = vpop.f32.mrf.mxu0
        %v4803 = vadd.f32 0.0, %v4802
        %v4804 = vand.u32 %v1946, 4294901760
        %v4805 = vsub.f32 %v1946, %v4804
        %v4806 = vand.u32 %v4805, 4294901760
        %v4807 = vsub.f32 %v4805, %v4806
        %v4808 = vand.u32 %v4807, 4294901760
        %4809 = vmatmul.f32.gmra.mxu0 %v4808
        %v4810 = vpop.f32.mrf.mxu0
        %v4811 = vadd.f32 0.0, %v4810
        %v4812 = vand.u32 %v1947, 4294901760
        %v4813 = vsub.f32 %v1947, %v4812
        %v4814 = vand.u32 %v4813, 4294901760
        %v4815 = vsub.f32 %v4813, %v4814
        %v4816 = vand.u32 %v4815, 4294901760
        %4817 = vmatmul.f32.gmra.mxu0 %v4816
        %v4818 = vpop.f32.mrf.mxu0
        %v4819 = vadd.f32 0.0, %v4818
        %v4820 = vand.u32 %v1948, 4294901760
        %v4821 = vsub.f32 %v1948, %v4820
        %v4822 = vand.u32 %v4821, 4294901760
        %v4823 = vsub.f32 %v4821, %v4822
        %v4824 = vand.u32 %v4823, 4294901760
        %4825 = vmatmul.f32.gmra.mxu0 %v4824
        %v4826 = vpop.f32.mrf.mxu0
        %v4827 = vadd.f32 0.0, %v4826
        %v4828 = vand.u32 %v1949, 4294901760
        %v4829 = vsub.f32 %v1949, %v4828
        %v4830 = vand.u32 %v4829, 4294901760
        %v4831 = vsub.f32 %v4829, %v4830
        %v4832 = vand.u32 %v4831, 4294901760
        %4833 = vmatmul.f32.gmra.mxu0 %v4832
        %v4834 = vpop.f32.mrf.mxu0
        %v4835 = vadd.f32 0.0, %v4834
        %4836 = vdwg.mxu0
        %v4837 = vand.u32 %v1939, 4294901760
        %v4838 = vsub.f32 %v1939, %v4837
        %v4839 = vand.u32 %v4838, 4294901760
        %v4840 = vsub.f32 %v4838, %v4839
        %v4841 = vand.u32 %v4840, 4294901760
        %4842 = vmatpush.msra.mxu0 %v4841
        %v4843 = vand.u32 %v1931, 4294901760
        %v4844 = vsub.f32 %v1931, %v4843
        %v4845 = vand.u32 %v4844, 4294901760
        %v4846 = vsub.f32 %v4844, %v4845
        %v4847 = vand.u32 %v4846, 4294901760
        %4848 = vmatpush.msra.mxu0 %v4847
        %v4849 = vand.u32 %v1923, 4294901760
        %v4850 = vsub.f32 %v1923, %v4849
        %v4851 = vand.u32 %v4850, 4294901760
        %v4852 = vsub.f32 %v4850, %v4851
        %v4853 = vand.u32 %v4852, 4294901760
        %4854 = vmatpush.msra.mxu0 %v4853
        %v4855 = vand.u32 %v1915, 4294901760
        %v4856 = vsub.f32 %v1915, %v4855
        %v4857 = vand.u32 %v4856, 4294901760
        %v4858 = vsub.f32 %v4856, %v4857
        %v4859 = vand.u32 %v4858, 4294901760
        %4860 = vmatpush.msra.mxu0 %v4859
        %v4861 = vand.u32 %v1907, 4294901760
        %v4862 = vsub.f32 %v1907, %v4861
        %v4863 = vand.u32 %v4862, 4294901760
        %v4864 = vsub.f32 %v4862, %v4863
        %v4865 = vand.u32 %v4864, 4294901760
        %4866 = vmatpush.msra.mxu0 %v4865
        %v4867 = vand.u32 %v1899, 4294901760
        %v4868 = vsub.f32 %v1899, %v4867
        %v4869 = vand.u32 %v4868, 4294901760
        %v4870 = vsub.f32 %v4868, %v4869
        %v4871 = vand.u32 %v4870, 4294901760
        %4872 = vmatpush.msra.mxu0 %v4871
        %v4873 = vand.u32 %v1891, 4294901760
        %v4874 = vsub.f32 %v1891, %v4873
        %v4875 = vand.u32 %v4874, 4294901760
        %v4876 = vsub.f32 %v4874, %v4875
        %v4877 = vand.u32 %v4876, 4294901760
        %4878 = vmatpush.msra.mxu0 %v4877
        %v4879 = vand.u32 %v1883, 4294901760
        %v4880 = vsub.f32 %v1883, %v4879
        %v4881 = vand.u32 %v4880, 4294901760
        %v4882 = vsub.f32 %v4880, %v4881
        %v4883 = vand.u32 %v4882, 4294901760
        %4884 = vmatpush.msra.mxu0 %v4883
        %v4885 = vand.u32 %v1875, 4294901760
        %v4886 = vsub.f32 %v1875, %v4885
        %v4887 = vand.u32 %v4886, 4294901760
        %v4888 = vsub.f32 %v4886, %v4887
        %v4889 = vand.u32 %v4888, 4294901760
        %4890 = vmatpush.msra.mxu0 %v4889
        %v4891 = vand.u32 %v1867, 4294901760
        %v4892 = vsub.f32 %v1867, %v4891
        %v4893 = vand.u32 %v4892, 4294901760
        %v4894 = vsub.f32 %v4892, %v4893
        %v4895 = vand.u32 %v4894, 4294901760
        %4896 = vmatpush.msra.mxu0 %v4895
        %v4897 = vand.u32 %v1859, 4294901760
        %v4898 = vsub.f32 %v1859, %v4897
        %v4899 = vand.u32 %v4898, 4294901760
        %v4900 = vsub.f32 %v4898, %v4899
        %v4901 = vand.u32 %v4900, 4294901760
        %4902 = vmatpush.msra.mxu0 %v4901
        %v4903 = vand.u32 %v1851, 4294901760
        %v4904 = vsub.f32 %v1851, %v4903
        %v4905 = vand.u32 %v4904, 4294901760
        %v4906 = vsub.f32 %v4904, %v4905
        %v4907 = vand.u32 %v4906, 4294901760
        %4908 = vmatpush.msra.mxu0 %v4907
        %v4909 = vand.u32 %v1843, 4294901760
        %v4910 = vsub.f32 %v1843, %v4909
        %v4911 = vand.u32 %v4910, 4294901760
        %v4912 = vsub.f32 %v4910, %v4911
        %v4913 = vand.u32 %v4912, 4294901760
        %4914 = vmatpush.msra.mxu0 %v4913
        %v4915 = vand.u32 %v1835, 4294901760
        %v4916 = vsub.f32 %v1835, %v4915
        %v4917 = vand.u32 %v4916, 4294901760
        %v4918 = vsub.f32 %v4916, %v4917
        %v4919 = vand.u32 %v4918, 4294901760
        %4920 = vmatpush.msra.mxu0 %v4919
        %v4921 = vand.u32 %v1827, 4294901760
        %v4922 = vsub.f32 %v1827, %v4921
        %v4923 = vand.u32 %v4922, 4294901760
        %v4924 = vsub.f32 %v4922, %v4923
        %v4925 = vand.u32 %v4924, 4294901760
        %4926 = vmatpush.msra.mxu0 %v4925
        %v4927 = vand.u32 %v1819, 4294901760
        %v4928 = vsub.f32 %v1819, %v4927
        %v4929 = vand.u32 %v4928, 4294901760
        %v4930 = vsub.f32 %v4928, %v4929
        %v4931 = vand.u32 %v4930, 4294901760
        %4932 = vmatpush.msra.mxu0 %v4931
        %v4933 = vand.u32 %v1942, 4294901760
        %4934 = vmatmul.f32.gmra.mxu0 %v4933
        %v4935 = vpop.f32.mrf.mxu0
        %v4936 = vadd.f32 %v4779, %v4935
        %v4937 = vand.u32 %v1943, 4294901760
        %4938 = vmatmul.f32.gmra.mxu0 %v4937
        %v4939 = vpop.f32.mrf.mxu0
        %v4940 = vadd.f32 %v4787, %v4939
        %v4941 = vand.u32 %v1944, 4294901760
        %4942 = vmatmul.f32.gmra.mxu0 %v4941
        %v4943 = vpop.f32.mrf.mxu0
        %v4944 = vadd.f32 %v4795, %v4943
        %v4945 = vand.u32 %v1945, 4294901760
        %4946 = vmatmul.f32.gmra.mxu0 %v4945
        %v4947 = vpop.f32.mrf.mxu0
        %v4948 = vadd.f32 %v4803, %v4947
        %v4949 = vand.u32 %v1946, 4294901760
        %4950 = vmatmul.f32.gmra.mxu0 %v4949
        %v4951 = vpop.f32.mrf.mxu0
        %v4952 = vadd.f32 %v4811, %v4951
        %v4953 = vand.u32 %v1947, 4294901760
        %4954 = vmatmul.f32.gmra.mxu0 %v4953
        %v4955 = vpop.f32.mrf.mxu0
        %v4956 = vadd.f32 %v4819, %v4955
        %v4957 = vand.u32 %v1948, 4294901760
        %4958 = vmatmul.f32.gmra.mxu0 %v4957
        %v4959 = vpop.f32.mrf.mxu0
        %v4960 = vadd.f32 %v4827, %v4959
        %v4961 = vand.u32 %v1949, 4294901760
        %4962 = vmatmul.f32.gmra.mxu0 %v4961
        %v4963 = vpop.f32.mrf.mxu0
        %v4964 = vadd.f32 %v4835, %v4963
        %4965 = vdwg.mxu0
        %v4966 = vand.u32 %v1939, 4294901760
        %v4967 = vsub.f32 %v1939, %v4966
        %4968 = vmatpush.msra.mxu0 %v4967
        %v4969 = vand.u32 %v1931, 4294901760
        %v4970 = vsub.f32 %v1931, %v4969
        %4971 = vmatpush.msra.mxu0 %v4970
        %v4972 = vand.u32 %v1923, 4294901760
        %v4973 = vsub.f32 %v1923, %v4972
        %4974 = vmatpush.msra.mxu0 %v4973
        %v4975 = vand.u32 %v1915, 4294901760
        %v4976 = vsub.f32 %v1915, %v4975
        %4977 = vmatpush.msra.mxu0 %v4976
        %v4978 = vand.u32 %v1907, 4294901760
        %v4979 = vsub.f32 %v1907, %v4978
        %4980 = vmatpush.msra.mxu0 %v4979
        %v4981 = vand.u32 %v1899, 4294901760
        %v4982 = vsub.f32 %v1899, %v4981
        %4983 = vmatpush.msra.mxu0 %v4982
        %v4984 = vand.u32 %v1891, 4294901760
        %v4985 = vsub.f32 %v1891, %v4984
        %4986 = vmatpush.msra.mxu0 %v4985
        %v4987 = vand.u32 %v1883, 4294901760
        %v4988 = vsub.f32 %v1883, %v4987
        %4989 = vmatpush.msra.mxu0 %v4988
        %v4990 = vand.u32 %v1875, 4294901760
        %v4991 = vsub.f32 %v1875, %v4990
        %4992 = vmatpush.msra.mxu0 %v4991
        %v4993 = vand.u32 %v1867, 4294901760
        %v4994 = vsub.f32 %v1867, %v4993
        %4995 = vmatpush.msra.mxu0 %v4994
        %v4996 = vand.u32 %v1859, 4294901760
        %v4997 = vsub.f32 %v1859, %v4996
        %4998 = vmatpush.msra.mxu0 %v4997
        %v4999 = vand.u32 %v1851, 4294901760
        %v5000 = vsub.f32 %v1851, %v4999
        %5001 = vmatpush.msra.mxu0 %v5000
        %v5002 = vand.u32 %v1843, 4294901760
        %v5003 = vsub.f32 %v1843, %v5002
        %5004 = vmatpush.msra.mxu0 %v5003
        %v5005 = vand.u32 %v1835, 4294901760
        %v5006 = vsub.f32 %v1835, %v5005
        %5007 = vmatpush.msra.mxu0 %v5006
        %v5008 = vand.u32 %v1827, 4294901760
        %v5009 = vsub.f32 %v1827, %v5008
        %5010 = vmatpush.msra.mxu0 %v5009
        %v5011 = vand.u32 %v1819, 4294901760
        %v5012 = vsub.f32 %v1819, %v5011
        %5013 = vmatpush.msra.mxu0 %v5012
        %v5014 = vand.u32 %v1942, 4294901760
        %v5015 = vsub.f32 %v1942, %v5014
        %5016 = vmatmul.f32.gmra.mxu0 %v5015
        %v5017 = vpop.f32.mrf.mxu0
        %v5018 = vadd.f32 %v4936, %v5017
        %v5019 = vand.u32 %v1943, 4294901760
        %v5020 = vsub.f32 %v1943, %v5019
        %5021 = vmatmul.f32.gmra.mxu0 %v5020
        %v5022 = vpop.f32.mrf.mxu0
        %v5023 = vadd.f32 %v4940, %v5022
        %v5024 = vand.u32 %v1944, 4294901760
        %v5025 = vsub.f32 %v1944, %v5024
        %5026 = vmatmul.f32.gmra.mxu0 %v5025
        %v5027 = vpop.f32.mrf.mxu0
        %v5028 = vadd.f32 %v4944, %v5027
        %v5029 = vand.u32 %v1945, 4294901760
        %v5030 = vsub.f32 %v1945, %v5029
        %5031 = vmatmul.f32.gmra.mxu0 %v5030
        %v5032 = vpop.f32.mrf.mxu0
        %v5033 = vadd.f32 %v4948, %v5032
        %v5034 = vand.u32 %v1946, 4294901760
        %v5035 = vsub.f32 %v1946, %v5034
        %5036 = vmatmul.f32.gmra.mxu0 %v5035
        %v5037 = vpop.f32.mrf.mxu0
        %v5038 = vadd.f32 %v4952, %v5037
        %v5039 = vand.u32 %v1947, 4294901760
        %v5040 = vsub.f32 %v1947, %v5039
        %5041 = vmatmul.f32.gmra.mxu0 %v5040
        %v5042 = vpop.f32.mrf.mxu0
        %v5043 = vadd.f32 %v4956, %v5042
        %v5044 = vand.u32 %v1948, 4294901760
        %v5045 = vsub.f32 %v1948, %v5044
        %5046 = vmatmul.f32.gmra.mxu0 %v5045
        %v5047 = vpop.f32.mrf.mxu0
        %v5048 = vadd.f32 %v4960, %v5047
        %v5049 = vand.u32 %v1949, 4294901760
        %v5050 = vsub.f32 %v1949, %v5049
        %5051 = vmatmul.f32.gmra.mxu0 %v5050
        %v5052 = vpop.f32.mrf.mxu0
        %v5053 = vadd.f32 %v4964, %v5052
        %5054 = vdwg.mxu0
        %v5055 = vand.u32 %v1939, 4294901760
        %5056 = vmatpush.msra.mxu0 %v5055
        %v5057 = vand.u32 %v1931, 4294901760
        %5058 = vmatpush.msra.mxu0 %v5057
        %v5059 = vand.u32 %v1923, 4294901760
        %5060 = vmatpush.msra.mxu0 %v5059
        %v5061 = vand.u32 %v1915, 4294901760
        %5062 = vmatpush.msra.mxu0 %v5061
        %v5063 = vand.u32 %v1907, 4294901760
        %5064 = vmatpush.msra.mxu0 %v5063
        %v5065 = vand.u32 %v1899, 4294901760
        %5066 = vmatpush.msra.mxu0 %v5065
        %v5067 = vand.u32 %v1891, 4294901760
        %5068 = vmatpush.msra.mxu0 %v5067
        %v5069 = vand.u32 %v1883, 4294901760
        %5070 = vmatpush.msra.mxu0 %v5069
        %v5071 = vand.u32 %v1875, 4294901760
        %5072 = vmatpush.msra.mxu0 %v5071
        %v5073 = vand.u32 %v1867, 4294901760
        %5074 = vmatpush.msra.mxu0 %v5073
        %v5075 = vand.u32 %v1859, 4294901760
        %5076 = vmatpush.msra.mxu0 %v5075
        %v5077 = vand.u32 %v1851, 4294901760
        %5078 = vmatpush.msra.mxu0 %v5077
        %v5079 = vand.u32 %v1843, 4294901760
        %5080 = vmatpush.msra.mxu0 %v5079
        %v5081 = vand.u32 %v1835, 4294901760
        %5082 = vmatpush.msra.mxu0 %v5081
        %v5083 = vand.u32 %v1827, 4294901760
        %5084 = vmatpush.msra.mxu0 %v5083
        %v5085 = vand.u32 %v1819, 4294901760
        %5086 = vmatpush.msra.mxu0 %v5085
        %v5087 = vand.u32 %v1942, 4294901760
        %v5088 = vsub.f32 %v1942, %v5087
        %v5089 = vand.u32 %v5088, 4294901760
        %5090 = vmatmul.f32.gmra.mxu0 %v5089
        %v5091 = vpop.f32.mrf.mxu0
        %v5092 = vadd.f32 %v5018, %v5091
        %v5093 = vand.u32 %v1943, 4294901760
        %v5094 = vsub.f32 %v1943, %v5093
        %v5095 = vand.u32 %v5094, 4294901760
        %5096 = vmatmul.f32.gmra.mxu0 %v5095
        %v5097 = vpop.f32.mrf.mxu0
        %v5098 = vadd.f32 %v5023, %v5097
        %v5099 = vand.u32 %v1944, 4294901760
        %v5100 = vsub.f32 %v1944, %v5099
        %v5101 = vand.u32 %v5100, 4294901760
        %5102 = vmatmul.f32.gmra.mxu0 %v5101
        %v5103 = vpop.f32.mrf.mxu0
        %v5104 = vadd.f32 %v5028, %v5103
        %v5105 = vand.u32 %v1945, 4294901760
        %v5106 = vsub.f32 %v1945, %v5105
        %v5107 = vand.u32 %v5106, 4294901760
        %5108 = vmatmul.f32.gmra.mxu0 %v5107
        %v5109 = vpop.f32.mrf.mxu0
        %v5110 = vadd.f32 %v5033, %v5109
        %v5111 = vand.u32 %v1946, 4294901760
        %v5112 = vsub.f32 %v1946, %v5111
        %v5113 = vand.u32 %v5112, 4294901760
        %5114 = vmatmul.f32.gmra.mxu0 %v5113
        %v5115 = vpop.f32.mrf.mxu0
        %v5116 = vadd.f32 %v5038, %v5115
        %v5117 = vand.u32 %v1947, 4294901760
        %v5118 = vsub.f32 %v1947, %v5117
        %v5119 = vand.u32 %v5118, 4294901760
        %5120 = vmatmul.f32.gmra.mxu0 %v5119
        %v5121 = vpop.f32.mrf.mxu0
        %v5122 = vadd.f32 %v5043, %v5121
        %v5123 = vand.u32 %v1948, 4294901760
        %v5124 = vsub.f32 %v1948, %v5123
        %v5125 = vand.u32 %v5124, 4294901760
        %5126 = vmatmul.f32.gmra.mxu0 %v5125
        %v5127 = vpop.f32.mrf.mxu0
        %v5128 = vadd.f32 %v5048, %v5127
        %v5129 = vand.u32 %v1949, 4294901760
        %v5130 = vsub.f32 %v1949, %v5129
        %v5131 = vand.u32 %v5130, 4294901760
        %5132 = vmatmul.f32.gmra.mxu0 %v5131
        %v5133 = vpop.f32.mrf.mxu0
        %v5134 = vadd.f32 %v5053, %v5133
        %5135 = vdwg.mxu0
        %v5136 = vand.u32 %v1939, 4294901760
        %v5137 = vsub.f32 %v1939, %v5136
        %v5138 = vand.u32 %v5137, 4294901760
        %5139 = vmatpush.msra.mxu0 %v5138
        %v5140 = vand.u32 %v1931, 4294901760
        %v5141 = vsub.f32 %v1931, %v5140
        %v5142 = vand.u32 %v5141, 4294901760
        %5143 = vmatpush.msra.mxu0 %v5142
        %v5144 = vand.u32 %v1923, 4294901760
        %v5145 = vsub.f32 %v1923, %v5144
        %v5146 = vand.u32 %v5145, 4294901760
        %5147 = vmatpush.msra.mxu0 %v5146
        %v5148 = vand.u32 %v1915, 4294901760
        %v5149 = vsub.f32 %v1915, %v5148
        %v5150 = vand.u32 %v5149, 4294901760
        %5151 = vmatpush.msra.mxu0 %v5150
        %v5152 = vand.u32 %v1907, 4294901760
        %v5153 = vsub.f32 %v1907, %v5152
        %v5154 = vand.u32 %v5153, 4294901760
        %5155 = vmatpush.msra.mxu0 %v5154
        %v5156 = vand.u32 %v1899, 4294901760
        %v5157 = vsub.f32 %v1899, %v5156
        %v5158 = vand.u32 %v5157, 4294901760
        %5159 = vmatpush.msra.mxu0 %v5158
        %v5160 = vand.u32 %v1891, 4294901760
        %v5161 = vsub.f32 %v1891, %v5160
        %v5162 = vand.u32 %v5161, 4294901760
        %5163 = vmatpush.msra.mxu0 %v5162
        %v5164 = vand.u32 %v1883, 4294901760
        %v5165 = vsub.f32 %v1883, %v5164
        %v5166 = vand.u32 %v5165, 4294901760
        %5167 = vmatpush.msra.mxu0 %v5166
        %v5168 = vand.u32 %v1875, 4294901760
        %v5169 = vsub.f32 %v1875, %v5168
        %v5170 = vand.u32 %v5169, 4294901760
        %5171 = vmatpush.msra.mxu0 %v5170
        %v5172 = vand.u32 %v1867, 4294901760
        %v5173 = vsub.f32 %v1867, %v5172
        %v5174 = vand.u32 %v5173, 4294901760
        %5175 = vmatpush.msra.mxu0 %v5174
        %v5176 = vand.u32 %v1859, 4294901760
        %v5177 = vsub.f32 %v1859, %v5176
        %v5178 = vand.u32 %v5177, 4294901760
        %5179 = vmatpush.msra.mxu0 %v5178
        %v5180 = vand.u32 %v1851, 4294901760
        %v5181 = vsub.f32 %v1851, %v5180
        %v5182 = vand.u32 %v5181, 4294901760
        %5183 = vmatpush.msra.mxu0 %v5182
        %v5184 = vand.u32 %v1843, 4294901760
        %v5185 = vsub.f32 %v1843, %v5184
        %v5186 = vand.u32 %v5185, 4294901760
        %5187 = vmatpush.msra.mxu0 %v5186
        %v5188 = vand.u32 %v1835, 4294901760
        %v5189 = vsub.f32 %v1835, %v5188
        %v5190 = vand.u32 %v5189, 4294901760
        %5191 = vmatpush.msra.mxu0 %v5190
        %v5192 = vand.u32 %v1827, 4294901760
        %v5193 = vsub.f32 %v1827, %v5192
        %v5194 = vand.u32 %v5193, 4294901760
        %5195 = vmatpush.msra.mxu0 %v5194
        %v5196 = vand.u32 %v1819, 4294901760
        %v5197 = vsub.f32 %v1819, %v5196
        %v5198 = vand.u32 %v5197, 4294901760
        %5199 = vmatpush.msra.mxu0 %v5198
        %v5200 = vand.u32 %v1942, 4294901760
        %5201 = vmatmul.f32.gmra.mxu0 %v5200
        %v5202 = vpop.f32.mrf.mxu0
        %v5203 = vadd.f32 %v5092, %v5202
        %v5204 = vand.u32 %v1943, 4294901760
        %5205 = vmatmul.f32.gmra.mxu0 %v5204
        %v5206 = vpop.f32.mrf.mxu0
        %v5207 = vadd.f32 %v5098, %v5206
        %v5208 = vand.u32 %v1944, 4294901760
        %5209 = vmatmul.f32.gmra.mxu0 %v5208
        %v5210 = vpop.f32.mrf.mxu0
        %v5211 = vadd.f32 %v5104, %v5210
        %v5212 = vand.u32 %v1945, 4294901760
        %5213 = vmatmul.f32.gmra.mxu0 %v5212
        %v5214 = vpop.f32.mrf.mxu0
        %v5215 = vadd.f32 %v5110, %v5214
        %v5216 = vand.u32 %v1946, 4294901760
        %5217 = vmatmul.f32.gmra.mxu0 %v5216
        %v5218 = vpop.f32.mrf.mxu0
        %v5219 = vadd.f32 %v5116, %v5218
        %v5220 = vand.u32 %v1947, 4294901760
        %5221 = vmatmul.f32.gmra.mxu0 %v5220
        %v5222 = vpop.f32.mrf.mxu0
        %v5223 = vadd.f32 %v5122, %v5222
        %v5224 = vand.u32 %v1948, 4294901760
        %5225 = vmatmul.f32.gmra.mxu0 %v5224
        %v5226 = vpop.f32.mrf.mxu0
        %v5227 = vadd.f32 %v5128, %v5226
        %v5228 = vand.u32 %v1949, 4294901760
        %5229 = vmatmul.f32.gmra.mxu0 %v5228
        %v5230 = vpop.f32.mrf.mxu0
        %v5231 = vadd.f32 %v5134, %v5230
        %5232 = vdwg.mxu0
        %v5233 = vand.u32 %v1939, 4294901760
        %5234 = vmatpush.msra.mxu0 %v5233
        %v5235 = vand.u32 %v1931, 4294901760
        %5236 = vmatpush.msra.mxu0 %v5235
        %v5237 = vand.u32 %v1923, 4294901760
        %5238 = vmatpush.msra.mxu0 %v5237
        %v5239 = vand.u32 %v1915, 4294901760
        %5240 = vmatpush.msra.mxu0 %v5239
        %v5241 = vand.u32 %v1907, 4294901760
        %5242 = vmatpush.msra.mxu0 %v5241
        %v5243 = vand.u32 %v1899, 4294901760
        %5244 = vmatpush.msra.mxu0 %v5243
        %v5245 = vand.u32 %v1891, 4294901760
        %5246 = vmatpush.msra.mxu0 %v5245
        %v5247 = vand.u32 %v1883, 4294901760
        %5248 = vmatpush.msra.mxu0 %v5247
        %v5249 = vand.u32 %v1875, 4294901760
        %5250 = vmatpush.msra.mxu0 %v5249
        %v5251 = vand.u32 %v1867, 4294901760
        %5252 = vmatpush.msra.mxu0 %v5251
        %v5253 = vand.u32 %v1859, 4294901760
        %5254 = vmatpush.msra.mxu0 %v5253
        %v5255 = vand.u32 %v1851, 4294901760
        %5256 = vmatpush.msra.mxu0 %v5255
        %v5257 = vand.u32 %v1843, 4294901760
        %5258 = vmatpush.msra.mxu0 %v5257
        %v5259 = vand.u32 %v1835, 4294901760
        %5260 = vmatpush.msra.mxu0 %v5259
        %v5261 = vand.u32 %v1827, 4294901760
        %5262 = vmatpush.msra.mxu0 %v5261
        %v5263 = vand.u32 %v1819, 4294901760
        %5264 = vmatpush.msra.mxu0 %v5263
        %v5265 = vand.u32 %v1942, 4294901760
        %5266 = vmatmul.f32.gmra.mxu0 %v5265
        %v5267 = vpop.f32.mrf.mxu0
        %v5268 = vadd.f32 %v5203, %v5267
        %v5269 = vand.u32 %v1943, 4294901760
        %5270 = vmatmul.f32.gmra.mxu0 %v5269
        %v5271 = vpop.f32.mrf.mxu0
        %v5272 = vadd.f32 %v5207, %v5271
        %v5273 = vand.u32 %v1944, 4294901760
        %5274 = vmatmul.f32.gmra.mxu0 %v5273
        %v5275 = vpop.f32.mrf.mxu0
        %v5276 = vadd.f32 %v5211, %v5275
        %v5277 = vand.u32 %v1945, 4294901760
        %5278 = vmatmul.f32.gmra.mxu0 %v5277
        %v5279 = vpop.f32.mrf.mxu0
        %v5280 = vadd.f32 %v5215, %v5279
        %v5281 = vand.u32 %v1946, 4294901760
        %5282 = vmatmul.f32.gmra.mxu0 %v5281
        %v5283 = vpop.f32.mrf.mxu0
        %v5284 = vadd.f32 %v5219, %v5283
        %v5285 = vand.u32 %v1947, 4294901760
        %5286 = vmatmul.f32.gmra.mxu0 %v5285
        %v5287 = vpop.f32.mrf.mxu0
        %v5288 = vadd.f32 %v5223, %v5287
        %v5289 = vand.u32 %v1948, 4294901760
        %5290 = vmatmul.f32.gmra.mxu0 %v5289
        %v5291 = vpop.f32.mrf.mxu0
        %v5292 = vadd.f32 %v5227, %v5291
        %v5293 = vand.u32 %v1949, 4294901760
        %5294 = vmatmul.f32.gmra.mxu0 %v5293
        %v5295 = vpop.f32.mrf.mxu0
        %v5296 = vadd.f32 %v5231, %v5295
        %5297 = vdwg.mxu0
        %v5298 = vand.u32 %v1940, 4294901760
        %5299 = vmatpush.msra.mxu0 %v5298
        %v5300 = vand.u32 %v1932, 4294901760
        %5301 = vmatpush.msra.mxu0 %v5300
        %v5302 = vand.u32 %v1924, 4294901760
        %5303 = vmatpush.msra.mxu0 %v5302
        %v5304 = vand.u32 %v1916, 4294901760
        %5305 = vmatpush.msra.mxu0 %v5304
        %v5306 = vand.u32 %v1908, 4294901760
        %5307 = vmatpush.msra.mxu0 %v5306
        %v5308 = vand.u32 %v1900, 4294901760
        %5309 = vmatpush.msra.mxu0 %v5308
        %v5310 = vand.u32 %v1892, 4294901760
        %5311 = vmatpush.msra.mxu0 %v5310
        %v5312 = vand.u32 %v1884, 4294901760
        %5313 = vmatpush.msra.mxu0 %v5312
        %v5314 = vand.u32 %v1876, 4294901760
        %5315 = vmatpush.msra.mxu0 %v5314
        %v5316 = vand.u32 %v1868, 4294901760
        %5317 = vmatpush.msra.mxu0 %v5316
        %v5318 = vand.u32 %v1860, 4294901760
        %5319 = vmatpush.msra.mxu0 %v5318
        %v5320 = vand.u32 %v1852, 4294901760
        %5321 = vmatpush.msra.mxu0 %v5320
        %v5322 = vand.u32 %v1844, 4294901760
        %5323 = vmatpush.msra.mxu0 %v5322
        %v5324 = vand.u32 %v1836, 4294901760
        %5325 = vmatpush.msra.mxu0 %v5324
        %v5326 = vand.u32 %v1828, 4294901760
        %5327 = vmatpush.msra.mxu0 %v5326
        %v5328 = vand.u32 %v1820, 4294901760
        %5329 = vmatpush.msra.mxu0 %v5328
        %v5330 = vand.u32 %v1942, 4294901760
        %v5331 = vsub.f32 %v1942, %v5330
        %v5332 = vand.u32 %v5331, 4294901760
        %v5333 = vsub.f32 %v5331, %v5332
        %v5334 = vand.u32 %v5333, 4294901760
        %5335 = vmatmul.f32.gmra.mxu0 %v5334
        %v5336 = vpop.f32.mrf.mxu0
        %v5337 = vadd.f32 0.0, %v5336
        %v5338 = vand.u32 %v1943, 4294901760
        %v5339 = vsub.f32 %v1943, %v5338
        %v5340 = vand.u32 %v5339, 4294901760
        %v5341 = vsub.f32 %v5339, %v5340
        %v5342 = vand.u32 %v5341, 4294901760
        %5343 = vmatmul.f32.gmra.mxu0 %v5342
        %v5344 = vpop.f32.mrf.mxu0
        %v5345 = vadd.f32 0.0, %v5344
        %v5346 = vand.u32 %v1944, 4294901760
        %v5347 = vsub.f32 %v1944, %v5346
        %v5348 = vand.u32 %v5347, 4294901760
        %v5349 = vsub.f32 %v5347, %v5348
        %v5350 = vand.u32 %v5349, 4294901760
        %5351 = vmatmul.f32.gmra.mxu0 %v5350
        %v5352 = vpop.f32.mrf.mxu0
        %v5353 = vadd.f32 0.0, %v5352
        %v5354 = vand.u32 %v1945, 4294901760
        %v5355 = vsub.f32 %v1945, %v5354
        %v5356 = vand.u32 %v5355, 4294901760
        %v5357 = vsub.f32 %v5355, %v5356
        %v5358 = vand.u32 %v5357, 4294901760
        %5359 = vmatmul.f32.gmra.mxu0 %v5358
        %v5360 = vpop.f32.mrf.mxu0
        %v5361 = vadd.f32 0.0, %v5360
        %v5362 = vand.u32 %v1946, 4294901760
        %v5363 = vsub.f32 %v1946, %v5362
        %v5364 = vand.u32 %v5363, 4294901760
        %v5365 = vsub.f32 %v5363, %v5364
        %v5366 = vand.u32 %v5365, 4294901760
        %5367 = vmatmul.f32.gmra.mxu0 %v5366
        %v5368 = vpop.f32.mrf.mxu0
        %v5369 = vadd.f32 0.0, %v5368
        %v5370 = vand.u32 %v1947, 4294901760
        %v5371 = vsub.f32 %v1947, %v5370
        %v5372 = vand.u32 %v5371, 4294901760
        %v5373 = vsub.f32 %v5371, %v5372
        %v5374 = vand.u32 %v5373, 4294901760
        %5375 = vmatmul.f32.gmra.mxu0 %v5374
        %v5376 = vpop.f32.mrf.mxu0
        %v5377 = vadd.f32 0.0, %v5376
        %v5378 = vand.u32 %v1948, 4294901760
        %v5379 = vsub.f32 %v1948, %v5378
        %v5380 = vand.u32 %v5379, 4294901760
        %v5381 = vsub.f32 %v5379, %v5380
        %v5382 = vand.u32 %v5381, 4294901760
        %5383 = vmatmul.f32.gmra.mxu0 %v5382
        %v5384 = vpop.f32.mrf.mxu0
        %v5385 = vadd.f32 0.0, %v5384
        %v5386 = vand.u32 %v1949, 4294901760
        %v5387 = vsub.f32 %v1949, %v5386
        %v5388 = vand.u32 %v5387, 4294901760
        %v5389 = vsub.f32 %v5387, %v5388
        %v5390 = vand.u32 %v5389, 4294901760
        %5391 = vmatmul.f32.gmra.mxu0 %v5390
        %v5392 = vpop.f32.mrf.mxu0
        %v5393 = vadd.f32 0.0, %v5392
        %5394 = vdwg.mxu0
        %v5395 = vand.u32 %v1940, 4294901760
        %v5396 = vsub.f32 %v1940, %v5395
        %v5397 = vand.u32 %v5396, 4294901760
        %v5398 = vsub.f32 %v5396, %v5397
        %v5399 = vand.u32 %v5398, 4294901760
        %5400 = vmatpush.msra.mxu0 %v5399
        %v5401 = vand.u32 %v1932, 4294901760
        %v5402 = vsub.f32 %v1932, %v5401
        %v5403 = vand.u32 %v5402, 4294901760
        %v5404 = vsub.f32 %v5402, %v5403
        %v5405 = vand.u32 %v5404, 4294901760
        %5406 = vmatpush.msra.mxu0 %v5405
        %v5407 = vand.u32 %v1924, 4294901760
        %v5408 = vsub.f32 %v1924, %v5407
        %v5409 = vand.u32 %v5408, 4294901760
        %v5410 = vsub.f32 %v5408, %v5409
        %v5411 = vand.u32 %v5410, 4294901760
        %5412 = vmatpush.msra.mxu0 %v5411
        %v5413 = vand.u32 %v1916, 4294901760
        %v5414 = vsub.f32 %v1916, %v5413
        %v5415 = vand.u32 %v5414, 4294901760
        %v5416 = vsub.f32 %v5414, %v5415
        %v5417 = vand.u32 %v5416, 4294901760
        %5418 = vmatpush.msra.mxu0 %v5417
        %v5419 = vand.u32 %v1908, 4294901760
        %v5420 = vsub.f32 %v1908, %v5419
        %v5421 = vand.u32 %v5420, 4294901760
        %v5422 = vsub.f32 %v5420, %v5421
        %v5423 = vand.u32 %v5422, 4294901760
        %5424 = vmatpush.msra.mxu0 %v5423
        %v5425 = vand.u32 %v1900, 4294901760
        %v5426 = vsub.f32 %v1900, %v5425
        %v5427 = vand.u32 %v5426, 4294901760
        %v5428 = vsub.f32 %v5426, %v5427
        %v5429 = vand.u32 %v5428, 4294901760
        %5430 = vmatpush.msra.mxu0 %v5429
        %v5431 = vand.u32 %v1892, 4294901760
        %v5432 = vsub.f32 %v1892, %v5431
        %v5433 = vand.u32 %v5432, 4294901760
        %v5434 = vsub.f32 %v5432, %v5433
        %v5435 = vand.u32 %v5434, 4294901760
        %5436 = vmatpush.msra.mxu0 %v5435
        %v5437 = vand.u32 %v1884, 4294901760
        %v5438 = vsub.f32 %v1884, %v5437
        %v5439 = vand.u32 %v5438, 4294901760
        %v5440 = vsub.f32 %v5438, %v5439
        %v5441 = vand.u32 %v5440, 4294901760
        %5442 = vmatpush.msra.mxu0 %v5441
        %v5443 = vand.u32 %v1876, 4294901760
        %v5444 = vsub.f32 %v1876, %v5443
        %v5445 = vand.u32 %v5444, 4294901760
        %v5446 = vsub.f32 %v5444, %v5445
        %v5447 = vand.u32 %v5446, 4294901760
        %5448 = vmatpush.msra.mxu0 %v5447
        %v5449 = vand.u32 %v1868, 4294901760
        %v5450 = vsub.f32 %v1868, %v5449
        %v5451 = vand.u32 %v5450, 4294901760
        %v5452 = vsub.f32 %v5450, %v5451
        %v5453 = vand.u32 %v5452, 4294901760
        %5454 = vmatpush.msra.mxu0 %v5453
        %v5455 = vand.u32 %v1860, 4294901760
        %v5456 = vsub.f32 %v1860, %v5455
        %v5457 = vand.u32 %v5456, 4294901760
        %v5458 = vsub.f32 %v5456, %v5457
        %v5459 = vand.u32 %v5458, 4294901760
        %5460 = vmatpush.msra.mxu0 %v5459
        %v5461 = vand.u32 %v1852, 4294901760
        %v5462 = vsub.f32 %v1852, %v5461
        %v5463 = vand.u32 %v5462, 4294901760
        %v5464 = vsub.f32 %v5462, %v5463
        %v5465 = vand.u32 %v5464, 4294901760
        %5466 = vmatpush.msra.mxu0 %v5465
        %v5467 = vand.u32 %v1844, 4294901760
        %v5468 = vsub.f32 %v1844, %v5467
        %v5469 = vand.u32 %v5468, 4294901760
        %v5470 = vsub.f32 %v5468, %v5469
        %v5471 = vand.u32 %v5470, 4294901760
        %5472 = vmatpush.msra.mxu0 %v5471
        %v5473 = vand.u32 %v1836, 4294901760
        %v5474 = vsub.f32 %v1836, %v5473
        %v5475 = vand.u32 %v5474, 4294901760
        %v5476 = vsub.f32 %v5474, %v5475
        %v5477 = vand.u32 %v5476, 4294901760
        %5478 = vmatpush.msra.mxu0 %v5477
        %v5479 = vand.u32 %v1828, 4294901760
        %v5480 = vsub.f32 %v1828, %v5479
        %v5481 = vand.u32 %v5480, 4294901760
        %v5482 = vsub.f32 %v5480, %v5481
        %v5483 = vand.u32 %v5482, 4294901760
        %5484 = vmatpush.msra.mxu0 %v5483
        %v5485 = vand.u32 %v1820, 4294901760
        %v5486 = vsub.f32 %v1820, %v5485
        %v5487 = vand.u32 %v5486, 4294901760
        %v5488 = vsub.f32 %v5486, %v5487
        %v5489 = vand.u32 %v5488, 4294901760
        %5490 = vmatpush.msra.mxu0 %v5489
        %v5491 = vand.u32 %v1942, 4294901760
        %5492 = vmatmul.f32.gmra.mxu0 %v5491
        %v5493 = vpop.f32.mrf.mxu0
        %v5494 = vadd.f32 %v5337, %v5493
        %v5495 = vand.u32 %v1943, 4294901760
        %5496 = vmatmul.f32.gmra.mxu0 %v5495
        %v5497 = vpop.f32.mrf.mxu0
        %v5498 = vadd.f32 %v5345, %v5497
        %v5499 = vand.u32 %v1944, 4294901760
        %5500 = vmatmul.f32.gmra.mxu0 %v5499
        %v5501 = vpop.f32.mrf.mxu0
        %v5502 = vadd.f32 %v5353, %v5501
        %v5503 = vand.u32 %v1945, 4294901760
        %5504 = vmatmul.f32.gmra.mxu0 %v5503
        %v5505 = vpop.f32.mrf.mxu0
        %v5506 = vadd.f32 %v5361, %v5505
        %v5507 = vand.u32 %v1946, 4294901760
        %5508 = vmatmul.f32.gmra.mxu0 %v5507
        %v5509 = vpop.f32.mrf.mxu0
        %v5510 = vadd.f32 %v5369, %v5509
        %v5511 = vand.u32 %v1947, 4294901760
        %5512 = vmatmul.f32.gmra.mxu0 %v5511
        %v5513 = vpop.f32.mrf.mxu0
        %v5514 = vadd.f32 %v5377, %v5513
        %v5515 = vand.u32 %v1948, 4294901760
        %5516 = vmatmul.f32.gmra.mxu0 %v5515
        %v5517 = vpop.f32.mrf.mxu0
        %v5518 = vadd.f32 %v5385, %v5517
        %v5519 = vand.u32 %v1949, 4294901760
        %5520 = vmatmul.f32.gmra.mxu0 %v5519
        %v5521 = vpop.f32.mrf.mxu0
        %v5522 = vadd.f32 %v5393, %v5521
        %5523 = vdwg.mxu0
        %v5524 = vand.u32 %v1940, 4294901760
        %v5525 = vsub.f32 %v1940, %v5524
        %5526 = vmatpush.msra.mxu0 %v5525
        %v5527 = vand.u32 %v1932, 4294901760
        %v5528 = vsub.f32 %v1932, %v5527
        %5529 = vmatpush.msra.mxu0 %v5528
        %v5530 = vand.u32 %v1924, 4294901760
        %v5531 = vsub.f32 %v1924, %v5530
        %5532 = vmatpush.msra.mxu0 %v5531
        %v5533 = vand.u32 %v1916, 4294901760
        %v5534 = vsub.f32 %v1916, %v5533
        %5535 = vmatpush.msra.mxu0 %v5534
        %v5536 = vand.u32 %v1908, 4294901760
        %v5537 = vsub.f32 %v1908, %v5536
        %5538 = vmatpush.msra.mxu0 %v5537
        %v5539 = vand.u32 %v1900, 4294901760
        %v5540 = vsub.f32 %v1900, %v5539
        %5541 = vmatpush.msra.mxu0 %v5540
        %v5542 = vand.u32 %v1892, 4294901760
        %v5543 = vsub.f32 %v1892, %v5542
        %5544 = vmatpush.msra.mxu0 %v5543
        %v5545 = vand.u32 %v1884, 4294901760
        %v5546 = vsub.f32 %v1884, %v5545
        %5547 = vmatpush.msra.mxu0 %v5546
        %v5548 = vand.u32 %v1876, 4294901760
        %v5549 = vsub.f32 %v1876, %v5548
        %5550 = vmatpush.msra.mxu0 %v5549
        %v5551 = vand.u32 %v1868, 4294901760
        %v5552 = vsub.f32 %v1868, %v5551
        %5553 = vmatpush.msra.mxu0 %v5552
        %v5554 = vand.u32 %v1860, 4294901760
        %v5555 = vsub.f32 %v1860, %v5554
        %5556 = vmatpush.msra.mxu0 %v5555
        %v5557 = vand.u32 %v1852, 4294901760
        %v5558 = vsub.f32 %v1852, %v5557
        %5559 = vmatpush.msra.mxu0 %v5558
        %v5560 = vand.u32 %v1844, 4294901760
        %v5561 = vsub.f32 %v1844, %v5560
        %5562 = vmatpush.msra.mxu0 %v5561
        %v5563 = vand.u32 %v1836, 4294901760
        %v5564 = vsub.f32 %v1836, %v5563
        %5565 = vmatpush.msra.mxu0 %v5564
        %v5566 = vand.u32 %v1828, 4294901760
        %v5567 = vsub.f32 %v1828, %v5566
        %5568 = vmatpush.msra.mxu0 %v5567
        %v5569 = vand.u32 %v1820, 4294901760
        %v5570 = vsub.f32 %v1820, %v5569
        %5571 = vmatpush.msra.mxu0 %v5570
        %v5572 = vand.u32 %v1942, 4294901760
        %v5573 = vsub.f32 %v1942, %v5572
        %5574 = vmatmul.f32.gmra.mxu0 %v5573
        %v5575 = vpop.f32.mrf.mxu0
        %v5576 = vadd.f32 %v5494, %v5575
        %v5577 = vand.u32 %v1943, 4294901760
        %v5578 = vsub.f32 %v1943, %v5577
        %5579 = vmatmul.f32.gmra.mxu0 %v5578
        %v5580 = vpop.f32.mrf.mxu0
        %v5581 = vadd.f32 %v5498, %v5580
        %v5582 = vand.u32 %v1944, 4294901760
        %v5583 = vsub.f32 %v1944, %v5582
        %5584 = vmatmul.f32.gmra.mxu0 %v5583
        %v5585 = vpop.f32.mrf.mxu0
        %v5586 = vadd.f32 %v5502, %v5585
        %v5587 = vand.u32 %v1945, 4294901760
        %v5588 = vsub.f32 %v1945, %v5587
        %5589 = vmatmul.f32.gmra.mxu0 %v5588
        %v5590 = vpop.f32.mrf.mxu0
        %v5591 = vadd.f32 %v5506, %v5590
        %v5592 = vand.u32 %v1946, 4294901760
        %v5593 = vsub.f32 %v1946, %v5592
        %5594 = vmatmul.f32.gmra.mxu0 %v5593
        %v5595 = vpop.f32.mrf.mxu0
        %v5596 = vadd.f32 %v5510, %v5595
        %v5597 = vand.u32 %v1947, 4294901760
        %v5598 = vsub.f32 %v1947, %v5597
        %5599 = vmatmul.f32.gmra.mxu0 %v5598
        %v5600 = vpop.f32.mrf.mxu0
        %v5601 = vadd.f32 %v5514, %v5600
        %v5602 = vand.u32 %v1948, 4294901760
        %v5603 = vsub.f32 %v1948, %v5602
        %5604 = vmatmul.f32.gmra.mxu0 %v5603
        %v5605 = vpop.f32.mrf.mxu0
        %v5606 = vadd.f32 %v5518, %v5605
        %v5607 = vand.u32 %v1949, 4294901760
        %v5608 = vsub.f32 %v1949, %v5607
        %5609 = vmatmul.f32.gmra.mxu0 %v5608
        %v5610 = vpop.f32.mrf.mxu0
        %v5611 = vadd.f32 %v5522, %v5610
        %5612 = vdwg.mxu0
        %v5613 = vand.u32 %v1940, 4294901760
        %5614 = vmatpush.msra.mxu0 %v5613
        %v5615 = vand.u32 %v1932, 4294901760
        %5616 = vmatpush.msra.mxu0 %v5615
        %v5617 = vand.u32 %v1924, 4294901760
        %5618 = vmatpush.msra.mxu0 %v5617
        %v5619 = vand.u32 %v1916, 4294901760
        %5620 = vmatpush.msra.mxu0 %v5619
        %v5621 = vand.u32 %v1908, 4294901760
        %5622 = vmatpush.msra.mxu0 %v5621
        %v5623 = vand.u32 %v1900, 4294901760
        %5624 = vmatpush.msra.mxu0 %v5623
        %v5625 = vand.u32 %v1892, 4294901760
        %5626 = vmatpush.msra.mxu0 %v5625
        %v5627 = vand.u32 %v1884, 4294901760
        %5628 = vmatpush.msra.mxu0 %v5627
        %v5629 = vand.u32 %v1876, 4294901760
        %5630 = vmatpush.msra.mxu0 %v5629
        %v5631 = vand.u32 %v1868, 4294901760
        %5632 = vmatpush.msra.mxu0 %v5631
        %v5633 = vand.u32 %v1860, 4294901760
        %5634 = vmatpush.msra.mxu0 %v5633
        %v5635 = vand.u32 %v1852, 4294901760
        %5636 = vmatpush.msra.mxu0 %v5635
        %v5637 = vand.u32 %v1844, 4294901760
        %5638 = vmatpush.msra.mxu0 %v5637
        %v5639 = vand.u32 %v1836, 4294901760
        %5640 = vmatpush.msra.mxu0 %v5639
        %v5641 = vand.u32 %v1828, 4294901760
        %5642 = vmatpush.msra.mxu0 %v5641
        %v5643 = vand.u32 %v1820, 4294901760
        %5644 = vmatpush.msra.mxu0 %v5643
        %v5645 = vand.u32 %v1942, 4294901760
        %v5646 = vsub.f32 %v1942, %v5645
        %v5647 = vand.u32 %v5646, 4294901760
        %5648 = vmatmul.f32.gmra.mxu0 %v5647
        %v5649 = vpop.f32.mrf.mxu0
        %v5650 = vadd.f32 %v5576, %v5649
        %v5651 = vand.u32 %v1943, 4294901760
        %v5652 = vsub.f32 %v1943, %v5651
        %v5653 = vand.u32 %v5652, 4294901760
        %5654 = vmatmul.f32.gmra.mxu0 %v5653
        %v5655 = vpop.f32.mrf.mxu0
        %v5656 = vadd.f32 %v5581, %v5655
        %v5657 = vand.u32 %v1944, 4294901760
        %v5658 = vsub.f32 %v1944, %v5657
        %v5659 = vand.u32 %v5658, 4294901760
        %5660 = vmatmul.f32.gmra.mxu0 %v5659
        %v5661 = vpop.f32.mrf.mxu0
        %v5662 = vadd.f32 %v5586, %v5661
        %v5663 = vand.u32 %v1945, 4294901760
        %v5664 = vsub.f32 %v1945, %v5663
        %v5665 = vand.u32 %v5664, 4294901760
        %5666 = vmatmul.f32.gmra.mxu0 %v5665
        %v5667 = vpop.f32.mrf.mxu0
        %v5668 = vadd.f32 %v5591, %v5667
        %v5669 = vand.u32 %v1946, 4294901760
        %v5670 = vsub.f32 %v1946, %v5669
        %v5671 = vand.u32 %v5670, 4294901760
        %5672 = vmatmul.f32.gmra.mxu0 %v5671
        %v5673 = vpop.f32.mrf.mxu0
        %v5674 = vadd.f32 %v5596, %v5673
        %v5675 = vand.u32 %v1947, 4294901760
        %v5676 = vsub.f32 %v1947, %v5675
        %v5677 = vand.u32 %v5676, 4294901760
        %5678 = vmatmul.f32.gmra.mxu0 %v5677
        %v5679 = vpop.f32.mrf.mxu0
        %v5680 = vadd.f32 %v5601, %v5679
        %v5681 = vand.u32 %v1948, 4294901760
        %v5682 = vsub.f32 %v1948, %v5681
        %v5683 = vand.u32 %v5682, 4294901760
        %5684 = vmatmul.f32.gmra.mxu0 %v5683
        %v5685 = vpop.f32.mrf.mxu0
        %v5686 = vadd.f32 %v5606, %v5685
        %v5687 = vand.u32 %v1949, 4294901760
        %v5688 = vsub.f32 %v1949, %v5687
        %v5689 = vand.u32 %v5688, 4294901760
        %5690 = vmatmul.f32.gmra.mxu0 %v5689
        %v5691 = vpop.f32.mrf.mxu0
        %v5692 = vadd.f32 %v5611, %v5691
        %5693 = vdwg.mxu0
        %v5694 = vand.u32 %v1940, 4294901760
        %v5695 = vsub.f32 %v1940, %v5694
        %v5696 = vand.u32 %v5695, 4294901760
        %5697 = vmatpush.msra.mxu0 %v5696
        %v5698 = vand.u32 %v1932, 4294901760
        %v5699 = vsub.f32 %v1932, %v5698
        %v5700 = vand.u32 %v5699, 4294901760
        %5701 = vmatpush.msra.mxu0 %v5700
        %v5702 = vand.u32 %v1924, 4294901760
        %v5703 = vsub.f32 %v1924, %v5702
        %v5704 = vand.u32 %v5703, 4294901760
        %5705 = vmatpush.msra.mxu0 %v5704
        %v5706 = vand.u32 %v1916, 4294901760
        %v5707 = vsub.f32 %v1916, %v5706
        %v5708 = vand.u32 %v5707, 4294901760
        %5709 = vmatpush.msra.mxu0 %v5708
        %v5710 = vand.u32 %v1908, 4294901760
        %v5711 = vsub.f32 %v1908, %v5710
        %v5712 = vand.u32 %v5711, 4294901760
        %5713 = vmatpush.msra.mxu0 %v5712
        %v5714 = vand.u32 %v1900, 4294901760
        %v5715 = vsub.f32 %v1900, %v5714
        %v5716 = vand.u32 %v5715, 4294901760
        %5717 = vmatpush.msra.mxu0 %v5716
        %v5718 = vand.u32 %v1892, 4294901760
        %v5719 = vsub.f32 %v1892, %v5718
        %v5720 = vand.u32 %v5719, 4294901760
        %5721 = vmatpush.msra.mxu0 %v5720
        %v5722 = vand.u32 %v1884, 4294901760
        %v5723 = vsub.f32 %v1884, %v5722
        %v5724 = vand.u32 %v5723, 4294901760
        %5725 = vmatpush.msra.mxu0 %v5724
        %v5726 = vand.u32 %v1876, 4294901760
        %v5727 = vsub.f32 %v1876, %v5726
        %v5728 = vand.u32 %v5727, 4294901760
        %5729 = vmatpush.msra.mxu0 %v5728
        %v5730 = vand.u32 %v1868, 4294901760
        %v5731 = vsub.f32 %v1868, %v5730
        %v5732 = vand.u32 %v5731, 4294901760
        %5733 = vmatpush.msra.mxu0 %v5732
        %v5734 = vand.u32 %v1860, 4294901760
        %v5735 = vsub.f32 %v1860, %v5734
        %v5736 = vand.u32 %v5735, 4294901760
        %5737 = vmatpush.msra.mxu0 %v5736
        %v5738 = vand.u32 %v1852, 4294901760
        %v5739 = vsub.f32 %v1852, %v5738
        %v5740 = vand.u32 %v5739, 4294901760
        %5741 = vmatpush.msra.mxu0 %v5740
        %v5742 = vand.u32 %v1844, 4294901760
        %v5743 = vsub.f32 %v1844, %v5742
        %v5744 = vand.u32 %v5743, 4294901760
        %5745 = vmatpush.msra.mxu0 %v5744
        %v5746 = vand.u32 %v1836, 4294901760
        %v5747 = vsub.f32 %v1836, %v5746
        %v5748 = vand.u32 %v5747, 4294901760
        %5749 = vmatpush.msra.mxu0 %v5748
        %v5750 = vand.u32 %v1828, 4294901760
        %v5751 = vsub.f32 %v1828, %v5750
        %v5752 = vand.u32 %v5751, 4294901760
        %5753 = vmatpush.msra.mxu0 %v5752
        %v5754 = vand.u32 %v1820, 4294901760
        %v5755 = vsub.f32 %v1820, %v5754
        %v5756 = vand.u32 %v5755, 4294901760
        %5757 = vmatpush.msra.mxu0 %v5756
        %v5758 = vand.u32 %v1942, 4294901760
        %5759 = vmatmul.f32.gmra.mxu0 %v5758
        %v5760 = vpop.f32.mrf.mxu0
        %v5761 = vadd.f32 %v5650, %v5760
        %v5762 = vand.u32 %v1943, 4294901760
        %5763 = vmatmul.f32.gmra.mxu0 %v5762
        %v5764 = vpop.f32.mrf.mxu0
        %v5765 = vadd.f32 %v5656, %v5764
        %v5766 = vand.u32 %v1944, 4294901760
        %5767 = vmatmul.f32.gmra.mxu0 %v5766
        %v5768 = vpop.f32.mrf.mxu0
        %v5769 = vadd.f32 %v5662, %v5768
        %v5770 = vand.u32 %v1945, 4294901760
        %5771 = vmatmul.f32.gmra.mxu0 %v5770
        %v5772 = vpop.f32.mrf.mxu0
        %v5773 = vadd.f32 %v5668, %v5772
        %v5774 = vand.u32 %v1946, 4294901760
        %5775 = vmatmul.f32.gmra.mxu0 %v5774
        %v5776 = vpop.f32.mrf.mxu0
        %v5777 = vadd.f32 %v5674, %v5776
        %v5778 = vand.u32 %v1947, 4294901760
        %5779 = vmatmul.f32.gmra.mxu0 %v5778
        %v5780 = vpop.f32.mrf.mxu0
        %v5781 = vadd.f32 %v5680, %v5780
        %v5782 = vand.u32 %v1948, 4294901760
        %5783 = vmatmul.f32.gmra.mxu0 %v5782
        %v5784 = vpop.f32.mrf.mxu0
        %v5785 = vadd.f32 %v5686, %v5784
        %v5786 = vand.u32 %v1949, 4294901760
        %5787 = vmatmul.f32.gmra.mxu0 %v5786
        %v5788 = vpop.f32.mrf.mxu0
        %v5789 = vadd.f32 %v5692, %v5788
        %5790 = vdwg.mxu0
        %v5791 = vand.u32 %v1940, 4294901760
        %5792 = vmatpush.msra.mxu0 %v5791
        %v5793 = vand.u32 %v1932, 4294901760
        %5794 = vmatpush.msra.mxu0 %v5793
        %v5795 = vand.u32 %v1924, 4294901760
        %5796 = vmatpush.msra.mxu0 %v5795
        %v5797 = vand.u32 %v1916, 4294901760
        %5798 = vmatpush.msra.mxu0 %v5797
        %v5799 = vand.u32 %v1908, 4294901760
        %5800 = vmatpush.msra.mxu0 %v5799
        %v5801 = vand.u32 %v1900, 4294901760
        %5802 = vmatpush.msra.mxu0 %v5801
        %v5803 = vand.u32 %v1892, 4294901760
        %5804 = vmatpush.msra.mxu0 %v5803
        %v5805 = vand.u32 %v1884, 4294901760
        %5806 = vmatpush.msra.mxu0 %v5805
        %v5807 = vand.u32 %v1876, 4294901760
        %5808 = vmatpush.msra.mxu0 %v5807
        %v5809 = vand.u32 %v1868, 4294901760
        %5810 = vmatpush.msra.mxu0 %v5809
        %v5811 = vand.u32 %v1860, 4294901760
        %5812 = vmatpush.msra.mxu0 %v5811
        %v5813 = vand.u32 %v1852, 4294901760
        %5814 = vmatpush.msra.mxu0 %v5813
        %v5815 = vand.u32 %v1844, 4294901760
        %5816 = vmatpush.msra.mxu0 %v5815
        %v5817 = vand.u32 %v1836, 4294901760
        %5818 = vmatpush.msra.mxu0 %v5817
        %v5819 = vand.u32 %v1828, 4294901760
        %5820 = vmatpush.msra.mxu0 %v5819
        %v5821 = vand.u32 %v1820, 4294901760
        %5822 = vmatpush.msra.mxu0 %v5821
        %v5823 = vand.u32 %v1942, 4294901760
        %5824 = vmatmul.f32.gmra.mxu0 %v5823
        %v5825 = vpop.f32.mrf.mxu0
        %v5826 = vadd.f32 %v5761, %v5825
        %v5827 = vand.u32 %v1943, 4294901760
        %5828 = vmatmul.f32.gmra.mxu0 %v5827
        %v5829 = vpop.f32.mrf.mxu0
        %v5830 = vadd.f32 %v5765, %v5829
        %v5831 = vand.u32 %v1944, 4294901760
        %5832 = vmatmul.f32.gmra.mxu0 %v5831
        %v5833 = vpop.f32.mrf.mxu0
        %v5834 = vadd.f32 %v5769, %v5833
        %v5835 = vand.u32 %v1945, 4294901760
        %5836 = vmatmul.f32.gmra.mxu0 %v5835
        %v5837 = vpop.f32.mrf.mxu0
        %v5838 = vadd.f32 %v5773, %v5837
        %v5839 = vand.u32 %v1946, 4294901760
        %5840 = vmatmul.f32.gmra.mxu0 %v5839
        %v5841 = vpop.f32.mrf.mxu0
        %v5842 = vadd.f32 %v5777, %v5841
        %v5843 = vand.u32 %v1947, 4294901760
        %5844 = vmatmul.f32.gmra.mxu0 %v5843
        %v5845 = vpop.f32.mrf.mxu0
        %v5846 = vadd.f32 %v5781, %v5845
        %v5847 = vand.u32 %v1948, 4294901760
        %5848 = vmatmul.f32.gmra.mxu0 %v5847
        %v5849 = vpop.f32.mrf.mxu0
        %v5850 = vadd.f32 %v5785, %v5849
        %v5851 = vand.u32 %v1949, 4294901760
        %5852 = vmatmul.f32.gmra.mxu0 %v5851
        %v5853 = vpop.f32.mrf.mxu0
        %v5854 = vadd.f32 %v5789, %v5853
        %5855 = vdwg.mxu0
        %v5856 = vand.u32 %v1941, 4294901760
        %5857 = vmatpush.msra.mxu0 %v5856
        %v5858 = vand.u32 %v1933, 4294901760
        %5859 = vmatpush.msra.mxu0 %v5858
        %v5860 = vand.u32 %v1925, 4294901760
        %5861 = vmatpush.msra.mxu0 %v5860
        %v5862 = vand.u32 %v1917, 4294901760
        %5863 = vmatpush.msra.mxu0 %v5862
        %v5864 = vand.u32 %v1909, 4294901760
        %5865 = vmatpush.msra.mxu0 %v5864
        %v5866 = vand.u32 %v1901, 4294901760
        %5867 = vmatpush.msra.mxu0 %v5866
        %v5868 = vand.u32 %v1893, 4294901760
        %5869 = vmatpush.msra.mxu0 %v5868
        %v5870 = vand.u32 %v1885, 4294901760
        %5871 = vmatpush.msra.mxu0 %v5870
        %v5872 = vand.u32 %v1877, 4294901760
        %5873 = vmatpush.msra.mxu0 %v5872
        %v5874 = vand.u32 %v1869, 4294901760
        %5875 = vmatpush.msra.mxu0 %v5874
        %v5876 = vand.u32 %v1861, 4294901760
        %5877 = vmatpush.msra.mxu0 %v5876
        %v5878 = vand.u32 %v1853, 4294901760
        %5879 = vmatpush.msra.mxu0 %v5878
        %v5880 = vand.u32 %v1845, 4294901760
        %5881 = vmatpush.msra.mxu0 %v5880
        %v5882 = vand.u32 %v1837, 4294901760
        %5883 = vmatpush.msra.mxu0 %v5882
        %v5884 = vand.u32 %v1829, 4294901760
        %5885 = vmatpush.msra.mxu0 %v5884
        %v5886 = vand.u32 %v1821, 4294901760
        %5887 = vmatpush.msra.mxu0 %v5886
        %v5888 = vand.u32 %v1942, 4294901760
        %v5889 = vsub.f32 %v1942, %v5888
        %v5890 = vand.u32 %v5889, 4294901760
        %v5891 = vsub.f32 %v5889, %v5890
        %v5892 = vand.u32 %v5891, 4294901760
        %5893 = vmatmul.f32.gmra.mxu0 %v5892
        %v5894 = vpop.f32.mrf.mxu0
        %v5895 = vadd.f32 0.0, %v5894
        %v5896 = vand.u32 %v1943, 4294901760
        %v5897 = vsub.f32 %v1943, %v5896
        %v5898 = vand.u32 %v5897, 4294901760
        %v5899 = vsub.f32 %v5897, %v5898
        %v5900 = vand.u32 %v5899, 4294901760
        %5901 = vmatmul.f32.gmra.mxu0 %v5900
        %v5902 = vpop.f32.mrf.mxu0
        %v5903 = vadd.f32 0.0, %v5902
        %v5904 = vand.u32 %v1944, 4294901760
        %v5905 = vsub.f32 %v1944, %v5904
        %v5906 = vand.u32 %v5905, 4294901760
        %v5907 = vsub.f32 %v5905, %v5906
        %v5908 = vand.u32 %v5907, 4294901760
        %5909 = vmatmul.f32.gmra.mxu0 %v5908
        %v5910 = vpop.f32.mrf.mxu0
        %v5911 = vadd.f32 0.0, %v5910
        %v5912 = vand.u32 %v1945, 4294901760
        %v5913 = vsub.f32 %v1945, %v5912
        %v5914 = vand.u32 %v5913, 4294901760
        %v5915 = vsub.f32 %v5913, %v5914
        %v5916 = vand.u32 %v5915, 4294901760
        %5917 = vmatmul.f32.gmra.mxu0 %v5916
        %v5918 = vpop.f32.mrf.mxu0
        %v5919 = vadd.f32 0.0, %v5918
        %v5920 = vand.u32 %v1946, 4294901760
        %v5921 = vsub.f32 %v1946, %v5920
        %v5922 = vand.u32 %v5921, 4294901760
        %v5923 = vsub.f32 %v5921, %v5922
        %v5924 = vand.u32 %v5923, 4294901760
        %5925 = vmatmul.f32.gmra.mxu0 %v5924
        %v5926 = vpop.f32.mrf.mxu0
        %v5927 = vadd.f32 0.0, %v5926
        %v5928 = vand.u32 %v1947, 4294901760
        %v5929 = vsub.f32 %v1947, %v5928
        %v5930 = vand.u32 %v5929, 4294901760
        %v5931 = vsub.f32 %v5929, %v5930
        %v5932 = vand.u32 %v5931, 4294901760
        %5933 = vmatmul.f32.gmra.mxu0 %v5932
        %v5934 = vpop.f32.mrf.mxu0
        %v5935 = vadd.f32 0.0, %v5934
        %v5936 = vand.u32 %v1948, 4294901760
        %v5937 = vsub.f32 %v1948, %v5936
        %v5938 = vand.u32 %v5937, 4294901760
        %v5939 = vsub.f32 %v5937, %v5938
        %v5940 = vand.u32 %v5939, 4294901760
        %5941 = vmatmul.f32.gmra.mxu0 %v5940
        %v5942 = vpop.f32.mrf.mxu0
        %v5943 = vadd.f32 0.0, %v5942
        %v5944 = vand.u32 %v1949, 4294901760
        %v5945 = vsub.f32 %v1949, %v5944
        %v5946 = vand.u32 %v5945, 4294901760
        %v5947 = vsub.f32 %v5945, %v5946
        %v5948 = vand.u32 %v5947, 4294901760
        %5949 = vmatmul.f32.gmra.mxu0 %v5948
        %v5950 = vpop.f32.mrf.mxu0
        %v5951 = vadd.f32 0.0, %v5950
        %5952 = vdwg.mxu0
        %v5953 = vand.u32 %v1941, 4294901760
        %v5954 = vsub.f32 %v1941, %v5953
        %v5955 = vand.u32 %v5954, 4294901760
        %v5956 = vsub.f32 %v5954, %v5955
        %v5957 = vand.u32 %v5956, 4294901760
        %5958 = vmatpush.msra.mxu0 %v5957
        %v5959 = vand.u32 %v1933, 4294901760
        %v5960 = vsub.f32 %v1933, %v5959
        %v5961 = vand.u32 %v5960, 4294901760
        %v5962 = vsub.f32 %v5960, %v5961
        %v5963 = vand.u32 %v5962, 4294901760
        %5964 = vmatpush.msra.mxu0 %v5963
        %v5965 = vand.u32 %v1925, 4294901760
        %v5966 = vsub.f32 %v1925, %v5965
        %v5967 = vand.u32 %v5966, 4294901760
        %v5968 = vsub.f32 %v5966, %v5967
        %v5969 = vand.u32 %v5968, 4294901760
        %5970 = vmatpush.msra.mxu0 %v5969
        %v5971 = vand.u32 %v1917, 4294901760
        %v5972 = vsub.f32 %v1917, %v5971
        %v5973 = vand.u32 %v5972, 4294901760
        %v5974 = vsub.f32 %v5972, %v5973
        %v5975 = vand.u32 %v5974, 4294901760
        %5976 = vmatpush.msra.mxu0 %v5975
        %v5977 = vand.u32 %v1909, 4294901760
        %v5978 = vsub.f32 %v1909, %v5977
        %v5979 = vand.u32 %v5978, 4294901760
        %v5980 = vsub.f32 %v5978, %v5979
        %v5981 = vand.u32 %v5980, 4294901760
        %5982 = vmatpush.msra.mxu0 %v5981
        %v5983 = vand.u32 %v1901, 4294901760
        %v5984 = vsub.f32 %v1901, %v5983
        %v5985 = vand.u32 %v5984, 4294901760
        %v5986 = vsub.f32 %v5984, %v5985
        %v5987 = vand.u32 %v5986, 4294901760
        %5988 = vmatpush.msra.mxu0 %v5987
        %v5989 = vand.u32 %v1893, 4294901760
        %v5990 = vsub.f32 %v1893, %v5989
        %v5991 = vand.u32 %v5990, 4294901760
        %v5992 = vsub.f32 %v5990, %v5991
        %v5993 = vand.u32 %v5992, 4294901760
        %5994 = vmatpush.msra.mxu0 %v5993
        %v5995 = vand.u32 %v1885, 4294901760
        %v5996 = vsub.f32 %v1885, %v5995
        %v5997 = vand.u32 %v5996, 4294901760
        %v5998 = vsub.f32 %v5996, %v5997
        %v5999 = vand.u32 %v5998, 4294901760
        %6000 = vmatpush.msra.mxu0 %v5999
        %v6001 = vand.u32 %v1877, 4294901760
        %v6002 = vsub.f32 %v1877, %v6001
        %v6003 = vand.u32 %v6002, 4294901760
        %v6004 = vsub.f32 %v6002, %v6003
        %v6005 = vand.u32 %v6004, 4294901760
        %6006 = vmatpush.msra.mxu0 %v6005
        %v6007 = vand.u32 %v1869, 4294901760
        %v6008 = vsub.f32 %v1869, %v6007
        %v6009 = vand.u32 %v6008, 4294901760
        %v6010 = vsub.f32 %v6008, %v6009
        %v6011 = vand.u32 %v6010, 4294901760
        %6012 = vmatpush.msra.mxu0 %v6011
        %v6013 = vand.u32 %v1861, 4294901760
        %v6014 = vsub.f32 %v1861, %v6013
        %v6015 = vand.u32 %v6014, 4294901760
        %v6016 = vsub.f32 %v6014, %v6015
        %v6017 = vand.u32 %v6016, 4294901760
        %6018 = vmatpush.msra.mxu0 %v6017
        %v6019 = vand.u32 %v1853, 4294901760
        %v6020 = vsub.f32 %v1853, %v6019
        %v6021 = vand.u32 %v6020, 4294901760
        %v6022 = vsub.f32 %v6020, %v6021
        %v6023 = vand.u32 %v6022, 4294901760
        %6024 = vmatpush.msra.mxu0 %v6023
        %v6025 = vand.u32 %v1845, 4294901760
        %v6026 = vsub.f32 %v1845, %v6025
        %v6027 = vand.u32 %v6026, 4294901760
        %v6028 = vsub.f32 %v6026, %v6027
        %v6029 = vand.u32 %v6028, 4294901760
        %6030 = vmatpush.msra.mxu0 %v6029
        %v6031 = vand.u32 %v1837, 4294901760
        %v6032 = vsub.f32 %v1837, %v6031
        %v6033 = vand.u32 %v6032, 4294901760
        %v6034 = vsub.f32 %v6032, %v6033
        %v6035 = vand.u32 %v6034, 4294901760
        %6036 = vmatpush.msra.mxu0 %v6035
        %v6037 = vand.u32 %v1829, 4294901760
        %v6038 = vsub.f32 %v1829, %v6037
        %v6039 = vand.u32 %v6038, 4294901760
        %v6040 = vsub.f32 %v6038, %v6039
        %v6041 = vand.u32 %v6040, 4294901760
        %6042 = vmatpush.msra.mxu0 %v6041
        %v6043 = vand.u32 %v1821, 4294901760
        %v6044 = vsub.f32 %v1821, %v6043
        %v6045 = vand.u32 %v6044, 4294901760
        %v6046 = vsub.f32 %v6044, %v6045
        %v6047 = vand.u32 %v6046, 4294901760
        %6048 = vmatpush.msra.mxu0 %v6047
        %v6049 = vand.u32 %v1942, 4294901760
        %6050 = vmatmul.f32.gmra.mxu0 %v6049
        %v6051 = vpop.f32.mrf.mxu0
        %v6052 = vadd.f32 %v5895, %v6051
        %v6053 = vand.u32 %v1943, 4294901760
        %6054 = vmatmul.f32.gmra.mxu0 %v6053
        %v6055 = vpop.f32.mrf.mxu0
        %v6056 = vadd.f32 %v5903, %v6055
        %v6057 = vand.u32 %v1944, 4294901760
        %6058 = vmatmul.f32.gmra.mxu0 %v6057
        %v6059 = vpop.f32.mrf.mxu0
        %v6060 = vadd.f32 %v5911, %v6059
        %v6061 = vand.u32 %v1945, 4294901760
        %6062 = vmatmul.f32.gmra.mxu0 %v6061
        %v6063 = vpop.f32.mrf.mxu0
        %v6064 = vadd.f32 %v5919, %v6063
        %v6065 = vand.u32 %v1946, 4294901760
        %6066 = vmatmul.f32.gmra.mxu0 %v6065
        %v6067 = vpop.f32.mrf.mxu0
        %v6068 = vadd.f32 %v5927, %v6067
        %v6069 = vand.u32 %v1947, 4294901760
        %6070 = vmatmul.f32.gmra.mxu0 %v6069
        %v6071 = vpop.f32.mrf.mxu0
        %v6072 = vadd.f32 %v5935, %v6071
        %v6073 = vand.u32 %v1948, 4294901760
        %6074 = vmatmul.f32.gmra.mxu0 %v6073
        %v6075 = vpop.f32.mrf.mxu0
        %v6076 = vadd.f32 %v5943, %v6075
        %v6077 = vand.u32 %v1949, 4294901760
        %6078 = vmatmul.f32.gmra.mxu0 %v6077
        %v6079 = vpop.f32.mrf.mxu0
        %v6080 = vadd.f32 %v5951, %v6079
        %6081 = vdwg.mxu0
        %v6082 = vand.u32 %v1941, 4294901760
        %v6083 = vsub.f32 %v1941, %v6082
        %6084 = vmatpush.msra.mxu0 %v6083
        %v6085 = vand.u32 %v1933, 4294901760
        %v6086 = vsub.f32 %v1933, %v6085
        %6087 = vmatpush.msra.mxu0 %v6086
        %v6088 = vand.u32 %v1925, 4294901760
        %v6089 = vsub.f32 %v1925, %v6088
        %6090 = vmatpush.msra.mxu0 %v6089
        %v6091 = vand.u32 %v1917, 4294901760
        %v6092 = vsub.f32 %v1917, %v6091
        %6093 = vmatpush.msra.mxu0 %v6092
        %v6094 = vand.u32 %v1909, 4294901760
        %v6095 = vsub.f32 %v1909, %v6094
        %6096 = vmatpush.msra.mxu0 %v6095
        %v6097 = vand.u32 %v1901, 4294901760
        %v6098 = vsub.f32 %v1901, %v6097
        %6099 = vmatpush.msra.mxu0 %v6098
        %v6100 = vand.u32 %v1893, 4294901760
        %v6101 = vsub.f32 %v1893, %v6100
        %6102 = vmatpush.msra.mxu0 %v6101
        %v6103 = vand.u32 %v1885, 4294901760
        %v6104 = vsub.f32 %v1885, %v6103
        %6105 = vmatpush.msra.mxu0 %v6104
        %v6106 = vand.u32 %v1877, 4294901760
        %v6107 = vsub.f32 %v1877, %v6106
        %6108 = vmatpush.msra.mxu0 %v6107
        %v6109 = vand.u32 %v1869, 4294901760
        %v6110 = vsub.f32 %v1869, %v6109
        %6111 = vmatpush.msra.mxu0 %v6110
        %v6112 = vand.u32 %v1861, 4294901760
        %v6113 = vsub.f32 %v1861, %v6112
        %6114 = vmatpush.msra.mxu0 %v6113
        %v6115 = vand.u32 %v1853, 4294901760
        %v6116 = vsub.f32 %v1853, %v6115
        %6117 = vmatpush.msra.mxu0 %v6116
        %v6118 = vand.u32 %v1845, 4294901760
        %v6119 = vsub.f32 %v1845, %v6118
        %6120 = vmatpush.msra.mxu0 %v6119
        %v6121 = vand.u32 %v1837, 4294901760
        %v6122 = vsub.f32 %v1837, %v6121
        %6123 = vmatpush.msra.mxu0 %v6122
        %v6124 = vand.u32 %v1829, 4294901760
        %v6125 = vsub.f32 %v1829, %v6124
        %6126 = vmatpush.msra.mxu0 %v6125
        %v6127 = vand.u32 %v1821, 4294901760
        %v6128 = vsub.f32 %v1821, %v6127
        %6129 = vmatpush.msra.mxu0 %v6128
        %v6130 = vand.u32 %v1942, 4294901760
        %v6131 = vsub.f32 %v1942, %v6130
        %6132 = vmatmul.f32.gmra.mxu0 %v6131
        %v6133 = vpop.f32.mrf.mxu0
        %v6134 = vadd.f32 %v6052, %v6133
        %v6135 = vand.u32 %v1943, 4294901760
        %v6136 = vsub.f32 %v1943, %v6135
        %6137 = vmatmul.f32.gmra.mxu0 %v6136
        %v6138 = vpop.f32.mrf.mxu0
        %v6139 = vadd.f32 %v6056, %v6138
        %v6140 = vand.u32 %v1944, 4294901760
        %v6141 = vsub.f32 %v1944, %v6140
        %6142 = vmatmul.f32.gmra.mxu0 %v6141
        %v6143 = vpop.f32.mrf.mxu0
        %v6144 = vadd.f32 %v6060, %v6143
        %v6145 = vand.u32 %v1945, 4294901760
        %v6146 = vsub.f32 %v1945, %v6145
        %6147 = vmatmul.f32.gmra.mxu0 %v6146
        %v6148 = vpop.f32.mrf.mxu0
        %v6149 = vadd.f32 %v6064, %v6148
        %v6150 = vand.u32 %v1946, 4294901760
        %v6151 = vsub.f32 %v1946, %v6150
        %6152 = vmatmul.f32.gmra.mxu0 %v6151
        %v6153 = vpop.f32.mrf.mxu0
        %v6154 = vadd.f32 %v6068, %v6153
        %v6155 = vand.u32 %v1947, 4294901760
        %v6156 = vsub.f32 %v1947, %v6155
        %6157 = vmatmul.f32.gmra.mxu0 %v6156
        %v6158 = vpop.f32.mrf.mxu0
        %v6159 = vadd.f32 %v6072, %v6158
        %v6160 = vand.u32 %v1948, 4294901760
        %v6161 = vsub.f32 %v1948, %v6160
        %6162 = vmatmul.f32.gmra.mxu0 %v6161
        %v6163 = vpop.f32.mrf.mxu0
        %v6164 = vadd.f32 %v6076, %v6163
        %v6165 = vand.u32 %v1949, 4294901760
        %v6166 = vsub.f32 %v1949, %v6165
        %6167 = vmatmul.f32.gmra.mxu0 %v6166
        %v6168 = vpop.f32.mrf.mxu0
        %v6169 = vadd.f32 %v6080, %v6168
        %6170 = vdwg.mxu0
        %v6171 = vand.u32 %v1941, 4294901760
        %6172 = vmatpush.msra.mxu0 %v6171
        %v6173 = vand.u32 %v1933, 4294901760
        %6174 = vmatpush.msra.mxu0 %v6173
        %v6175 = vand.u32 %v1925, 4294901760
        %6176 = vmatpush.msra.mxu0 %v6175
        %v6177 = vand.u32 %v1917, 4294901760
        %6178 = vmatpush.msra.mxu0 %v6177
        %v6179 = vand.u32 %v1909, 4294901760
        %6180 = vmatpush.msra.mxu0 %v6179
        %v6181 = vand.u32 %v1901, 4294901760
        %6182 = vmatpush.msra.mxu0 %v6181
        %v6183 = vand.u32 %v1893, 4294901760
        %6184 = vmatpush.msra.mxu0 %v6183
        %v6185 = vand.u32 %v1885, 4294901760
        %6186 = vmatpush.msra.mxu0 %v6185
        %v6187 = vand.u32 %v1877, 4294901760
        %6188 = vmatpush.msra.mxu0 %v6187
        %v6189 = vand.u32 %v1869, 4294901760
        %6190 = vmatpush.msra.mxu0 %v6189
        %v6191 = vand.u32 %v1861, 4294901760
        %6192 = vmatpush.msra.mxu0 %v6191
        %v6193 = vand.u32 %v1853, 4294901760
        %6194 = vmatpush.msra.mxu0 %v6193
        %v6195 = vand.u32 %v1845, 4294901760
        %6196 = vmatpush.msra.mxu0 %v6195
        %v6197 = vand.u32 %v1837, 4294901760
        %6198 = vmatpush.msra.mxu0 %v6197
        %v6199 = vand.u32 %v1829, 4294901760
        %6200 = vmatpush.msra.mxu0 %v6199
        %v6201 = vand.u32 %v1821, 4294901760
        %6202 = vmatpush.msra.mxu0 %v6201
        %v6203 = vand.u32 %v1942, 4294901760
        %v6204 = vsub.f32 %v1942, %v6203
        %v6205 = vand.u32 %v6204, 4294901760
        %6206 = vmatmul.f32.gmra.mxu0 %v6205
        %v6207 = vpop.f32.mrf.mxu0
        %v6208 = vadd.f32 %v6134, %v6207
        %v6209 = vand.u32 %v1943, 4294901760
        %v6210 = vsub.f32 %v1943, %v6209
        %v6211 = vand.u32 %v6210, 4294901760
        %6212 = vmatmul.f32.gmra.mxu0 %v6211
        %v6213 = vpop.f32.mrf.mxu0
        %v6214 = vadd.f32 %v6139, %v6213
        %v6215 = vand.u32 %v1944, 4294901760
        %v6216 = vsub.f32 %v1944, %v6215
        %v6217 = vand.u32 %v6216, 4294901760
        %6218 = vmatmul.f32.gmra.mxu0 %v6217
        %v6219 = vpop.f32.mrf.mxu0
        %v6220 = vadd.f32 %v6144, %v6219
        %v6221 = vand.u32 %v1945, 4294901760
        %v6222 = vsub.f32 %v1945, %v6221
        %v6223 = vand.u32 %v6222, 4294901760
        %6224 = vmatmul.f32.gmra.mxu0 %v6223
        %v6225 = vpop.f32.mrf.mxu0
        %v6226 = vadd.f32 %v6149, %v6225
        %v6227 = vand.u32 %v1946, 4294901760
        %v6228 = vsub.f32 %v1946, %v6227
        %v6229 = vand.u32 %v6228, 4294901760
        %6230 = vmatmul.f32.gmra.mxu0 %v6229
        %v6231 = vpop.f32.mrf.mxu0
        %v6232 = vadd.f32 %v6154, %v6231
        %v6233 = vand.u32 %v1947, 4294901760
        %v6234 = vsub.f32 %v1947, %v6233
        %v6235 = vand.u32 %v6234, 4294901760
        %6236 = vmatmul.f32.gmra.mxu0 %v6235
        %v6237 = vpop.f32.mrf.mxu0
        %v6238 = vadd.f32 %v6159, %v6237
        %v6239 = vand.u32 %v1948, 4294901760
        %v6240 = vsub.f32 %v1948, %v6239
        %v6241 = vand.u32 %v6240, 4294901760
        %6242 = vmatmul.f32.gmra.mxu0 %v6241
        %v6243 = vpop.f32.mrf.mxu0
        %v6244 = vadd.f32 %v6164, %v6243
        %v6245 = vand.u32 %v1949, 4294901760
        %v6246 = vsub.f32 %v1949, %v6245
        %v6247 = vand.u32 %v6246, 4294901760
        %6248 = vmatmul.f32.gmra.mxu0 %v6247
        %v6249 = vpop.f32.mrf.mxu0
        %v6250 = vadd.f32 %v6169, %v6249
        %6251 = vdwg.mxu0
        %v6252 = vand.u32 %v1941, 4294901760
        %v6253 = vsub.f32 %v1941, %v6252
        %v6254 = vand.u32 %v6253, 4294901760
        %6255 = vmatpush.msra.mxu0 %v6254
        %v6256 = vand.u32 %v1933, 4294901760
        %v6257 = vsub.f32 %v1933, %v6256
        %v6258 = vand.u32 %v6257, 4294901760
        %6259 = vmatpush.msra.mxu0 %v6258
        %v6260 = vand.u32 %v1925, 4294901760
        %v6261 = vsub.f32 %v1925, %v6260
        %v6262 = vand.u32 %v6261, 4294901760
        %6263 = vmatpush.msra.mxu0 %v6262
        %v6264 = vand.u32 %v1917, 4294901760
        %v6265 = vsub.f32 %v1917, %v6264
        %v6266 = vand.u32 %v6265, 4294901760
        %6267 = vmatpush.msra.mxu0 %v6266
        %v6268 = vand.u32 %v1909, 4294901760
        %v6269 = vsub.f32 %v1909, %v6268
        %v6270 = vand.u32 %v6269, 4294901760
        %6271 = vmatpush.msra.mxu0 %v6270
        %v6272 = vand.u32 %v1901, 4294901760
        %v6273 = vsub.f32 %v1901, %v6272
        %v6274 = vand.u32 %v6273, 4294901760
        %6275 = vmatpush.msra.mxu0 %v6274
        %v6276 = vand.u32 %v1893, 4294901760
        %v6277 = vsub.f32 %v1893, %v6276
        %v6278 = vand.u32 %v6277, 4294901760
        %6279 = vmatpush.msra.mxu0 %v6278
        %v6280 = vand.u32 %v1885, 4294901760
        %v6281 = vsub.f32 %v1885, %v6280
        %v6282 = vand.u32 %v6281, 4294901760
        %6283 = vmatpush.msra.mxu0 %v6282
        %v6284 = vand.u32 %v1877, 4294901760
        %v6285 = vsub.f32 %v1877, %v6284
        %v6286 = vand.u32 %v6285, 4294901760
        %6287 = vmatpush.msra.mxu0 %v6286
        %v6288 = vand.u32 %v1869, 4294901760
        %v6289 = vsub.f32 %v1869, %v6288
        %v6290 = vand.u32 %v6289, 4294901760
        %6291 = vmatpush.msra.mxu0 %v6290
        %v6292 = vand.u32 %v1861, 4294901760
        %v6293 = vsub.f32 %v1861, %v6292
        %v6294 = vand.u32 %v6293, 4294901760
        %6295 = vmatpush.msra.mxu0 %v6294
        %v6296 = vand.u32 %v1853, 4294901760
        %v6297 = vsub.f32 %v1853, %v6296
        %v6298 = vand.u32 %v6297, 4294901760
        %6299 = vmatpush.msra.mxu0 %v6298
        %v6300 = vand.u32 %v1845, 4294901760
        %v6301 = vsub.f32 %v1845, %v6300
        %v6302 = vand.u32 %v6301, 4294901760
        %6303 = vmatpush.msra.mxu0 %v6302
        %v6304 = vand.u32 %v1837, 4294901760
        %v6305 = vsub.f32 %v1837, %v6304
        %v6306 = vand.u32 %v6305, 4294901760
        %6307 = vmatpush.msra.mxu0 %v6306
        %v6308 = vand.u32 %v1829, 4294901760
        %v6309 = vsub.f32 %v1829, %v6308
        %v6310 = vand.u32 %v6309, 4294901760
        %6311 = vmatpush.msra.mxu0 %v6310
        %v6312 = vand.u32 %v1821, 4294901760
        %v6313 = vsub.f32 %v1821, %v6312
        %v6314 = vand.u32 %v6313, 4294901760
        %6315 = vmatpush.msra.mxu0 %v6314
        %v6316 = vand.u32 %v1942, 4294901760
        %6317 = vmatmul.f32.gmra.mxu0 %v6316
        %v6318 = vpop.f32.mrf.mxu0
        %v6319 = vadd.f32 %v6208, %v6318
        %v6320 = vand.u32 %v1943, 4294901760
        %6321 = vmatmul.f32.gmra.mxu0 %v6320
        %v6322 = vpop.f32.mrf.mxu0
        %v6323 = vadd.f32 %v6214, %v6322
        %v6324 = vand.u32 %v1944, 4294901760
        %6325 = vmatmul.f32.gmra.mxu0 %v6324
        %v6326 = vpop.f32.mrf.mxu0
        %v6327 = vadd.f32 %v6220, %v6326
        %v6328 = vand.u32 %v1945, 4294901760
        %6329 = vmatmul.f32.gmra.mxu0 %v6328
        %v6330 = vpop.f32.mrf.mxu0
        %v6331 = vadd.f32 %v6226, %v6330
        %v6332 = vand.u32 %v1946, 4294901760
        %6333 = vmatmul.f32.gmra.mxu0 %v6332
        %v6334 = vpop.f32.mrf.mxu0
        %v6335 = vadd.f32 %v6232, %v6334
        %v6336 = vand.u32 %v1947, 4294901760
        %6337 = vmatmul.f32.gmra.mxu0 %v6336
        %v6338 = vpop.f32.mrf.mxu0
        %v6339 = vadd.f32 %v6238, %v6338
        %v6340 = vand.u32 %v1948, 4294901760
        %6341 = vmatmul.f32.gmra.mxu0 %v6340
        %v6342 = vpop.f32.mrf.mxu0
        %v6343 = vadd.f32 %v6244, %v6342
        %v6344 = vand.u32 %v1949, 4294901760
        %6345 = vmatmul.f32.gmra.mxu0 %v6344
        %v6346 = vpop.f32.mrf.mxu0
        %v6347 = vadd.f32 %v6250, %v6346
        %6348 = vdwg.mxu0
        %v6349 = vand.u32 %v1941, 4294901760
        %6350 = vmatpush.msra.mxu0 %v6349
        %v6351 = vand.u32 %v1933, 4294901760
        %6352 = vmatpush.msra.mxu0 %v6351
        %v6353 = vand.u32 %v1925, 4294901760
        %6354 = vmatpush.msra.mxu0 %v6353
        %v6355 = vand.u32 %v1917, 4294901760
        %6356 = vmatpush.msra.mxu0 %v6355
        %v6357 = vand.u32 %v1909, 4294901760
        %6358 = vmatpush.msra.mxu0 %v6357
        %v6359 = vand.u32 %v1901, 4294901760
        %6360 = vmatpush.msra.mxu0 %v6359
        %v6361 = vand.u32 %v1893, 4294901760
        %6362 = vmatpush.msra.mxu0 %v6361
        %v6363 = vand.u32 %v1885, 4294901760
        %6364 = vmatpush.msra.mxu0 %v6363
        %v6365 = vand.u32 %v1877, 4294901760
        %6366 = vmatpush.msra.mxu0 %v6365
        %v6367 = vand.u32 %v1869, 4294901760
        %6368 = vmatpush.msra.mxu0 %v6367
        %v6369 = vand.u32 %v1861, 4294901760
        %6370 = vmatpush.msra.mxu0 %v6369
        %v6371 = vand.u32 %v1853, 4294901760
        %6372 = vmatpush.msra.mxu0 %v6371
        %v6373 = vand.u32 %v1845, 4294901760
        %6374 = vmatpush.msra.mxu0 %v6373
        %v6375 = vand.u32 %v1837, 4294901760
        %6376 = vmatpush.msra.mxu0 %v6375
        %v6377 = vand.u32 %v1829, 4294901760
        %6378 = vmatpush.msra.mxu0 %v6377
        %v6379 = vand.u32 %v1821, 4294901760
        %6380 = vmatpush.msra.mxu0 %v6379
        %v6381 = vand.u32 %v1942, 4294901760
        %6382 = vmatmul.f32.gmra.mxu0 %v6381
        %v6383 = vpop.f32.mrf.mxu0
        %v6384 = vadd.f32 %v6319, %v6383
        %v6385 = vand.u32 %v1943, 4294901760
        %6386 = vmatmul.f32.gmra.mxu0 %v6385
        %v6387 = vpop.f32.mrf.mxu0
        %v6388 = vadd.f32 %v6323, %v6387
        %v6389 = vand.u32 %v1944, 4294901760
        %6390 = vmatmul.f32.gmra.mxu0 %v6389
        %v6391 = vpop.f32.mrf.mxu0
        %v6392 = vadd.f32 %v6327, %v6391
        %v6393 = vand.u32 %v1945, 4294901760
        %6394 = vmatmul.f32.gmra.mxu0 %v6393
        %v6395 = vpop.f32.mrf.mxu0
        %v6396 = vadd.f32 %v6331, %v6395
        %v6397 = vand.u32 %v1946, 4294901760
        %6398 = vmatmul.f32.gmra.mxu0 %v6397
        %v6399 = vpop.f32.mrf.mxu0
        %v6400 = vadd.f32 %v6335, %v6399
        %v6401 = vand.u32 %v1947, 4294901760
        %6402 = vmatmul.f32.gmra.mxu0 %v6401
        %v6403 = vpop.f32.mrf.mxu0
        %v6404 = vadd.f32 %v6339, %v6403
        %v6405 = vand.u32 %v1948, 4294901760
        %6406 = vmatmul.f32.gmra.mxu0 %v6405
        %v6407 = vpop.f32.mrf.mxu0
        %v6408 = vadd.f32 %v6343, %v6407
        %v6409 = vand.u32 %v1949, 4294901760
        %6410 = vmatmul.f32.gmra.mxu0 %v6409
        %v6411 = vpop.f32.mrf.mxu0
        %v6412 = vadd.f32 %v6347, %v6411
        %6413 = vdwg.mxu0
        %v6414 = vperm.slane %v209, 2
        %v6415 = vperm.slane %v209, 6
        %v6416 = vperm.slane %v210, 2
        %v6417 = vperm.slane %v210, 6
        %v6418 = vperm.slane %v211, 2
        %v6419 = vperm.slane %v211, 6
        %v6420 = vperm.slane %v212, 2
        %v6421 = vperm.slane %v212, 6
        %v6422 = vperm.slane %v6414, 2
        %v6423 = vperm.slane %v6415, 2
        %v6424 = vperm.slane %v6416, 2
        %v6425 = vperm.slane %v6417, 2
        %v6426 = vperm.slane %v6418, 2
        %v6427 = vperm.slane %v6419, 2
        %v6428 = vperm.slane %v6420, 2
        %v6429 = vperm.slane %v6421, 2
        %vm6430 = vcmp.eq.s32.totalorder %v254, %v6422
        %vm6431 = vcmp.eq.s32.totalorder %v254, %v6423
        %vm6432 = vcmp.eq.s32.totalorder %v254, %v6424
        %vm6433 = vcmp.eq.s32.totalorder %v254, %v6425
        %vm6434 = vcmp.eq.s32.totalorder %v254, %v6426
        %vm6435 = vcmp.eq.s32.totalorder %v254, %v6427
        %vm6436 = vcmp.eq.s32.totalorder %v254, %v6428
        %vm6437 = vcmp.eq.s32.totalorder %v254, %v6429
        %vm6438 = vcmp.eq.s32.totalorder %v255, %v6422
        %vm6439 = vcmp.eq.s32.totalorder %v255, %v6423
        %vm6440 = vcmp.eq.s32.totalorder %v255, %v6424
        %vm6441 = vcmp.eq.s32.totalorder %v255, %v6425
        %vm6442 = vcmp.eq.s32.totalorder %v255, %v6426
        %vm6443 = vcmp.eq.s32.totalorder %v255, %v6427
        %vm6444 = vcmp.eq.s32.totalorder %v255, %v6428
        %vm6445 = vcmp.eq.s32.totalorder %v255, %v6429
        %v6446 = vperm.slane %v249, 2
        %v6447 = vperm.slane %v249, 6
        %v6448 = vperm.slane %v250, 2
        %v6449 = vperm.slane %v250, 6
        %v6450 = vperm.slane %v251, 2
        %v6451 = vperm.slane %v251, 6
        %v6452 = vperm.slane %v252, 2
        %v6453 = vperm.slane %v252, 6
        %v6462 = vperm.slane %v6446, 2
        %v6463 = vperm.slane %v6447, 2
        %v6464 = vperm.slane %v6448, 2
        %v6465 = vperm.slane %v6449, 2
        %v6466 = vperm.slane %v6450, 2
        %v6467 = vperm.slane %v6451, 2
        %v6468 = vperm.slane %v6452, 2
        %v6469 = vperm.slane %v6453, 2
        %v6470 = vsel %vm6430, %v6462, 0.0
        %v6471 = vsel %vm6431, %v6463, 0.0
        %v6472 = vsel %vm6432, %v6464, 0.0
        %v6473 = vsel %vm6433, %v6465, 0.0
        %v6474 = vsel %vm6434, %v6466, 0.0
        %v6475 = vsel %vm6435, %v6467, 0.0
        %v6476 = vsel %vm6436, %v6468, 0.0
        %v6477 = vsel %vm6437, %v6469, 0.0
        %v6478 = vsel %vm6438, %v6462, 0.0
        %v6479 = vsel %vm6439, %v6463, 0.0
        %v6480 = vsel %vm6440, %v6464, 0.0
        %v6481 = vsel %vm6441, %v6465, 0.0
        %v6482 = vsel %vm6442, %v6466, 0.0
        %v6483 = vsel %vm6443, %v6467, 0.0
        %v6484 = vsel %vm6444, %v6468, 0.0
        %v6485 = vsel %vm6445, %v6469, 0.0
        %v6486 = vperm.slane %v230, 2
        %v6487 = vperm.slane %v230, 6
        %v6488 = vperm.slane %v232, 2
        %v6489 = vperm.slane %v232, 6
        %v6490 = vperm.slane %v234, 2
        %v6491 = vperm.slane %v234, 6
        %v6492 = vperm.slane %v236, 2
        %v6493 = vperm.slane %v236, 6
        %v6494 = vperm.slane %v6486, 2
        %v6495 = vperm.slane %v6487, 2
        %v6496 = vperm.slane %v6488, 2
        %v6497 = vperm.slane %v6489, 2
        %v6498 = vperm.slane %v6490, 2
        %v6499 = vperm.slane %v6491, 2
        %v6500 = vperm.slane %v6492, 2
        %v6501 = vperm.slane %v6493, 2
        %vm6502 = vcmp.eq.s32.totalorder %v254, %v6494
        %vm6503 = vcmp.eq.s32.totalorder %v254, %v6495
        %vm6504 = vcmp.eq.s32.totalorder %v254, %v6496
        %vm6505 = vcmp.eq.s32.totalorder %v254, %v6497
        %vm6506 = vcmp.eq.s32.totalorder %v254, %v6498
        %vm6507 = vcmp.eq.s32.totalorder %v254, %v6499
        %vm6508 = vcmp.eq.s32.totalorder %v254, %v6500
        %vm6509 = vcmp.eq.s32.totalorder %v254, %v6501
        %vm6510 = vcmp.eq.s32.totalorder %v255, %v6494
        %vm6511 = vcmp.eq.s32.totalorder %v255, %v6495
        %vm6512 = vcmp.eq.s32.totalorder %v255, %v6496
        %vm6513 = vcmp.eq.s32.totalorder %v255, %v6497
        %vm6514 = vcmp.eq.s32.totalorder %v255, %v6498
        %vm6515 = vcmp.eq.s32.totalorder %v255, %v6499
        %vm6516 = vcmp.eq.s32.totalorder %v255, %v6500
        %vm6517 = vcmp.eq.s32.totalorder %v255, %v6501
        %v6518 = vperm.slane %v241, 2
        %v6519 = vperm.slane %v241, 6
        %v6520 = vperm.slane %v242, 2
        %v6521 = vperm.slane %v242, 6
        %v6522 = vperm.slane %v243, 2
        %v6523 = vperm.slane %v243, 6
        %v6524 = vperm.slane %v244, 2
        %v6525 = vperm.slane %v244, 6
        %v6534 = vperm.slane %v6518, 2
        %v6535 = vperm.slane %v6519, 2
        %v6536 = vperm.slane %v6520, 2
        %v6537 = vperm.slane %v6521, 2
        %v6538 = vperm.slane %v6522, 2
        %v6539 = vperm.slane %v6523, 2
        %v6540 = vperm.slane %v6524, 2
        %v6541 = vperm.slane %v6525, 2
        %v6542 = vsel %vm6502, %v6534, 0.0
        %v6543 = vsel %vm6503, %v6535, 0.0
        %v6544 = vsel %vm6504, %v6536, 0.0
        %v6545 = vsel %vm6505, %v6537, 0.0
        %v6546 = vsel %vm6506, %v6538, 0.0
        %v6547 = vsel %vm6507, %v6539, 0.0
        %v6548 = vsel %vm6508, %v6540, 0.0
        %v6549 = vsel %vm6509, %v6541, 0.0
        %v6550 = vsel %vm6510, %v6534, 0.0
        %v6551 = vsel %vm6511, %v6535, 0.0
        %v6552 = vsel %vm6512, %v6536, 0.0
        %v6553 = vsel %vm6513, %v6537, 0.0
        %v6554 = vsel %vm6514, %v6538, 0.0
        %v6555 = vsel %vm6515, %v6539, 0.0
        %v6556 = vsel %vm6516, %v6540, 0.0
        %v6557 = vsel %vm6517, %v6541, 0.0
        %v6558 = vadd.f32 %v6470, %v6542
        %v6559 = vadd.f32 %v6471, %v6543
        %v6560 = vadd.f32 %v6472, %v6544
        %v6561 = vadd.f32 %v6473, %v6545
        %v6562 = vadd.f32 %v6474, %v6546
        %v6563 = vadd.f32 %v6475, %v6547
        %v6564 = vadd.f32 %v6476, %v6548
        %v6565 = vadd.f32 %v6477, %v6549
        %v6566 = vadd.f32 %v6478, %v6550
        %v6567 = vadd.f32 %v6479, %v6551
        %v6568 = vadd.f32 %v6480, %v6552
        %v6569 = vadd.f32 %v6481, %v6553
        %v6570 = vadd.f32 %v6482, %v6554
        %v6571 = vadd.f32 %v6483, %v6555
        %v6572 = vadd.f32 %v6484, %v6556
        %v6573 = vadd.f32 %v6485, %v6557
        %v6574 = vmul.f32 %v2478, %v6558
        %v6575 = vmul.f32 %v3036, %v6559
        %v6576 = vmul.f32 %v3594, %v6560
        %v6577 = vmul.f32 %v4152, %v6561
        %v6578 = vmul.f32 %v4710, %v6562
        %v6579 = vmul.f32 %v5268, %v6563
        %v6580 = vmul.f32 %v5826, %v6564
        %v6581 = vmul.f32 %v6384, %v6565
        %v6582 = vmul.f32 %v2482, %v6566
        %v6583 = vmul.f32 %v3040, %v6567
        %v6584 = vmul.f32 %v3598, %v6568
        %v6585 = vmul.f32 %v4156, %v6569
        %v6586 = vmul.f32 %v4714, %v6570
        %v6587 = vmul.f32 %v5272, %v6571
        %v6588 = vmul.f32 %v5830, %v6572
        %v6589 = vmul.f32 %v6388, %v6573
        %v6590 = vadd.f32 %v6574, %v6582
        %v6591 = vrot.slane %v6590, 4
        %v6592 = vadd.f32 %v6590, %v6591
        %v6593 = vrot.slane %v6592, 2
        %v6594 = vadd.f32 %v6592, %v6593
        %v6595 = vrot.slane %v6594, 1
        %v6596 = vadd.f32 %v6594, %v6595
        %v6597 = vadd.f32 %v6575, %v6583
        %v6598 = vrot.slane %v6597, 4
        %v6599 = vadd.f32 %v6597, %v6598
        %v6600 = vrot.slane %v6599, 2
        %v6601 = vadd.f32 %v6599, %v6600
        %v6602 = vrot.slane %v6601, 1
        %v6603 = vadd.f32 %v6601, %v6602
        %v6604 = vadd.f32 %v6576, %v6584
        %v6605 = vrot.slane %v6604, 4
        %v6606 = vadd.f32 %v6604, %v6605
        %v6607 = vrot.slane %v6606, 2
        %v6608 = vadd.f32 %v6606, %v6607
        %v6609 = vrot.slane %v6608, 1
        %v6610 = vadd.f32 %v6608, %v6609
        %v6611 = vadd.f32 %v6577, %v6585
        %v6612 = vrot.slane %v6611, 4
        %v6613 = vadd.f32 %v6611, %v6612
        %v6614 = vrot.slane %v6613, 2
        %v6615 = vadd.f32 %v6613, %v6614
        %v6616 = vrot.slane %v6615, 1
        %v6617 = vadd.f32 %v6615, %v6616
        %v6618 = vadd.f32 %v6578, %v6586
        %v6619 = vrot.slane %v6618, 4
        %v6620 = vadd.f32 %v6618, %v6619
        %v6621 = vrot.slane %v6620, 2
        %v6622 = vadd.f32 %v6620, %v6621
        %v6623 = vrot.slane %v6622, 1
        %v6624 = vadd.f32 %v6622, %v6623
        %v6625 = vadd.f32 %v6579, %v6587
        %v6626 = vrot.slane %v6625, 4
        %v6627 = vadd.f32 %v6625, %v6626
        %v6628 = vrot.slane %v6627, 2
        %v6629 = vadd.f32 %v6627, %v6628
        %v6630 = vrot.slane %v6629, 1
        %v6631 = vadd.f32 %v6629, %v6630
        %v6632 = vadd.f32 %v6580, %v6588
        %v6633 = vrot.slane %v6632, 4
        %v6634 = vadd.f32 %v6632, %v6633
        %v6635 = vrot.slane %v6634, 2
        %v6636 = vadd.f32 %v6634, %v6635
        %v6637 = vrot.slane %v6636, 1
        %v6638 = vadd.f32 %v6636, %v6637
        %v6639 = vadd.f32 %v6581, %v6589
        %v6640 = vrot.slane %v6639, 4
        %v6641 = vadd.f32 %v6639, %v6640
        %v6642 = vrot.slane %v6641, 2
        %v6643 = vadd.f32 %v6641, %v6642
        %v6644 = vrot.slane %v6643, 1
        %v6645 = vadd.f32 %v6643, %v6644
        %v6646 = vmul.f32 %v2486, %v6558
        %v6647 = vmul.f32 %v3044, %v6559
        %v6648 = vmul.f32 %v3602, %v6560
        %v6649 = vmul.f32 %v4160, %v6561
        %v6650 = vmul.f32 %v4718, %v6562
        %v6651 = vmul.f32 %v5276, %v6563
        %v6652 = vmul.f32 %v5834, %v6564
        %v6653 = vmul.f32 %v6392, %v6565
        %v6654 = vmul.f32 %v2490, %v6566
        %v6655 = vmul.f32 %v3048, %v6567
        %v6656 = vmul.f32 %v3606, %v6568
        %v6657 = vmul.f32 %v4164, %v6569
        %v6658 = vmul.f32 %v4722, %v6570
        %v6659 = vmul.f32 %v5280, %v6571
        %v6660 = vmul.f32 %v5838, %v6572
        %v6661 = vmul.f32 %v6396, %v6573
        %v6662 = vadd.f32 %v6646, %v6654
        %v6663 = vrot.slane %v6662, 4
        %v6664 = vadd.f32 %v6662, %v6663
        %v6665 = vrot.slane %v6664, 2
        %v6666 = vadd.f32 %v6664, %v6665
        %v6667 = vrot.slane %v6666, 1
        %v6668 = vadd.f32 %v6666, %v6667
        %v6669 = vadd.f32 %v6647, %v6655
        %v6670 = vrot.slane %v6669, 4
        %v6671 = vadd.f32 %v6669, %v6670
        %v6672 = vrot.slane %v6671, 2
        %v6673 = vadd.f32 %v6671, %v6672
        %v6674 = vrot.slane %v6673, 1
        %v6675 = vadd.f32 %v6673, %v6674
        %v6676 = vadd.f32 %v6648, %v6656
        %v6677 = vrot.slane %v6676, 4
        %v6678 = vadd.f32 %v6676, %v6677
        %v6679 = vrot.slane %v6678, 2
        %v6680 = vadd.f32 %v6678, %v6679
        %v6681 = vrot.slane %v6680, 1
        %v6682 = vadd.f32 %v6680, %v6681
        %v6683 = vadd.f32 %v6649, %v6657
        %v6684 = vrot.slane %v6683, 4
        %v6685 = vadd.f32 %v6683, %v6684
        %v6686 = vrot.slane %v6685, 2
        %v6687 = vadd.f32 %v6685, %v6686
        %v6688 = vrot.slane %v6687, 1
        %v6689 = vadd.f32 %v6687, %v6688
        %v6690 = vadd.f32 %v6650, %v6658
        %v6691 = vrot.slane %v6690, 4
        %v6692 = vadd.f32 %v6690, %v6691
        %v6693 = vrot.slane %v6692, 2
        %v6694 = vadd.f32 %v6692, %v6693
        %v6695 = vrot.slane %v6694, 1
        %v6696 = vadd.f32 %v6694, %v6695
        %v6697 = vadd.f32 %v6651, %v6659
        %v6698 = vrot.slane %v6697, 4
        %v6699 = vadd.f32 %v6697, %v6698
        %v6700 = vrot.slane %v6699, 2
        %v6701 = vadd.f32 %v6699, %v6700
        %v6702 = vrot.slane %v6701, 1
        %v6703 = vadd.f32 %v6701, %v6702
        %v6704 = vadd.f32 %v6652, %v6660
        %v6705 = vrot.slane %v6704, 4
        %v6706 = vadd.f32 %v6704, %v6705
        %v6707 = vrot.slane %v6706, 2
        %v6708 = vadd.f32 %v6706, %v6707
        %v6709 = vrot.slane %v6708, 1
        %v6710 = vadd.f32 %v6708, %v6709
        %v6711 = vadd.f32 %v6653, %v6661
        %v6712 = vrot.slane %v6711, 4
        %v6713 = vadd.f32 %v6711, %v6712
        %v6714 = vrot.slane %v6713, 2
        %v6715 = vadd.f32 %v6713, %v6714
        %v6716 = vrot.slane %v6715, 1
        %v6717 = vadd.f32 %v6715, %v6716
        %v6718 = vmul.f32 %v2494, %v6558
        %v6719 = vmul.f32 %v3052, %v6559
        %v6720 = vmul.f32 %v3610, %v6560
        %v6721 = vmul.f32 %v4168, %v6561
        %v6722 = vmul.f32 %v4726, %v6562
        %v6723 = vmul.f32 %v5284, %v6563
        %v6724 = vmul.f32 %v5842, %v6564
        %v6725 = vmul.f32 %v6400, %v6565
        %v6726 = vmul.f32 %v2498, %v6566
        %v6727 = vmul.f32 %v3056, %v6567
        %v6728 = vmul.f32 %v3614, %v6568
        %v6729 = vmul.f32 %v4172, %v6569
        %v6730 = vmul.f32 %v4730, %v6570
        %v6731 = vmul.f32 %v5288, %v6571
        %v6732 = vmul.f32 %v5846, %v6572
        %v6733 = vmul.f32 %v6404, %v6573
        %v6734 = vadd.f32 %v6718, %v6726
        %v6735 = vrot.slane %v6734, 4
        %v6736 = vadd.f32 %v6734, %v6735
        %v6737 = vrot.slane %v6736, 2
        %v6738 = vadd.f32 %v6736, %v6737
        %v6739 = vrot.slane %v6738, 1
        %v6740 = vadd.f32 %v6738, %v6739
        %v6741 = vadd.f32 %v6719, %v6727
        %v6742 = vrot.slane %v6741, 4
        %v6743 = vadd.f32 %v6741, %v6742
        %v6744 = vrot.slane %v6743, 2
        %v6745 = vadd.f32 %v6743, %v6744
        %v6746 = vrot.slane %v6745, 1
        %v6747 = vadd.f32 %v6745, %v6746
        %v6748 = vadd.f32 %v6720, %v6728
        %v6749 = vrot.slane %v6748, 4
        %v6750 = vadd.f32 %v6748, %v6749
        %v6751 = vrot.slane %v6750, 2
        %v6752 = vadd.f32 %v6750, %v6751
        %v6753 = vrot.slane %v6752, 1
        %v6754 = vadd.f32 %v6752, %v6753
        %v6755 = vadd.f32 %v6721, %v6729
        %v6756 = vrot.slane %v6755, 4
        %v6757 = vadd.f32 %v6755, %v6756
        %v6758 = vrot.slane %v6757, 2
        %v6759 = vadd.f32 %v6757, %v6758
        %v6760 = vrot.slane %v6759, 1
        %v6761 = vadd.f32 %v6759, %v6760
        %v6762 = vadd.f32 %v6722, %v6730
        %v6763 = vrot.slane %v6762, 4
        %v6764 = vadd.f32 %v6762, %v6763
        %v6765 = vrot.slane %v6764, 2
        %v6766 = vadd.f32 %v6764, %v6765
        %v6767 = vrot.slane %v6766, 1
        %v6768 = vadd.f32 %v6766, %v6767
        %v6769 = vadd.f32 %v6723, %v6731
        %v6770 = vrot.slane %v6769, 4
        %v6771 = vadd.f32 %v6769, %v6770
        %v6772 = vrot.slane %v6771, 2
        %v6773 = vadd.f32 %v6771, %v6772
        %v6774 = vrot.slane %v6773, 1
        %v6775 = vadd.f32 %v6773, %v6774
        %v6776 = vadd.f32 %v6724, %v6732
        %v6777 = vrot.slane %v6776, 4
        %v6778 = vadd.f32 %v6776, %v6777
        %v6779 = vrot.slane %v6778, 2
        %v6780 = vadd.f32 %v6778, %v6779
        %v6781 = vrot.slane %v6780, 1
        %v6782 = vadd.f32 %v6780, %v6781
        %v6783 = vadd.f32 %v6725, %v6733
        %v6784 = vrot.slane %v6783, 4
        %v6785 = vadd.f32 %v6783, %v6784
        %v6786 = vrot.slane %v6785, 2
        %v6787 = vadd.f32 %v6785, %v6786
        %v6788 = vrot.slane %v6787, 1
        %v6789 = vadd.f32 %v6787, %v6788
        %v6790 = vmul.f32 %v2502, %v6558
        %v6791 = vmul.f32 %v3060, %v6559
        %v6792 = vmul.f32 %v3618, %v6560
        %v6793 = vmul.f32 %v4176, %v6561
        %v6794 = vmul.f32 %v4734, %v6562
        %v6795 = vmul.f32 %v5292, %v6563
        %v6796 = vmul.f32 %v5850, %v6564
        %v6797 = vmul.f32 %v6408, %v6565
        %v6798 = vmul.f32 %v2506, %v6566
        %v6799 = vmul.f32 %v3064, %v6567
        %v6800 = vmul.f32 %v3622, %v6568
        %v6801 = vmul.f32 %v4180, %v6569
        %v6802 = vmul.f32 %v4738, %v6570
        %v6803 = vmul.f32 %v5296, %v6571
        %v6804 = vmul.f32 %v5854, %v6572
        %v6805 = vmul.f32 %v6412, %v6573
        %v6806 = vadd.f32 %v6790, %v6798
        %v6807 = vrot.slane %v6806, 4
        %v6808 = vadd.f32 %v6806, %v6807
        %v6809 = vrot.slane %v6808, 2
        %v6810 = vadd.f32 %v6808, %v6809
        %v6811 = vrot.slane %v6810, 1
        %v6812 = vadd.f32 %v6810, %v6811
        %v6813 = vadd.f32 %v6791, %v6799
        %v6814 = vrot.slane %v6813, 4
        %v6815 = vadd.f32 %v6813, %v6814
        %v6816 = vrot.slane %v6815, 2
        %v6817 = vadd.f32 %v6815, %v6816
        %v6818 = vrot.slane %v6817, 1
        %v6819 = vadd.f32 %v6817, %v6818
        %v6820 = vadd.f32 %v6792, %v6800
        %v6821 = vrot.slane %v6820, 4
        %v6822 = vadd.f32 %v6820, %v6821
        %v6823 = vrot.slane %v6822, 2
        %v6824 = vadd.f32 %v6822, %v6823
        %v6825 = vrot.slane %v6824, 1
        %v6826 = vadd.f32 %v6824, %v6825
        %v6827 = vadd.f32 %v6793, %v6801
        %v6828 = vrot.slane %v6827, 4
        %v6829 = vadd.f32 %v6827, %v6828
        %v6830 = vrot.slane %v6829, 2
        %v6831 = vadd.f32 %v6829, %v6830
        %v6832 = vrot.slane %v6831, 1
        %v6833 = vadd.f32 %v6831, %v6832
        %v6834 = vadd.f32 %v6794, %v6802
        %v6835 = vrot.slane %v6834, 4
        %v6836 = vadd.f32 %v6834, %v6835
        %v6837 = vrot.slane %v6836, 2
        %v6838 = vadd.f32 %v6836, %v6837
        %v6839 = vrot.slane %v6838, 1
        %v6840 = vadd.f32 %v6838, %v6839
        %v6841 = vadd.f32 %v6795, %v6803
        %v6842 = vrot.slane %v6841, 4
        %v6843 = vadd.f32 %v6841, %v6842
        %v6844 = vrot.slane %v6843, 2
        %v6845 = vadd.f32 %v6843, %v6844
        %v6846 = vrot.slane %v6845, 1
        %v6847 = vadd.f32 %v6845, %v6846
        %v6848 = vadd.f32 %v6796, %v6804
        %v6849 = vrot.slane %v6848, 4
        %v6850 = vadd.f32 %v6848, %v6849
        %v6851 = vrot.slane %v6850, 2
        %v6852 = vadd.f32 %v6850, %v6851
        %v6853 = vrot.slane %v6852, 1
        %v6854 = vadd.f32 %v6852, %v6853
        %v6855 = vadd.f32 %v6797, %v6805
        %v6856 = vrot.slane %v6855, 4
        %v6857 = vadd.f32 %v6855, %v6856
        %v6858 = vrot.slane %v6857, 2
        %v6859 = vadd.f32 %v6857, %v6858
        %v6860 = vrot.slane %v6859, 1
        %v6861 = vadd.f32 %v6859, %v6860
        %vm6862 = vcmp.gt.f32.partialorder %v6596, 0.0
        %vm6863 = vcmp.gt.f32.partialorder %v6603, 0.0
        %vm6864 = vcmp.gt.f32.partialorder %v6610, 0.0
        %vm6865 = vcmp.gt.f32.partialorder %v6617, 0.0
        %vm6866 = vcmp.gt.f32.partialorder %v6624, 0.0
        %vm6867 = vcmp.gt.f32.partialorder %v6631, 0.0
        %vm6868 = vcmp.gt.f32.partialorder %v6638, 0.0
        %vm6869 = vcmp.gt.f32.partialorder %v6645, 0.0
        %v6870 = vmul.f32 %v6596, 1.442695
        %v6871 = vpow.pop %v6870
        %v6872 = vmul.f32 %v6603, 1.442695
        %v6873 = vpow.pop %v6872
        %v6874 = vmul.f32 %v6610, 1.442695
        %v6875 = vpow.pop %v6874
        %v6876 = vmul.f32 %v6617, 1.442695
        %v6877 = vpow.pop %v6876
        %v6878 = vmul.f32 %v6624, 1.442695
        %v6879 = vpow.pop %v6878
        %v6880 = vmul.f32 %v6631, 1.442695
        %v6881 = vpow.pop %v6880
        %v6882 = vmul.f32 %v6638, 1.442695
        %v6883 = vpow.pop %v6882
        %v6884 = vmul.f32 %v6645, 1.442695
        %v6885 = vpow.pop %v6884
        %v6886 = vsub.f32 %v6871, 1.0
        %v6887 = vsub.f32 %v6873, 1.0
        %v6888 = vsub.f32 %v6875, 1.0
        %v6889 = vsub.f32 %v6877, 1.0
        %v6890 = vsub.f32 %v6879, 1.0
        %v6891 = vsub.f32 %v6881, 1.0
        %v6892 = vsub.f32 %v6883, 1.0
        %v6893 = vsub.f32 %v6885, 1.0
        %v6894 = vsel %vm6862, %v6596, %v6886
        %v6895 = vsel %vm6863, %v6603, %v6887
        %v6896 = vsel %vm6864, %v6610, %v6888
        %v6897 = vsel %vm6865, %v6617, %v6889
        %v6898 = vsel %vm6866, %v6624, %v6890
        %v6899 = vsel %vm6867, %v6631, %v6891
        %v6900 = vsel %vm6868, %v6638, %v6892
        %v6901 = vsel %vm6869, %v6645, %v6893
        %v6902 = vtanh.pop %v6668
        %v6903 = vtanh.pop %v6675
        %v6904 = vtanh.pop %v6682
        %v6905 = vtanh.pop %v6689
        %v6906 = vtanh.pop %v6696
        %v6907 = vtanh.pop %v6703
        %v6908 = vtanh.pop %v6710
        %v6909 = vtanh.pop %v6717
        %v6910 = vsub.f32 %v6902, 1.0
        %v6911 = vsub.f32 %v6903, 1.0
        %v6912 = vsub.f32 %v6904, 1.0
        %v6913 = vsub.f32 %v6905, 1.0
        %v6914 = vsub.f32 %v6906, 1.0
        %v6915 = vsub.f32 %v6907, 1.0
        %v6916 = vsub.f32 %v6908, 1.0
        %v6917 = vsub.f32 %v6909, 1.0
        %v6918 = vtanh.pop %v6740
        %v6919 = vtanh.pop %v6747
        %v6920 = vtanh.pop %v6754
        %v6921 = vtanh.pop %v6761
        %v6922 = vtanh.pop %v6768
        %v6923 = vtanh.pop %v6775
        %v6924 = vtanh.pop %v6782
        %v6925 = vtanh.pop %v6789
        %v6926 = vtanh.pop %v6812
        %v6927 = vtanh.pop %v6819
        %v6928 = vtanh.pop %v6826
        %v6929 = vtanh.pop %v6833
        %v6930 = vtanh.pop %v6840
        %v6931 = vtanh.pop %v6847
        %v6932 = vtanh.pop %v6854
        %v6933 = vtanh.pop %v6861
        %v6934 = vmul.f32 %v6910, %v6910
        %v6935 = vmul.f32 %v6911, %v6911
        %v6936 = vmul.f32 %v6912, %v6912
        %v6937 = vmul.f32 %v6913, %v6913
        %v6938 = vmul.f32 %v6914, %v6914
        %v6939 = vmul.f32 %v6915, %v6915
        %v6940 = vmul.f32 %v6916, %v6916
        %v6941 = vmul.f32 %v6917, %v6917
        %v6942 = vmul.f32 %v6918, %v6918
        %v6943 = vmul.f32 %v6919, %v6919
        %v6944 = vmul.f32 %v6920, %v6920
        %v6945 = vmul.f32 %v6921, %v6921
        %v6946 = vmul.f32 %v6922, %v6922
        %v6947 = vmul.f32 %v6923, %v6923
        %v6948 = vmul.f32 %v6924, %v6924
        %v6949 = vmul.f32 %v6925, %v6925
        %v6950 = vadd.f32 %v6934, %v6942
        %v6951 = vadd.f32 %v6935, %v6943
        %v6952 = vadd.f32 %v6936, %v6944
        %v6953 = vadd.f32 %v6937, %v6945
        %v6954 = vadd.f32 %v6938, %v6946
        %v6955 = vadd.f32 %v6939, %v6947
        %v6956 = vadd.f32 %v6940, %v6948
        %v6957 = vadd.f32 %v6941, %v6949
        %v6958 = vmul.f32 %v6926, %v6926
        %v6959 = vmul.f32 %v6927, %v6927
        %v6960 = vmul.f32 %v6928, %v6928
        %v6961 = vmul.f32 %v6929, %v6929
        %v6962 = vmul.f32 %v6930, %v6930
        %v6963 = vmul.f32 %v6931, %v6931
        %v6964 = vmul.f32 %v6932, %v6932
        %v6965 = vmul.f32 %v6933, %v6933
        %v6966 = vadd.f32 %v6950, %v6958
        %v6967 = vadd.f32 %v6951, %v6959
        %v6968 = vadd.f32 %v6952, %v6960
        %v6969 = vadd.f32 %v6953, %v6961
        %v6970 = vadd.f32 %v6954, %v6962
        %v6971 = vadd.f32 %v6955, %v6963
        %v6972 = vadd.f32 %v6956, %v6964
        %v6973 = vadd.f32 %v6957, %v6965
        %v6974 = vmax.f32 %v6966, 1e-24
        %v6975 = vmax.f32 %v6967, 1e-24
        %v6976 = vmax.f32 %v6968, 1e-24
        %v6977 = vmax.f32 %v6969, 1e-24
        %v6978 = vmax.f32 %v6970, 1e-24
        %v6979 = vmax.f32 %v6971, 1e-24
        %v6980 = vmax.f32 %v6972, 1e-24
        %v6981 = vmax.f32 %v6973, 1e-24
        %v6982 = vrsqrt.pop %v6974
        %v6983 = vmul.f32 %v6982, %v6974
        %v6984 = vmul.f32 %v6983, %v6982
        %v6985 = vmul.f32 0.5, %v6984
        %v6986 = vsub.f32 1.5, %v6985
        %v6987 = vmul.f32 %v6982, %v6986
        %vm6988 = vweird.f32 %v6974
        %vm6989 = vweird.f32 %v6982
        %vm6990 = vmor %vm6988, %vm6989
        %v6991 = vsel %vm6990, %v6982, %v6987
        %v6992 = vrsqrt.pop %v6975
        %v6993 = vmul.f32 %v6992, %v6975
        %v6994 = vmul.f32 %v6993, %v6992
        %v6995 = vmul.f32 0.5, %v6994
        %v6996 = vsub.f32 1.5, %v6995
        %v6997 = vmul.f32 %v6992, %v6996
        %vm6998 = vweird.f32 %v6975
        %vm6999 = vweird.f32 %v6992
        %vm7000 = vmor %vm6998, %vm6999
        %v7001 = vsel %vm7000, %v6992, %v6997
        %v7002 = vrsqrt.pop %v6976
        %v7003 = vmul.f32 %v7002, %v6976
        %v7004 = vmul.f32 %v7003, %v7002
        %v7005 = vmul.f32 0.5, %v7004
        %v7006 = vsub.f32 1.5, %v7005
        %v7007 = vmul.f32 %v7002, %v7006
        %vm7008 = vweird.f32 %v6976
        %vm7009 = vweird.f32 %v7002
        %vm7010 = vmor %vm7008, %vm7009
        %v7011 = vsel %vm7010, %v7002, %v7007
        %v7012 = vrsqrt.pop %v6977
        %v7013 = vmul.f32 %v7012, %v6977
        %v7014 = vmul.f32 %v7013, %v7012
        %v7015 = vmul.f32 0.5, %v7014
        %v7016 = vsub.f32 1.5, %v7015
        %v7017 = vmul.f32 %v7012, %v7016
        %vm7018 = vweird.f32 %v6977
        %vm7019 = vweird.f32 %v7012
        %vm7020 = vmor %vm7018, %vm7019
        %v7021 = vsel %vm7020, %v7012, %v7017
        %v7022 = vrsqrt.pop %v6978
        %v7023 = vmul.f32 %v7022, %v6978
        %v7024 = vmul.f32 %v7023, %v7022
        %v7025 = vmul.f32 0.5, %v7024
        %v7026 = vsub.f32 1.5, %v7025
        %v7027 = vmul.f32 %v7022, %v7026
        %vm7028 = vweird.f32 %v6978
        %vm7029 = vweird.f32 %v7022
        %vm7030 = vmor %vm7028, %vm7029
        %v7031 = vsel %vm7030, %v7022, %v7027
        %v7032 = vrsqrt.pop %v6979
        %v7033 = vmul.f32 %v7032, %v6979
        %v7034 = vmul.f32 %v7033, %v7032
        %v7035 = vmul.f32 0.5, %v7034
        %v7036 = vsub.f32 1.5, %v7035
        %v7037 = vmul.f32 %v7032, %v7036
        %vm7038 = vweird.f32 %v6979
        %vm7039 = vweird.f32 %v7032
        %vm7040 = vmor %vm7038, %vm7039
        %v7041 = vsel %vm7040, %v7032, %v7037
        %v7042 = vrsqrt.pop %v6980
        %v7043 = vmul.f32 %v7042, %v6980
        %v7044 = vmul.f32 %v7043, %v7042
        %v7045 = vmul.f32 0.5, %v7044
        %v7046 = vsub.f32 1.5, %v7045
        %v7047 = vmul.f32 %v7042, %v7046
        %vm7048 = vweird.f32 %v6980
        %vm7049 = vweird.f32 %v7042
        %vm7050 = vmor %vm7048, %vm7049
        %v7051 = vsel %vm7050, %v7042, %v7047
        %v7052 = vrsqrt.pop %v6981
        %v7053 = vmul.f32 %v7052, %v6981
        %v7054 = vmul.f32 %v7053, %v7052
        %v7055 = vmul.f32 0.5, %v7054
        %v7056 = vsub.f32 1.5, %v7055
        %v7057 = vmul.f32 %v7052, %v7056
        %vm7058 = vweird.f32 %v6981
        %vm7059 = vweird.f32 %v7052
        %vm7060 = vmor %vm7058, %vm7059
        %v7061 = vsel %vm7060, %v7052, %v7057
        %v7070 = vrot.slane %v6895, 7
        %v7071 = vrot.slane %v6896, 6
        %v7072 = vrot.slane %v6897, 5
        %v7073 = vrot.slane %v6898, 4
        %v7074 = vrot.slane %v6899, 3
        %v7075 = vrot.slane %v6900, 2
        %v7076 = vrot.slane %v6901, 1
        %vm7077 = vcmask 1040384
        %v7078 = vsel %vm7077, %v6894, %v7070
        %vm7079 = vcmask 1042434
        %v7080 = vsel %vm7079, %v7071, %v7072
        %vm7081 = vcmask 1041408
        %v7082 = vsel %vm7081, %v7078, %v7080
        %vm7083 = vcmask 1044484
        %v7084 = vsel %vm7083, %v7073, %v7074
        %vm7085 = vcmask 1046534
        %v7086 = vsel %vm7085, %v7075, %v7076
        %vm7087 = vcmask 1045508
        %v7088 = vsel %vm7087, %v7084, %v7086
        %vm7089 = vcmask 1043456
        %v7090 = vsel %vm7089, %v7082, %v7088
        %7092 = vst [vmem:[%s178] ss:$4 sm:$0xff] %v7090
        %v7093 = vmul.f32 %v6910, %v6991
        %v7094 = vmul.f32 %v6911, %v7001
        %v7095 = vmul.f32 %v6912, %v7011
        %v7096 = vmul.f32 %v6913, %v7021
        %v7097 = vmul.f32 %v6914, %v7031
        %v7098 = vmul.f32 %v6915, %v7041
        %v7099 = vmul.f32 %v6916, %v7051
        %v7100 = vmul.f32 %v6917, %v7061
        %v7109 = vrot.slane %v7094, 7
        %v7110 = vrot.slane %v7095, 6
        %v7111 = vrot.slane %v7096, 5
        %v7112 = vrot.slane %v7097, 4
        %v7113 = vrot.slane %v7098, 3
        %v7114 = vrot.slane %v7099, 2
        %v7115 = vrot.slane %v7100, 1
        %v7116 = vsel %vm7077, %v7093, %v7109
        %v7117 = vsel %vm7079, %v7110, %v7111
        %v7118 = vsel %vm7081, %v7116, %v7117
        %v7119 = vsel %vm7083, %v7112, %v7113
        %v7120 = vsel %vm7085, %v7114, %v7115
        %v7121 = vsel %vm7087, %v7119, %v7120
        %v7122 = vsel %vm7089, %v7118, %v7121
        %s7124 = scalar_lea.vmem %s178, 1 [#allocation7]
        %7125 = vst [vmem:[%s7124] ss:$4 sm:$0xff] %v7122
        %v7126 = vmul.f32 %v6918, %v6991
        %v7127 = vmul.f32 %v6919, %v7001
        %v7128 = vmul.f32 %v6920, %v7011
        %v7129 = vmul.f32 %v6921, %v7021
        %v7130 = vmul.f32 %v6922, %v7031
        %v7131 = vmul.f32 %v6923, %v7041
        %v7132 = vmul.f32 %v6924, %v7051
        %v7133 = vmul.f32 %v6925, %v7061
        %v7142 = vrot.slane %v7127, 7
        %v7143 = vrot.slane %v7128, 6
        %v7144 = vrot.slane %v7129, 5
        %v7145 = vrot.slane %v7130, 4
        %v7146 = vrot.slane %v7131, 3
        %v7147 = vrot.slane %v7132, 2
        %v7148 = vrot.slane %v7133, 1
        %v7149 = vsel %vm7077, %v7126, %v7142
        %v7150 = vsel %vm7079, %v7143, %v7144
        %v7151 = vsel %vm7081, %v7149, %v7150
        %v7152 = vsel %vm7083, %v7145, %v7146
        %v7153 = vsel %vm7085, %v7147, %v7148
        %v7154 = vsel %vm7087, %v7152, %v7153
        %v7155 = vsel %vm7089, %v7151, %v7154
        %s7157 = scalar_lea.vmem %s178, 2 [#allocation7]
        %7158 = vst [vmem:[%s7157] ss:$4 sm:$0xff] %v7155
        %v7159 = vmul.f32 %v6926, %v6991
        %v7160 = vmul.f32 %v6927, %v7001
        %v7161 = vmul.f32 %v6928, %v7011
        %v7162 = vmul.f32 %v6929, %v7021
        %v7163 = vmul.f32 %v6930, %v7031
        %v7164 = vmul.f32 %v6931, %v7041
        %v7165 = vmul.f32 %v6932, %v7051
        %v7166 = vmul.f32 %v6933, %v7061
        %v7175 = vrot.slane %v7160, 7
        %v7176 = vrot.slane %v7161, 6
        %v7177 = vrot.slane %v7162, 5
        %v7178 = vrot.slane %v7163, 4
        %v7179 = vrot.slane %v7164, 3
        %v7180 = vrot.slane %v7165, 2
        %v7181 = vrot.slane %v7166, 1
        %v7182 = vsel %vm7077, %v7159, %v7175
        %v7183 = vsel %vm7079, %v7176, %v7177
        %v7184 = vsel %vm7081, %v7182, %v7183
        %v7185 = vsel %vm7083, %v7178, %v7179
        %v7186 = vsel %vm7085, %v7180, %v7181
        %v7187 = vsel %vm7087, %v7185, %v7186
        %v7188 = vsel %vm7089, %v7184, %v7187
        %s7190 = scalar_lea.vmem %s178, 3 [#allocation7]
        %7191 = vst [vmem:[%s7190] ss:$4 sm:$0xff] %v7188
        %s7192 = sand.u32 %s75, 1
        %s7193 = scalar_lea.sflag [#allocation4], %s7192
        %s7194 = sand.u32 %s75, 1
        %s7195 = smul.addr %s7194, 32
        %s7196 = scalar_lea.vmem [#allocation7], %s7195
        // Predicated region
        $region37: #{tpu_custom_call.1} parent=27 // pred_check
          %p7197 = pneg %p85
        $region38: #{tpu_custom_call.1} parent=27 // pred_check_branch
          %7199 = sbr.rel (%p7197) target = $region40
        $region39: #{tpu_custom_call.1} parent=27 // pred_region
          %s7200 = smul.u32 8, %s20
          %7202 = vsyncadd %s7193, 0
          %s7203 = smul.addr %s7200, 4
          %s7204 = scalar_lea.hbm %s2, %s7203
          %s7206 = sshll.u32 %s7196, 4
          %s7207 = int_to_ptr.vmem [resolvable:$true] %s7206
          %s7208 = sshll.u32 %s7204, 4
          %s7209 = int_to_ptr.hbm [resolvable:$true] %s7208
          %7211 = dma.vmem_to_hbm [thread:$0]  %s7207, 512, %s7209, %s7193
        $region40: #{tpu_custom_call.1} parent=27 // pred_fallthru
          _
      $region28: #{tpu_custom_call.1} parent=5 // pred_fallthru
        _
      %p7212 = scmp.le.s32.totalorder 2, %s15
      // Predicated region
      $region41: #{tpu_custom_call.1} parent=5 // pred_check
        %p7213 = pneg %p7212
      $region42: #{tpu_custom_call.1} parent=5 // pred_check_branch
        %7215 = sbr.rel (%p7213) target = $region44
      $region43: #{tpu_custom_call.1} parent=5 // pred_region
        %s7216 = ssub.s32 %s15, 2
        // Predicated region
        $region45: #{tpu_custom_call.1} parent=43 // pred_check
          %p7217 = pneg %p91
        $region46: #{tpu_custom_call.1} parent=43 // pred_check_branch
          %7219 = sbr.rel (%p7217) target = $region48
        $region47: #{tpu_custom_call.1} parent=43 // pred_region
          %s7220 = sand.u32 %s76, 1
          %s7221 = scalar_lea.sflag [#allocation4], %s7220
          %s7222 = sand.u32 %s76, 1
          %s7223 = smul.addr %s7222, 32
          %s7224 = scalar_lea.vmem [#allocation7], %s7223
          %7226 = dma.done %s7221, 512
        $region48: #{tpu_custom_call.1} parent=43 // pred_fallthru
          _
      $region44: #{tpu_custom_call.1} parent=5 // pred_fallthru
        _
    $region6: #{tpu_custom_call.1} parent=1 // loop_footer
      %s19 = sadd.s32 1, %s15
    $region7: #{tpu_custom_call.1} parent=1 // loop_footer_branch
      %14 = sbr.rel target = $region3
    $region8: #{tpu_custom_call.1} parent=1 // loop_exit
      _
    %7227 = vsyncpa [#allocation3], 1
    %s7228 = scalar_lea.sflag [#allocation3], 1
    %7229 = vsyncpa %s7228, 1
    %7230 = vsyncpa [#allocation6], 1
    %7231 = vsyncpa [#allocation4], 1
    %s7232 = scalar_lea.sflag [#allocation4], 1
    %7233 = vsyncpa %s7232, 1

</llo_original>
